<compile_context>
chip_gen: v6e
topology: v6e:2x2x1
jax: 0.10.0
libtpu: 0.0.40
codegen_flags: <defaults>
</compile_context>

<pallas_src>
import functools

import jax
import jax.numpy as jnp
from jax import lax
from jax.experimental import pallas as pl
from jax.experimental.pallas import tpu as pltpu


_PAR = pltpu.CompilerParams(dimension_semantics=("parallel",))


# ----------------------------------------------------------------------------------
# In-kernel helpers
# ----------------------------------------------------------------------------------
def _knn_scores(x):
    """Per-row kNN score matrix for features x (N, C).

    score[i, j] = |x_j|^2 - 2 <x_i, x_j>  ==  ||x_i - x_j||^2 - |x_i|^2.
    The row-constant |x_i|^2 term is dropped: it does not affect the per-row argmin
    (neighbor selection) and dropping it avoids a sublane->lane relayout of the norms.
    """
    n, c = x.shape
    g = lax.dot_general(x, x, (((1,), (1,)), ((), ())),
                        preferred_element_type=jnp.float32)               # (N, N) gram
    y = x * x
    sq_row = lax.dot_general(jnp.ones((1, c), jnp.float32), y,
                             (((1,), (1,)), ((), ())),
                             preferred_element_type=jnp.float32)          # (1, N) |x_j|^2
    return sq_row - 2.0 * g


def _argmin_onehot(d, col, n):
    """Boolean one-hot (N, N): per-row argmin of d (first index on ties)."""
    rmin = jnp.min(d, axis=1, keepdims=True)
    amin = jnp.min(jnp.where(d == rmin, col, n), axis=1, keepdims=True)
    return col == amin


# ----------------------------------------------------------------------------------
# Kernels
# ----------------------------------------------------------------------------------
def stats_kernel(pos_ref, w_ref, b_ref, stats_ref, *, k):
    """Per graph: kNN + EdgeConv Linear(2*3,64); emit BatchNorm partial sums only.

    stats_ref[0, 0, :] = sum over the K*N edge messages, stats_ref[0, 1, :] = sum of
    squares.  The per-edge messages themselves are recomputed in the main kernel.
    """
    x = pos_ref[0]                                                        # (N, 3)
    n, c = x.shape

    d = _knn_scores(x)
    col = lax.broadcasted_iota(jnp.int32, (n, n), 1)

    wa = w_ref[:c, :]                                                     # x_i part
    wb = w_ref[c:, :]                                                     # (x_j - x_i) part
    # x_i term hoisted out of the edge axis: one (N,3)@(3,64) matmul, not (N*K,3).
    hi = jnp.dot(x, wa, preferred_element_type=jnp.float32) + b_ref[...]  # (N, 64)

    s = None
    ss = None
    for t in range(k):                                                    # static unroll (k small)
        sel = _argmin_onehot(d, col, n)
        onehot = sel.astype(jnp.float32)                                  # (N, N) one-hot
        xj = jnp.dot(onehot, x, preferred_element_type=jnp.float32)       # neighbor gather
        h_t = hi + jnp.dot(xj - x, wb, preferred_element_type=jnp.float32)
        st = jnp.sum(h_t, axis=0, keepdims=True)
        sst = jnp.sum(h_t * h_t, axis=0, keepdims=True)
        s = st if s is None else s + st
        ss = sst if ss is None else ss + sst
        d = jnp.where(sel, jnp.inf, d)                                    # mask selected

    stats_ref[0] = jnp.concatenate([s, ss], axis=0)                       # (2, 64)


def main_kernel(pos_ref, bn_ref,
                w1a_ref, b1a_ref, w1b_ref, b1b_ref,
                w2_ref, b2_ref, wl_ref, bl_ref,
                wm1_ref, bm1_ref, wm2_ref, bm2_ref,
                h_ref, c_ref, *, k):
    """Per graph, fully in VMEM:
         kNN(pos) -> EdgeConv1: Lin(6,64) -> BN-affine -> ReLU -> Lin(64,64) -> max  (f1)
         dynamic kNN on f1 -> EdgeConv2: Lin(2*64,128) -> max                        (f2)
         lm_head(cat[f1, f2]) -> global max pool over N                              (h)
         projection MLP([128,256,32], norm=None)                                     (compact h)
    """
    x = pos_ref[0]                                                        # (N, 3)
    n, c = x.shape
    scale = bn_ref[0, 0:1, :]                                             # (1, 64) gamma*invstd
    shift = bn_ref[0, 1:2, :]                                             # (1, 64) beta - mean*scale
    col = lax.broadcasted_iota(jnp.int32, (n, n), 1)

    # --- conv1: kNN on pos, full per-edge MLP, max over K (slab never materialized) ---
    d = _knn_scores(x)
    w1a = w1a_ref[:c, :]
    w1b = w1a_ref[c:, :]
    hi = jnp.dot(x, w1a, preferred_element_type=jnp.float32) + b1a_ref[...]   # (N, 64)
    f1 = None
    for t in range(k):
        sel = _argmin_onehot(d, col, n)
        onehot = sel.astype(jnp.float32)
        xj = jnp.dot(onehot, x, preferred_element_type=jnp.float32)       # (N, 3)
        h_t = hi + jnp.dot(xj - x, w1b, preferred_element_type=jnp.float32)
        hn = jnp.maximum(h_t * scale + shift, 0.0)                        # BN + ReLU
        h2 = jnp.dot(hn, w1b_ref[...], preferred_element_type=jnp.float32) + b1b_ref[...]
        f1 = h2 if f1 is None else jnp.maximum(f1, h2)
        d = jnp.where(sel, jnp.inf, d)
    # f1: (N, 64)

    # --- conv2: dynamic graph recomputed in 64-d feature space ---
    d2 = _knn_scores(f1)
    cf = f1.shape[-1]
    w2a = w2_ref[:cf, :]
    w2b = w2_ref[cf:, :]
    # x_i term (+ bias) is constant over the K neighbors -> hoist past the max.
    hi2 = jnp.dot(f1, w2a, preferred_element_type=jnp.float32) + b2_ref[...]  # (N, 128)
    he_max = None
    for t in range(k):
        sel = _argmin_onehot(d2, col, n)
        onehot = sel.astype(jnp.float32)
        xj = jnp.dot(onehot, f1, preferred_element_type=jnp.float32)      # (N, 64)
        he = jnp.dot(xj - f1, w2b, preferred_element_type=jnp.float32)    # (N, 128)
        he_max = he if he_max is None else jnp.maximum(he_max, he)
        d2 = jnp.where(sel, jnp.inf, d2)
    f2 = hi2 + he_max                                                     # (N, 128)

    # --- lm_head(cat([f1, f2], dim=1)) + global max pool over the N points ---
    wl = wl_ref[...]                                                      # (192, 128)
    hp_head = (jnp.dot(f1, wl[:cf, :], preferred_element_type=jnp.float32)
               + jnp.dot(f2, wl[cf:, :], preferred_element_type=jnp.float32)
               + bl_ref[...])                                             # (N, 128)
    hg = jnp.max(hp_head, axis=0, keepdims=True)                          # (1, 128)
    h_ref[0] = hg

    # --- projection MLP: Linear -> ReLU -> Linear ---
    hm = jnp.maximum(
        jnp.dot(hg, wm1_ref[...], preferred_element_type=jnp.float32) + bm1_ref[...], 0.0)
    c_ref[0] = jnp.dot(hm, wm2_ref[...], preferred_element_type=jnp.float32) + bm2_ref[...]


# ----------------------------------------------------------------------------------
# Wrappers (pallas_call glue)
# ----------------------------------------------------------------------------------
def forward_fused(pos2b, params, k):
    """Runs the full per-graph pipeline on a (2B, N, 3) batch (both views folded in)."""
    w1a, b1a, gamma, beta, w1b, b1b = params["conv1"]
    w2, b2 = params["conv2"]
    wl, bl = params["lm_head"]
    wm1, bm1, wm2, bm2 = params["mlp"]
    G, N, C = pos2b.shape
    B = G // 2

    # Pass 1: per-graph BatchNorm partial statistics (only (2,64) per graph hits HBM).
    stats = pl.pallas_call(
        functools.partial(stats_kernel, k=k),
        out_shape=jax.ShapeDtypeStruct((G, 2, 64), jnp.float32),
        grid=(G,),
        in_specs=[
            pl.BlockSpec((1, N, C), lambda g: (g, 0, 0)),
            pl.BlockSpec((2 * C, 64), lambda g: (0, 0)),
            pl.BlockSpec((1, 64), lambda g: (0, 0)),
        ],
        out_specs=pl.BlockSpec((1, 2, 64), lambda g: (g, 0, 0)),
        compiler_params=_PAR,
    )(pos2b, w1a, b1a)

    # Train-mode BatchNorm statistics: per VIEW (each conv1 forward in the PyTorch code
    # sees only its own view's edges).  Tiny (B,2,64) combine -> plain JAX; gamma/beta
    # are folded into a single (scale, shift) affine pair per view.
    cnt = jnp.float32(B * N * k)

    def view_affine(st):
        m = jnp.sum(st[:, 0, :], axis=0) / cnt                            # (64,)
        ms = jnp.sum(st[:, 1, :], axis=0) / cnt
        invstd = 1.0 / jnp.sqrt(ms - m * m + 1e-5)                        # biased variance
        sc = gamma[0] * invstd
        sh = beta[0] - m * sc
        return jnp.stack([sc, sh], axis=0)                                # (2, 64)

    bn_aff = jnp.concatenate(
        [jnp.broadcast_to(view_affine(stats[:B])[None], (B, 2, 64)),
         jnp.broadcast_to(view_affine(stats[B:])[None], (B, 2, 64))], axis=0)   # (G, 2, 64)

    # Pass 2: everything fused per graph.
    h, comp = pl.pallas_call(
        functools.partial(main_kernel, k=k),
        out_shape=(jax.ShapeDtypeStruct((G, 1, 128), jnp.float32),
                   jax.ShapeDtypeStruct((G, 1, 32), jnp.float32)),
        grid=(G,),
        in_specs=[
            pl.BlockSpec((1, N, C), lambda g: (g, 0, 0)),
            pl.BlockSpec((1, 2, 64), lambda g: (g, 0, 0)),
            pl.BlockSpec((2 * C, 64), lambda g: (0, 0)),
            pl.BlockSpec((1, 64), lambda g: (0, 0)),
            pl.BlockSpec((64, 64), lambda g: (0, 0)),
            pl.BlockSpec((1, 64), lambda g: (0, 0)),
            pl.BlockSpec((128, 128), lambda g: (0, 0)),
            pl.BlockSpec((1, 128), lambda g: (0, 0)),
            pl.BlockSpec((192, 128), lambda g: (0, 0)),
            pl.BlockSpec((1, 128), lambda g: (0, 0)),
            pl.BlockSpec((128, 256), lambda g: (0, 0)),
            pl.BlockSpec((1, 256), lambda g: (0, 0)),
            pl.BlockSpec((256, 32), lambda g: (0, 0)),
            pl.BlockSpec((1, 32), lambda g: (0, 0)),
        ],
        out_specs=(pl.BlockSpec((1, 1, 128), lambda g: (g, 0, 0)),
                   pl.BlockSpec((1, 1, 32), lambda g: (g, 0, 0))),
        compiler_params=_PAR,
    )(pos2b, bn_aff, w1a, b1a, w1b, b1b, w2, b2, wl, bl, wm1, bm1, wm2, bm2)

    return h[:, 0, :], comp[:, 0, :]


# ----------------------------------------------------------------------------------
# Augmentations (random glue in JAX): RandomJitter(0.03), RandomFlip(1), RandomShear(0.2)
# ----------------------------------------------------------------------------------
def augment(pos, key):
    kj, kf, ks = jax.random.split(key, 3)
    # per-point jitter in [-0.03, 0.03]
    pos = pos + jax.random.uniform(kj, pos.shape, minval=-0.03, maxval=0.03,
                                   dtype=pos.dtype)
    # flip axis 1 with probability 0.5 (applied to the whole batch object, as in the script)
    flip = jax.random.bernoulli(kf, 0.5)
    sign = jnp.ones((3,), pos.dtype).at[1].set(jnp.where(flip, -1.0, 1.0))
    pos = pos * sign
    # shear: identity + off-diagonal uniform(-0.2, 0.2)
    m = jax.random.uniform(ks, (3, 3), minval=-0.2, maxval=0.2, dtype=pos.dtype)
    shear = jnp.eye(3, dtype=pos.dtype) + m * (1.0 - jnp.eye(3, dtype=pos.dtype))
    return pos @ shear


# ----------------------------------------------------------------------------------
# Parameters (deterministic synthetic init, matching nn.Linear fan-in scaling)
# ----------------------------------------------------------------------------------
def dense_init(key, fan_in, fan_out):
    kw, kb = jax.random.split(key)
    lim = 1.0 / jnp.sqrt(jnp.float32(fan_in))
    w = jax.random.uniform(kw, (fan_in, fan_out), minval=-lim, maxval=lim,
                           dtype=jnp.float32)
    b = jax.random.uniform(kb, (1, fan_out), minval=-lim, maxval=lim,
                           dtype=jnp.float32)
    return w, b


def init_params(key):
    keys = jax.random.split(key, 6)
    w1a, b1a = dense_init(keys[0], 6, 64)          # conv1 MLP: Linear(2*3, 64)
    gamma = jnp.ones((1, 64), jnp.float32)         # BatchNorm1d(64) weight
    beta = jnp.zeros((1, 64), jnp.float32)         # BatchNorm1d(64) bias
    w1b, b1b = dense_init(keys[1], 64, 64)         # conv1 MLP: Linear(64, 64) (plain last)
    w2, b2 = dense_init(keys[2], 128, 128)         # conv2 MLP: Linear(2*64, 128)
    wl, bl = dense_init(keys[3], 192, 128)         # lm_head: Linear(128+64, 128)
    wm1, bm1 = dense_init(keys[4], 128, 256)       # mlp: Linear(128, 256)
    wm2, bm2 = dense_init(keys[5], 256, 32)        # mlp: Linear(256, 32)
    return dict(conv1=(w1a, b1a, gamma, beta, w1b, b1b),
                conv2=(w2, b2),
                lm_head=(wl, bl),
                mlp=(wm1, bm1, wm2, bm2))


# ----------------------------------------------------------------------------------
# Model.forward (train=True path)
# ----------------------------------------------------------------------------------
def model_forward(pos, key, params, k=8):
    k1, k2 = jax.random.split(key)
    pos_1 = augment(pos, k1)
    pos_2 = augment(pos, k2)
    # Fold both augmented views into one 2B-graph batch -> one set of kernel launches,
    # grid=(2B,) gives each TensorCore >=2 steps to pipeline.
    # NOTE: the PyTorch code passes batch_1 to conv2 for both views; with fixed-size
    # graphs the batch vectors are identical so this is equivalent.
    pos2b = jnp.concatenate([pos_1, pos_2], axis=0)
    h, comp = forward_fused(pos2b, params, k)
    B = pos.shape[0]
    return h[:B], h[B:], comp[:B], comp[B:]


if __name__ == "__main__":
    key = jax.random.PRNGKey(0)
    k_params, k_data, k_aug = jax.random.split(key, 3)

    B, N, K = 2, 32, 8          # small shapes: 2 graphs, 32 points each, k=8 neighbors
    params = init_params(k_params)
    pos = jax.random.normal(k_data, (B, N, 3), dtype=jnp.float32)

    fwd = jax.jit(functools.partial(model_forward, k=K))
    outs = fwd(pos, k_aug, params)
    outs = jax.block_until_ready(outs)

    h1, h2, c1, c2 = outs
    assert h1.shape == (B, 128) and h2.shape == (B, 128)
    assert c1.shape == (B, 32) and c2.shape == (B, 32)
    assert all(bool(jnp.all(jnp.isfinite(o))) for o in outs)
    print("KERNEL_OK")
</pallas_src>

<mosaic_0001>
module attributes {stable_mosaic.version = 11 : i64} {
  func.func @stats_kernel(%arg0: i32, %arg1: memref<1x32x3xf32, #tpu.memory_space<vmem>>, %arg2: memref<6x64xf32, #tpu.memory_space<vmem>>, %arg3: memref<1x64xf32, #tpu.memory_space<vmem>>, %arg4: memref<1x2x64xf32, #tpu.memory_space<vmem>>) attributes {dimension_semantics = [#tpu.dimension_semantics<parallel>], iteration_bounds = array<i64: 4>, scalar_prefetch = 0 : i64, scratch_operands = 0 : i64, tpu.core_type = #tpu.core_type<tc>, window_params = [{transform_indices = @transform_0, window_bounds = array<i64: 1, 32, 3>}, {pipeline_mode = #tpu.pipeline_mode<synchronous>, transform_indices = @transform_1, window_bounds = array<i64: 6, 64>}, {pipeline_mode = #tpu.pipeline_mode<synchronous>, transform_indices = @transform_2, window_bounds = array<i64: 1, 64>}, {transform_indices = @transform_3, window_bounds = array<i64: 1, 2, 64>}]} {
    %c0 = arith.constant 0 : index
    %c0_0 = arith.constant 0 : index
    %c0_1 = arith.constant 0 : index
    %0 = vector.load %arg1[%c0, %c0_0, %c0_1] : memref<1x32x3xf32, #tpu.memory_space<vmem>>, vector<1x32x3xf32>
    %1 = vector.shape_cast %0 : vector<1x32x3xf32> to vector<32x3xf32>
    %cst = arith.constant dense<0.000000e+00> : vector<32x32xf32>
    %2 = tpu.matmul %1, %1, %cst {dimension_numbers = #tpu.dot_dimension_numbers<[1], [1], [0], [0], [0, 0, 1, 0], [], []>} : vector<32x3xf32>, vector<32x3xf32>, vector<32x32xf32> -> vector<32x32xf32>
    %3 = arith.mulf %1, %1 : vector<32x3xf32>
    %cst_2 = arith.constant 1.000000e+00 : f32
    %4 = vector.broadcast %cst_2 : f32 to vector<1x3xf32>
    %cst_3 = arith.constant dense<0.000000e+00> : vector<1x32xf32>
    %5 = tpu.matmul %4, %3, %cst_3 {dimension_numbers = #tpu.dot_dimension_numbers<[1], [1], [0], [0], [0, 0, 1, 0], [], []>} : vector<1x3xf32>, vector<32x3xf32>, vector<1x32xf32> -> vector<1x32xf32>
    %cst_4 = arith.constant 2.000000e+00 : f32
    %6 = vector.broadcast %cst_4 : f32 to vector<32x32xf32>
    %7 = arith.mulf %6, %2 : vector<32x32xf32>
    %8 = vector.broadcast %5 : vector<1x32xf32> to vector<32x32xf32>
    %9 = arith.subf %8, %7 : vector<32x32xf32>
    %10 = tpu.iota {dimensions = array<i32: 1>} : vector<32x32xi32>
    %c0_5 = arith.constant 0 : index
    %c0_6 = arith.constant 0 : index
    %11 = vector.load %arg2[%c0_5, %c0_6] : memref<6x64xf32, #tpu.memory_space<vmem>>, vector<3x64xf32>
    %c3 = arith.constant 3 : index
    %c0_7 = arith.constant 0 : index
    %12 = vector.load %arg2[%c3, %c0_7] : memref<6x64xf32, #tpu.memory_space<vmem>>, vector<3x64xf32>
    %cst_8 = arith.constant dense<0.000000e+00> : vector<32x64xf32>
    %13 = tpu.matmul %1, %11, %cst_8 {dimension_numbers = #tpu.dot_dimension_numbers<[1], [0], [0], [1], [0, 0, 1, 1], [], []>} : vector<32x3xf32>, vector<3x64xf32>, vector<32x64xf32> -> vector<32x64xf32>
    %c0_9 = arith.constant 0 : index
    %c0_10 = arith.constant 0 : index
    %14 = vector.load %arg3[%c0_9, %c0_10] : memref<1x64xf32, #tpu.memory_space<vmem>>, vector<1x64xf32>
    %15 = vector.broadcast %14 : vector<1x64xf32> to vector<32x64xf32>
    %16 = arith.addf %13, %15 : vector<32x64xf32>
    %cst_11 = arith.constant dense<0x7F800000> : vector<32xf32>
    %17 = vector.multi_reduction <minimumf>, %9, %cst_11 [1] : vector<32x32xf32> to vector<32xf32>
    %18 = vector.shape_cast %17 : vector<32xf32> to vector<32x1xf32>
    %19 = vector.broadcast %18 : vector<32x1xf32> to vector<32x32xf32>
    %20 = arith.cmpf oeq, %9, %19 : vector<32x32xf32>
    %c32_i32 = arith.constant 32 : i32
    %21 = vector.broadcast %c32_i32 : i32 to vector<32x32xi32>
    %22 = arith.select %20, %10, %21 : vector<32x32xi1>, vector<32x32xi32>
    %cst_12 = arith.constant dense<2147483647> : vector<32xi32>
    %23 = vector.multi_reduction <minsi>, %22, %cst_12 [1] : vector<32x32xi32> to vector<32xi32>
    %24 = vector.shape_cast %23 : vector<32xi32> to vector<32x1xi32>
    %25 = vector.broadcast %24 : vector<32x1xi32> to vector<32x32xi32>
    %26 = arith.cmpi eq, %10, %25 : vector<32x32xi32>
    %27 = arith.extui %26 : vector<32x32xi1> to vector<32x32xi32>
    %28 = arith.sitofp %27 : vector<32x32xi32> to vector<32x32xf32>
    %cst_13 = arith.constant dense<0.000000e+00> : vector<32x3xf32>
    %29 = tpu.matmul %28, %1, %cst_13 {dimension_numbers = #tpu.dot_dimension_numbers<[1], [0], [0], [1], [0, 0, 1, 1], [], []>} : vector<32x32xf32>, vector<32x3xf32>, vector<32x3xf32> -> vector<32x3xf32>
    %30 = arith.subf %29, %1 : vector<32x3xf32>
    %cst_14 = arith.constant dense<0.000000e+00> : vector<32x64xf32>
    %31 = tpu.matmul %30, %12, %cst_14 {dimension_numbers = #tpu.dot_dimension_numbers<[1], [0], [0], [1], [0, 0, 1, 1], [], []>} : vector<32x3xf32>, vector<3x64xf32>, vector<32x64xf32> -> vector<32x64xf32>
    %32 = arith.addf %16, %31 : vector<32x64xf32>
    %cst_15 = arith.constant dense<0.000000e+00> : vector<64xf32>
    %33 = vector.multi_reduction <add>, %32, %cst_15 [0] : vector<32x64xf32> to vector<64xf32>
    %34 = vector.shape_cast %33 : vector<64xf32> to vector<1x64xf32>
    %35 = arith.mulf %32, %32 : vector<32x64xf32>
    %cst_16 = arith.constant dense<0.000000e+00> : vector<64xf32>
    %36 = vector.multi_reduction <add>, %35, %cst_16 [0] : vector<32x64xf32> to vector<64xf32>
    %37 = vector.shape_cast %36 : vector<64xf32> to vector<1x64xf32>
    %cst_17 = arith.constant 0x7F800000 : f32
    %38 = vector.broadcast %cst_17 : f32 to vector<32x32xf32>
    %39 = arith.select %26, %38, %9 : vector<32x32xi1>, vector<32x32xf32>
    %cst_18 = arith.constant dense<0x7F800000> : vector<32xf32>
    %40 = vector.multi_reduction <minimumf>, %39, %cst_18 [1] : vector<32x32xf32> to vector<32xf32>
    %41 = vector.shape_cast %40 : vector<32xf32> to vector<32x1xf32>
    %42 = vector.broadcast %41 : vector<32x1xf32> to vector<32x32xf32>
    %43 = arith.cmpf oeq, %39, %42 : vector<32x32xf32>
    %c32_i32_19 = arith.constant 32 : i32
    %44 = vector.broadcast %c32_i32_19 : i32 to vector<32x32xi32>
    %45 = arith.select %43, %10, %44 : vector<32x32xi1>, vector<32x32xi32>
    %cst_20 = arith.constant dense<2147483647> : vector<32xi32>
    %46 = vector.multi_reduction <minsi>, %45, %cst_20 [1] : vector<32x32xi32> to vector<32xi32>
    %47 = vector.shape_cast %46 : vector<32xi32> to vector<32x1xi32>
    %48 = vector.broadcast %47 : vector<32x1xi32> to vector<32x32xi32>
    %49 = arith.cmpi eq, %10, %48 : vector<32x32xi32>
    %50 = arith.extui %49 : vector<32x32xi1> to vector<32x32xi32>
    %51 = arith.sitofp %50 : vector<32x32xi32> to vector<32x32xf32>
    %cst_21 = arith.constant dense<0.000000e+00> : vector<32x3xf32>
    %52 = tpu.matmul %51, %1, %cst_21 {dimension_numbers = #tpu.dot_dimension_numbers<[1], [0], [0], [1], [0, 0, 1, 1], [], []>} : vector<32x32xf32>, vector<32x3xf32>, vector<32x3xf32> -> vector<32x3xf32>
    %53 = arith.subf %52, %1 : vector<32x3xf32>
    %cst_22 = arith.constant dense<0.000000e+00> : vector<32x64xf32>
    %54 = tpu.matmul %53, %12, %cst_22 {dimension_numbers = #tpu.dot_dimension_numbers<[1], [0], [0], [1], [0, 0, 1, 1], [], []>} : vector<32x3xf32>, vector<3x64xf32>, vector<32x64xf32> -> vector<32x64xf32>
    %55 = arith.addf %16, %54 : vector<32x64xf32>
    %cst_23 = arith.constant dense<0.000000e+00> : vector<64xf32>
    %56 = vector.multi_reduction <add>, %55, %cst_23 [0] : vector<32x64xf32> to vector<64xf32>
    %57 = vector.shape_cast %56 : vector<64xf32> to vector<1x64xf32>
    %58 = arith.mulf %55, %55 : vector<32x64xf32>
    %cst_24 = arith.constant dense<0.000000e+00> : vector<64xf32>
    %59 = vector.multi_reduction <add>, %58, %cst_24 [0] : vector<32x64xf32> to vector<64xf32>
    %60 = vector.shape_cast %59 : vector<64xf32> to vector<1x64xf32>
    %61 = arith.addf %34, %57 : vector<1x64xf32>
    %62 = arith.addf %37, %60 : vector<1x64xf32>
    %cst_25 = arith.constant 0x7F800000 : f32
    %63 = vector.broadcast %cst_25 : f32 to vector<32x32xf32>
    %64 = arith.select %49, %63, %39 : vector<32x32xi1>, vector<32x32xf32>
    %cst_26 = arith.constant dense<0x7F800000> : vector<32xf32>
    %65 = vector.multi_reduction <minimumf>, %64, %cst_26 [1] : vector<32x32xf32> to vector<32xf32>
    %66 = vector.shape_cast %65 : vector<32xf32> to vector<32x1xf32>
    %67 = vector.broadcast %66 : vector<32x1xf32> to vector<32x32xf32>
    %68 = arith.cmpf oeq, %64, %67 : vector<32x32xf32>
    %c32_i32_27 = arith.constant 32 : i32
    %69 = vector.broadcast %c32_i32_27 : i32 to vector<32x32xi32>
    %70 = arith.select %68, %10, %69 : vector<32x32xi1>, vector<32x32xi32>
    %cst_28 = arith.constant dense<2147483647> : vector<32xi32>
    %71 = vector.multi_reduction <minsi>, %70, %cst_28 [1] : vector<32x32xi32> to vector<32xi32>
    %72 = vector.shape_cast %71 : vector<32xi32> to vector<32x1xi32>
    %73 = vector.broadcast %72 : vector<32x1xi32> to vector<32x32xi32>
    %74 = arith.cmpi eq, %10, %73 : vector<32x32xi32>
    %75 = arith.extui %74 : vector<32x32xi1> to vector<32x32xi32>
    %76 = arith.sitofp %75 : vector<32x32xi32> to vector<32x32xf32>
    %cst_29 = arith.constant dense<0.000000e+00> : vector<32x3xf32>
    %77 = tpu.matmul %76, %1, %cst_29 {dimension_numbers = #tpu.dot_dimension_numbers<[1], [0], [0], [1], [0, 0, 1, 1], [], []>} : vector<32x32xf32>, vector<32x3xf32>, vector<32x3xf32> -> vector<32x3xf32>
    %78 = arith.subf %77, %1 : vector<32x3xf32>
    %cst_30 = arith.constant dense<0.000000e+00> : vector<32x64xf32>
    %79 = tpu.matmul %78, %12, %cst_30 {dimension_numbers = #tpu.dot_dimension_numbers<[1], [0], [0], [1], [0, 0, 1, 1], [], []>} : vector<32x3xf32>, vector<3x64xf32>, vector<32x64xf32> -> vector<32x64xf32>
    %80 = arith.addf %16, %79 : vector<32x64xf32>
    %cst_31 = arith.constant dense<0.000000e+00> : vector<64xf32>
    %81 = vector.multi_reduction <add>, %80, %cst_31 [0] : vector<32x64xf32> to vector<64xf32>
    %82 = vector.shape_cast %81 : vector<64xf32> to vector<1x64xf32>
    %83 = arith.mulf %80, %80 : vector<32x64xf32>
    %cst_32 = arith.constant dense<0.000000e+00> : vector<64xf32>
    %84 = vector.multi_reduction <add>, %83, %cst_32 [0] : vector<32x64xf32> to vector<64xf32>
    %85 = vector.shape_cast %84 : vector<64xf32> to vector<1x64xf32>
    %86 = arith.addf %61, %82 : vector<1x64xf32>
    %87 = arith.addf %62, %85 : vector<1x64xf32>
    %cst_33 = arith.constant 0x7F800000 : f32
    %88 = vector.broadcast %cst_33 : f32 to vector<32x32xf32>
    %89 = arith.select %74, %88, %64 : vector<32x32xi1>, vector<32x32xf32>
    %cst_34 = arith.constant dense<0x7F800000> : vector<32xf32>
    %90 = vector.multi_reduction <minimumf>, %89, %cst_34 [1] : vector<32x32xf32> to vector<32xf32>
    %91 = vector.shape_cast %90 : vector<32xf32> to vector<32x1xf32>
    %92 = vector.broadcast %91 : vector<32x1xf32> to vector<32x32xf32>
    %93 = arith.cmpf oeq, %89, %92 : vector<32x32xf32>
    %c32_i32_35 = arith.constant 32 : i32
    %94 = vector.broadcast %c32_i32_35 : i32 to vector<32x32xi32>
    %95 = arith.select %93, %10, %94 : vector<32x32xi1>, vector<32x32xi32>
    %cst_36 = arith.constant dense<2147483647> : vector<32xi32>
    %96 = vector.multi_reduction <minsi>, %95, %cst_36 [1] : vector<32x32xi32> to vector<32xi32>
    %97 = vector.shape_cast %96 : vector<32xi32> to vector<32x1xi32>
    %98 = vector.broadcast %97 : vector<32x1xi32> to vector<32x32xi32>
    %99 = arith.cmpi eq, %10, %98 : vector<32x32xi32>
    %100 = arith.extui %99 : vector<32x32xi1> to vector<32x32xi32>
    %101 = arith.sitofp %100 : vector<32x32xi32> to vector<32x32xf32>
    %cst_37 = arith.constant dense<0.000000e+00> : vector<32x3xf32>
    %102 = tpu.matmul %101, %1, %cst_37 {dimension_numbers = #tpu.dot_dimension_numbers<[1], [0], [0], [1], [0, 0, 1, 1], [], []>} : vector<32x32xf32>, vector<32x3xf32>, vector<32x3xf32> -> vector<32x3xf32>
    %103 = arith.subf %102, %1 : vector<32x3xf32>
    %cst_38 = arith.constant dense<0.000000e+00> : vector<32x64xf32>
    %104 = tpu.matmul %103, %12, %cst_38 {dimension_numbers = #tpu.dot_dimension_numbers<[1], [0], [0], [1], [0, 0, 1, 1], [], []>} : vector<32x3xf32>, vector<3x64xf32>, vector<32x64xf32> -> vector<32x64xf32>
    %105 = arith.addf %16, %104 : vector<32x64xf32>
    %cst_39 = arith.constant dense<0.000000e+00> : vector<64xf32>
    %106 = vector.multi_reduction <add>, %105, %cst_39 [0] : vector<32x64xf32> to vector<64xf32>
    %107 = vector.shape_cast %106 : vector<64xf32> to vector<1x64xf32>
    %108 = arith.mulf %105, %105 : vector<32x64xf32>
    %cst_40 = arith.constant dense<0.000000e+00> : vector<64xf32>
    %109 = vector.multi_reduction <add>, %108, %cst_40 [0] : vector<32x64xf32> to vector<64xf32>
    %110 = vector.shape_cast %109 : vector<64xf32> to vector<1x64xf32>
    %111 = arith.addf %86, %107 : vector<1x64xf32>
    %112 = arith.addf %87, %110 : vector<1x64xf32>
    %cst_41 = arith.constant 0x7F800000 : f32
    %113 = vector.broadcast %cst_41 : f32 to vector<32x32xf32>
    %114 = arith.select %99, %113, %89 : vector<32x32xi1>, vector<32x32xf32>
    %cst_42 = arith.constant dense<0x7F800000> : vector<32xf32>
    %115 = vector.multi_reduction <minimumf>, %114, %cst_42 [1] : vector<32x32xf32> to vector<32xf32>
    %116 = vector.shape_cast %115 : vector<32xf32> to vector<32x1xf32>
    %117 = vector.broadcast %116 : vector<32x1xf32> to vector<32x32xf32>
    %118 = arith.cmpf oeq, %114, %117 : vector<32x32xf32>
    %c32_i32_43 = arith.constant 32 : i32
    %119 = vector.broadcast %c32_i32_43 : i32 to vector<32x32xi32>
    %120 = arith.select %118, %10, %119 : vector<32x32xi1>, vector<32x32xi32>
    %cst_44 = arith.constant dense<2147483647> : vector<32xi32>
    %121 = vector.multi_reduction <minsi>, %120, %cst_44 [1] : vector<32x32xi32> to vector<32xi32>
    %122 = vector.shape_cast %121 : vector<32xi32> to vector<32x1xi32>
    %123 = vector.broadcast %122 : vector<32x1xi32> to vector<32x32xi32>
    %124 = arith.cmpi eq, %10, %123 : vector<32x32xi32>
    %125 = arith.extui %124 : vector<32x32xi1> to vector<32x32xi32>
    %126 = arith.sitofp %125 : vector<32x32xi32> to vector<32x32xf32>
    %cst_45 = arith.constant dense<0.000000e+00> : vector<32x3xf32>
    %127 = tpu.matmul %126, %1, %cst_45 {dimension_numbers = #tpu.dot_dimension_numbers<[1], [0], [0], [1], [0, 0, 1, 1], [], []>} : vector<32x32xf32>, vector<32x3xf32>, vector<32x3xf32> -> vector<32x3xf32>
    %128 = arith.subf %127, %1 : vector<32x3xf32>
    %cst_46 = arith.constant dense<0.000000e+00> : vector<32x64xf32>
    %129 = tpu.matmul %128, %12, %cst_46 {dimension_numbers = #tpu.dot_dimension_numbers<[1], [0], [0], [1], [0, 0, 1, 1], [], []>} : vector<32x3xf32>, vector<3x64xf32>, vector<32x64xf32> -> vector<32x64xf32>
    %130 = arith.addf %16, %129 : vector<32x64xf32>
    %cst_47 = arith.constant dense<0.000000e+00> : vector<64xf32>
    %131 = vector.multi_reduction <add>, %130, %cst_47 [0] : vector<32x64xf32> to vector<64xf32>
    %132 = vector.shape_cast %131 : vector<64xf32> to vector<1x64xf32>
    %133 = arith.mulf %130, %130 : vector<32x64xf32>
    %cst_48 = arith.constant dense<0.000000e+00> : vector<64xf32>
    %134 = vector.multi_reduction <add>, %133, %cst_48 [0] : vector<32x64xf32> to vector<64xf32>
    %135 = vector.shape_cast %134 : vector<64xf32> to vector<1x64xf32>
    %136 = arith.addf %111, %132 : vector<1x64xf32>
    %137 = arith.addf %112, %135 : vector<1x64xf32>
    %cst_49 = arith.constant 0x7F800000 : f32
    %138 = vector.broadcast %cst_49 : f32 to vector<32x32xf32>
    %139 = arith.select %124, %138, %114 : vector<32x32xi1>, vector<32x32xf32>
    %cst_50 = arith.constant dense<0x7F800000> : vector<32xf32>
    %140 = vector.multi_reduction <minimumf>, %139, %cst_50 [1] : vector<32x32xf32> to vector<32xf32>
    %141 = vector.shape_cast %140 : vector<32xf32> to vector<32x1xf32>
    %142 = vector.broadcast %141 : vector<32x1xf32> to vector<32x32xf32>
    %143 = arith.cmpf oeq, %139, %142 : vector<32x32xf32>
    %c32_i32_51 = arith.constant 32 : i32
    %144 = vector.broadcast %c32_i32_51 : i32 to vector<32x32xi32>
    %145 = arith.select %143, %10, %144 : vector<32x32xi1>, vector<32x32xi32>
    %cst_52 = arith.constant dense<2147483647> : vector<32xi32>
    %146 = vector.multi_reduction <minsi>, %145, %cst_52 [1] : vector<32x32xi32> to vector<32xi32>
    %147 = vector.shape_cast %146 : vector<32xi32> to vector<32x1xi32>
    %148 = vector.broadcast %147 : vector<32x1xi32> to vector<32x32xi32>
    %149 = arith.cmpi eq, %10, %148 : vector<32x32xi32>
    %150 = arith.extui %149 : vector<32x32xi1> to vector<32x32xi32>
    %151 = arith.sitofp %150 : vector<32x32xi32> to vector<32x32xf32>
    %cst_53 = arith.constant dense<0.000000e+00> : vector<32x3xf32>
    %152 = tpu.matmul %151, %1, %cst_53 {dimension_numbers = #tpu.dot_dimension_numbers<[1], [0], [0], [1], [0, 0, 1, 1], [], []>} : vector<32x32xf32>, vector<32x3xf32>, vector<32x3xf32> -> vector<32x3xf32>
    %153 = arith.subf %152, %1 : vector<32x3xf32>
    %cst_54 = arith.constant dense<0.000000e+00> : vector<32x64xf32>
    %154 = tpu.matmul %153, %12, %cst_54 {dimension_numbers = #tpu.dot_dimension_numbers<[1], [0], [0], [1], [0, 0, 1, 1], [], []>} : vector<32x3xf32>, vector<3x64xf32>, vector<32x64xf32> -> vector<32x64xf32>
    %155 = arith.addf %16, %154 : vector<32x64xf32>
    %cst_55 = arith.constant dense<0.000000e+00> : vector<64xf32>
    %156 = vector.multi_reduction <add>, %155, %cst_55 [0] : vector<32x64xf32> to vector<64xf32>
    %157 = vector.shape_cast %156 : vector<64xf32> to vector<1x64xf32>
    %158 = arith.mulf %155, %155 : vector<32x64xf32>
    %cst_56 = arith.constant dense<0.000000e+00> : vector<64xf32>
    %159 = vector.multi_reduction <add>, %158, %cst_56 [0] : vector<32x64xf32> to vector<64xf32>
    %160 = vector.shape_cast %159 : vector<64xf32> to vector<1x64xf32>
    %161 = arith.addf %136, %157 : vector<1x64xf32>
    %162 = arith.addf %137, %160 : vector<1x64xf32>
    %cst_57 = arith.constant 0x7F800000 : f32
    %163 = vector.broadcast %cst_57 : f32 to vector<32x32xf32>
    %164 = arith.select %149, %163, %139 : vector<32x32xi1>, vector<32x32xf32>
    %cst_58 = arith.constant dense<0x7F800000> : vector<32xf32>
    %165 = vector.multi_reduction <minimumf>, %164, %cst_58 [1] : vector<32x32xf32> to vector<32xf32>
    %166 = vector.shape_cast %165 : vector<32xf32> to vector<32x1xf32>
    %167 = vector.broadcast %166 : vector<32x1xf32> to vector<32x32xf32>
    %168 = arith.cmpf oeq, %164, %167 : vector<32x32xf32>
    %c32_i32_59 = arith.constant 32 : i32
    %169 = vector.broadcast %c32_i32_59 : i32 to vector<32x32xi32>
    %170 = arith.select %168, %10, %169 : vector<32x32xi1>, vector<32x32xi32>
    %cst_60 = arith.constant dense<2147483647> : vector<32xi32>
    %171 = vector.multi_reduction <minsi>, %170, %cst_60 [1] : vector<32x32xi32> to vector<32xi32>
    %172 = vector.shape_cast %171 : vector<32xi32> to vector<32x1xi32>
    %173 = vector.broadcast %172 : vector<32x1xi32> to vector<32x32xi32>
    %174 = arith.cmpi eq, %10, %173 : vector<32x32xi32>
    %175 = arith.extui %174 : vector<32x32xi1> to vector<32x32xi32>
    %176 = arith.sitofp %175 : vector<32x32xi32> to vector<32x32xf32>
    %cst_61 = arith.constant dense<0.000000e+00> : vector<32x3xf32>
    %177 = tpu.matmul %176, %1, %cst_61 {dimension_numbers = #tpu.dot_dimension_numbers<[1], [0], [0], [1], [0, 0, 1, 1], [], []>} : vector<32x32xf32>, vector<32x3xf32>, vector<32x3xf32> -> vector<32x3xf32>
    %178 = arith.subf %177, %1 : vector<32x3xf32>
    %cst_62 = arith.constant dense<0.000000e+00> : vector<32x64xf32>
    %179 = tpu.matmul %178, %12, %cst_62 {dimension_numbers = #tpu.dot_dimension_numbers<[1], [0], [0], [1], [0, 0, 1, 1], [], []>} : vector<32x3xf32>, vector<3x64xf32>, vector<32x64xf32> -> vector<32x64xf32>
    %180 = arith.addf %16, %179 : vector<32x64xf32>
    %cst_63 = arith.constant dense<0.000000e+00> : vector<64xf32>
    %181 = vector.multi_reduction <add>, %180, %cst_63 [0] : vector<32x64xf32> to vector<64xf32>
    %182 = vector.shape_cast %181 : vector<64xf32> to vector<1x64xf32>
    %183 = arith.mulf %180, %180 : vector<32x64xf32>
    %cst_64 = arith.constant dense<0.000000e+00> : vector<64xf32>
    %184 = vector.multi_reduction <add>, %183, %cst_64 [0] : vector<32x64xf32> to vector<64xf32>
    %185 = vector.shape_cast %184 : vector<64xf32> to vector<1x64xf32>
    %186 = arith.addf %161, %182 : vector<1x64xf32>
    %187 = arith.addf %162, %185 : vector<1x64xf32>
    %cst_65 = arith.constant 0x7F800000 : f32
    %188 = vector.broadcast %cst_65 : f32 to vector<32x32xf32>
    %189 = arith.select %174, %188, %164 : vector<32x32xi1>, vector<32x32xf32>
    %cst_66 = arith.constant dense<0x7F800000> : vector<32xf32>
    %190 = vector.multi_reduction <minimumf>, %189, %cst_66 [1] : vector<32x32xf32> to vector<32xf32>
    %191 = vector.shape_cast %190 : vector<32xf32> to vector<32x1xf32>
    %192 = vector.broadcast %191 : vector<32x1xf32> to vector<32x32xf32>
    %193 = arith.cmpf oeq, %189, %192 : vector<32x32xf32>
    %c32_i32_67 = arith.constant 32 : i32
    %194 = vector.broadcast %c32_i32_67 : i32 to vector<32x32xi32>
    %195 = arith.select %193, %10, %194 : vector<32x32xi1>, vector<32x32xi32>
    %cst_68 = arith.constant dense<2147483647> : vector<32xi32>
    %196 = vector.multi_reduction <minsi>, %195, %cst_68 [1] : vector<32x32xi32> to vector<32xi32>
    %197 = vector.shape_cast %196 : vector<32xi32> to vector<32x1xi32>
    %198 = vector.broadcast %197 : vector<32x1xi32> to vector<32x32xi32>
    %199 = arith.cmpi eq, %10, %198 : vector<32x32xi32>
    %200 = arith.extui %199 : vector<32x32xi1> to vector<32x32xi32>
    %201 = arith.sitofp %200 : vector<32x32xi32> to vector<32x32xf32>
    %cst_69 = arith.constant dense<0.000000e+00> : vector<32x3xf32>
    %202 = tpu.matmul %201, %1, %cst_69 {dimension_numbers = #tpu.dot_dimension_numbers<[1], [0], [0], [1], [0, 0, 1, 1], [], []>} : vector<32x32xf32>, vector<32x3xf32>, vector<32x3xf32> -> vector<32x3xf32>
    %203 = arith.subf %202, %1 : vector<32x3xf32>
    %cst_70 = arith.constant dense<0.000000e+00> : vector<32x64xf32>
    %204 = tpu.matmul %203, %12, %cst_70 {dimension_numbers = #tpu.dot_dimension_numbers<[1], [0], [0], [1], [0, 0, 1, 1], [], []>} : vector<32x3xf32>, vector<3x64xf32>, vector<32x64xf32> -> vector<32x64xf32>
    %205 = arith.addf %16, %204 : vector<32x64xf32>
    %cst_71 = arith.constant dense<0.000000e+00> : vector<64xf32>
    %206 = vector.multi_reduction <add>, %205, %cst_71 [0] : vector<32x64xf32> to vector<64xf32>
    %207 = vector.shape_cast %206 : vector<64xf32> to vector<1x64xf32>
    %208 = arith.mulf %205, %205 : vector<32x64xf32>
    %cst_72 = arith.constant dense<0.000000e+00> : vector<64xf32>
    %209 = vector.multi_reduction <add>, %208, %cst_72 [0] : vector<32x64xf32> to vector<64xf32>
    %210 = vector.shape_cast %209 : vector<64xf32> to vector<1x64xf32>
    %211 = arith.addf %186, %207 : vector<1x64xf32>
    %212 = arith.addf %187, %210 : vector<1x64xf32>
    %213 = tpu.concatenate %211, %212 in 0 : vector<1x64xf32>, vector<1x64xf32> -> vector<2x64xf32>
    %c0_73 = arith.constant 0 : index
    %c0_74 = arith.constant 0 : index
    %c0_75 = arith.constant 0 : index
    %214 = vector.load %arg4[%c0_73, %c0_74, %c0_75] : memref<1x2x64xf32, #tpu.memory_space<vmem>>, vector<1x2x64xf32>
    %215 = vector.shape_cast %214 : vector<1x2x64xf32> to vector<2x64xf32>
    %216 = vector.shape_cast %213 : vector<2x64xf32> to vector<1x2x64xf32>
    tpu.vector_store %arg4[%c0_73, %c0_74, %c0_75], %216 {strides = array<i32>} : memref<1x2x64xf32, #tpu.memory_space<vmem>>, vector<1x2x64xf32>,
    return
  }
  func.func @transform_0(%arg0: i32) -> (i32, i32, i32) {
    %c0_i32 = arith.constant 0 : i32
    %c0_i32_0 = arith.constant 0 : i32
    %c0_i32_1 = arith.constant 0 : i32
    return %arg0, %c0_i32, %c0_i32_0 : i32, i32, i32
  }
  func.func @transform_1(%arg0: i32) -> (i32, i32) {
    %c0_i32 = arith.constant 0 : i32
    %c0_i32_0 = arith.constant 0 : i32
    %c0_i32_1 = arith.constant 0 : i32
    return %c0_i32, %c0_i32_0 : i32, i32
  }
  func.func @transform_2(%arg0: i32) -> (i32, i32) {
    %c0_i32 = arith.constant 0 : i32
    %c0_i32_0 = arith.constant 0 : i32
    %c0_i32_1 = arith.constant 0 : i32
    return %c0_i32, %c0_i32_0 : i32, i32
  }
  func.func @transform_3(%arg0: i32) -> (i32, i32, i32) {
    %c0_i32 = arith.constant 0 : i32
    %c0_i32_0 = arith.constant 0 : i32
    %c0_i32_1 = arith.constant 0 : i32
    return %arg0, %c0_i32, %c0_i32_0 : i32, i32, i32
  }
}

module attributes {stable_mosaic.version = 11 : i64} {
  func.func @main_kernel(%arg0: i32, %arg1: memref<1x32x3xf32, #tpu.memory_space<vmem>>, %arg2: memref<1x2x64xf32, #tpu.memory_space<vmem>>, %arg3: memref<6x64xf32, #tpu.memory_space<vmem>>, %arg4: memref<1x64xf32, #tpu.memory_space<vmem>>, %arg5: memref<64x64xf32, #tpu.memory_space<vmem>>, %arg6: memref<1x64xf32, #tpu.memory_space<vmem>>, %arg7: memref<128x128xf32, #tpu.memory_space<vmem>>, %arg8: memref<1x128xf32, #tpu.memory_space<vmem>>, %arg9: memref<192x128xf32, #tpu.memory_space<vmem>>, %arg10: memref<1x128xf32, #tpu.memory_space<vmem>>, %arg11: memref<128x256xf32, #tpu.memory_space<vmem>>, %arg12: memref<1x256xf32, #tpu.memory_space<vmem>>, %arg13: memref<256x32xf32, #tpu.memory_space<vmem>>, %arg14: memref<1x32xf32, #tpu.memory_space<vmem>>, %arg15: memref<1x1x128xf32, #tpu.memory_space<vmem>>, %arg16: memref<1x1x32xf32, #tpu.memory_space<vmem>>) attributes {dimension_semantics = [#tpu.dimension_semantics<parallel>], iteration_bounds = array<i64: 4>, scalar_prefetch = 0 : i64, scratch_operands = 0 : i64, tpu.core_type = #tpu.core_type<tc>, window_params = [{transform_indices = @transform_0, window_bounds = array<i64: 1, 32, 3>}, {transform_indices = @transform_1, window_bounds = array<i64: 1, 2, 64>}, {pipeline_mode = #tpu.pipeline_mode<synchronous>, transform_indices = @transform_2, window_bounds = array<i64: 6, 64>}, {pipeline_mode = #tpu.pipeline_mode<synchronous>, transform_indices = @transform_3, window_bounds = array<i64: 1, 64>}, {pipeline_mode = #tpu.pipeline_mode<synchronous>, transform_indices = @transform_4, window_bounds = array<i64: 64, 64>}, {pipeline_mode = #tpu.pipeline_mode<synchronous>, transform_indices = @transform_5, window_bounds = array<i64: 1, 64>}, {pipeline_mode = #tpu.pipeline_mode<synchronous>, transform_indices = @transform_6, window_bounds = array<i64: 128, 128>}, {pipeline_mode = #tpu.pipeline_mode<synchronous>, transform_indices = @transform_7, window_bounds = array<i64: 1, 128>}, {pipeline_mode = #tpu.pipeline_mode<synchronous>, transform_indices = @transform_8, window_bounds = array<i64: 192, 128>}, {pipeline_mode = #tpu.pipeline_mode<synchronous>, transform_indices = @transform_9, window_bounds = array<i64: 1, 128>}, {pipeline_mode = #tpu.pipeline_mode<synchronous>, transform_indices = @transform_10, window_bounds = array<i64: 128, 256>}, {pipeline_mode = #tpu.pipeline_mode<synchronous>, transform_indices = @transform_11, window_bounds = array<i64: 1, 256>}, {pipeline_mode = #tpu.pipeline_mode<synchronous>, transform_indices = @transform_12, window_bounds = array<i64: 256, 32>}, {pipeline_mode = #tpu.pipeline_mode<synchronous>, transform_indices = @transform_13, window_bounds = array<i64: 1, 32>}, {transform_indices = @transform_14, window_bounds = array<i64: 1, 1, 128>}, {transform_indices = @transform_15, window_bounds = array<i64: 1, 1, 32>}]} {
    %c0 = arith.constant 0 : index
    %c0_0 = arith.constant 0 : index
    %c0_1 = arith.constant 0 : index
    %0 = vector.load %arg1[%c0, %c0_0, %c0_1] : memref<1x32x3xf32, #tpu.memory_space<vmem>>, vector<1x32x3xf32>
    %1 = vector.shape_cast %0 : vector<1x32x3xf32> to vector<32x3xf32>
    %c0_2 = arith.constant 0 : index
    %c0_3 = arith.constant 0 : index
    %c0_4 = arith.constant 0 : index
    %2 = vector.load %arg2[%c0_2, %c0_3, %c0_4] : memref<1x2x64xf32, #tpu.memory_space<vmem>>, vector<1x1x64xf32>
    %3 = vector.shape_cast %2 : vector<1x1x64xf32> to vector<1x64xf32>
    %c0_5 = arith.constant 0 : index
    %c1 = arith.constant 1 : index
    %c0_6 = arith.constant 0 : index
    %4 = vector.load %arg2[%c0_5, %c1, %c0_6] : memref<1x2x64xf32, #tpu.memory_space<vmem>>, vector<1x1x64xf32>
    %5 = vector.shape_cast %4 : vector<1x1x64xf32> to vector<1x64xf32>
    %6 = tpu.iota {dimensions = array<i32: 1>} : vector<32x32xi32>
    %cst = arith.constant dense<0.000000e+00> : vector<32x32xf32>
    %7 = tpu.matmul %1, %1, %cst {dimension_numbers = #tpu.dot_dimension_numbers<[1], [1], [0], [0], [0, 0, 1, 0], [], []>} : vector<32x3xf32>, vector<32x3xf32>, vector<32x32xf32> -> vector<32x32xf32>
    %8 = arith.mulf %1, %1 : vector<32x3xf32>
    %cst_7 = arith.constant 1.000000e+00 : f32
    %9 = vector.broadcast %cst_7 : f32 to vector<1x3xf32>
    %cst_8 = arith.constant dense<0.000000e+00> : vector<1x32xf32>
    %10 = tpu.matmul %9, %8, %cst_8 {dimension_numbers = #tpu.dot_dimension_numbers<[1], [1], [0], [0], [0, 0, 1, 0], [], []>} : vector<1x3xf32>, vector<32x3xf32>, vector<1x32xf32> -> vector<1x32xf32>
    %cst_9 = arith.constant 2.000000e+00 : f32
    %11 = vector.broadcast %cst_9 : f32 to vector<32x32xf32>
    %12 = arith.mulf %11, %7 : vector<32x32xf32>
    %13 = vector.broadcast %10 : vector<1x32xf32> to vector<32x32xf32>
    %14 = arith.subf %13, %12 : vector<32x32xf32>
    %c0_10 = arith.constant 0 : index
    %c0_11 = arith.constant 0 : index
    %15 = vector.load %arg3[%c0_10, %c0_11] : memref<6x64xf32, #tpu.memory_space<vmem>>, vector<3x64xf32>
    %c3 = arith.constant 3 : index
    %c0_12 = arith.constant 0 : index
    %16 = vector.load %arg3[%c3, %c0_12] : memref<6x64xf32, #tpu.memory_space<vmem>>, vector<3x64xf32>
    %cst_13 = arith.constant dense<0.000000e+00> : vector<32x64xf32>
    %17 = tpu.matmul %1, %15, %cst_13 {dimension_numbers = #tpu.dot_dimension_numbers<[1], [0], [0], [1], [0, 0, 1, 1], [], []>} : vector<32x3xf32>, vector<3x64xf32>, vector<32x64xf32> -> vector<32x64xf32>
    %c0_14 = arith.constant 0 : index
    %c0_15 = arith.constant 0 : index
    %18 = vector.load %arg4[%c0_14, %c0_15] : memref<1x64xf32, #tpu.memory_space<vmem>>, vector<1x64xf32>
    %19 = vector.broadcast %18 : vector<1x64xf32> to vector<32x64xf32>
    %20 = arith.addf %17, %19 : vector<32x64xf32>
    %cst_16 = arith.constant dense<0x7F800000> : vector<32xf32>
    %21 = vector.multi_reduction <minimumf>, %14, %cst_16 [1] : vector<32x32xf32> to vector<32xf32>
    %22 = vector.shape_cast %21 : vector<32xf32> to vector<32x1xf32>
    %23 = vector.broadcast %22 : vector<32x1xf32> to vector<32x32xf32>
    %24 = arith.cmpf oeq, %14, %23 : vector<32x32xf32>
    %c32_i32 = arith.constant 32 : i32
    %25 = vector.broadcast %c32_i32 : i32 to vector<32x32xi32>
    %26 = arith.select %24, %6, %25 : vector<32x32xi1>, vector<32x32xi32>
    %cst_17 = arith.constant dense<2147483647> : vector<32xi32>
    %27 = vector.multi_reduction <minsi>, %26, %cst_17 [1] : vector<32x32xi32> to vector<32xi32>
    %28 = vector.shape_cast %27 : vector<32xi32> to vector<32x1xi32>
    %29 = vector.broadcast %28 : vector<32x1xi32> to vector<32x32xi32>
    %30 = arith.cmpi eq, %6, %29 : vector<32x32xi32>
    %31 = arith.extui %30 : vector<32x32xi1> to vector<32x32xi32>
    %32 = arith.sitofp %31 : vector<32x32xi32> to vector<32x32xf32>
    %cst_18 = arith.constant dense<0.000000e+00> : vector<32x3xf32>
    %33 = tpu.matmul %32, %1, %cst_18 {dimension_numbers = #tpu.dot_dimension_numbers<[1], [0], [0], [1], [0, 0, 1, 1], [], []>} : vector<32x32xf32>, vector<32x3xf32>, vector<32x3xf32> -> vector<32x3xf32>
    %34 = arith.subf %33, %1 : vector<32x3xf32>
    %cst_19 = arith.constant dense<0.000000e+00> : vector<32x64xf32>
    %35 = tpu.matmul %34, %16, %cst_19 {dimension_numbers = #tpu.dot_dimension_numbers<[1], [0], [0], [1], [0, 0, 1, 1], [], []>} : vector<32x3xf32>, vector<3x64xf32>, vector<32x64xf32> -> vector<32x64xf32>
    %36 = arith.addf %20, %35 : vector<32x64xf32>
    %37 = vector.broadcast %3 : vector<1x64xf32> to vector<32x64xf32>
    %38 = arith.mulf %36, %37 : vector<32x64xf32>
    %39 = vector.broadcast %5 : vector<1x64xf32> to vector<32x64xf32>
    %40 = arith.addf %38, %39 : vector<32x64xf32>
    %cst_20 = arith.constant 0.000000e+00 : f32
    %41 = vector.broadcast %cst_20 : f32 to vector<32x64xf32>
    %42 = arith.maximumf %40, %41 : vector<32x64xf32>
    %c0_21 = arith.constant 0 : index
    %c0_22 = arith.constant 0 : index
    %43 = vector.load %arg5[%c0_21, %c0_22] : memref<64x64xf32, #tpu.memory_space<vmem>>, vector<64x64xf32>
    %cst_23 = arith.constant dense<0.000000e+00> : vector<32x64xf32>
    %44 = tpu.matmul %42, %43, %cst_23 {dimension_numbers = #tpu.dot_dimension_numbers<[1], [0], [0], [1], [0, 0, 1, 1], [], []>} : vector<32x64xf32>, vector<64x64xf32>, vector<32x64xf32> -> vector<32x64xf32>
    %c0_24 = arith.constant 0 : index
    %c0_25 = arith.constant 0 : index
    %45 = vector.load %arg6[%c0_24, %c0_25] : memref<1x64xf32, #tpu.memory_space<vmem>>, vector<1x64xf32>
    %46 = vector.broadcast %45 : vector<1x64xf32> to vector<32x64xf32>
    %47 = arith.addf %44, %46 : vector<32x64xf32>
    %cst_26 = arith.constant 0x7F800000 : f32
    %48 = vector.broadcast %cst_26 : f32 to vector<32x32xf32>
    %49 = arith.select %30, %48, %14 : vector<32x32xi1>, vector<32x32xf32>
    %cst_27 = arith.constant dense<0x7F800000> : vector<32xf32>
    %50 = vector.multi_reduction <minimumf>, %49, %cst_27 [1] : vector<32x32xf32> to vector<32xf32>
    %51 = vector.shape_cast %50 : vector<32xf32> to vector<32x1xf32>
    %52 = vector.broadcast %51 : vector<32x1xf32> to vector<32x32xf32>
    %53 = arith.cmpf oeq, %49, %52 : vector<32x32xf32>
    %c32_i32_28 = arith.constant 32 : i32
    %54 = vector.broadcast %c32_i32_28 : i32 to vector<32x32xi32>
    %55 = arith.select %53, %6, %54 : vector<32x32xi1>, vector<32x32xi32>
    %cst_29 = arith.constant dense<2147483647> : vector<32xi32>
    %56 = vector.multi_reduction <minsi>, %55, %cst_29 [1] : vector<32x32xi32> to vector<32xi32>
    %57 = vector.shape_cast %56 : vector<32xi32> to vector<32x1xi32>
    %58 = vector.broadcast %57 : vector<32x1xi32> to vector<32x32xi32>
    %59 = arith.cmpi eq, %6, %58 : vector<32x32xi32>
    %60 = arith.extui %59 : vector<32x32xi1> to vector<32x32xi32>
    %61 = arith.sitofp %60 : vector<32x32xi32> to vector<32x32xf32>
    %cst_30 = arith.constant dense<0.000000e+00> : vector<32x3xf32>
    %62 = tpu.matmul %61, %1, %cst_30 {dimension_numbers = #tpu.dot_dimension_numbers<[1], [0], [0], [1], [0, 0, 1, 1], [], []>} : vector<32x32xf32>, vector<32x3xf32>, vector<32x3xf32> -> vector<32x3xf32>
    %63 = arith.subf %62, %1 : vector<32x3xf32>
    %cst_31 = arith.constant dense<0.000000e+00> : vector<32x64xf32>
    %64 = tpu.matmul %63, %16, %cst_31 {dimension_numbers = #tpu.dot_dimension_numbers<[1], [0], [0], [1], [0, 0, 1, 1], [], []>} : vector<32x3xf32>, vector<3x64xf32>, vector<32x64xf32> -> vector<32x64xf32>
    %65 = arith.addf %20, %64 : vector<32x64xf32>
    %66 = vector.broadcast %3 : vector<1x64xf32> to vector<32x64xf32>
    %67 = arith.mulf %65, %66 : vector<32x64xf32>
    %68 = vector.broadcast %5 : vector<1x64xf32> to vector<32x64xf32>
    %69 = arith.addf %67, %68 : vector<32x64xf32>
    %cst_32 = arith.constant 0.000000e+00 : f32
    %70 = vector.broadcast %cst_32 : f32 to vector<32x64xf32>
    %71 = arith.maximumf %69, %70 : vector<32x64xf32>
    %c0_33 = arith.constant 0 : index
    %c0_34 = arith.constant 0 : index
    %72 = vector.load %arg5[%c0_33, %c0_34] : memref<64x64xf32, #tpu.memory_space<vmem>>, vector<64x64xf32>
    %cst_35 = arith.constant dense<0.000000e+00> : vector<32x64xf32>
    %73 = tpu.matmul %71, %72, %cst_35 {dimension_numbers = #tpu.dot_dimension_numbers<[1], [0], [0], [1], [0, 0, 1, 1], [], []>} : vector<32x64xf32>, vector<64x64xf32>, vector<32x64xf32> -> vector<32x64xf32>
    %c0_36 = arith.constant 0 : index
    %c0_37 = arith.constant 0 : index
    %74 = vector.load %arg6[%c0_36, %c0_37] : memref<1x64xf32, #tpu.memory_space<vmem>>, vector<1x64xf32>
    %75 = vector.broadcast %74 : vector<1x64xf32> to vector<32x64xf32>
    %76 = arith.addf %73, %75 : vector<32x64xf32>
    %77 = arith.maximumf %47, %76 : vector<32x64xf32>
    %cst_38 = arith.constant 0x7F800000 : f32
    %78 = vector.broadcast %cst_38 : f32 to vector<32x32xf32>
    %79 = arith.select %59, %78, %49 : vector<32x32xi1>, vector<32x32xf32>
    %cst_39 = arith.constant dense<0x7F800000> : vector<32xf32>
    %80 = vector.multi_reduction <minimumf>, %79, %cst_39 [1] : vector<32x32xf32> to vector<32xf32>
    %81 = vector.shape_cast %80 : vector<32xf32> to vector<32x1xf32>
    %82 = vector.broadcast %81 : vector<32x1xf32> to vector<32x32xf32>
    %83 = arith.cmpf oeq, %79, %82 : vector<32x32xf32>
    %c32_i32_40 = arith.constant 32 : i32
    %84 = vector.broadcast %c32_i32_40 : i32 to vector<32x32xi32>
    %85 = arith.select %83, %6, %84 : vector<32x32xi1>, vector<32x32xi32>
    %cst_41 = arith.constant dense<2147483647> : vector<32xi32>
    %86 = vector.multi_reduction <minsi>, %85, %cst_41 [1] : vector<32x32xi32> to vector<32xi32>
    %87 = vector.shape_cast %86 : vector<32xi32> to vector<32x1xi32>
    %88 = vector.broadcast %87 : vector<32x1xi32> to vector<32x32xi32>
    %89 = arith.cmpi eq, %6, %88 : vector<32x32xi32>
    %90 = arith.extui %89 : vector<32x32xi1> to vector<32x32xi32>
    %91 = arith.sitofp %90 : vector<32x32xi32> to vector<32x32xf32>
    %cst_42 = arith.constant dense<0.000000e+00> : vector<32x3xf32>
    %92 = tpu.matmul %91, %1, %cst_42 {dimension_numbers = #tpu.dot_dimension_numbers<[1], [0], [0], [1], [0, 0, 1, 1], [], []>} : vector<32x32xf32>, vector<32x3xf32>, vector<32x3xf32> -> vector<32x3xf32>
    %93 = arith.subf %92, %1 : vector<32x3xf32>
    %cst_43 = arith.constant dense<0.000000e+00> : vector<32x64xf32>
    %94 = tpu.matmul %93, %16, %cst_43 {dimension_numbers = #tpu.dot_dimension_numbers<[1], [0], [0], [1], [0, 0, 1, 1], [], []>} : vector<32x3xf32>, vector<3x64xf32>, vector<32x64xf32> -> vector<32x64xf32>
    %95 = arith.addf %20, %94 : vector<32x64xf32>
    %96 = vector.broadcast %3 : vector<1x64xf32> to vector<32x64xf32>
    %97 = arith.mulf %95, %96 : vector<32x64xf32>
    %98 = vector.broadcast %5 : vector<1x64xf32> to vector<32x64xf32>
    %99 = arith.addf %97, %98 : vector<32x64xf32>
    %cst_44 = arith.constant 0.000000e+00 : f32
    %100 = vector.broadcast %cst_44 : f32 to vector<32x64xf32>
    %101 = arith.maximumf %99, %100 : vector<32x64xf32>
    %c0_45 = arith.constant 0 : index
    %c0_46 = arith.constant 0 : index
    %102 = vector.load %arg5[%c0_45, %c0_46] : memref<64x64xf32, #tpu.memory_space<vmem>>, vector<64x64xf32>
    %cst_47 = arith.constant dense<0.000000e+00> : vector<32x64xf32>
    %103 = tpu.matmul %101, %102, %cst_47 {dimension_numbers = #tpu.dot_dimension_numbers<[1], [0], [0], [1], [0, 0, 1, 1], [], []>} : vector<32x64xf32>, vector<64x64xf32>, vector<32x64xf32> -> vector<32x64xf32>
    %c0_48 = arith.constant 0 : index
    %c0_49 = arith.constant 0 : index
    %104 = vector.load %arg6[%c0_48, %c0_49] : memref<1x64xf32, #tpu.memory_space<vmem>>, vector<1x64xf32>
    %105 = vector.broadcast %104 : vector<1x64xf32> to vector<32x64xf32>
    %106 = arith.addf %103, %105 : vector<32x64xf32>
    %107 = arith.maximumf %77, %106 : vector<32x64xf32>
    %cst_50 = arith.constant 0x7F800000 : f32
    %108 = vector.broadcast %cst_50 : f32 to vector<32x32xf32>
    %109 = arith.select %89, %108, %79 : vector<32x32xi1>, vector<32x32xf32>
    %cst_51 = arith.constant dense<0x7F800000> : vector<32xf32>
    %110 = vector.multi_reduction <minimumf>, %109, %cst_51 [1] : vector<32x32xf32> to vector<32xf32>
    %111 = vector.shape_cast %110 : vector<32xf32> to vector<32x1xf32>
    %112 = vector.broadcast %111 : vector<32x1xf32> to vector<32x32xf32>
    %113 = arith.cmpf oeq, %109, %112 : vector<32x32xf32>
    %c32_i32_52 = arith.constant 32 : i32
    %114 = vector.broadcast %c32_i32_52 : i32 to vector<32x32xi32>
    %115 = arith.select %113, %6, %114 : vector<32x32xi1>, vector<32x32xi32>
    %cst_53 = arith.constant dense<2147483647> : vector<32xi32>
    %116 = vector.multi_reduction <minsi>, %115, %cst_53 [1] : vector<32x32xi32> to vector<32xi32>
    %117 = vector.shape_cast %116 : vector<32xi32> to vector<32x1xi32>
    %118 = vector.broadcast %117 : vector<32x1xi32> to vector<32x32xi32>
    %119 = arith.cmpi eq, %6, %118 : vector<32x32xi32>
    %120 = arith.extui %119 : vector<32x32xi1> to vector<32x32xi32>
    %121 = arith.sitofp %120 : vector<32x32xi32> to vector<32x32xf32>
    %cst_54 = arith.constant dense<0.000000e+00> : vector<32x3xf32>
    %122 = tpu.matmul %121, %1, %cst_54 {dimension_numbers = #tpu.dot_dimension_numbers<[1], [0], [0], [1], [0, 0, 1, 1], [], []>} : vector<32x32xf32>, vector<32x3xf32>, vector<32x3xf32> -> vector<32x3xf32>
    %123 = arith.subf %122, %1 : vector<32x3xf32>
    %cst_55 = arith.constant dense<0.000000e+00> : vector<32x64xf32>
    %124 = tpu.matmul %123, %16, %cst_55 {dimension_numbers = #tpu.dot_dimension_numbers<[1], [0], [0], [1], [0, 0, 1, 1], [], []>} : vector<32x3xf32>, vector<3x64xf32>, vector<32x64xf32> -> vector<32x64xf32>
    %125 = arith.addf %20, %124 : vector<32x64xf32>
    %126 = vector.broadcast %3 : vector<1x64xf32> to vector<32x64xf32>
    %127 = arith.mulf %125, %126 : vector<32x64xf32>
    %128 = vector.broadcast %5 : vector<1x64xf32> to vector<32x64xf32>
    %129 = arith.addf %127, %128 : vector<32x64xf32>
    %cst_56 = arith.constant 0.000000e+00 : f32
    %130 = vector.broadcast %cst_56 : f32 to vector<32x64xf32>
    %131 = arith.maximumf %129, %130 : vector<32x64xf32>
    %c0_57 = arith.constant 0 : index
    %c0_58 = arith.constant 0 : index
    %132 = vector.load %arg5[%c0_57, %c0_58] : memref<64x64xf32, #tpu.memory_space<vmem>>, vector<64x64xf32>
    %cst_59 = arith.constant dense<0.000000e+00> : vector<32x64xf32>
    %133 = tpu.matmul %131, %132, %cst_59 {dimension_numbers = #tpu.dot_dimension_numbers<[1], [0], [0], [1], [0, 0, 1, 1], [], []>} : vector<32x64xf32>, vector<64x64xf32>, vector<32x64xf32> -> vector<32x64xf32>
    %c0_60 = arith.constant 0 : index
    %c0_61 = arith.constant 0 : index
    %134 = vector.load %arg6[%c0_60, %c0_61] : memref<1x64xf32, #tpu.memory_space<vmem>>, vector<1x64xf32>
    %135 = vector.broadcast %134 : vector<1x64xf32> to vector<32x64xf32>
    %136 = arith.addf %133, %135 : vector<32x64xf32>
    %137 = arith.maximumf %107, %136 : vector<32x64xf32>
    %cst_62 = arith.constant 0x7F800000 : f32
    %138 = vector.broadcast %cst_62 : f32 to vector<32x32xf32>
    %139 = arith.select %119, %138, %109 : vector<32x32xi1>, vector<32x32xf32>
    %cst_63 = arith.constant dense<0x7F800000> : vector<32xf32>
    %140 = vector.multi_reduction <minimumf>, %139, %cst_63 [1] : vector<32x32xf32> to vector<32xf32>
    %141 = vector.shape_cast %140 : vector<32xf32> to vector<32x1xf32>
    %142 = vector.broadcast %141 : vector<32x1xf32> to vector<32x32xf32>
    %143 = arith.cmpf oeq, %139, %142 : vector<32x32xf32>
    %c32_i32_64 = arith.constant 32 : i32
    %144 = vector.broadcast %c32_i32_64 : i32 to vector<32x32xi32>
    %145 = arith.select %143, %6, %144 : vector<32x32xi1>, vector<32x32xi32>
    %cst_65 = arith.constant dense<2147483647> : vector<32xi32>
    %146 = vector.multi_reduction <minsi>, %145, %cst_65 [1] : vector<32x32xi32> to vector<32xi32>
    %147 = vector.shape_cast %146 : vector<32xi32> to vector<32x1xi32>
    %148 = vector.broadcast %147 : vector<32x1xi32> to vector<32x32xi32>
    %149 = arith.cmpi eq, %6, %148 : vector<32x32xi32>
    %150 = arith.extui %149 : vector<32x32xi1> to vector<32x32xi32>
    %151 = arith.sitofp %150 : vector<32x32xi32> to vector<32x32xf32>
    %cst_66 = arith.constant dense<0.000000e+00> : vector<32x3xf32>
    %152 = tpu.matmul %151, %1, %cst_66 {dimension_numbers = #tpu.dot_dimension_numbers<[1], [0], [0], [1], [0, 0, 1, 1], [], []>} : vector<32x32xf32>, vector<32x3xf32>, vector<32x3xf32> -> vector<32x3xf32>
    %153 = arith.subf %152, %1 : vector<32x3xf32>
    %cst_67 = arith.constant dense<0.000000e+00> : vector<32x64xf32>
    %154 = tpu.matmul %153, %16, %cst_67 {dimension_numbers = #tpu.dot_dimension_numbers<[1], [0], [0], [1], [0, 0, 1, 1], [], []>} : vector<32x3xf32>, vector<3x64xf32>, vector<32x64xf32> -> vector<32x64xf32>
    %155 = arith.addf %20, %154 : vector<32x64xf32>
    %156 = vector.broadcast %3 : vector<1x64xf32> to vector<32x64xf32>
    %157 = arith.mulf %155, %156 : vector<32x64xf32>
    %158 = vector.broadcast %5 : vector<1x64xf32> to vector<32x64xf32>
    %159 = arith.addf %157, %158 : vector<32x64xf32>
    %cst_68 = arith.constant 0.000000e+00 : f32
    %160 = vector.broadcast %cst_68 : f32 to vector<32x64xf32>
    %161 = arith.maximumf %159, %160 : vector<32x64xf32>
    %c0_69 = arith.constant 0 : index
    %c0_70 = arith.constant 0 : index
    %162 = vector.load %arg5[%c0_69, %c0_70] : memref<64x64xf32, #tpu.memory_space<vmem>>, vector<64x64xf32>
    %cst_71 = arith.constant dense<0.000000e+00> : vector<32x64xf32>
    %163 = tpu.matmul %161, %162, %cst_71 {dimension_numbers = #tpu.dot_dimension_numbers<[1], [0], [0], [1], [0, 0, 1, 1], [], []>} : vector<32x64xf32>, vector<64x64xf32>, vector<32x64xf32> -> vector<32x64xf32>
    %c0_72 = arith.constant 0 : index
    %c0_73 = arith.constant 0 : index
    %164 = vector.load %arg6[%c0_72, %c0_73] : memref<1x64xf32, #tpu.memory_space<vmem>>, vector<1x64xf32>
    %165 = vector.broadcast %164 : vector<1x64xf32> to vector<32x64xf32>
    %166 = arith.addf %163, %165 : vector<32x64xf32>
    %167 = arith.maximumf %137, %166 : vector<32x64xf32>
    %cst_74 = arith.constant 0x7F800000 : f32
    %168 = vector.broadcast %cst_74 : f32 to vector<32x32xf32>
    %169 = arith.select %149, %168, %139 : vector<32x32xi1>, vector<32x32xf32>
    %cst_75 = arith.constant dense<0x7F800000> : vector<32xf32>
    %170 = vector.multi_reduction <minimumf>, %169, %cst_75 [1] : vector<32x32xf32> to vector<32xf32>
    %171 = vector.shape_cast %170 : vector<32xf32> to vector<32x1xf32>
    %172 = vector.broadcast %171 : vector<32x1xf32> to vector<32x32xf32>
    %173 = arith.cmpf oeq, %169, %172 : vector<32x32xf32>
    %c32_i32_76 = arith.constant 32 : i32
    %174 = vector.broadcast %c32_i32_76 : i32 to vector<32x32xi32>
    %175 = arith.select %173, %6, %174 : vector<32x32xi1>, vector<32x32xi32>
    %cst_77 = arith.constant dense<2147483647> : vector<32xi32>
    %176 = vector.multi_reduction <minsi>, %175, %cst_77 [1] : vector<32x32xi32> to vector<32xi32>
    %177 = vector.shape_cast %176 : vector<32xi32> to vector<32x1xi32>
    %178 = vector.broadcast %177 : vector<32x1xi32> to vector<32x32xi32>
    %179 = arith.cmpi eq, %6, %178 : vector<32x32xi32>
    %180 = arith.extui %179 : vector<32x32xi1> to vector<32x32xi32>
    %181 = arith.sitofp %180 : vector<32x32xi32> to vector<32x32xf32>
    %cst_78 = arith.constant dense<0.000000e+00> : vector<32x3xf32>
    %182 = tpu.matmul %181, %1, %cst_78 {dimension_numbers = #tpu.dot_dimension_numbers<[1], [0], [0], [1], [0, 0, 1, 1], [], []>} : vector<32x32xf32>, vector<32x3xf32>, vector<32x3xf32> -> vector<32x3xf32>
    %183 = arith.subf %182, %1 : vector<32x3xf32>
    %cst_79 = arith.constant dense<0.000000e+00> : vector<32x64xf32>
    %184 = tpu.matmul %183, %16, %cst_79 {dimension_numbers = #tpu.dot_dimension_numbers<[1], [0], [0], [1], [0, 0, 1, 1], [], []>} : vector<32x3xf32>, vector<3x64xf32>, vector<32x64xf32> -> vector<32x64xf32>
    %185 = arith.addf %20, %184 : vector<32x64xf32>
    %186 = vector.broadcast %3 : vector<1x64xf32> to vector<32x64xf32>
    %187 = arith.mulf %185, %186 : vector<32x64xf32>
    %188 = vector.broadcast %5 : vector<1x64xf32> to vector<32x64xf32>
    %189 = arith.addf %187, %188 : vector<32x64xf32>
    %cst_80 = arith.constant 0.000000e+00 : f32
    %190 = vector.broadcast %cst_80 : f32 to vector<32x64xf32>
    %191 = arith.maximumf %189, %190 : vector<32x64xf32>
    %c0_81 = arith.constant 0 : index
    %c0_82 = arith.constant 0 : index
    %192 = vector.load %arg5[%c0_81, %c0_82] : memref<64x64xf32, #tpu.memory_space<vmem>>, vector<64x64xf32>
    %cst_83 = arith.constant dense<0.000000e+00> : vector<32x64xf32>
    %193 = tpu.matmul %191, %192, %cst_83 {dimension_numbers = #tpu.dot_dimension_numbers<[1], [0], [0], [1], [0, 0, 1, 1], [], []>} : vector<32x64xf32>, vector<64x64xf32>, vector<32x64xf32> -> vector<32x64xf32>
    %c0_84 = arith.constant 0 : index
    %c0_85 = arith.constant 0 : index
    %194 = vector.load %arg6[%c0_84, %c0_85] : memref<1x64xf32, #tpu.memory_space<vmem>>, vector<1x64xf32>
    %195 = vector.broadcast %194 : vector<1x64xf32> to vector<32x64xf32>
    %196 = arith.addf %193, %195 : vector<32x64xf32>
    %197 = arith.maximumf %167, %196 : vector<32x64xf32>
    %cst_86 = arith.constant 0x7F800000 : f32
    %198 = vector.broadcast %cst_86 : f32 to vector<32x32xf32>
    %199 = arith.select %179, %198, %169 : vector<32x32xi1>, vector<32x32xf32>
    %cst_87 = arith.constant dense<0x7F800000> : vector<32xf32>
    %200 = vector.multi_reduction <minimumf>, %199, %cst_87 [1] : vector<32x32xf32> to vector<32xf32>
    %201 = vector.shape_cast %200 : vector<32xf32> to vector<32x1xf32>
    %202 = vector.broadcast %201 : vector<32x1xf32> to vector<32x32xf32>
    %203 = arith.cmpf oeq, %199, %202 : vector<32x32xf32>
    %c32_i32_88 = arith.constant 32 : i32
    %204 = vector.broadcast %c32_i32_88 : i32 to vector<32x32xi32>
    %205 = arith.select %203, %6, %204 : vector<32x32xi1>, vector<32x32xi32>
    %cst_89 = arith.constant dense<2147483647> : vector<32xi32>
    %206 = vector.multi_reduction <minsi>, %205, %cst_89 [1] : vector<32x32xi32> to vector<32xi32>
    %207 = vector.shape_cast %206 : vector<32xi32> to vector<32x1xi32>
    %208 = vector.broadcast %207 : vector<32x1xi32> to vector<32x32xi32>
    %209 = arith.cmpi eq, %6, %208 : vector<32x32xi32>
    %210 = arith.extui %209 : vector<32x32xi1> to vector<32x32xi32>
    %211 = arith.sitofp %210 : vector<32x32xi32> to vector<32x32xf32>
    %cst_90 = arith.constant dense<0.000000e+00> : vector<32x3xf32>
    %212 = tpu.matmul %211, %1, %cst_90 {dimension_numbers = #tpu.dot_dimension_numbers<[1], [0], [0], [1], [0, 0, 1, 1], [], []>} : vector<32x32xf32>, vector<32x3xf32>, vector<32x3xf32> -> vector<32x3xf32>
    %213 = arith.subf %212, %1 : vector<32x3xf32>
    %cst_91 = arith.constant dense<0.000000e+00> : vector<32x64xf32>
    %214 = tpu.matmul %213, %16, %cst_91 {dimension_numbers = #tpu.dot_dimension_numbers<[1], [0], [0], [1], [0, 0, 1, 1], [], []>} : vector<32x3xf32>, vector<3x64xf32>, vector<32x64xf32> -> vector<32x64xf32>
    %215 = arith.addf %20, %214 : vector<32x64xf32>
    %216 = vector.broadcast %3 : vector<1x64xf32> to vector<32x64xf32>
    %217 = arith.mulf %215, %216 : vector<32x64xf32>
    %218 = vector.broadcast %5 : vector<1x64xf32> to vector<32x64xf32>
    %219 = arith.addf %217, %218 : vector<32x64xf32>
    %cst_92 = arith.constant 0.000000e+00 : f32
    %220 = vector.broadcast %cst_92 : f32 to vector<32x64xf32>
    %221 = arith.maximumf %219, %220 : vector<32x64xf32>
    %c0_93 = arith.constant 0 : index
    %c0_94 = arith.constant 0 : index
    %222 = vector.load %arg5[%c0_93, %c0_94] : memref<64x64xf32, #tpu.memory_space<vmem>>, vector<64x64xf32>
    %cst_95 = arith.constant dense<0.000000e+00> : vector<32x64xf32>
    %223 = tpu.matmul %221, %222, %cst_95 {dimension_numbers = #tpu.dot_dimension_numbers<[1], [0], [0], [1], [0, 0, 1, 1], [], []>} : vector<32x64xf32>, vector<64x64xf32>, vector<32x64xf32> -> vector<32x64xf32>
    %c0_96 = arith.constant 0 : index
    %c0_97 = arith.constant 0 : index
    %224 = vector.load %arg6[%c0_96, %c0_97] : memref<1x64xf32, #tpu.memory_space<vmem>>, vector<1x64xf32>
    %225 = vector.broadcast %224 : vector<1x64xf32> to vector<32x64xf32>
    %226 = arith.addf %223, %225 : vector<32x64xf32>
    %227 = arith.maximumf %197, %226 : vector<32x64xf32>
    %cst_98 = arith.constant 0x7F800000 : f32
    %228 = vector.broadcast %cst_98 : f32 to vector<32x32xf32>
    %229 = arith.select %209, %228, %199 : vector<32x32xi1>, vector<32x32xf32>
    %cst_99 = arith.constant dense<0x7F800000> : vector<32xf32>
    %230 = vector.multi_reduction <minimumf>, %229, %cst_99 [1] : vector<32x32xf32> to vector<32xf32>
    %231 = vector.shape_cast %230 : vector<32xf32> to vector<32x1xf32>
    %232 = vector.broadcast %231 : vector<32x1xf32> to vector<32x32xf32>
    %233 = arith.cmpf oeq, %229, %232 : vector<32x32xf32>
    %c32_i32_100 = arith.constant 32 : i32
    %234 = vector.broadcast %c32_i32_100 : i32 to vector<32x32xi32>
    %235 = arith.select %233, %6, %234 : vector<32x32xi1>, vector<32x32xi32>
    %cst_101 = arith.constant dense<2147483647> : vector<32xi32>
    %236 = vector.multi_reduction <minsi>, %235, %cst_101 [1] : vector<32x32xi32> to vector<32xi32>
    %237 = vector.shape_cast %236 : vector<32xi32> to vector<32x1xi32>
    %238 = vector.broadcast %237 : vector<32x1xi32> to vector<32x32xi32>
    %239 = arith.cmpi eq, %6, %238 : vector<32x32xi32>
    %240 = arith.extui %239 : vector<32x32xi1> to vector<32x32xi32>
    %241 = arith.sitofp %240 : vector<32x32xi32> to vector<32x32xf32>
    %cst_102 = arith.constant dense<0.000000e+00> : vector<32x3xf32>
    %242 = tpu.matmul %241, %1, %cst_102 {dimension_numbers = #tpu.dot_dimension_numbers<[1], [0], [0], [1], [0, 0, 1, 1], [], []>} : vector<32x32xf32>, vector<32x3xf32>, vector<32x3xf32> -> vector<32x3xf32>
    %243 = arith.subf %242, %1 : vector<32x3xf32>
    %cst_103 = arith.constant dense<0.000000e+00> : vector<32x64xf32>
    %244 = tpu.matmul %243, %16, %cst_103 {dimension_numbers = #tpu.dot_dimension_numbers<[1], [0], [0], [1], [0, 0, 1, 1], [], []>} : vector<32x3xf32>, vector<3x64xf32>, vector<32x64xf32> -> vector<32x64xf32>
    %245 = arith.addf %20, %244 : vector<32x64xf32>
    %246 = vector.broadcast %3 : vector<1x64xf32> to vector<32x64xf32>
    %247 = arith.mulf %245, %246 : vector<32x64xf32>
    %248 = vector.broadcast %5 : vector<1x64xf32> to vector<32x64xf32>
    %249 = arith.addf %247, %248 : vector<32x64xf32>
    %cst_104 = arith.constant 0.000000e+00 : f32
    %250 = vector.broadcast %cst_104 : f32 to vector<32x64xf32>
    %251 = arith.maximumf %249, %250 : vector<32x64xf32>
    %c0_105 = arith.constant 0 : index
    %c0_106 = arith.constant 0 : index
    %252 = vector.load %arg5[%c0_105, %c0_106] : memref<64x64xf32, #tpu.memory_space<vmem>>, vector<64x64xf32>
    %cst_107 = arith.constant dense<0.000000e+00> : vector<32x64xf32>
    %253 = tpu.matmul %251, %252, %cst_107 {dimension_numbers = #tpu.dot_dimension_numbers<[1], [0], [0], [1], [0, 0, 1, 1], [], []>} : vector<32x64xf32>, vector<64x64xf32>, vector<32x64xf32> -> vector<32x64xf32>
    %c0_108 = arith.constant 0 : index
    %c0_109 = arith.constant 0 : index
    %254 = vector.load %arg6[%c0_108, %c0_109] : memref<1x64xf32, #tpu.memory_space<vmem>>, vector<1x64xf32>
    %255 = vector.broadcast %254 : vector<1x64xf32> to vector<32x64xf32>
    %256 = arith.addf %253, %255 : vector<32x64xf32>
    %257 = arith.maximumf %227, %256 : vector<32x64xf32>
    %cst_110 = arith.constant dense<0.000000e+00> : vector<32x32xf32>
    %258 = tpu.matmul %257, %257, %cst_110 {dimension_numbers = #tpu.dot_dimension_numbers<[1], [1], [0], [0], [0, 0, 1, 0], [], []>} : vector<32x64xf32>, vector<32x64xf32>, vector<32x32xf32> -> vector<32x32xf32>
    %259 = arith.mulf %257, %257 : vector<32x64xf32>
    %cst_111 = arith.constant 1.000000e+00 : f32
    %260 = vector.broadcast %cst_111 : f32 to vector<1x64xf32>
    %cst_112 = arith.constant dense<0.000000e+00> : vector<1x32xf32>
    %261 = tpu.matmul %260, %259, %cst_112 {dimension_numbers = #tpu.dot_dimension_numbers<[1], [1], [0], [0], [0, 0, 1, 0], [], []>} : vector<1x64xf32>, vector<32x64xf32>, vector<1x32xf32> -> vector<1x32xf32>
    %cst_113 = arith.constant 2.000000e+00 : f32
    %262 = vector.broadcast %cst_113 : f32 to vector<32x32xf32>
    %263 = arith.mulf %262, %258 : vector<32x32xf32>
    %264 = vector.broadcast %261 : vector<1x32xf32> to vector<32x32xf32>
    %265 = arith.subf %264, %263 : vector<32x32xf32>
    %c0_114 = arith.constant 0 : index
    %c0_115 = arith.constant 0 : index
    %266 = vector.load %arg7[%c0_114, %c0_115] : memref<128x128xf32, #tpu.memory_space<vmem>>, vector<64x128xf32>
    %c64 = arith.constant 64 : index
    %c0_116 = arith.constant 0 : index
    %267 = vector.load %arg7[%c64, %c0_116] : memref<128x128xf32, #tpu.memory_space<vmem>>, vector<64x128xf32>
    %cst_117 = arith.constant dense<0.000000e+00> : vector<32x128xf32>
    %268 = tpu.matmul %257, %266, %cst_117 {dimension_numbers = #tpu.dot_dimension_numbers<[1], [0], [0], [1], [0, 0, 1, 1], [], []>} : vector<32x64xf32>, vector<64x128xf32>, vector<32x128xf32> -> vector<32x128xf32>
    %c0_118 = arith.constant 0 : index
    %c0_119 = arith.constant 0 : index
    %269 = vector.load %arg8[%c0_118, %c0_119] : memref<1x128xf32, #tpu.memory_space<vmem>>, vector<1x128xf32>
    %270 = vector.broadcast %269 : vector<1x128xf32> to vector<32x128xf32>
    %271 = arith.addf %268, %270 : vector<32x128xf32>
    %cst_120 = arith.constant dense<0x7F800000> : vector<32xf32>
    %272 = vector.multi_reduction <minimumf>, %265, %cst_120 [1] : vector<32x32xf32> to vector<32xf32>
    %273 = vector.shape_cast %272 : vector<32xf32> to vector<32x1xf32>
    %274 = vector.broadcast %273 : vector<32x1xf32> to vector<32x32xf32>
    %275 = arith.cmpf oeq, %265, %274 : vector<32x32xf32>
    %c32_i32_121 = arith.constant 32 : i32
    %276 = vector.broadcast %c32_i32_121 : i32 to vector<32x32xi32>
    %277 = arith.select %275, %6, %276 : vector<32x32xi1>, vector<32x32xi32>
    %cst_122 = arith.constant dense<2147483647> : vector<32xi32>
    %278 = vector.multi_reduction <minsi>, %277, %cst_122 [1] : vector<32x32xi32> to vector<32xi32>
    %279 = vector.shape_cast %278 : vector<32xi32> to vector<32x1xi32>
    %280 = vector.broadcast %279 : vector<32x1xi32> to vector<32x32xi32>
    %281 = arith.cmpi eq, %6, %280 : vector<32x32xi32>
    %282 = arith.extui %281 : vector<32x32xi1> to vector<32x32xi32>
    %283 = arith.sitofp %282 : vector<32x32xi32> to vector<32x32xf32>
    %cst_123 = arith.constant dense<0.000000e+00> : vector<32x64xf32>
    %284 = tpu.matmul %283, %257, %cst_123 {dimension_numbers = #tpu.dot_dimension_numbers<[1], [0], [0], [1], [0, 0, 1, 1], [], []>} : vector<32x32xf32>, vector<32x64xf32>, vector<32x64xf32> -> vector<32x64xf32>
    %285 = arith.subf %284, %257 : vector<32x64xf32>
    %cst_124 = arith.constant dense<0.000000e+00> : vector<32x128xf32>
    %286 = tpu.matmul %285, %267, %cst_124 {dimension_numbers = #tpu.dot_dimension_numbers<[1], [0], [0], [1], [0, 0, 1, 1], [], []>} : vector<32x64xf32>, vector<64x128xf32>, vector<32x128xf32> -> vector<32x128xf32>
    %cst_125 = arith.constant 0x7F800000 : f32
    %287 = vector.broadcast %cst_125 : f32 to vector<32x32xf32>
    %288 = arith.select %281, %287, %265 : vector<32x32xi1>, vector<32x32xf32>
    %cst_126 = arith.constant dense<0x7F800000> : vector<32xf32>
    %289 = vector.multi_reduction <minimumf>, %288, %cst_126 [1] : vector<32x32xf32> to vector<32xf32>
    %290 = vector.shape_cast %289 : vector<32xf32> to vector<32x1xf32>
    %291 = vector.broadcast %290 : vector<32x1xf32> to vector<32x32xf32>
    %292 = arith.cmpf oeq, %288, %291 : vector<32x32xf32>
    %c32_i32_127 = arith.constant 32 : i32
    %293 = vector.broadcast %c32_i32_127 : i32 to vector<32x32xi32>
    %294 = arith.select %292, %6, %293 : vector<32x32xi1>, vector<32x32xi32>
    %cst_128 = arith.constant dense<2147483647> : vector<32xi32>
    %295 = vector.multi_reduction <minsi>, %294, %cst_128 [1] : vector<32x32xi32> to vector<32xi32>
    %296 = vector.shape_cast %295 : vector<32xi32> to vector<32x1xi32>
    %297 = vector.broadcast %296 : vector<32x1xi32> to vector<32x32xi32>
    %298 = arith.cmpi eq, %6, %297 : vector<32x32xi32>
    %299 = arith.extui %298 : vector<32x32xi1> to vector<32x32xi32>
    %300 = arith.sitofp %299 : vector<32x32xi32> to vector<32x32xf32>
    %cst_129 = arith.constant dense<0.000000e+00> : vector<32x64xf32>
    %301 = tpu.matmul %300, %257, %cst_129 {dimension_numbers = #tpu.dot_dimension_numbers<[1], [0], [0], [1], [0, 0, 1, 1], [], []>} : vector<32x32xf32>, vector<32x64xf32>, vector<32x64xf32> -> vector<32x64xf32>
    %302 = arith.subf %301, %257 : vector<32x64xf32>
    %cst_130 = arith.constant dense<0.000000e+00> : vector<32x128xf32>
    %303 = tpu.matmul %302, %267, %cst_130 {dimension_numbers = #tpu.dot_dimension_numbers<[1], [0], [0], [1], [0, 0, 1, 1], [], []>} : vector<32x64xf32>, vector<64x128xf32>, vector<32x128xf32> -> vector<32x128xf32>
    %304 = arith.maximumf %286, %303 : vector<32x128xf32>
    %cst_131 = arith.constant 0x7F800000 : f32
    %305 = vector.broadcast %cst_131 : f32 to vector<32x32xf32>
    %306 = arith.select %298, %305, %288 : vector<32x32xi1>, vector<32x32xf32>
    %cst_132 = arith.constant dense<0x7F800000> : vector<32xf32>
    %307 = vector.multi_reduction <minimumf>, %306, %cst_132 [1] : vector<32x32xf32> to vector<32xf32>
    %308 = vector.shape_cast %307 : vector<32xf32> to vector<32x1xf32>
    %309 = vector.broadcast %308 : vector<32x1xf32> to vector<32x32xf32>
    %310 = arith.cmpf oeq, %306, %309 : vector<32x32xf32>
    %c32_i32_133 = arith.constant 32 : i32
    %311 = vector.broadcast %c32_i32_133 : i32 to vector<32x32xi32>
    %312 = arith.select %310, %6, %311 : vector<32x32xi1>, vector<32x32xi32>
    %cst_134 = arith.constant dense<2147483647> : vector<32xi32>
    %313 = vector.multi_reduction <minsi>, %312, %cst_134 [1] : vector<32x32xi32> to vector<32xi32>
    %314 = vector.shape_cast %313 : vector<32xi32> to vector<32x1xi32>
    %315 = vector.broadcast %314 : vector<32x1xi32> to vector<32x32xi32>
    %316 = arith.cmpi eq, %6, %315 : vector<32x32xi32>
    %317 = arith.extui %316 : vector<32x32xi1> to vector<32x32xi32>
    %318 = arith.sitofp %317 : vector<32x32xi32> to vector<32x32xf32>
    %cst_135 = arith.constant dense<0.000000e+00> : vector<32x64xf32>
    %319 = tpu.matmul %318, %257, %cst_135 {dimension_numbers = #tpu.dot_dimension_numbers<[1], [0], [0], [1], [0, 0, 1, 1], [], []>} : vector<32x32xf32>, vector<32x64xf32>, vector<32x64xf32> -> vector<32x64xf32>
    %320 = arith.subf %319, %257 : vector<32x64xf32>
    %cst_136 = arith.constant dense<0.000000e+00> : vector<32x128xf32>
    %321 = tpu.matmul %320, %267, %cst_136 {dimension_numbers = #tpu.dot_dimension_numbers<[1], [0], [0], [1], [0, 0, 1, 1], [], []>} : vector<32x64xf32>, vector<64x128xf32>, vector<32x128xf32> -> vector<32x128xf32>
    %322 = arith.maximumf %304, %321 : vector<32x128xf32>
    %cst_137 = arith.constant 0x7F800000 : f32
    %323 = vector.broadcast %cst_137 : f32 to vector<32x32xf32>
    %324 = arith.select %316, %323, %306 : vector<32x32xi1>, vector<32x32xf32>
    %cst_138 = arith.constant dense<0x7F800000> : vector<32xf32>
    %325 = vector.multi_reduction <minimumf>, %324, %cst_138 [1] : vector<32x32xf32> to vector<32xf32>
    %326 = vector.shape_cast %325 : vector<32xf32> to vector<32x1xf32>
    %327 = vector.broadcast %326 : vector<32x1xf32> to vector<32x32xf32>
    %328 = arith.cmpf oeq, %324, %327 : vector<32x32xf32>
    %c32_i32_139 = arith.constant 32 : i32
    %329 = vector.broadcast %c32_i32_139 : i32 to vector<32x32xi32>
    %330 = arith.select %328, %6, %329 : vector<32x32xi1>, vector<32x32xi32>
    %cst_140 = arith.constant dense<2147483647> : vector<32xi32>
    %331 = vector.multi_reduction <minsi>, %330, %cst_140 [1] : vector<32x32xi32> to vector<32xi32>
    %332 = vector.shape_cast %331 : vector<32xi32> to vector<32x1xi32>
    %333 = vector.broadcast %332 : vector<32x1xi32> to vector<32x32xi32>
    %334 = arith.cmpi eq, %6, %333 : vector<32x32xi32>
    %335 = arith.extui %334 : vector<32x32xi1> to vector<32x32xi32>
    %336 = arith.sitofp %335 : vector<32x32xi32> to vector<32x32xf32>
    %cst_141 = arith.constant dense<0.000000e+00> : vector<32x64xf32>
    %337 = tpu.matmul %336, %257, %cst_141 {dimension_numbers = #tpu.dot_dimension_numbers<[1], [0], [0], [1], [0, 0, 1, 1], [], []>} : vector<32x32xf32>, vector<32x64xf32>, vector<32x64xf32> -> vector<32x64xf32>
    %338 = arith.subf %337, %257 : vector<32x64xf32>
    %cst_142 = arith.constant dense<0.000000e+00> : vector<32x128xf32>
    %339 = tpu.matmul %338, %267, %cst_142 {dimension_numbers = #tpu.dot_dimension_numbers<[1], [0], [0], [1], [0, 0, 1, 1], [], []>} : vector<32x64xf32>, vector<64x128xf32>, vector<32x128xf32> -> vector<32x128xf32>
    %340 = arith.maximumf %322, %339 : vector<32x128xf32>
    %cst_143 = arith.constant 0x7F800000 : f32
    %341 = vector.broadcast %cst_143 : f32 to vector<32x32xf32>
    %342 = arith.select %334, %341, %324 : vector<32x32xi1>, vector<32x32xf32>
    %cst_144 = arith.constant dense<0x7F800000> : vector<32xf32>
    %343 = vector.multi_reduction <minimumf>, %342, %cst_144 [1] : vector<32x32xf32> to vector<32xf32>
    %344 = vector.shape_cast %343 : vector<32xf32> to vector<32x1xf32>
    %345 = vector.broadcast %344 : vector<32x1xf32> to vector<32x32xf32>
    %346 = arith.cmpf oeq, %342, %345 : vector<32x32xf32>
    %c32_i32_145 = arith.constant 32 : i32
    %347 = vector.broadcast %c32_i32_145 : i32 to vector<32x32xi32>
    %348 = arith.select %346, %6, %347 : vector<32x32xi1>, vector<32x32xi32>
    %cst_146 = arith.constant dense<2147483647> : vector<32xi32>
    %349 = vector.multi_reduction <minsi>, %348, %cst_146 [1] : vector<32x32xi32> to vector<32xi32>
    %350 = vector.shape_cast %349 : vector<32xi32> to vector<32x1xi32>
    %351 = vector.broadcast %350 : vector<32x1xi32> to vector<32x32xi32>
    %352 = arith.cmpi eq, %6, %351 : vector<32x32xi32>
    %353 = arith.extui %352 : vector<32x32xi1> to vector<32x32xi32>
    %354 = arith.sitofp %353 : vector<32x32xi32> to vector<32x32xf32>
    %cst_147 = arith.constant dense<0.000000e+00> : vector<32x64xf32>
    %355 = tpu.matmul %354, %257, %cst_147 {dimension_numbers = #tpu.dot_dimension_numbers<[1], [0], [0], [1], [0, 0, 1, 1], [], []>} : vector<32x32xf32>, vector<32x64xf32>, vector<32x64xf32> -> vector<32x64xf32>
    %356 = arith.subf %355, %257 : vector<32x64xf32>
    %cst_148 = arith.constant dense<0.000000e+00> : vector<32x128xf32>
    %357 = tpu.matmul %356, %267, %cst_148 {dimension_numbers = #tpu.dot_dimension_numbers<[1], [0], [0], [1], [0, 0, 1, 1], [], []>} : vector<32x64xf32>, vector<64x128xf32>, vector<32x128xf32> -> vector<32x128xf32>
    %358 = arith.maximumf %340, %357 : vector<32x128xf32>
    %cst_149 = arith.constant 0x7F800000 : f32
    %359 = vector.broadcast %cst_149 : f32 to vector<32x32xf32>
    %360 = arith.select %352, %359, %342 : vector<32x32xi1>, vector<32x32xf32>
    %cst_150 = arith.constant dense<0x7F800000> : vector<32xf32>
    %361 = vector.multi_reduction <minimumf>, %360, %cst_150 [1] : vector<32x32xf32> to vector<32xf32>
    %362 = vector.shape_cast %361 : vector<32xf32> to vector<32x1xf32>
    %363 = vector.broadcast %362 : vector<32x1xf32> to vector<32x32xf32>
    %364 = arith.cmpf oeq, %360, %363 : vector<32x32xf32>
    %c32_i32_151 = arith.constant 32 : i32
    %365 = vector.broadcast %c32_i32_151 : i32 to vector<32x32xi32>
    %366 = arith.select %364, %6, %365 : vector<32x32xi1>, vector<32x32xi32>
    %cst_152 = arith.constant dense<2147483647> : vector<32xi32>
    %367 = vector.multi_reduction <minsi>, %366, %cst_152 [1] : vector<32x32xi32> to vector<32xi32>
    %368 = vector.shape_cast %367 : vector<32xi32> to vector<32x1xi32>
    %369 = vector.broadcast %368 : vector<32x1xi32> to vector<32x32xi32>
    %370 = arith.cmpi eq, %6, %369 : vector<32x32xi32>
    %371 = arith.extui %370 : vector<32x32xi1> to vector<32x32xi32>
    %372 = arith.sitofp %371 : vector<32x32xi32> to vector<32x32xf32>
    %cst_153 = arith.constant dense<0.000000e+00> : vector<32x64xf32>
    %373 = tpu.matmul %372, %257, %cst_153 {dimension_numbers = #tpu.dot_dimension_numbers<[1], [0], [0], [1], [0, 0, 1, 1], [], []>} : vector<32x32xf32>, vector<32x64xf32>, vector<32x64xf32> -> vector<32x64xf32>
    %374 = arith.subf %373, %257 : vector<32x64xf32>
    %cst_154 = arith.constant dense<0.000000e+00> : vector<32x128xf32>
    %375 = tpu.matmul %374, %267, %cst_154 {dimension_numbers = #tpu.dot_dimension_numbers<[1], [0], [0], [1], [0, 0, 1, 1], [], []>} : vector<32x64xf32>, vector<64x128xf32>, vector<32x128xf32> -> vector<32x128xf32>
    %376 = arith.maximumf %358, %375 : vector<32x128xf32>
    %cst_155 = arith.constant 0x7F800000 : f32
    %377 = vector.broadcast %cst_155 : f32 to vector<32x32xf32>
    %378 = arith.select %370, %377, %360 : vector<32x32xi1>, vector<32x32xf32>
    %cst_156 = arith.constant dense<0x7F800000> : vector<32xf32>
    %379 = vector.multi_reduction <minimumf>, %378, %cst_156 [1] : vector<32x32xf32> to vector<32xf32>
    %380 = vector.shape_cast %379 : vector<32xf32> to vector<32x1xf32>
    %381 = vector.broadcast %380 : vector<32x1xf32> to vector<32x32xf32>
    %382 = arith.cmpf oeq, %378, %381 : vector<32x32xf32>
    %c32_i32_157 = arith.constant 32 : i32
    %383 = vector.broadcast %c32_i32_157 : i32 to vector<32x32xi32>
    %384 = arith.select %382, %6, %383 : vector<32x32xi1>, vector<32x32xi32>
    %cst_158 = arith.constant dense<2147483647> : vector<32xi32>
    %385 = vector.multi_reduction <minsi>, %384, %cst_158 [1] : vector<32x32xi32> to vector<32xi32>
    %386 = vector.shape_cast %385 : vector<32xi32> to vector<32x1xi32>
    %387 = vector.broadcast %386 : vector<32x1xi32> to vector<32x32xi32>
    %388 = arith.cmpi eq, %6, %387 : vector<32x32xi32>
    %389 = arith.extui %388 : vector<32x32xi1> to vector<32x32xi32>
    %390 = arith.sitofp %389 : vector<32x32xi32> to vector<32x32xf32>
    %cst_159 = arith.constant dense<0.000000e+00> : vector<32x64xf32>
    %391 = tpu.matmul %390, %257, %cst_159 {dimension_numbers = #tpu.dot_dimension_numbers<[1], [0], [0], [1], [0, 0, 1, 1], [], []>} : vector<32x32xf32>, vector<32x64xf32>, vector<32x64xf32> -> vector<32x64xf32>
    %392 = arith.subf %391, %257 : vector<32x64xf32>
    %cst_160 = arith.constant dense<0.000000e+00> : vector<32x128xf32>
    %393 = tpu.matmul %392, %267, %cst_160 {dimension_numbers = #tpu.dot_dimension_numbers<[1], [0], [0], [1], [0, 0, 1, 1], [], []>} : vector<32x64xf32>, vector<64x128xf32>, vector<32x128xf32> -> vector<32x128xf32>
    %394 = arith.maximumf %376, %393 : vector<32x128xf32>
    %cst_161 = arith.constant 0x7F800000 : f32
    %395 = vector.broadcast %cst_161 : f32 to vector<32x32xf32>
    %396 = arith.select %388, %395, %378 : vector<32x32xi1>, vector<32x32xf32>
    %cst_162 = arith.constant dense<0x7F800000> : vector<32xf32>
    %397 = vector.multi_reduction <minimumf>, %396, %cst_162 [1] : vector<32x32xf32> to vector<32xf32>
    %398 = vector.shape_cast %397 : vector<32xf32> to vector<32x1xf32>
    %399 = vector.broadcast %398 : vector<32x1xf32> to vector<32x32xf32>
    %400 = arith.cmpf oeq, %396, %399 : vector<32x32xf32>
    %c32_i32_163 = arith.constant 32 : i32
    %401 = vector.broadcast %c32_i32_163 : i32 to vector<32x32xi32>
    %402 = arith.select %400, %6, %401 : vector<32x32xi1>, vector<32x32xi32>
    %cst_164 = arith.constant dense<2147483647> : vector<32xi32>
    %403 = vector.multi_reduction <minsi>, %402, %cst_164 [1] : vector<32x32xi32> to vector<32xi32>
    %404 = vector.shape_cast %403 : vector<32xi32> to vector<32x1xi32>
    %405 = vector.broadcast %404 : vector<32x1xi32> to vector<32x32xi32>
    %406 = arith.cmpi eq, %6, %405 : vector<32x32xi32>
    %407 = arith.extui %406 : vector<32x32xi1> to vector<32x32xi32>
    %408 = arith.sitofp %407 : vector<32x32xi32> to vector<32x32xf32>
    %cst_165 = arith.constant dense<0.000000e+00> : vector<32x64xf32>
    %409 = tpu.matmul %408, %257, %cst_165 {dimension_numbers = #tpu.dot_dimension_numbers<[1], [0], [0], [1], [0, 0, 1, 1], [], []>} : vector<32x32xf32>, vector<32x64xf32>, vector<32x64xf32> -> vector<32x64xf32>
    %410 = arith.subf %409, %257 : vector<32x64xf32>
    %cst_166 = arith.constant dense<0.000000e+00> : vector<32x128xf32>
    %411 = tpu.matmul %410, %267, %cst_166 {dimension_numbers = #tpu.dot_dimension_numbers<[1], [0], [0], [1], [0, 0, 1, 1], [], []>} : vector<32x64xf32>, vector<64x128xf32>, vector<32x128xf32> -> vector<32x128xf32>
    %412 = arith.maximumf %394, %411 : vector<32x128xf32>
    %413 = arith.addf %271, %412 : vector<32x128xf32>
    %c0_167 = arith.constant 0 : index
    %c0_168 = arith.constant 0 : index
    %414 = vector.load %arg9[%c0_167, %c0_168] : memref<192x128xf32, #tpu.memory_space<vmem>>, vector<192x128xf32>
    %415 = vector.extract_strided_slice %414 {offsets = [0, 0], sizes = [64, 128], strides = [1, 1]} : vector<192x128xf32> to vector<64x128xf32>
    %cst_169 = arith.constant dense<0.000000e+00> : vector<32x128xf32>
    %416 = tpu.matmul %257, %415, %cst_169 {dimension_numbers = #tpu.dot_dimension_numbers<[1], [0], [0], [1], [0, 0, 1, 1], [], []>} : vector<32x64xf32>, vector<64x128xf32>, vector<32x128xf32> -> vector<32x128xf32>
    %417 = vector.extract_strided_slice %414 {offsets = [64, 0], sizes = [128, 128], strides = [1, 1]} : vector<192x128xf32> to vector<128x128xf32>
    %cst_170 = arith.constant dense<0.000000e+00> : vector<32x128xf32>
    %418 = tpu.matmul %413, %417, %cst_170 {dimension_numbers = #tpu.dot_dimension_numbers<[1], [0], [0], [1], [0, 0, 1, 1], [], []>} : vector<32x128xf32>, vector<128x128xf32>, vector<32x128xf32> -> vector<32x128xf32>
    %419 = arith.addf %416, %418 : vector<32x128xf32>
    %c0_171 = arith.constant 0 : index
    %c0_172 = arith.constant 0 : index
    %420 = vector.load %arg10[%c0_171, %c0_172] : memref<1x128xf32, #tpu.memory_space<vmem>>, vector<1x128xf32>
    %421 = vector.broadcast %420 : vector<1x128xf32> to vector<32x128xf32>
    %422 = arith.addf %419, %421 : vector<32x128xf32>
    %cst_173 = arith.constant dense<0xFF800000> : vector<128xf32>
    %423 = vector.multi_reduction <maximumf>, %422, %cst_173 [0] : vector<32x128xf32> to vector<128xf32>
    %424 = vector.shape_cast %423 : vector<128xf32> to vector<1x128xf32>
    %c0_174 = arith.constant 0 : index
    %c0_175 = arith.constant 0 : index
    %c0_176 = arith.constant 0 : index
    %425 = vector.load %arg15[%c0_174, %c0_175, %c0_176] : memref<1x1x128xf32, #tpu.memory_space<vmem>>, vector<1x1x128xf32>
    %426 = vector.shape_cast %425 : vector<1x1x128xf32> to vector<1x128xf32>
    %427 = vector.shape_cast %424 : vector<1x128xf32> to vector<1x1x128xf32>
    tpu.vector_store %arg15[%c0_174, %c0_175, %c0_176], %427 {strides = array<i32>} : memref<1x1x128xf32, #tpu.memory_space<vmem>>, vector<1x1x128xf32>,
    %c0_177 = arith.constant 0 : index
    %c0_178 = arith.constant 0 : index
    %428 = vector.load %arg11[%c0_177, %c0_178] : memref<128x256xf32, #tpu.memory_space<vmem>>, vector<128x256xf32>
    %cst_179 = arith.constant dense<0.000000e+00> : vector<1x256xf32>
    %429 = tpu.matmul %424, %428, %cst_179 {dimension_numbers = #tpu.dot_dimension_numbers<[1], [0], [0], [1], [0, 0, 1, 1], [], []>} : vector<1x128xf32>, vector<128x256xf32>, vector<1x256xf32> -> vector<1x256xf32>
    %c0_180 = arith.constant 0 : index
    %c0_181 = arith.constant 0 : index
    %430 = vector.load %arg12[%c0_180, %c0_181] : memref<1x256xf32, #tpu.memory_space<vmem>>, vector<1x256xf32>
    %431 = arith.addf %429, %430 : vector<1x256xf32>
    %cst_182 = arith.constant 0.000000e+00 : f32
    %432 = vector.broadcast %cst_182 : f32 to vector<1x256xf32>
    %433 = arith.maximumf %431, %432 : vector<1x256xf32>
    %c0_183 = arith.constant 0 : index
    %c0_184 = arith.constant 0 : index
    %434 = vector.load %arg13[%c0_183, %c0_184] : memref<256x32xf32, #tpu.memory_space<vmem>>, vector<256x32xf32>
    %cst_185 = arith.constant dense<0.000000e+00> : vector<1x32xf32>
    %435 = tpu.matmul %433, %434, %cst_185 {dimension_numbers = #tpu.dot_dimension_numbers<[1], [0], [0], [1], [0, 0, 1, 1], [], []>} : vector<1x256xf32>, vector<256x32xf32>, vector<1x32xf32> -> vector<1x32xf32>
    %c0_186 = arith.constant 0 : index
    %c0_187 = arith.constant 0 : index
    %436 = vector.load %arg14[%c0_186, %c0_187] : memref<1x32xf32, #tpu.memory_space<vmem>>, vector<1x32xf32>
    %437 = arith.addf %435, %436 : vector<1x32xf32>
    %c0_188 = arith.constant 0 : index
    %c0_189 = arith.constant 0 : index
    %c0_190 = arith.constant 0 : index
    %438 = vector.load %arg16[%c0_188, %c0_189, %c0_190] : memref<1x1x32xf32, #tpu.memory_space<vmem>>, vector<1x1x32xf32>
    %439 = vector.shape_cast %438 : vector<1x1x32xf32> to vector<1x32xf32>
    %440 = vector.shape_cast %437 : vector<1x32xf32> to vector<1x1x32xf32>
    tpu.vector_store %arg16[%c0_188, %c0_189, %c0_190], %440 {strides = array<i32>} : memref<1x1x32xf32, #tpu.memory_space<vmem>>, vector<1x1x32xf32>,
    return
  }
  func.func @transform_0(%arg0: i32) -> (i32, i32, i32) {
    %c0_i32 = arith.constant 0 : i32
    %c0_i32_0 = arith.constant 0 : i32
    %c0_i32_1 = arith.constant 0 : i32
    return %arg0, %c0_i32, %c0_i32_0 : i32, i32, i32
  }
  func.func @transform_1(%arg0: i32) -> (i32, i32, i32) {
    %c0_i32 = arith.constant 0 : i32
    %c0_i32_0 = arith.constant 0 : i32
    %c0_i32_1 = arith.constant 0 : i32
    return %arg0, %c0_i32, %c0_i32_0 : i32, i32, i32
  }
  func.func @transform_2(%arg0: i32) -> (i32, i32) {
    %c0_i32 = arith.constant 0 : i32
    %c0_i32_0 = arith.constant 0 : i32
    %c0_i32_1 = arith.constant 0 : i32
    return %c0_i32, %c0_i32_0 : i32, i32
  }
  func.func @transform_3(%arg0: i32) -> (i32, i32) {
    %c0_i32 = arith.constant 0 : i32
    %c0_i32_0 = arith.constant 0 : i32
    %c0_i32_1 = arith.constant 0 : i32
    return %c0_i32, %c0_i32_0 : i32, i32
  }
  func.func @transform_4(%arg0: i32) -> (i32, i32) {
    %c0_i32 = arith.constant 0 : i32
    %c0_i32_0 = arith.constant 0 : i32
    %c0_i32_1 = arith.constant 0 : i32
    return %c0_i32, %c0_i32_0 : i32, i32
  }
  func.func @transform_5(%arg0: i32) -> (i32, i32) {
    %c0_i32 = arith.constant 0 : i32
    %c0_i32_0 = arith.constant 0 : i32
    %c0_i32_1 = arith.constant 0 : i32
    return %c0_i32, %c0_i32_0 : i32, i32
  }
  func.func @transform_6(%arg0: i32) -> (i32, i32) {
    %c0_i32 = arith.constant 0 : i32
    %c0_i32_0 = arith.constant 0 : i32
    %c0_i32_1 = arith.constant 0 : i32
    return %c0_i32, %c0_i32_0 : i32, i32
  }
  func.func @transform_7(%arg0: i32) -> (i32, i32) {
    %c0_i32 = arith.constant 0 : i32
    %c0_i32_0 = arith.constant 0 : i32
    %c0_i32_1 = arith.constant 0 : i32
    return %c0_i32, %c0_i32_0 : i32, i32
  }
  func.func @transform_8(%arg0: i32) -> (i32, i32) {
    %c0_i32 = arith.constant 0 : i32
    %c0_i32_0 = arith.constant 0 : i32
    %c0_i32_1 = arith.constant 0 : i32
    return %c0_i32, %c0_i32_0 : i32, i32
  }
  func.func @transform_9(%arg0: i32) -> (i32, i32) {
    %c0_i32 = arith.constant 0 : i32
    %c0_i32_0 = arith.constant 0 : i32
    %c0_i32_1 = arith.constant 0 : i32
    return %c0_i32, %c0_i32_0 : i32, i32
  }
  func.func @transform_10(%arg0: i32) -> (i32, i32) {
    %c0_i32 = arith.constant 0 : i32
    %c0_i32_0 = arith.constant 0 : i32
    %c0_i32_1 = arith.constant 0 : i32
    return %c0_i32, %c0_i32_0 : i32, i32
  }
  func.func @transform_11(%arg0: i32) -> (i32, i32) {
    %c0_i32 = arith.constant 0 : i32
    %c0_i32_0 = arith.constant 0 : i32
    %c0_i32_1 = arith.constant 0 : i32
    return %c0_i32, %c0_i32_0 : i32, i32
  }
  func.func @transform_12(%arg0: i32) -> (i32, i32) {
    %c0_i32 = arith.constant 0 : i32
    %c0_i32_0 = arith.constant 0 : i32
    %c0_i32_1 = arith.constant 0 : i32
    return %c0_i32, %c0_i32_0 : i32, i32
  }
  func.func @transform_13(%arg0: i32) -> (i32, i32) {
    %c0_i32 = arith.constant 0 : i32
    %c0_i32_0 = arith.constant 0 : i32
    %c0_i32_1 = arith.constant 0 : i32
    return %c0_i32, %c0_i32_0 : i32, i32
  }
  func.func @transform_14(%arg0: i32) -> (i32, i32, i32) {
    %c0_i32 = arith.constant 0 : i32
    %c0_i32_0 = arith.constant 0 : i32
    %c0_i32_1 = arith.constant 0 : i32
    return %arg0, %c0_i32, %c0_i32_0 : i32, i32, i32
  }
  func.func @transform_15(%arg0: i32) -> (i32, i32, i32) {
    %c0_i32 = arith.constant 0 : i32
    %c0_i32_0 = arith.constant 0 : i32
    %c0_i32_1 = arith.constant 0 : i32
    return %arg0, %c0_i32, %c0_i32_0 : i32, i32, i32
  }
}

</mosaic_0001>

<llo_original>
// kernel: model_forward.4
$region0: #{model_forward.4}
  #allocation0 [shape = 'u32[]', space=smem, size = 0x4, offset = 0x4, fixed_abs, tag = 'smem constant byte address 0x4 - core index']
  #allocation1 [shape = 'u32[144,128]{1,0:T(1,128)}', space=vmem, size = 0x12000, scoped, tag = 'internal scratch']
  %s0 = inlined_call_operand.vmem [shape: f32[4,32,3], index: 0, kind: input, shape index: {}]
  %s1 = inlined_call_operand.vmem [shape: f32[6,64], index: 1, kind: input, shape index: {}]
  %s2 = inlined_call_operand.vmem [shape: f32[1,64], index: 2, kind: input, shape index: {}]
  %s3 = inlined_call_operand.vmem [shape: f32[4,2,64], index: 3, kind: output, shape index: {}]
  %s4 = sld [smem:[#allocation0]]
  $region45: #{model_forward.4} parent=0
    _
  %s6 = ssub.s32 1, %s4
  %s7 = scalar_select 0, %s6, %s4
  loop: start=0, step=1, limit=6
  $region2: #{model_forward.4} parent=0 // loop_pre_header
    _
  $region3: #{model_forward.4} parent=0 // loop_header
    %s9 = sphi 0, %s13
    %p10 = scmp.ge.s32.totalorder %s9, 6
    %s19 = sphi 0, %s21
    %s22 = sphi 0, %s19
    %s23 = sphi 0, %s22
    %s39 = sphi 0, %s23
    %s43 = sphi 0, %s43
    %s45 = sphi 0, %s43
    %s46 = sphi 0, %s45
    %s60 = sphi 0, %s46
    %s64 = sphi 0, %s64
    %s66 = sphi 0, %s64
    %s67 = sphi 0, %s66
    %s81 = sphi 0, %s67
    %s87 = sphi 0, %s89
    %s90 = sphi 0, %s87
    %s91 = sphi 0, %s90
    %s107 = sphi 0, %s91
  $region4: #{model_forward.4} parent=0 // loop_header_branch
    %12 = sbr.rel (%p10) target = $region8
  $region5: #{model_forward.4} parent=0 // loop_body
    %s14 = ssub.s32 %s9, 1
    %s15 = ssub.s32 %s9, 2
    %s16 = sadd.s32 %s9, 1
    %s17 = ssub.s32 %s9, %s16
    %p18 = scmp.eq.s32.totalorder %s17, 0
    %s20 = sadd.s32 %s19, 1
    %s21 = scalar_select %p18, %s19, %s20
    %p24 = pneg %p18
    %p25 = scmp.eq.s32.totalorder %s9, 3
    %p26 = por %p24, %p25
    %p27 = scmp.ne.s32.totalorder %s19, %s22
    %p28 = scmp.eq.s32.totalorder %s9, 0
    %p29 = por %p27, %p28
    %p30 = scmp.ne.s32.totalorder %s19, %s22
    %p31 = scmp.eq.s32.totalorder %s14, 3
    %p32 = por %p30, %p31
    %p33 = scmp.ne.s32.totalorder %s22, %s23
    %p34 = scmp.eq.s32.totalorder %s14, 0
    %p35 = por %p33, %p34
    %p36 = scmp.ne.s32.totalorder %s22, %s23
    %p37 = scmp.eq.s32.totalorder %s15, 3
    %p38 = por %p36, %p37
    %p40 = scmp.ne.s32.totalorder %s23, %s39
    %p41 = scmp.eq.s32.totalorder %s15, 0
    %p42 = por %p40, %p41
    %s44 = sadd.s32 %s43, 1
    %p47 = scmp.eq.s32.totalorder %s9, 3
    %p48 = scmp.ne.s32.totalorder %s43, %s45
    %p49 = scmp.eq.s32.totalorder %s9, 0
    %p50 = por %p48, %p49
    %p51 = scmp.ne.s32.totalorder %s43, %s45
    %p52 = scmp.eq.s32.totalorder %s14, 3
    %p53 = por %p51, %p52
    %p54 = scmp.ne.s32.totalorder %s45, %s46
    %p55 = scmp.eq.s32.totalorder %s14, 0
    %p56 = por %p54, %p55
    %p57 = scmp.ne.s32.totalorder %s45, %s46
    %p58 = scmp.eq.s32.totalorder %s15, 3
    %p59 = por %p57, %p58
    %p61 = scmp.ne.s32.totalorder %s46, %s60
    %p62 = scmp.eq.s32.totalorder %s15, 0
    %p63 = por %p61, %p62
    %s65 = sadd.s32 %s64, 1
    %p68 = scmp.eq.s32.totalorder %s9, 3
    %p69 = scmp.ne.s32.totalorder %s64, %s66
    %p70 = scmp.eq.s32.totalorder %s9, 0
    %p71 = por %p69, %p70
    %p72 = scmp.ne.s32.totalorder %s64, %s66
    %p73 = scmp.eq.s32.totalorder %s14, 3
    %p74 = por %p72, %p73
    %p75 = scmp.ne.s32.totalorder %s66, %s67
    %p76 = scmp.eq.s32.totalorder %s14, 0
    %p77 = por %p75, %p76
    %p78 = scmp.ne.s32.totalorder %s66, %s67
    %p79 = scmp.eq.s32.totalorder %s15, 3
    %p80 = por %p78, %p79
    %p82 = scmp.ne.s32.totalorder %s67, %s81
    %p83 = scmp.eq.s32.totalorder %s15, 0
    %p84 = por %p82, %p83
    %s85 = ssub.s32 %s9, %s16
    %p86 = scmp.eq.s32.totalorder %s85, 0
    %s88 = sadd.s32 %s87, 1
    %s89 = scalar_select %p86, %s87, %s88
    %p92 = pneg %p86
    %p93 = scmp.eq.s32.totalorder %s9, 3
    %p94 = por %p92, %p93
    %p95 = scmp.ne.s32.totalorder %s87, %s90
    %p96 = scmp.eq.s32.totalorder %s9, 0
    %p97 = por %p95, %p96
    %p98 = scmp.ne.s32.totalorder %s87, %s90
    %p99 = scmp.eq.s32.totalorder %s14, 3
    %p100 = por %p98, %p99
    %p101 = scmp.ne.s32.totalorder %s90, %s91
    %p102 = scmp.eq.s32.totalorder %s14, 0
    %p103 = por %p101, %p102
    %p104 = scmp.ne.s32.totalorder %s90, %s91
    %p105 = scmp.eq.s32.totalorder %s15, 3
    %p106 = por %p104, %p105
    %p108 = scmp.ne.s32.totalorder %s91, %s107
    %p109 = scmp.eq.s32.totalorder %s15, 0
    %p110 = por %p108, %p109
    %p111 = scmp.le.s32.totalorder 1, %s9
    %p112 = scmp.lt.s32.totalorder %s9, 5
    %p113 = pnand %p111, %p112
    %p114 = pneg %p113
    // Predicated region
    $region9: #{model_forward.4} parent=5 // pred_check
      _
    $region10: #{model_forward.4} parent=5 // pred_check_branch
      %116 = sbr.rel (%p113) target = $region12
    $region11: #{model_forward.4} parent=5 // pred_region
      %s117 = ssub.s32 %s9, 1
      // Predicated region
      $region13: #{model_forward.4} parent=11 // pred_check
        %p118 = pneg %p56
      $region14: #{model_forward.4} parent=11 // pred_check_branch
        %120 = sbr.rel (%p118) target = $region16
      $region15: #{model_forward.4} parent=11 // pred_region
        _
      $region16: #{model_forward.4} parent=11 // pred_fallthru
        _
      // Predicated region
      $region17: #{model_forward.4} parent=11 // pred_check
        %p121 = pneg %p77
      $region18: #{model_forward.4} parent=11 // pred_check_branch
        %123 = sbr.rel (%p121) target = $region20
      $region19: #{model_forward.4} parent=11 // pred_region
        _
      $region20: #{model_forward.4} parent=11 // pred_fallthru
        _
    $region12: #{model_forward.4} parent=5 // pred_fallthru
      _
    %p124 = scmp.lt.s32.totalorder %s9, 4
    // Predicated region
    $region21: #{model_forward.4} parent=5 // pred_check
      %p125 = pneg %p124
    $region22: #{model_forward.4} parent=5 // pred_check_branch
      %127 = sbr.rel (%p125) target = $region24
    $region23: #{model_forward.4} parent=5 // pred_region
      // Predicated region
      $region25: #{model_forward.4} parent=23 // pred_check
        %p128 = pneg %p29
      $region26: #{model_forward.4} parent=23 // pred_check_branch
        %130 = sbr.rel (%p128) target = $region28
      $region27: #{model_forward.4} parent=23 // pred_region
        %p131 = scmp.lt.s32.totalorder %s9, 3
        %s132 = scalar_select %p131, %s9, 3
        %s133 = smul.addr %s132, 4
        %s134 = smul.addr %s133, 8
        %s135 = scalar_lea.vmem %s0, %s134
      $region28: #{model_forward.4} parent=23 // pred_fallthru
        _
    $region24: #{model_forward.4} parent=5 // pred_fallthru
      _
    %p136 = scmp.le.s32.totalorder 1, %s9
    %p137 = scmp.lt.s32.totalorder %s9, 5
    %p138 = pnand %p136, %p137
    %p139 = pneg %p138
    // Predicated region
    $region29: #{model_forward.4} parent=5 // pred_check
      _
    $region30: #{model_forward.4} parent=5 // pred_check_branch
      %141 = sbr.rel (%p138) target = $region32
    $region31: #{model_forward.4} parent=5 // pred_region
      %s142 = ssub.s32 %s9, 1
      %p143 = scmp.lt.s32.totalorder %s14, 3
      %s144 = scalar_select %p143, %s14, 3
      %s145 = smul.addr %s144, 4
      %s146 = smul.addr %s145, 8
      %s147 = scalar_lea.vmem %s0, %s146
      %p148 = pneg %p35
      %p149 = pneg %p32
      %p150 = pneg %p56
      %p151 = pneg %p53
      %p152 = pneg %p77
      %p153 = pneg %p74
      %p154 = pneg %p103
      %p155 = pneg %p100
      %p156 = scmp.lt.s32.totalorder %s14, 3
      %s157 = scalar_select %p156, %s14, 3
      %s158 = smul.addr %s157, 2
      %s159 = scalar_lea.vmem %s3, %s158
      %p160 = scmp.lt.s32.totalorder %s14, 3
      %s161 = scalar_select %p160, %s14, 3
      %s162 = smul.addr %s161, 4
      %s163 = smul.addr %s162, 8
      %s164 = scalar_lea.vmem %s0, %s163
      %p165 = scmp.lt.s32.totalorder %s14, 3
      %s166 = scalar_select %p165, %s14, 3
      %s167 = smul.addr %s166, 2
      %s168 = scalar_lea.vmem %s3, %s167
      %v169 = vld [vmem:[%s164] sm:$0xff]
      %v170 = vld [vmem:[%s164 + $0x8] sm:$0xff]
      %v171 = vld [vmem:[%s164 + $0x10] sm:$0xff]
      %v172 = vld [vmem:[%s164 + $0x18] sm:$0xff]
      %vm173 = vcmask 23552
      %v175 = vsel %vm173, %v169, 0
      %v178 = vsel %vm173, %v170, 0
      %v181 = vsel %vm173, %v171, 0
      %v184 = vsel %vm173, %v172, 0
      %186 = vmatprep.subr.mxu0 0.0
      %187 = vmatpush1.xpose.msra.mxu0 0.0
      %188 = vmatprep.subr.mxu0 0.0
      %189 = vmatpush1.xpose.msra.mxu0 0.0
      %190 = vmatprep.subr.mxu0 0.0
      %191 = vmatpush1.xpose.msra.mxu0 0.0
      %192 = vmatprep.subr.mxu0 0.0
      %193 = vmatpush1.xpose.msra.mxu0 0.0
      %194 = vmatprep.subr.mxu0 0.0
      %195 = vmatpush1.xpose.msra.mxu0 0.0
      %196 = vmatprep.subr.mxu0 0.0
      %197 = vmatpush1.xpose.msra.mxu0 0.0
      %198 = vmatprep.subr.mxu0 0.0
      %199 = vmatpush1.xpose.msra.mxu0 0.0
      %200 = vmatprep.subr.mxu0 0.0
      %201 = vmatpush1.xpose.msra.mxu0 0.0
      %202 = vmatprep.subr.mxu0 0.0
      %203 = vmatpush1.xpose.msra.mxu0 0.0
      %204 = vmatprep.subr.mxu0 0.0
      %205 = vmatpush1.xpose.msra.mxu0 0.0
      %206 = vmatprep.subr.mxu0 0.0
      %207 = vmatpush1.xpose.msra.mxu0 0.0
      %208 = vmatprep.subr.mxu0 0.0
      %209 = vmatpush1.xpose.msra.mxu0 0.0
      %210 = vmatprep.subr.mxu0 0.0
      %211 = vmatpush1.xpose.msra.mxu0 %v184
      %212 = vmatprep.subr.mxu0 0.0
      %213 = vmatpush1.xpose.msra.mxu0 %v181
      %214 = vmatprep.subr.mxu0 0.0
      %215 = vmatpush1.xpose.msra.mxu0 %v178
      %216 = vmatprep.subr.mxu0 0.0
      %217 = vmatpush1.xpose.msra.mxu0 %v175
      %218 = vmatprep.subr.mxu0 0.0
      %219 = vmatpush2.xpose.msra.mxu0 0.0
      %220 = vmatprep.subr.mxu0 0.0
      %221 = vmatpush2.xpose.msra.mxu0 0.0
      %222 = vmatprep.subr.mxu0 0.0
      %223 = vmatpush2.xpose.msra.mxu0 0.0
      %224 = vmatprep.subr.mxu0 0.0
      %225 = vmatpush2.xpose.msra.mxu0 0.0
      %226 = vmatprep.subr.mxu0 0.0
      %227 = vmatpush2.xpose.msra.mxu0 0.0
      %228 = vmatprep.subr.mxu0 0.0
      %229 = vmatpush2.xpose.msra.mxu0 0.0
      %230 = vmatprep.subr.mxu0 0.0
      %231 = vmatpush2.xpose.msra.mxu0 0.0
      %232 = vmatprep.subr.mxu0 0.0
      %233 = vmatpush2.xpose.msra.mxu0 0.0
      %234 = vmatprep.subr.mxu0 0.0
      %235 = vmatpush2.xpose.msra.mxu0 0.0
      %236 = vmatprep.subr.mxu0 0.0
      %237 = vmatpush2.xpose.msra.mxu0 0.0
      %238 = vmatprep.subr.mxu0 0.0
      %239 = vmatpush2.xpose.msra.mxu0 0.0
      %240 = vmatprep.subr.mxu0 0.0
      %241 = vmatpush2.xpose.msra.mxu0 0.0
      %242 = vmatprep.subr.mxu0 0.0
      %243 = vmatpush2.xpose.msra.mxu0 0.0
      %244 = vmatprep.subr.mxu0 0.0
      %245 = vmatpush2.xpose.msra.mxu0 0.0
      %246 = vmatprep.subr.mxu0 0.0
      %247 = vmatpush2.xpose.msra.mxu0 0.0
      %248 = vmatprep.subr.mxu0 0.0
      %249 = vmatpush2.xpose.msra.mxu0 0.0
      %250 = vmatprep.mubr.f32.mxu0 0.0
      %251 = vmatmul.mubr.f32.gmra.mxu0 %v175
      %v252 = vpop.f32.mrf.mxu0
      %v253 = vadd.f32 0.0, %v252
      %v254 = vpop.f32.mrf.mxu0
      %255 = vmatprep.mubr.f32.mxu0 0.0
      %256 = vmatmul.mubr.f32.gmra.mxu0 %v178
      %v257 = vpop.f32.mrf.mxu0
      %v258 = vadd.f32 0.0, %v257
      %v259 = vpop.f32.mrf.mxu0
      %260 = vmatprep.mubr.f32.mxu0 0.0
      %261 = vmatmul.mubr.f32.gmra.mxu0 %v181
      %v262 = vpop.f32.mrf.mxu0
      %v263 = vadd.f32 0.0, %v262
      %v264 = vpop.f32.mrf.mxu0
      %265 = vmatprep.mubr.f32.mxu0 0.0
      %266 = vmatmul.mubr.f32.gmra.mxu0 %v184
      %v267 = vpop.f32.mrf.mxu0
      %v268 = vadd.f32 0.0, %v267
      %v269 = vpop.f32.mrf.mxu0
      %270 = vdwg.mxu0
      %v271 = vmul.f32 %v169, %v169
      %v272 = vmul.f32 %v170, %v170
      %v273 = vmul.f32 %v171, %v171
      %v274 = vmul.f32 %v172, %v172
      %v276 = vsel %vm173, 1.0, 0
      %v279 = vsel %vm173, %v271, 0
      %v282 = vsel %vm173, %v272, 0
      %v285 = vsel %vm173, %v273, 0
      %v288 = vsel %vm173, %v274, 0
      %290 = vmatprep.subr.mxu0 0.0
      %291 = vmatpush1.xpose.msra.mxu0 0.0
      %292 = vmatprep.subr.mxu0 0.0
      %293 = vmatpush1.xpose.msra.mxu0 0.0
      %294 = vmatprep.subr.mxu0 0.0
      %295 = vmatpush1.xpose.msra.mxu0 0.0
      %296 = vmatprep.subr.mxu0 0.0
      %297 = vmatpush1.xpose.msra.mxu0 0.0
      %298 = vmatprep.subr.mxu0 0.0
      %299 = vmatpush1.xpose.msra.mxu0 0.0
      %300 = vmatprep.subr.mxu0 0.0
      %301 = vmatpush1.xpose.msra.mxu0 0.0
      %302 = vmatprep.subr.mxu0 0.0
      %303 = vmatpush1.xpose.msra.mxu0 0.0
      %304 = vmatprep.subr.mxu0 0.0
      %305 = vmatpush1.xpose.msra.mxu0 0.0
      %306 = vmatprep.subr.mxu0 0.0
      %307 = vmatpush1.xpose.msra.mxu0 0.0
      %308 = vmatprep.subr.mxu0 0.0
      %309 = vmatpush1.xpose.msra.mxu0 0.0
      %310 = vmatprep.subr.mxu0 0.0
      %311 = vmatpush1.xpose.msra.mxu0 0.0
      %312 = vmatprep.subr.mxu0 0.0
      %313 = vmatpush1.xpose.msra.mxu0 0.0
      %314 = vmatprep.subr.mxu0 0.0
      %315 = vmatpush1.xpose.msra.mxu0 %v288
      %316 = vmatprep.subr.mxu0 0.0
      %317 = vmatpush1.xpose.msra.mxu0 %v285
      %318 = vmatprep.subr.mxu0 0.0
      %319 = vmatpush1.xpose.msra.mxu0 %v282
      %320 = vmatprep.subr.mxu0 0.0
      %321 = vmatpush1.xpose.msra.mxu0 %v279
      %322 = vmatprep.subr.mxu0 0.0
      %323 = vmatpush2.xpose.msra.mxu0 0.0
      %324 = vmatprep.subr.mxu0 0.0
      %325 = vmatpush2.xpose.msra.mxu0 0.0
      %326 = vmatprep.subr.mxu0 0.0
      %327 = vmatpush2.xpose.msra.mxu0 0.0
      %328 = vmatprep.subr.mxu0 0.0
      %329 = vmatpush2.xpose.msra.mxu0 0.0
      %330 = vmatprep.subr.mxu0 0.0
      %331 = vmatpush2.xpose.msra.mxu0 0.0
      %332 = vmatprep.subr.mxu0 0.0
      %333 = vmatpush2.xpose.msra.mxu0 0.0
      %334 = vmatprep.subr.mxu0 0.0
      %335 = vmatpush2.xpose.msra.mxu0 0.0
      %336 = vmatprep.subr.mxu0 0.0
      %337 = vmatpush2.xpose.msra.mxu0 0.0
      %338 = vmatprep.subr.mxu0 0.0
      %339 = vmatpush2.xpose.msra.mxu0 0.0
      %340 = vmatprep.subr.mxu0 0.0
      %341 = vmatpush2.xpose.msra.mxu0 0.0
      %342 = vmatprep.subr.mxu0 0.0
      %343 = vmatpush2.xpose.msra.mxu0 0.0
      %344 = vmatprep.subr.mxu0 0.0
      %345 = vmatpush2.xpose.msra.mxu0 0.0
      %346 = vmatprep.subr.mxu0 0.0
      %347 = vmatpush2.xpose.msra.mxu0 0.0
      %348 = vmatprep.subr.mxu0 0.0
      %349 = vmatpush2.xpose.msra.mxu0 0.0
      %350 = vmatprep.subr.mxu0 0.0
      %351 = vmatpush2.xpose.msra.mxu0 0.0
      %352 = vmatprep.subr.mxu0 0.0
      %353 = vmatpush2.xpose.msra.mxu0 0.0
      %354 = vmatprep.mubr.f32.mxu0 0.0
      %355 = vmatmul.mubr.f32.gmra.mxu0 %v276
      %v356 = vpop.f32.mrf.mxu0
      %v357 = vadd.f32 0.0, %v356
      %v358 = vpop.f32.mrf.mxu0
      %359 = vdwg.mxu0
      %v360 = vmul.f32 %v253, 2.0
      %v361 = vmul.f32 %v258, 2.0
      %v362 = vmul.f32 %v263, 2.0
      %v363 = vmul.f32 %v268, 2.0
      %v364 = vlaneseq
      %v365 = vshrl.u32 %v364, 7
      %v366 = vsub.s32 0, %v365
      %v367 = vrot.slane %v357, %v366
      %v368 = vsub.f32 %v367, %v360
      %v369 = vsub.f32 %v367, %v361
      %v370 = vsub.f32 %v367, %v362
      %v371 = vsub.f32 %v367, %v363
      %v372 = vlaneseq
      %v373 = vand.u32 %v372, 127
      %v374 = vld [vmem:[%s1] sm:$0x7]
      %v375 = vld [vmem:[%s1 + $0x3] sm:$0x7]
      %v376 = vld [vmem:[%s2] sm:$0x1]
      %v378 = vlaneseq
      %v379 = vshrl.u32 %v378, 7
      %v380 = vsub.s32 0, %v379
      %v381 = vrot.slane %v376, %v380
      %vm383 = vcmask 1042432
      %v385 = vsel %vm383, %v374, 0
      %387 = vmatprep.subr.mxu0 0.0
      %388 = vmatpush1.msra.mxu0 0.0
      %389 = vmatprep.subr.mxu0 0.0
      %390 = vmatpush1.msra.mxu0 0.0
      %391 = vmatprep.subr.mxu0 0.0
      %392 = vmatpush1.msra.mxu0 0.0
      %393 = vmatprep.subr.mxu0 0.0
      %394 = vmatpush1.msra.mxu0 0.0
      %395 = vmatprep.subr.mxu0 0.0
      %396 = vmatpush1.msra.mxu0 0.0
      %397 = vmatprep.subr.mxu0 0.0
      %398 = vmatpush1.msra.mxu0 0.0
      %399 = vmatprep.subr.mxu0 0.0
      %400 = vmatpush1.msra.mxu0 0.0
      %401 = vmatprep.subr.mxu0 0.0
      %402 = vmatpush1.msra.mxu0 0.0
      %403 = vmatprep.subr.mxu0 0.0
      %404 = vmatpush1.msra.mxu0 0.0
      %405 = vmatprep.subr.mxu0 0.0
      %406 = vmatpush1.msra.mxu0 0.0
      %407 = vmatprep.subr.mxu0 0.0
      %408 = vmatpush1.msra.mxu0 0.0
      %409 = vmatprep.subr.mxu0 0.0
      %410 = vmatpush1.msra.mxu0 0.0
      %411 = vmatprep.subr.mxu0 0.0
      %412 = vmatpush1.msra.mxu0 0.0
      %413 = vmatprep.subr.mxu0 0.0
      %414 = vmatpush1.msra.mxu0 0.0
      %415 = vmatprep.subr.mxu0 0.0
      %416 = vmatpush1.msra.mxu0 0.0
      %417 = vmatprep.subr.mxu0 0.0
      %418 = vmatpush1.msra.mxu0 %v385
      %419 = vmatprep.subr.mxu0 0.0
      %420 = vmatpush2.msra.mxu0 0.0
      %421 = vmatprep.subr.mxu0 0.0
      %422 = vmatpush2.msra.mxu0 0.0
      %423 = vmatprep.subr.mxu0 0.0
      %424 = vmatpush2.msra.mxu0 0.0
      %425 = vmatprep.subr.mxu0 0.0
      %426 = vmatpush2.msra.mxu0 0.0
      %427 = vmatprep.subr.mxu0 0.0
      %428 = vmatpush2.msra.mxu0 0.0
      %429 = vmatprep.subr.mxu0 0.0
      %430 = vmatpush2.msra.mxu0 0.0
      %431 = vmatprep.subr.mxu0 0.0
      %432 = vmatpush2.msra.mxu0 0.0
      %433 = vmatprep.subr.mxu0 0.0
      %434 = vmatpush2.msra.mxu0 0.0
      %435 = vmatprep.subr.mxu0 0.0
      %436 = vmatpush2.msra.mxu0 0.0
      %437 = vmatprep.subr.mxu0 0.0
      %438 = vmatpush2.msra.mxu0 0.0
      %439 = vmatprep.subr.mxu0 0.0
      %440 = vmatpush2.msra.mxu0 0.0
      %441 = vmatprep.subr.mxu0 0.0
      %442 = vmatpush2.msra.mxu0 0.0
      %443 = vmatprep.subr.mxu0 0.0
      %444 = vmatpush2.msra.mxu0 0.0
      %445 = vmatprep.subr.mxu0 0.0
      %446 = vmatpush2.msra.mxu0 0.0
      %447 = vmatprep.subr.mxu0 0.0
      %448 = vmatpush2.msra.mxu0 0.0
      %449 = vmatprep.subr.mxu0 0.0
      %450 = vmatpush2.msra.mxu0 0.0
      %451 = vmatprep.mubr.f32.mxu0 0.0
      %452 = vmatmul.mubr.f32.gmra.mxu0 %v175
      %v453 = vpop.f32.mrf.mxu0
      %v454 = vadd.f32 %v381, %v453
      %v455 = vpop.f32.mrf.mxu0
      %456 = vmatprep.mubr.f32.mxu0 0.0
      %457 = vmatmul.mubr.f32.gmra.mxu0 %v178
      %v458 = vpop.f32.mrf.mxu0
      %v459 = vadd.f32 %v381, %v458
      %v460 = vpop.f32.mrf.mxu0
      %461 = vmatprep.mubr.f32.mxu0 0.0
      %462 = vmatmul.mubr.f32.gmra.mxu0 %v181
      %v463 = vpop.f32.mrf.mxu0
      %v464 = vadd.f32 %v381, %v463
      %v465 = vpop.f32.mrf.mxu0
      %466 = vmatprep.mubr.f32.mxu0 0.0
      %467 = vmatmul.mubr.f32.gmra.mxu0 %v184
      %v468 = vpop.f32.mrf.mxu0
      %v469 = vadd.f32 %v381, %v468
      %v470 = vpop.f32.mrf.mxu0
      %471 = vdwg.mxu0
      %vm472 = vcmask 261120
      %v473 = vsel %vm472, %v368, inf
      %474 = vmin.xlane.f32.xlu0 %v473
      %v475 = vpop.xlane.xlu0 %474
      %v476 = vsel %vm472, %v369, inf
      %477 = vmin.xlane.f32.xlu0 %v476
      %v478 = vpop.xlane.xlu0 %477
      %v479 = vsel %vm472, %v370, inf
      %480 = vmin.xlane.f32.xlu0 %v479
      %v481 = vpop.xlane.xlu0 %480
      %v482 = vsel %vm472, %v371, inf
      %483 = vmin.xlane.f32.xlu0 %v482
      %v484 = vpop.xlane.xlu0 %483
      %vm485 = vcmp.eq.f32.partialorder %v368, %v475
      %vm486 = vcmp.eq.f32.partialorder %v369, %v478
      %vm487 = vcmp.eq.f32.partialorder %v370, %v481
      %vm488 = vcmp.eq.f32.partialorder %v371, %v484
      %v489 = vsel %vm485, %v373, 32
      %v490 = vsel %vm486, %v373, 32
      %v491 = vsel %vm487, %v373, 32
      %v492 = vsel %vm488, %v373, 32
      %v493 = vsel %vm472, %v489, 2147483647
      %v494 = vand.u32 %v493, 65535
      %v495 = vshra.s32 %v493, 16
      %v496 = vcvt.s32.f32 %v494
      %v497 = vcvt.s32.f32 %v495
      %498 = vmin.xlane.f32.xlu0 %v497
      %v499 = vpop.xlane.xlu0 %498
      %vm500 = vcmp.eq.f32.partialorder %v497, %v499
      %v501 = vsel %vm500, %v496, inf
      %502 = vmin.xlane.f32.xlu0 %v501
      %v503 = vpop.xlane.xlu0 %502
      %v504 = vcvt.f32.s32 %v503
      %v505 = vcvt.f32.s32 %v499
      %v506 = vshll.u32 %v505, 16
      %v507 = vadd.s32 %v506, %v504
      %v508 = vsel %vm472, %v490, 2147483647
      %v509 = vand.u32 %v508, 65535
      %v510 = vshra.s32 %v508, 16
      %v511 = vcvt.s32.f32 %v509
      %v512 = vcvt.s32.f32 %v510
      %513 = vmin.xlane.f32.xlu0 %v512
      %v514 = vpop.xlane.xlu0 %513
      %vm515 = vcmp.eq.f32.partialorder %v512, %v514
      %v516 = vsel %vm515, %v511, inf
      %517 = vmin.xlane.f32.xlu0 %v516
      %v518 = vpop.xlane.xlu0 %517
      %v519 = vcvt.f32.s32 %v518
      %v520 = vcvt.f32.s32 %v514
      %v521 = vshll.u32 %v520, 16
      %v522 = vadd.s32 %v521, %v519
      %v523 = vsel %vm472, %v491, 2147483647
      %v524 = vand.u32 %v523, 65535
      %v525 = vshra.s32 %v523, 16
      %v526 = vcvt.s32.f32 %v524
      %v527 = vcvt.s32.f32 %v525
      %528 = vmin.xlane.f32.xlu0 %v527
      %v529 = vpop.xlane.xlu0 %528
      %vm530 = vcmp.eq.f32.partialorder %v527, %v529
      %v531 = vsel %vm530, %v526, inf
      %532 = vmin.xlane.f32.xlu0 %v531
      %v533 = vpop.xlane.xlu0 %532
      %v534 = vcvt.f32.s32 %v533
      %v535 = vcvt.f32.s32 %v529
      %v536 = vshll.u32 %v535, 16
      %v537 = vadd.s32 %v536, %v534
      %v538 = vsel %vm472, %v492, 2147483647
      %v539 = vand.u32 %v538, 65535
      %v540 = vshra.s32 %v538, 16
      %v541 = vcvt.s32.f32 %v539
      %v542 = vcvt.s32.f32 %v540
      %543 = vmin.xlane.f32.xlu0 %v542
      %v544 = vpop.xlane.xlu0 %543
      %vm545 = vcmp.eq.f32.partialorder %v542, %v544
      %v546 = vsel %vm545, %v541, inf
      %547 = vmin.xlane.f32.xlu0 %v546
      %v548 = vpop.xlane.xlu0 %547
      %v549 = vcvt.f32.s32 %v548
      %v550 = vcvt.f32.s32 %v544
      %v551 = vshll.u32 %v550, 16
      %v552 = vadd.s32 %v551, %v549
      %vm553 = vcmp.eq.s32.totalorder %v373, %v507
      %vm554 = vcmp.eq.s32.totalorder %v373, %v522
      %vm555 = vcmp.eq.s32.totalorder %v373, %v537
      %vm556 = vcmp.eq.s32.totalorder %v373, %v552
      %v557 = vsel %vm553, 1, 0
      %v558 = vsel %vm554, 1, 0
      %v559 = vsel %vm555, 1, 0
      %v560 = vsel %vm556, 1, 0
      %v561 = vcvt.s32.f32 %v557
      %v562 = vcvt.s32.f32 %v558
      %v563 = vcvt.s32.f32 %v559
      %v564 = vcvt.s32.f32 %v560
      %v566 = vsel %vm472, %v561, 0
      %v569 = vsel %vm472, %v562, 0
      %v572 = vsel %vm472, %v563, 0
      %v575 = vsel %vm472, %v564, 0
      %577 = vmatprep.subr.mxu0 0.0
      %578 = vmatpush1.msra.mxu0 0.0
      %579 = vmatprep.subr.mxu0 0.0
      %580 = vmatpush1.msra.mxu0 0.0
      %581 = vmatprep.subr.mxu0 0.0
      %582 = vmatpush1.msra.mxu0 0.0
      %583 = vmatprep.subr.mxu0 0.0
      %584 = vmatpush1.msra.mxu0 0.0
      %585 = vmatprep.subr.mxu0 0.0
      %586 = vmatpush1.msra.mxu0 0.0
      %587 = vmatprep.subr.mxu0 0.0
      %588 = vmatpush1.msra.mxu0 0.0
      %589 = vmatprep.subr.mxu0 0.0
      %590 = vmatpush1.msra.mxu0 0.0
      %591 = vmatprep.subr.mxu0 0.0
      %592 = vmatpush1.msra.mxu0 0.0
      %593 = vmatprep.subr.mxu0 0.0
      %594 = vmatpush1.msra.mxu0 0.0
      %595 = vmatprep.subr.mxu0 0.0
      %596 = vmatpush1.msra.mxu0 0.0
      %597 = vmatprep.subr.mxu0 0.0
      %598 = vmatpush1.msra.mxu0 0.0
      %599 = vmatprep.subr.mxu0 0.0
      %600 = vmatpush1.msra.mxu0 0.0
      %601 = vmatprep.subr.mxu0 0.0
      %602 = vmatpush1.msra.mxu0 %v172
      %603 = vmatprep.subr.mxu0 0.0
      %604 = vmatpush1.msra.mxu0 %v171
      %605 = vmatprep.subr.mxu0 0.0
      %606 = vmatpush1.msra.mxu0 %v170
      %607 = vmatprep.subr.mxu0 0.0
      %608 = vmatpush1.msra.mxu0 %v169
      %609 = vmatprep.subr.mxu0 0.0
      %610 = vmatpush2.msra.mxu0 0.0
      %611 = vmatprep.subr.mxu0 0.0
      %612 = vmatpush2.msra.mxu0 0.0
      %613 = vmatprep.subr.mxu0 0.0
      %614 = vmatpush2.msra.mxu0 0.0
      %615 = vmatprep.subr.mxu0 0.0
      %616 = vmatpush2.msra.mxu0 0.0
      %617 = vmatprep.subr.mxu0 0.0
      %618 = vmatpush2.msra.mxu0 0.0
      %619 = vmatprep.subr.mxu0 0.0
      %620 = vmatpush2.msra.mxu0 0.0
      %621 = vmatprep.subr.mxu0 0.0
      %622 = vmatpush2.msra.mxu0 0.0
      %623 = vmatprep.subr.mxu0 0.0
      %624 = vmatpush2.msra.mxu0 0.0
      %625 = vmatprep.subr.mxu0 0.0
      %626 = vmatpush2.msra.mxu0 0.0
      %627 = vmatprep.subr.mxu0 0.0
      %628 = vmatpush2.msra.mxu0 0.0
      %629 = vmatprep.subr.mxu0 0.0
      %630 = vmatpush2.msra.mxu0 0.0
      %631 = vmatprep.subr.mxu0 0.0
      %632 = vmatpush2.msra.mxu0 0.0
      %633 = vmatprep.subr.mxu0 0.0
      %634 = vmatpush2.msra.mxu0 0.0
      %635 = vmatprep.subr.mxu0 0.0
      %636 = vmatpush2.msra.mxu0 0.0
      %637 = vmatprep.subr.mxu0 0.0
      %638 = vmatpush2.msra.mxu0 0.0
      %639 = vmatprep.subr.mxu0 0.0
      %640 = vmatpush2.msra.mxu0 0.0
      %641 = vmatprep.mubr.f32.mxu0 0.0
      %642 = vmatmul.mubr.f32.gmra.mxu0 %v566
      %v643 = vpop.f32.mrf.mxu0
      %v644 = vadd.f32 0.0, %v643
      %v645 = vpop.f32.mrf.mxu0
      %646 = vmatprep.mubr.f32.mxu0 0.0
      %647 = vmatmul.mubr.f32.gmra.mxu0 %v569
      %v648 = vpop.f32.mrf.mxu0
      %v649 = vadd.f32 0.0, %v648
      %v650 = vpop.f32.mrf.mxu0
      %651 = vmatprep.mubr.f32.mxu0 0.0
      %652 = vmatmul.mubr.f32.gmra.mxu0 %v572
      %v653 = vpop.f32.mrf.mxu0
      %v654 = vadd.f32 0.0, %v653
      %v655 = vpop.f32.mrf.mxu0
      %656 = vmatprep.mubr.f32.mxu0 0.0
      %657 = vmatmul.mubr.f32.gmra.mxu0 %v575
      %v658 = vpop.f32.mrf.mxu0
      %v659 = vadd.f32 0.0, %v658
      %v660 = vpop.f32.mrf.mxu0
      %661 = vdwg.mxu0
      %v662 = vsub.f32 %v644, %v169
      %v663 = vsub.f32 %v649, %v170
      %v664 = vsub.f32 %v654, %v171
      %v665 = vsub.f32 %v659, %v172
      %v667 = vsel %vm173, %v662, 0
      %v670 = vsel %vm173, %v663, 0
      %v673 = vsel %vm173, %v664, 0
      %v676 = vsel %vm173, %v665, 0
      %v679 = vsel %vm383, %v375, 0
      %681 = vmatprep.subr.mxu0 0.0
      %682 = vmatpush1.msra.mxu0 0.0
      %683 = vmatprep.subr.mxu0 0.0
      %684 = vmatpush1.msra.mxu0 0.0
      %685 = vmatprep.subr.mxu0 0.0
      %686 = vmatpush1.msra.mxu0 0.0
      %687 = vmatprep.subr.mxu0 0.0
      %688 = vmatpush1.msra.mxu0 0.0
      %689 = vmatprep.subr.mxu0 0.0
      %690 = vmatpush1.msra.mxu0 0.0
      %691 = vmatprep.subr.mxu0 0.0
      %692 = vmatpush1.msra.mxu0 0.0
      %693 = vmatprep.subr.mxu0 0.0
      %694 = vmatpush1.msra.mxu0 0.0
      %695 = vmatprep.subr.mxu0 0.0
      %696 = vmatpush1.msra.mxu0 0.0
      %697 = vmatprep.subr.mxu0 0.0
      %698 = vmatpush1.msra.mxu0 0.0
      %699 = vmatprep.subr.mxu0 0.0
      %700 = vmatpush1.msra.mxu0 0.0
      %701 = vmatprep.subr.mxu0 0.0
      %702 = vmatpush1.msra.mxu0 0.0
      %703 = vmatprep.subr.mxu0 0.0
      %704 = vmatpush1.msra.mxu0 0.0
      %705 = vmatprep.subr.mxu0 0.0
      %706 = vmatpush1.msra.mxu0 0.0
      %707 = vmatprep.subr.mxu0 0.0
      %708 = vmatpush1.msra.mxu0 0.0
      %709 = vmatprep.subr.mxu0 0.0
      %710 = vmatpush1.msra.mxu0 0.0
      %711 = vmatprep.subr.mxu0 0.0
      %712 = vmatpush1.msra.mxu0 %v679
      %713 = vmatprep.subr.mxu0 0.0
      %714 = vmatpush2.msra.mxu0 0.0
      %715 = vmatprep.subr.mxu0 0.0
      %716 = vmatpush2.msra.mxu0 0.0
      %717 = vmatprep.subr.mxu0 0.0
      %718 = vmatpush2.msra.mxu0 0.0
      %719 = vmatprep.subr.mxu0 0.0
      %720 = vmatpush2.msra.mxu0 0.0
      %721 = vmatprep.subr.mxu0 0.0
      %722 = vmatpush2.msra.mxu0 0.0
      %723 = vmatprep.subr.mxu0 0.0
      %724 = vmatpush2.msra.mxu0 0.0
      %725 = vmatprep.subr.mxu0 0.0
      %726 = vmatpush2.msra.mxu0 0.0
      %727 = vmatprep.subr.mxu0 0.0
      %728 = vmatpush2.msra.mxu0 0.0
      %729 = vmatprep.subr.mxu0 0.0
      %730 = vmatpush2.msra.mxu0 0.0
      %731 = vmatprep.subr.mxu0 0.0
      %732 = vmatpush2.msra.mxu0 0.0
      %733 = vmatprep.subr.mxu0 0.0
      %734 = vmatpush2.msra.mxu0 0.0
      %735 = vmatprep.subr.mxu0 0.0
      %736 = vmatpush2.msra.mxu0 0.0
      %737 = vmatprep.subr.mxu0 0.0
      %738 = vmatpush2.msra.mxu0 0.0
      %739 = vmatprep.subr.mxu0 0.0
      %740 = vmatpush2.msra.mxu0 0.0
      %741 = vmatprep.subr.mxu0 0.0
      %742 = vmatpush2.msra.mxu0 0.0
      %743 = vmatprep.subr.mxu0 0.0
      %744 = vmatpush2.msra.mxu0 0.0
      %745 = vmatprep.mubr.f32.mxu0 0.0
      %746 = vmatmul.mubr.f32.gmra.mxu0 %v667
      %v747 = vpop.f32.mrf.mxu0
      %v748 = vadd.f32 0.0, %v747
      %v749 = vpop.f32.mrf.mxu0
      %750 = vmatprep.mubr.f32.mxu0 0.0
      %751 = vmatmul.mubr.f32.gmra.mxu0 %v670
      %v752 = vpop.f32.mrf.mxu0
      %v753 = vadd.f32 0.0, %v752
      %v754 = vpop.f32.mrf.mxu0
      %755 = vmatprep.mubr.f32.mxu0 0.0
      %756 = vmatmul.mubr.f32.gmra.mxu0 %v673
      %v757 = vpop.f32.mrf.mxu0
      %v758 = vadd.f32 0.0, %v757
      %v759 = vpop.f32.mrf.mxu0
      %760 = vmatprep.mubr.f32.mxu0 0.0
      %761 = vmatmul.mubr.f32.gmra.mxu0 %v676
      %v762 = vpop.f32.mrf.mxu0
      %v763 = vadd.f32 0.0, %v762
      %v764 = vpop.f32.mrf.mxu0
      %765 = vdwg.mxu0
      %v766 = vadd.f32 %v454, %v748
      %v767 = vadd.f32 %v459, %v753
      %v768 = vadd.f32 %v464, %v758
      %v769 = vadd.f32 %v469, %v763
      %vm770 = vcmask 523264
      %v771 = vsel %vm770, %v766, 0.0
      %v772 = vsel %vm770, %v767, 0.0
      %v773 = vadd.f32 %v771, %v772
      %v774 = vsel %vm770, %v768, 0.0
      %v775 = vadd.f32 %v773, %v774
      %v776 = vsel %vm770, %v769, 0.0
      %v777 = vadd.f32 %v775, %v776
      %v778 = vrot.slane %v777, 4
      %v779 = vadd.f32 %v777, %v778
      %v780 = vrot.slane %v779, 2
      %v781 = vadd.f32 %v779, %v780
      %v782 = vrot.slane %v781, 1
      %v783 = vadd.f32 %v781, %v782
      %v784 = vmul.f32 %v766, %v766
      %v785 = vmul.f32 %v767, %v767
      %v786 = vmul.f32 %v768, %v768
      %v787 = vmul.f32 %v769, %v769
      %v788 = vsel %vm770, %v784, 0.0
      %v789 = vsel %vm770, %v785, 0.0
      %v790 = vadd.f32 %v788, %v789
      %v791 = vsel %vm770, %v786, 0.0
      %v792 = vadd.f32 %v790, %v791
      %v793 = vsel %vm770, %v787, 0.0
      %v794 = vadd.f32 %v792, %v793
      %v795 = vrot.slane %v794, 4
      %v796 = vadd.f32 %v794, %v795
      %v797 = vrot.slane %v796, 2
      %v798 = vadd.f32 %v796, %v797
      %v799 = vrot.slane %v798, 1
      %v800 = vadd.f32 %v798, %v799
      %v801 = vsel %vm553, inf, %v368
      %v802 = vsel %vm554, inf, %v369
      %v803 = vsel %vm555, inf, %v370
      %v804 = vsel %vm556, inf, %v371
      %v805 = vsel %vm472, %v801, inf
      %806 = vmin.xlane.f32.xlu0 %v805
      %v807 = vpop.xlane.xlu0 %806
      %v808 = vsel %vm472, %v802, inf
      %809 = vmin.xlane.f32.xlu0 %v808
      %v810 = vpop.xlane.xlu0 %809
      %v811 = vsel %vm472, %v803, inf
      %812 = vmin.xlane.f32.xlu0 %v811
      %v813 = vpop.xlane.xlu0 %812
      %v814 = vsel %vm472, %v804, inf
      %815 = vmin.xlane.f32.xlu0 %v814
      %v816 = vpop.xlane.xlu0 %815
      %vm817 = vcmp.eq.f32.partialorder %v801, %v807
      %vm818 = vcmp.eq.f32.partialorder %v802, %v810
      %vm819 = vcmp.eq.f32.partialorder %v803, %v813
      %vm820 = vcmp.eq.f32.partialorder %v804, %v816
      %v821 = vsel %vm817, %v373, 32
      %v822 = vsel %vm818, %v373, 32
      %v823 = vsel %vm819, %v373, 32
      %v824 = vsel %vm820, %v373, 32
      %v825 = vsel %vm472, %v821, 2147483647
      %v826 = vand.u32 %v825, 65535
      %v827 = vshra.s32 %v825, 16
      %v828 = vcvt.s32.f32 %v826
      %v829 = vcvt.s32.f32 %v827
      %830 = vmin.xlane.f32.xlu0 %v829
      %v831 = vpop.xlane.xlu0 %830
      %vm832 = vcmp.eq.f32.partialorder %v829, %v831
      %v833 = vsel %vm832, %v828, inf
      %834 = vmin.xlane.f32.xlu0 %v833
      %v835 = vpop.xlane.xlu0 %834
      %v836 = vcvt.f32.s32 %v835
      %v837 = vcvt.f32.s32 %v831
      %v838 = vshll.u32 %v837, 16
      %v839 = vadd.s32 %v838, %v836
      %v840 = vsel %vm472, %v822, 2147483647
      %v841 = vand.u32 %v840, 65535
      %v842 = vshra.s32 %v840, 16
      %v843 = vcvt.s32.f32 %v841
      %v844 = vcvt.s32.f32 %v842
      %845 = vmin.xlane.f32.xlu0 %v844
      %v846 = vpop.xlane.xlu0 %845
      %vm847 = vcmp.eq.f32.partialorder %v844, %v846
      %v848 = vsel %vm847, %v843, inf
      %849 = vmin.xlane.f32.xlu0 %v848
      %v850 = vpop.xlane.xlu0 %849
      %v851 = vcvt.f32.s32 %v850
      %v852 = vcvt.f32.s32 %v846
      %v853 = vshll.u32 %v852, 16
      %v854 = vadd.s32 %v853, %v851
      %v855 = vsel %vm472, %v823, 2147483647
      %v856 = vand.u32 %v855, 65535
      %v857 = vshra.s32 %v855, 16
      %v858 = vcvt.s32.f32 %v856
      %v859 = vcvt.s32.f32 %v857
      %860 = vmin.xlane.f32.xlu0 %v859
      %v861 = vpop.xlane.xlu0 %860
      %vm862 = vcmp.eq.f32.partialorder %v859, %v861
      %v863 = vsel %vm862, %v858, inf
      %864 = vmin.xlane.f32.xlu0 %v863
      %v865 = vpop.xlane.xlu0 %864
      %v866 = vcvt.f32.s32 %v865
      %v867 = vcvt.f32.s32 %v861
      %v868 = vshll.u32 %v867, 16
      %v869 = vadd.s32 %v868, %v866
      %v870 = vsel %vm472, %v824, 2147483647
      %v871 = vand.u32 %v870, 65535
      %v872 = vshra.s32 %v870, 16
      %v873 = vcvt.s32.f32 %v871
      %v874 = vcvt.s32.f32 %v872
      %875 = vmin.xlane.f32.xlu0 %v874
      %v876 = vpop.xlane.xlu0 %875
      %vm877 = vcmp.eq.f32.partialorder %v874, %v876
      %v878 = vsel %vm877, %v873, inf
      %879 = vmin.xlane.f32.xlu0 %v878
      %v880 = vpop.xlane.xlu0 %879
      %v881 = vcvt.f32.s32 %v880
      %v882 = vcvt.f32.s32 %v876
      %v883 = vshll.u32 %v882, 16
      %v884 = vadd.s32 %v883, %v881
      %vm885 = vcmp.eq.s32.totalorder %v373, %v839
      %vm886 = vcmp.eq.s32.totalorder %v373, %v854
      %vm887 = vcmp.eq.s32.totalorder %v373, %v869
      %vm888 = vcmp.eq.s32.totalorder %v373, %v884
      %v889 = vsel %vm885, 1, 0
      %v890 = vsel %vm886, 1, 0
      %v891 = vsel %vm887, 1, 0
      %v892 = vsel %vm888, 1, 0
      %v893 = vcvt.s32.f32 %v889
      %v894 = vcvt.s32.f32 %v890
      %v895 = vcvt.s32.f32 %v891
      %v896 = vcvt.s32.f32 %v892
      %v898 = vsel %vm472, %v893, 0
      %v901 = vsel %vm472, %v894, 0
      %v904 = vsel %vm472, %v895, 0
      %v907 = vsel %vm472, %v896, 0
      %909 = vmatprep.subr.mxu0 0.0
      %910 = vmatpush1.msra.mxu0 0.0
      %911 = vmatprep.subr.mxu0 0.0
      %912 = vmatpush1.msra.mxu0 0.0
      %913 = vmatprep.subr.mxu0 0.0
      %914 = vmatpush1.msra.mxu0 0.0
      %915 = vmatprep.subr.mxu0 0.0
      %916 = vmatpush1.msra.mxu0 0.0
      %917 = vmatprep.subr.mxu0 0.0
      %918 = vmatpush1.msra.mxu0 0.0
      %919 = vmatprep.subr.mxu0 0.0
      %920 = vmatpush1.msra.mxu0 0.0
      %921 = vmatprep.subr.mxu0 0.0
      %922 = vmatpush1.msra.mxu0 0.0
      %923 = vmatprep.subr.mxu0 0.0
      %924 = vmatpush1.msra.mxu0 0.0
      %925 = vmatprep.subr.mxu0 0.0
      %926 = vmatpush1.msra.mxu0 0.0
      %927 = vmatprep.subr.mxu0 0.0
      %928 = vmatpush1.msra.mxu0 0.0
      %929 = vmatprep.subr.mxu0 0.0
      %930 = vmatpush1.msra.mxu0 0.0
      %931 = vmatprep.subr.mxu0 0.0
      %932 = vmatpush1.msra.mxu0 0.0
      %933 = vmatprep.subr.mxu0 0.0
      %934 = vmatpush1.msra.mxu0 %v172
      %935 = vmatprep.subr.mxu0 0.0
      %936 = vmatpush1.msra.mxu0 %v171
      %937 = vmatprep.subr.mxu0 0.0
      %938 = vmatpush1.msra.mxu0 %v170
      %939 = vmatprep.subr.mxu0 0.0
      %940 = vmatpush1.msra.mxu0 %v169
      %941 = vmatprep.subr.mxu0 0.0
      %942 = vmatpush2.msra.mxu0 0.0
      %943 = vmatprep.subr.mxu0 0.0
      %944 = vmatpush2.msra.mxu0 0.0
      %945 = vmatprep.subr.mxu0 0.0
      %946 = vmatpush2.msra.mxu0 0.0
      %947 = vmatprep.subr.mxu0 0.0
      %948 = vmatpush2.msra.mxu0 0.0
      %949 = vmatprep.subr.mxu0 0.0
      %950 = vmatpush2.msra.mxu0 0.0
      %951 = vmatprep.subr.mxu0 0.0
      %952 = vmatpush2.msra.mxu0 0.0
      %953 = vmatprep.subr.mxu0 0.0
      %954 = vmatpush2.msra.mxu0 0.0
      %955 = vmatprep.subr.mxu0 0.0
      %956 = vmatpush2.msra.mxu0 0.0
      %957 = vmatprep.subr.mxu0 0.0
      %958 = vmatpush2.msra.mxu0 0.0
      %959 = vmatprep.subr.mxu0 0.0
      %960 = vmatpush2.msra.mxu0 0.0
      %961 = vmatprep.subr.mxu0 0.0
      %962 = vmatpush2.msra.mxu0 0.0
      %963 = vmatprep.subr.mxu0 0.0
      %964 = vmatpush2.msra.mxu0 0.0
      %965 = vmatprep.subr.mxu0 0.0
      %966 = vmatpush2.msra.mxu0 0.0
      %967 = vmatprep.subr.mxu0 0.0
      %968 = vmatpush2.msra.mxu0 0.0
      %969 = vmatprep.subr.mxu0 0.0
      %970 = vmatpush2.msra.mxu0 0.0
      %971 = vmatprep.subr.mxu0 0.0
      %972 = vmatpush2.msra.mxu0 0.0
      %973 = vmatprep.mubr.f32.mxu0 0.0
      %974 = vmatmul.mubr.f32.gmra.mxu0 %v898
      %v975 = vpop.f32.mrf.mxu0
      %v976 = vadd.f32 0.0, %v975
      %v977 = vpop.f32.mrf.mxu0
      %978 = vmatprep.mubr.f32.mxu0 0.0
      %979 = vmatmul.mubr.f32.gmra.mxu0 %v901
      %v980 = vpop.f32.mrf.mxu0
      %v981 = vadd.f32 0.0, %v980
      %v982 = vpop.f32.mrf.mxu0
      %983 = vmatprep.mubr.f32.mxu0 0.0
      %984 = vmatmul.mubr.f32.gmra.mxu0 %v904
      %v985 = vpop.f32.mrf.mxu0
      %v986 = vadd.f32 0.0, %v985
      %v987 = vpop.f32.mrf.mxu0
      %988 = vmatprep.mubr.f32.mxu0 0.0
      %989 = vmatmul.mubr.f32.gmra.mxu0 %v907
      %v990 = vpop.f32.mrf.mxu0
      %v991 = vadd.f32 0.0, %v990
      %v992 = vpop.f32.mrf.mxu0
      %993 = vdwg.mxu0
      %v994 = vsub.f32 %v976, %v169
      %v995 = vsub.f32 %v981, %v170
      %v996 = vsub.f32 %v986, %v171
      %v997 = vsub.f32 %v991, %v172
      %v999 = vsel %vm173, %v994, 0
      %v1002 = vsel %vm173, %v995, 0
      %v1005 = vsel %vm173, %v996, 0
      %v1008 = vsel %vm173, %v997, 0
      %1010 = vmatprep.subr.mxu0 0.0
      %1011 = vmatpush1.msra.mxu0 0.0
      %1012 = vmatprep.subr.mxu0 0.0
      %1013 = vmatpush1.msra.mxu0 0.0
      %1014 = vmatprep.subr.mxu0 0.0
      %1015 = vmatpush1.msra.mxu0 0.0
      %1016 = vmatprep.subr.mxu0 0.0
      %1017 = vmatpush1.msra.mxu0 0.0
      %1018 = vmatprep.subr.mxu0 0.0
      %1019 = vmatpush1.msra.mxu0 0.0
      %1020 = vmatprep.subr.mxu0 0.0
      %1021 = vmatpush1.msra.mxu0 0.0
      %1022 = vmatprep.subr.mxu0 0.0
      %1023 = vmatpush1.msra.mxu0 0.0
      %1024 = vmatprep.subr.mxu0 0.0
      %1025 = vmatpush1.msra.mxu0 0.0
      %1026 = vmatprep.subr.mxu0 0.0
      %1027 = vmatpush1.msra.mxu0 0.0
      %1028 = vmatprep.subr.mxu0 0.0
      %1029 = vmatpush1.msra.mxu0 0.0
      %1030 = vmatprep.subr.mxu0 0.0
      %1031 = vmatpush1.msra.mxu0 0.0
      %1032 = vmatprep.subr.mxu0 0.0
      %1033 = vmatpush1.msra.mxu0 0.0
      %1034 = vmatprep.subr.mxu0 0.0
      %1035 = vmatpush1.msra.mxu0 0.0
      %1036 = vmatprep.subr.mxu0 0.0
      %1037 = vmatpush1.msra.mxu0 0.0
      %1038 = vmatprep.subr.mxu0 0.0
      %1039 = vmatpush1.msra.mxu0 0.0
      %1040 = vmatprep.subr.mxu0 0.0
      %1041 = vmatpush1.msra.mxu0 %v679
      %1042 = vmatprep.subr.mxu0 0.0
      %1043 = vmatpush2.msra.mxu0 0.0
      %1044 = vmatprep.subr.mxu0 0.0
      %1045 = vmatpush2.msra.mxu0 0.0
      %1046 = vmatprep.subr.mxu0 0.0
      %1047 = vmatpush2.msra.mxu0 0.0
      %1048 = vmatprep.subr.mxu0 0.0
      %1049 = vmatpush2.msra.mxu0 0.0
      %1050 = vmatprep.subr.mxu0 0.0
      %1051 = vmatpush2.msra.mxu0 0.0
      %1052 = vmatprep.subr.mxu0 0.0
      %1053 = vmatpush2.msra.mxu0 0.0
      %1054 = vmatprep.subr.mxu0 0.0
      %1055 = vmatpush2.msra.mxu0 0.0
      %1056 = vmatprep.subr.mxu0 0.0
      %1057 = vmatpush2.msra.mxu0 0.0
      %1058 = vmatprep.subr.mxu0 0.0
      %1059 = vmatpush2.msra.mxu0 0.0
      %1060 = vmatprep.subr.mxu0 0.0
      %1061 = vmatpush2.msra.mxu0 0.0
      %1062 = vmatprep.subr.mxu0 0.0
      %1063 = vmatpush2.msra.mxu0 0.0
      %1064 = vmatprep.subr.mxu0 0.0
      %1065 = vmatpush2.msra.mxu0 0.0
      %1066 = vmatprep.subr.mxu0 0.0
      %1067 = vmatpush2.msra.mxu0 0.0
      %1068 = vmatprep.subr.mxu0 0.0
      %1069 = vmatpush2.msra.mxu0 0.0
      %1070 = vmatprep.subr.mxu0 0.0
      %1071 = vmatpush2.msra.mxu0 0.0
      %1072 = vmatprep.subr.mxu0 0.0
      %1073 = vmatpush2.msra.mxu0 0.0
      %1074 = vmatprep.mubr.f32.mxu0 0.0
      %1075 = vmatmul.mubr.f32.gmra.mxu0 %v999
      %v1076 = vpop.f32.mrf.mxu0
      %v1077 = vadd.f32 0.0, %v1076
      %v1078 = vpop.f32.mrf.mxu0
      %1079 = vmatprep.mubr.f32.mxu0 0.0
      %1080 = vmatmul.mubr.f32.gmra.mxu0 %v1002
      %v1081 = vpop.f32.mrf.mxu0
      %v1082 = vadd.f32 0.0, %v1081
      %v1083 = vpop.f32.mrf.mxu0
      %1084 = vmatprep.mubr.f32.mxu0 0.0
      %1085 = vmatmul.mubr.f32.gmra.mxu0 %v1005
      %v1086 = vpop.f32.mrf.mxu0
      %v1087 = vadd.f32 0.0, %v1086
      %v1088 = vpop.f32.mrf.mxu0
      %1089 = vmatprep.mubr.f32.mxu0 0.0
      %1090 = vmatmul.mubr.f32.gmra.mxu0 %v1008
      %v1091 = vpop.f32.mrf.mxu0
      %v1092 = vadd.f32 0.0, %v1091
      %v1093 = vpop.f32.mrf.mxu0
      %1094 = vdwg.mxu0
      %v1095 = vadd.f32 %v454, %v1077
      %v1096 = vadd.f32 %v459, %v1082
      %v1097 = vadd.f32 %v464, %v1087
      %v1098 = vadd.f32 %v469, %v1092
      %v1099 = vsel %vm770, %v1095, 0.0
      %v1100 = vsel %vm770, %v1096, 0.0
      %v1101 = vadd.f32 %v1099, %v1100
      %v1102 = vsel %vm770, %v1097, 0.0
      %v1103 = vadd.f32 %v1101, %v1102
      %v1104 = vsel %vm770, %v1098, 0.0
      %v1105 = vadd.f32 %v1103, %v1104
      %v1106 = vrot.slane %v1105, 4
      %v1107 = vadd.f32 %v1105, %v1106
      %v1108 = vrot.slane %v1107, 2
      %v1109 = vadd.f32 %v1107, %v1108
      %v1110 = vrot.slane %v1109, 1
      %v1111 = vadd.f32 %v1109, %v1110
      %v1112 = vmul.f32 %v1095, %v1095
      %v1113 = vmul.f32 %v1096, %v1096
      %v1114 = vmul.f32 %v1097, %v1097
      %v1115 = vmul.f32 %v1098, %v1098
      %v1116 = vsel %vm770, %v1112, 0.0
      %v1117 = vsel %vm770, %v1113, 0.0
      %v1118 = vadd.f32 %v1116, %v1117
      %v1119 = vsel %vm770, %v1114, 0.0
      %v1120 = vadd.f32 %v1118, %v1119
      %v1121 = vsel %vm770, %v1115, 0.0
      %v1122 = vadd.f32 %v1120, %v1121
      %v1123 = vrot.slane %v1122, 4
      %v1124 = vadd.f32 %v1122, %v1123
      %v1125 = vrot.slane %v1124, 2
      %v1126 = vadd.f32 %v1124, %v1125
      %v1127 = vrot.slane %v1126, 1
      %v1128 = vadd.f32 %v1126, %v1127
      %v1129 = vadd.f32 %v783, %v1111
      %v1130 = vadd.f32 %v800, %v1128
      %v1131 = vsel %vm885, inf, %v801
      %v1132 = vsel %vm886, inf, %v802
      %v1133 = vsel %vm887, inf, %v803
      %v1134 = vsel %vm888, inf, %v804
      %v1135 = vsel %vm472, %v1131, inf
      %1136 = vmin.xlane.f32.xlu0 %v1135
      %v1137 = vpop.xlane.xlu0 %1136
      %v1138 = vsel %vm472, %v1132, inf
      %1139 = vmin.xlane.f32.xlu0 %v1138
      %v1140 = vpop.xlane.xlu0 %1139
      %v1141 = vsel %vm472, %v1133, inf
      %1142 = vmin.xlane.f32.xlu0 %v1141
      %v1143 = vpop.xlane.xlu0 %1142
      %v1144 = vsel %vm472, %v1134, inf
      %1145 = vmin.xlane.f32.xlu0 %v1144
      %v1146 = vpop.xlane.xlu0 %1145
      %vm1147 = vcmp.eq.f32.partialorder %v1131, %v1137
      %vm1148 = vcmp.eq.f32.partialorder %v1132, %v1140
      %vm1149 = vcmp.eq.f32.partialorder %v1133, %v1143
      %vm1150 = vcmp.eq.f32.partialorder %v1134, %v1146
      %v1151 = vsel %vm1147, %v373, 32
      %v1152 = vsel %vm1148, %v373, 32
      %v1153 = vsel %vm1149, %v373, 32
      %v1154 = vsel %vm1150, %v373, 32
      %v1155 = vsel %vm472, %v1151, 2147483647
      %v1156 = vand.u32 %v1155, 65535
      %v1157 = vshra.s32 %v1155, 16
      %v1158 = vcvt.s32.f32 %v1156
      %v1159 = vcvt.s32.f32 %v1157
      %1160 = vmin.xlane.f32.xlu0 %v1159
      %v1161 = vpop.xlane.xlu0 %1160
      %vm1162 = vcmp.eq.f32.partialorder %v1159, %v1161
      %v1163 = vsel %vm1162, %v1158, inf
      %1164 = vmin.xlane.f32.xlu0 %v1163
      %v1165 = vpop.xlane.xlu0 %1164
      %v1166 = vcvt.f32.s32 %v1165
      %v1167 = vcvt.f32.s32 %v1161
      %v1168 = vshll.u32 %v1167, 16
      %v1169 = vadd.s32 %v1168, %v1166
      %v1170 = vsel %vm472, %v1152, 2147483647
      %v1171 = vand.u32 %v1170, 65535
      %v1172 = vshra.s32 %v1170, 16
      %v1173 = vcvt.s32.f32 %v1171
      %v1174 = vcvt.s32.f32 %v1172
      %1175 = vmin.xlane.f32.xlu0 %v1174
      %v1176 = vpop.xlane.xlu0 %1175
      %vm1177 = vcmp.eq.f32.partialorder %v1174, %v1176
      %v1178 = vsel %vm1177, %v1173, inf
      %1179 = vmin.xlane.f32.xlu0 %v1178
      %v1180 = vpop.xlane.xlu0 %1179
      %v1181 = vcvt.f32.s32 %v1180
      %v1182 = vcvt.f32.s32 %v1176
      %v1183 = vshll.u32 %v1182, 16
      %v1184 = vadd.s32 %v1183, %v1181
      %v1185 = vsel %vm472, %v1153, 2147483647
      %v1186 = vand.u32 %v1185, 65535
      %v1187 = vshra.s32 %v1185, 16
      %v1188 = vcvt.s32.f32 %v1186
      %v1189 = vcvt.s32.f32 %v1187
      %1190 = vmin.xlane.f32.xlu0 %v1189
      %v1191 = vpop.xlane.xlu0 %1190
      %vm1192 = vcmp.eq.f32.partialorder %v1189, %v1191
      %v1193 = vsel %vm1192, %v1188, inf
      %1194 = vmin.xlane.f32.xlu0 %v1193
      %v1195 = vpop.xlane.xlu0 %1194
      %v1196 = vcvt.f32.s32 %v1195
      %v1197 = vcvt.f32.s32 %v1191
      %v1198 = vshll.u32 %v1197, 16
      %v1199 = vadd.s32 %v1198, %v1196
      %v1200 = vsel %vm472, %v1154, 2147483647
      %v1201 = vand.u32 %v1200, 65535
      %v1202 = vshra.s32 %v1200, 16
      %v1203 = vcvt.s32.f32 %v1201
      %v1204 = vcvt.s32.f32 %v1202
      %1205 = vmin.xlane.f32.xlu0 %v1204
      %v1206 = vpop.xlane.xlu0 %1205
      %vm1207 = vcmp.eq.f32.partialorder %v1204, %v1206
      %v1208 = vsel %vm1207, %v1203, inf
      %1209 = vmin.xlane.f32.xlu0 %v1208
      %v1210 = vpop.xlane.xlu0 %1209
      %v1211 = vcvt.f32.s32 %v1210
      %v1212 = vcvt.f32.s32 %v1206
      %v1213 = vshll.u32 %v1212, 16
      %v1214 = vadd.s32 %v1213, %v1211
      %vm1215 = vcmp.eq.s32.totalorder %v373, %v1169
      %vm1216 = vcmp.eq.s32.totalorder %v373, %v1184
      %vm1217 = vcmp.eq.s32.totalorder %v373, %v1199
      %vm1218 = vcmp.eq.s32.totalorder %v373, %v1214
      %v1219 = vsel %vm1215, 1, 0
      %v1220 = vsel %vm1216, 1, 0
      %v1221 = vsel %vm1217, 1, 0
      %v1222 = vsel %vm1218, 1, 0
      %v1223 = vcvt.s32.f32 %v1219
      %v1224 = vcvt.s32.f32 %v1220
      %v1225 = vcvt.s32.f32 %v1221
      %v1226 = vcvt.s32.f32 %v1222
      %v1228 = vsel %vm472, %v1223, 0
      %v1231 = vsel %vm472, %v1224, 0
      %v1234 = vsel %vm472, %v1225, 0
      %v1237 = vsel %vm472, %v1226, 0
      %1239 = vmatprep.subr.mxu0 0.0
      %1240 = vmatpush1.msra.mxu0 0.0
      %1241 = vmatprep.subr.mxu0 0.0
      %1242 = vmatpush1.msra.mxu0 0.0
      %1243 = vmatprep.subr.mxu0 0.0
      %1244 = vmatpush1.msra.mxu0 0.0
      %1245 = vmatprep.subr.mxu0 0.0
      %1246 = vmatpush1.msra.mxu0 0.0
      %1247 = vmatprep.subr.mxu0 0.0
      %1248 = vmatpush1.msra.mxu0 0.0
      %1249 = vmatprep.subr.mxu0 0.0
      %1250 = vmatpush1.msra.mxu0 0.0
      %1251 = vmatprep.subr.mxu0 0.0
      %1252 = vmatpush1.msra.mxu0 0.0
      %1253 = vmatprep.subr.mxu0 0.0
      %1254 = vmatpush1.msra.mxu0 0.0
      %1255 = vmatprep.subr.mxu0 0.0
      %1256 = vmatpush1.msra.mxu0 0.0
      %1257 = vmatprep.subr.mxu0 0.0
      %1258 = vmatpush1.msra.mxu0 0.0
      %1259 = vmatprep.subr.mxu0 0.0
      %1260 = vmatpush1.msra.mxu0 0.0
      %1261 = vmatprep.subr.mxu0 0.0
      %1262 = vmatpush1.msra.mxu0 0.0
      %1263 = vmatprep.subr.mxu0 0.0
      %1264 = vmatpush1.msra.mxu0 %v172
      %1265 = vmatprep.subr.mxu0 0.0
      %1266 = vmatpush1.msra.mxu0 %v171
      %1267 = vmatprep.subr.mxu0 0.0
      %1268 = vmatpush1.msra.mxu0 %v170
      %1269 = vmatprep.subr.mxu0 0.0
      %1270 = vmatpush1.msra.mxu0 %v169
      %1271 = vmatprep.subr.mxu0 0.0
      %1272 = vmatpush2.msra.mxu0 0.0
      %1273 = vmatprep.subr.mxu0 0.0
      %1274 = vmatpush2.msra.mxu0 0.0
      %1275 = vmatprep.subr.mxu0 0.0
      %1276 = vmatpush2.msra.mxu0 0.0
      %1277 = vmatprep.subr.mxu0 0.0
      %1278 = vmatpush2.msra.mxu0 0.0
      %1279 = vmatprep.subr.mxu0 0.0
      %1280 = vmatpush2.msra.mxu0 0.0
      %1281 = vmatprep.subr.mxu0 0.0
      %1282 = vmatpush2.msra.mxu0 0.0
      %1283 = vmatprep.subr.mxu0 0.0
      %1284 = vmatpush2.msra.mxu0 0.0
      %1285 = vmatprep.subr.mxu0 0.0
      %1286 = vmatpush2.msra.mxu0 0.0
      %1287 = vmatprep.subr.mxu0 0.0
      %1288 = vmatpush2.msra.mxu0 0.0
      %1289 = vmatprep.subr.mxu0 0.0
      %1290 = vmatpush2.msra.mxu0 0.0
      %1291 = vmatprep.subr.mxu0 0.0
      %1292 = vmatpush2.msra.mxu0 0.0
      %1293 = vmatprep.subr.mxu0 0.0
      %1294 = vmatpush2.msra.mxu0 0.0
      %1295 = vmatprep.subr.mxu0 0.0
      %1296 = vmatpush2.msra.mxu0 0.0
      %1297 = vmatprep.subr.mxu0 0.0
      %1298 = vmatpush2.msra.mxu0 0.0
      %1299 = vmatprep.subr.mxu0 0.0
      %1300 = vmatpush2.msra.mxu0 0.0
      %1301 = vmatprep.subr.mxu0 0.0
      %1302 = vmatpush2.msra.mxu0 0.0
      %1303 = vmatprep.mubr.f32.mxu0 0.0
      %1304 = vmatmul.mubr.f32.gmra.mxu0 %v1228
      %v1305 = vpop.f32.mrf.mxu0
      %v1306 = vadd.f32 0.0, %v1305
      %v1307 = vpop.f32.mrf.mxu0
      %1308 = vmatprep.mubr.f32.mxu0 0.0
      %1309 = vmatmul.mubr.f32.gmra.mxu0 %v1231
      %v1310 = vpop.f32.mrf.mxu0
      %v1311 = vadd.f32 0.0, %v1310
      %v1312 = vpop.f32.mrf.mxu0
      %1313 = vmatprep.mubr.f32.mxu0 0.0
      %1314 = vmatmul.mubr.f32.gmra.mxu0 %v1234
      %v1315 = vpop.f32.mrf.mxu0
      %v1316 = vadd.f32 0.0, %v1315
      %v1317 = vpop.f32.mrf.mxu0
      %1318 = vmatprep.mubr.f32.mxu0 0.0
      %1319 = vmatmul.mubr.f32.gmra.mxu0 %v1237
      %v1320 = vpop.f32.mrf.mxu0
      %v1321 = vadd.f32 0.0, %v1320
      %v1322 = vpop.f32.mrf.mxu0
      %1323 = vdwg.mxu0
      %v1324 = vsub.f32 %v1306, %v169
      %v1325 = vsub.f32 %v1311, %v170
      %v1326 = vsub.f32 %v1316, %v171
      %v1327 = vsub.f32 %v1321, %v172
      %v1329 = vsel %vm173, %v1324, 0
      %v1332 = vsel %vm173, %v1325, 0
      %v1335 = vsel %vm173, %v1326, 0
      %v1338 = vsel %vm173, %v1327, 0
      %1340 = vmatprep.subr.mxu0 0.0
      %1341 = vmatpush1.msra.mxu0 0.0
      %1342 = vmatprep.subr.mxu0 0.0
      %1343 = vmatpush1.msra.mxu0 0.0
      %1344 = vmatprep.subr.mxu0 0.0
      %1345 = vmatpush1.msra.mxu0 0.0
      %1346 = vmatprep.subr.mxu0 0.0
      %1347 = vmatpush1.msra.mxu0 0.0
      %1348 = vmatprep.subr.mxu0 0.0
      %1349 = vmatpush1.msra.mxu0 0.0
      %1350 = vmatprep.subr.mxu0 0.0
      %1351 = vmatpush1.msra.mxu0 0.0
      %1352 = vmatprep.subr.mxu0 0.0
      %1353 = vmatpush1.msra.mxu0 0.0
      %1354 = vmatprep.subr.mxu0 0.0
      %1355 = vmatpush1.msra.mxu0 0.0
      %1356 = vmatprep.subr.mxu0 0.0
      %1357 = vmatpush1.msra.mxu0 0.0
      %1358 = vmatprep.subr.mxu0 0.0
      %1359 = vmatpush1.msra.mxu0 0.0
      %1360 = vmatprep.subr.mxu0 0.0
      %1361 = vmatpush1.msra.mxu0 0.0
      %1362 = vmatprep.subr.mxu0 0.0
      %1363 = vmatpush1.msra.mxu0 0.0
      %1364 = vmatprep.subr.mxu0 0.0
      %1365 = vmatpush1.msra.mxu0 0.0
      %1366 = vmatprep.subr.mxu0 0.0
      %1367 = vmatpush1.msra.mxu0 0.0
      %1368 = vmatprep.subr.mxu0 0.0
      %1369 = vmatpush1.msra.mxu0 0.0
      %1370 = vmatprep.subr.mxu0 0.0
      %1371 = vmatpush1.msra.mxu0 %v679
      %1372 = vmatprep.subr.mxu0 0.0
      %1373 = vmatpush2.msra.mxu0 0.0
      %1374 = vmatprep.subr.mxu0 0.0
      %1375 = vmatpush2.msra.mxu0 0.0
      %1376 = vmatprep.subr.mxu0 0.0
      %1377 = vmatpush2.msra.mxu0 0.0
      %1378 = vmatprep.subr.mxu0 0.0
      %1379 = vmatpush2.msra.mxu0 0.0
      %1380 = vmatprep.subr.mxu0 0.0
      %1381 = vmatpush2.msra.mxu0 0.0
      %1382 = vmatprep.subr.mxu0 0.0
      %1383 = vmatpush2.msra.mxu0 0.0
      %1384 = vmatprep.subr.mxu0 0.0
      %1385 = vmatpush2.msra.mxu0 0.0
      %1386 = vmatprep.subr.mxu0 0.0
      %1387 = vmatpush2.msra.mxu0 0.0
      %1388 = vmatprep.subr.mxu0 0.0
      %1389 = vmatpush2.msra.mxu0 0.0
      %1390 = vmatprep.subr.mxu0 0.0
      %1391 = vmatpush2.msra.mxu0 0.0
      %1392 = vmatprep.subr.mxu0 0.0
      %1393 = vmatpush2.msra.mxu0 0.0
      %1394 = vmatprep.subr.mxu0 0.0
      %1395 = vmatpush2.msra.mxu0 0.0
      %1396 = vmatprep.subr.mxu0 0.0
      %1397 = vmatpush2.msra.mxu0 0.0
      %1398 = vmatprep.subr.mxu0 0.0
      %1399 = vmatpush2.msra.mxu0 0.0
      %1400 = vmatprep.subr.mxu0 0.0
      %1401 = vmatpush2.msra.mxu0 0.0
      %1402 = vmatprep.subr.mxu0 0.0
      %1403 = vmatpush2.msra.mxu0 0.0
      %1404 = vmatprep.mubr.f32.mxu0 0.0
      %1405 = vmatmul.mubr.f32.gmra.mxu0 %v1329
      %v1406 = vpop.f32.mrf.mxu0
      %v1407 = vadd.f32 0.0, %v1406
      %v1408 = vpop.f32.mrf.mxu0
      %1409 = vmatprep.mubr.f32.mxu0 0.0
      %1410 = vmatmul.mubr.f32.gmra.mxu0 %v1332
      %v1411 = vpop.f32.mrf.mxu0
      %v1412 = vadd.f32 0.0, %v1411
      %v1413 = vpop.f32.mrf.mxu0
      %1414 = vmatprep.mubr.f32.mxu0 0.0
      %1415 = vmatmul.mubr.f32.gmra.mxu0 %v1335
      %v1416 = vpop.f32.mrf.mxu0
      %v1417 = vadd.f32 0.0, %v1416
      %v1418 = vpop.f32.mrf.mxu0
      %1419 = vmatprep.mubr.f32.mxu0 0.0
      %1420 = vmatmul.mubr.f32.gmra.mxu0 %v1338
      %v1421 = vpop.f32.mrf.mxu0
      %v1422 = vadd.f32 0.0, %v1421
      %v1423 = vpop.f32.mrf.mxu0
      %1424 = vdwg.mxu0
      %v1425 = vadd.f32 %v454, %v1407
      %v1426 = vadd.f32 %v459, %v1412
      %v1427 = vadd.f32 %v464, %v1417
      %v1428 = vadd.f32 %v469, %v1422
      %v1429 = vsel %vm770, %v1425, 0.0
      %v1430 = vsel %vm770, %v1426, 0.0
      %v1431 = vadd.f32 %v1429, %v1430
      %v1432 = vsel %vm770, %v1427, 0.0
      %v1433 = vadd.f32 %v1431, %v1432
      %v1434 = vsel %vm770, %v1428, 0.0
      %v1435 = vadd.f32 %v1433, %v1434
      %v1436 = vrot.slane %v1435, 4
      %v1437 = vadd.f32 %v1435, %v1436
      %v1438 = vrot.slane %v1437, 2
      %v1439 = vadd.f32 %v1437, %v1438
      %v1440 = vrot.slane %v1439, 1
      %v1441 = vadd.f32 %v1439, %v1440
      %v1442 = vmul.f32 %v1425, %v1425
      %v1443 = vmul.f32 %v1426, %v1426
      %v1444 = vmul.f32 %v1427, %v1427
      %v1445 = vmul.f32 %v1428, %v1428
      %v1446 = vsel %vm770, %v1442, 0.0
      %v1447 = vsel %vm770, %v1443, 0.0
      %v1448 = vadd.f32 %v1446, %v1447
      %v1449 = vsel %vm770, %v1444, 0.0
      %v1450 = vadd.f32 %v1448, %v1449
      %v1451 = vsel %vm770, %v1445, 0.0
      %v1452 = vadd.f32 %v1450, %v1451
      %v1453 = vrot.slane %v1452, 4
      %v1454 = vadd.f32 %v1452, %v1453
      %v1455 = vrot.slane %v1454, 2
      %v1456 = vadd.f32 %v1454, %v1455
      %v1457 = vrot.slane %v1456, 1
      %v1458 = vadd.f32 %v1456, %v1457
      %v1459 = vadd.f32 %v1129, %v1441
      %v1460 = vadd.f32 %v1130, %v1458
      %v1461 = vsel %vm1215, inf, %v1131
      %v1462 = vsel %vm1216, inf, %v1132
      %v1463 = vsel %vm1217, inf, %v1133
      %v1464 = vsel %vm1218, inf, %v1134
      %v1465 = vsel %vm472, %v1461, inf
      %1466 = vmin.xlane.f32.xlu0 %v1465
      %v1467 = vpop.xlane.xlu0 %1466
      %v1468 = vsel %vm472, %v1462, inf
      %1469 = vmin.xlane.f32.xlu0 %v1468
      %v1470 = vpop.xlane.xlu0 %1469
      %v1471 = vsel %vm472, %v1463, inf
      %1472 = vmin.xlane.f32.xlu0 %v1471
      %v1473 = vpop.xlane.xlu0 %1472
      %v1474 = vsel %vm472, %v1464, inf
      %1475 = vmin.xlane.f32.xlu0 %v1474
      %v1476 = vpop.xlane.xlu0 %1475
      %vm1477 = vcmp.eq.f32.partialorder %v1461, %v1467
      %vm1478 = vcmp.eq.f32.partialorder %v1462, %v1470
      %vm1479 = vcmp.eq.f32.partialorder %v1463, %v1473
      %vm1480 = vcmp.eq.f32.partialorder %v1464, %v1476
      %v1481 = vsel %vm1477, %v373, 32
      %v1482 = vsel %vm1478, %v373, 32
      %v1483 = vsel %vm1479, %v373, 32
      %v1484 = vsel %vm1480, %v373, 32
      %v1485 = vsel %vm472, %v1481, 2147483647
      %v1486 = vand.u32 %v1485, 65535
      %v1487 = vshra.s32 %v1485, 16
      %v1488 = vcvt.s32.f32 %v1486
      %v1489 = vcvt.s32.f32 %v1487
      %1490 = vmin.xlane.f32.xlu0 %v1489
      %v1491 = vpop.xlane.xlu0 %1490
      %vm1492 = vcmp.eq.f32.partialorder %v1489, %v1491
      %v1493 = vsel %vm1492, %v1488, inf
      %1494 = vmin.xlane.f32.xlu0 %v1493
      %v1495 = vpop.xlane.xlu0 %1494
      %v1496 = vcvt.f32.s32 %v1495
      %v1497 = vcvt.f32.s32 %v1491
      %v1498 = vshll.u32 %v1497, 16
      %v1499 = vadd.s32 %v1498, %v1496
      %v1500 = vsel %vm472, %v1482, 2147483647
      %v1501 = vand.u32 %v1500, 65535
      %v1502 = vshra.s32 %v1500, 16
      %v1503 = vcvt.s32.f32 %v1501
      %v1504 = vcvt.s32.f32 %v1502
      %1505 = vmin.xlane.f32.xlu0 %v1504
      %v1506 = vpop.xlane.xlu0 %1505
      %vm1507 = vcmp.eq.f32.partialorder %v1504, %v1506
      %v1508 = vsel %vm1507, %v1503, inf
      %1509 = vmin.xlane.f32.xlu0 %v1508
      %v1510 = vpop.xlane.xlu0 %1509
      %v1511 = vcvt.f32.s32 %v1510
      %v1512 = vcvt.f32.s32 %v1506
      %v1513 = vshll.u32 %v1512, 16
      %v1514 = vadd.s32 %v1513, %v1511
      %v1515 = vsel %vm472, %v1483, 2147483647
      %v1516 = vand.u32 %v1515, 65535
      %v1517 = vshra.s32 %v1515, 16
      %v1518 = vcvt.s32.f32 %v1516
      %v1519 = vcvt.s32.f32 %v1517
      %1520 = vmin.xlane.f32.xlu0 %v1519
      %v1521 = vpop.xlane.xlu0 %1520
      %vm1522 = vcmp.eq.f32.partialorder %v1519, %v1521
      %v1523 = vsel %vm1522, %v1518, inf
      %1524 = vmin.xlane.f32.xlu0 %v1523
      %v1525 = vpop.xlane.xlu0 %1524
      %v1526 = vcvt.f32.s32 %v1525
      %v1527 = vcvt.f32.s32 %v1521
      %v1528 = vshll.u32 %v1527, 16
      %v1529 = vadd.s32 %v1528, %v1526
      %v1530 = vsel %vm472, %v1484, 2147483647
      %v1531 = vand.u32 %v1530, 65535
      %v1532 = vshra.s32 %v1530, 16
      %v1533 = vcvt.s32.f32 %v1531
      %v1534 = vcvt.s32.f32 %v1532
      %1535 = vmin.xlane.f32.xlu0 %v1534
      %v1536 = vpop.xlane.xlu0 %1535
      %vm1537 = vcmp.eq.f32.partialorder %v1534, %v1536
      %v1538 = vsel %vm1537, %v1533, inf
      %1539 = vmin.xlane.f32.xlu0 %v1538
      %v1540 = vpop.xlane.xlu0 %1539
      %v1541 = vcvt.f32.s32 %v1540
      %v1542 = vcvt.f32.s32 %v1536
      %v1543 = vshll.u32 %v1542, 16
      %v1544 = vadd.s32 %v1543, %v1541
      %vm1545 = vcmp.eq.s32.totalorder %v373, %v1499
      %vm1546 = vcmp.eq.s32.totalorder %v373, %v1514
      %vm1547 = vcmp.eq.s32.totalorder %v373, %v1529
      %vm1548 = vcmp.eq.s32.totalorder %v373, %v1544
      %v1549 = vsel %vm1545, 1, 0
      %v1550 = vsel %vm1546, 1, 0
      %v1551 = vsel %vm1547, 1, 0
      %v1552 = vsel %vm1548, 1, 0
      %v1553 = vcvt.s32.f32 %v1549
      %v1554 = vcvt.s32.f32 %v1550
      %v1555 = vcvt.s32.f32 %v1551
      %v1556 = vcvt.s32.f32 %v1552
      %v1558 = vsel %vm472, %v1553, 0
      %v1561 = vsel %vm472, %v1554, 0
      %v1564 = vsel %vm472, %v1555, 0
      %v1567 = vsel %vm472, %v1556, 0
      %1569 = vmatprep.subr.mxu0 0.0
      %1570 = vmatpush1.msra.mxu0 0.0
      %1571 = vmatprep.subr.mxu0 0.0
      %1572 = vmatpush1.msra.mxu0 0.0
      %1573 = vmatprep.subr.mxu0 0.0
      %1574 = vmatpush1.msra.mxu0 0.0
      %1575 = vmatprep.subr.mxu0 0.0
      %1576 = vmatpush1.msra.mxu0 0.0
      %1577 = vmatprep.subr.mxu0 0.0
      %1578 = vmatpush1.msra.mxu0 0.0
      %1579 = vmatprep.subr.mxu0 0.0
      %1580 = vmatpush1.msra.mxu0 0.0
      %1581 = vmatprep.subr.mxu0 0.0
      %1582 = vmatpush1.msra.mxu0 0.0
      %1583 = vmatprep.subr.mxu0 0.0
      %1584 = vmatpush1.msra.mxu0 0.0
      %1585 = vmatprep.subr.mxu0 0.0
      %1586 = vmatpush1.msra.mxu0 0.0
      %1587 = vmatprep.subr.mxu0 0.0
      %1588 = vmatpush1.msra.mxu0 0.0
      %1589 = vmatprep.subr.mxu0 0.0
      %1590 = vmatpush1.msra.mxu0 0.0
      %1591 = vmatprep.subr.mxu0 0.0
      %1592 = vmatpush1.msra.mxu0 0.0
      %1593 = vmatprep.subr.mxu0 0.0
      %1594 = vmatpush1.msra.mxu0 %v172
      %1595 = vmatprep.subr.mxu0 0.0
      %1596 = vmatpush1.msra.mxu0 %v171
      %1597 = vmatprep.subr.mxu0 0.0
      %1598 = vmatpush1.msra.mxu0 %v170
      %1599 = vmatprep.subr.mxu0 0.0
      %1600 = vmatpush1.msra.mxu0 %v169
      %1601 = vmatprep.subr.mxu0 0.0
      %1602 = vmatpush2.msra.mxu0 0.0
      %1603 = vmatprep.subr.mxu0 0.0
      %1604 = vmatpush2.msra.mxu0 0.0
      %1605 = vmatprep.subr.mxu0 0.0
      %1606 = vmatpush2.msra.mxu0 0.0
      %1607 = vmatprep.subr.mxu0 0.0
      %1608 = vmatpush2.msra.mxu0 0.0
      %1609 = vmatprep.subr.mxu0 0.0
      %1610 = vmatpush2.msra.mxu0 0.0
      %1611 = vmatprep.subr.mxu0 0.0
      %1612 = vmatpush2.msra.mxu0 0.0
      %1613 = vmatprep.subr.mxu0 0.0
      %1614 = vmatpush2.msra.mxu0 0.0
      %1615 = vmatprep.subr.mxu0 0.0
      %1616 = vmatpush2.msra.mxu0 0.0
      %1617 = vmatprep.subr.mxu0 0.0
      %1618 = vmatpush2.msra.mxu0 0.0
      %1619 = vmatprep.subr.mxu0 0.0
      %1620 = vmatpush2.msra.mxu0 0.0
      %1621 = vmatprep.subr.mxu0 0.0
      %1622 = vmatpush2.msra.mxu0 0.0
      %1623 = vmatprep.subr.mxu0 0.0
      %1624 = vmatpush2.msra.mxu0 0.0
      %1625 = vmatprep.subr.mxu0 0.0
      %1626 = vmatpush2.msra.mxu0 0.0
      %1627 = vmatprep.subr.mxu0 0.0
      %1628 = vmatpush2.msra.mxu0 0.0
      %1629 = vmatprep.subr.mxu0 0.0
      %1630 = vmatpush2.msra.mxu0 0.0
      %1631 = vmatprep.subr.mxu0 0.0
      %1632 = vmatpush2.msra.mxu0 0.0
      %1633 = vmatprep.mubr.f32.mxu0 0.0
      %1634 = vmatmul.mubr.f32.gmra.mxu0 %v1558
      %v1635 = vpop.f32.mrf.mxu0
      %v1636 = vadd.f32 0.0, %v1635
      %v1637 = vpop.f32.mrf.mxu0
      %1638 = vmatprep.mubr.f32.mxu0 0.0
      %1639 = vmatmul.mubr.f32.gmra.mxu0 %v1561
      %v1640 = vpop.f32.mrf.mxu0
      %v1641 = vadd.f32 0.0, %v1640
      %v1642 = vpop.f32.mrf.mxu0
      %1643 = vmatprep.mubr.f32.mxu0 0.0
      %1644 = vmatmul.mubr.f32.gmra.mxu0 %v1564
      %v1645 = vpop.f32.mrf.mxu0
      %v1646 = vadd.f32 0.0, %v1645
      %v1647 = vpop.f32.mrf.mxu0
      %1648 = vmatprep.mubr.f32.mxu0 0.0
      %1649 = vmatmul.mubr.f32.gmra.mxu0 %v1567
      %v1650 = vpop.f32.mrf.mxu0
      %v1651 = vadd.f32 0.0, %v1650
      %v1652 = vpop.f32.mrf.mxu0
      %1653 = vdwg.mxu0
      %v1654 = vsub.f32 %v1636, %v169
      %v1655 = vsub.f32 %v1641, %v170
      %v1656 = vsub.f32 %v1646, %v171
      %v1657 = vsub.f32 %v1651, %v172
      %v1659 = vsel %vm173, %v1654, 0
      %v1662 = vsel %vm173, %v1655, 0
      %v1665 = vsel %vm173, %v1656, 0
      %v1668 = vsel %vm173, %v1657, 0
      %1670 = vmatprep.subr.mxu0 0.0
      %1671 = vmatpush1.msra.mxu0 0.0
      %1672 = vmatprep.subr.mxu0 0.0
      %1673 = vmatpush1.msra.mxu0 0.0
      %1674 = vmatprep.subr.mxu0 0.0
      %1675 = vmatpush1.msra.mxu0 0.0
      %1676 = vmatprep.subr.mxu0 0.0
      %1677 = vmatpush1.msra.mxu0 0.0
      %1678 = vmatprep.subr.mxu0 0.0
      %1679 = vmatpush1.msra.mxu0 0.0
      %1680 = vmatprep.subr.mxu0 0.0
      %1681 = vmatpush1.msra.mxu0 0.0
      %1682 = vmatprep.subr.mxu0 0.0
      %1683 = vmatpush1.msra.mxu0 0.0
      %1684 = vmatprep.subr.mxu0 0.0
      %1685 = vmatpush1.msra.mxu0 0.0
      %1686 = vmatprep.subr.mxu0 0.0
      %1687 = vmatpush1.msra.mxu0 0.0
      %1688 = vmatprep.subr.mxu0 0.0
      %1689 = vmatpush1.msra.mxu0 0.0
      %1690 = vmatprep.subr.mxu0 0.0
      %1691 = vmatpush1.msra.mxu0 0.0
      %1692 = vmatprep.subr.mxu0 0.0
      %1693 = vmatpush1.msra.mxu0 0.0
      %1694 = vmatprep.subr.mxu0 0.0
      %1695 = vmatpush1.msra.mxu0 0.0
      %1696 = vmatprep.subr.mxu0 0.0
      %1697 = vmatpush1.msra.mxu0 0.0
      %1698 = vmatprep.subr.mxu0 0.0
      %1699 = vmatpush1.msra.mxu0 0.0
      %1700 = vmatprep.subr.mxu0 0.0
      %1701 = vmatpush1.msra.mxu0 %v679
      %1702 = vmatprep.subr.mxu0 0.0
      %1703 = vmatpush2.msra.mxu0 0.0
      %1704 = vmatprep.subr.mxu0 0.0
      %1705 = vmatpush2.msra.mxu0 0.0
      %1706 = vmatprep.subr.mxu0 0.0
      %1707 = vmatpush2.msra.mxu0 0.0
      %1708 = vmatprep.subr.mxu0 0.0
      %1709 = vmatpush2.msra.mxu0 0.0
      %1710 = vmatprep.subr.mxu0 0.0
      %1711 = vmatpush2.msra.mxu0 0.0
      %1712 = vmatprep.subr.mxu0 0.0
      %1713 = vmatpush2.msra.mxu0 0.0
      %1714 = vmatprep.subr.mxu0 0.0
      %1715 = vmatpush2.msra.mxu0 0.0
      %1716 = vmatprep.subr.mxu0 0.0
      %1717 = vmatpush2.msra.mxu0 0.0
      %1718 = vmatprep.subr.mxu0 0.0
      %1719 = vmatpush2.msra.mxu0 0.0
      %1720 = vmatprep.subr.mxu0 0.0
      %1721 = vmatpush2.msra.mxu0 0.0
      %1722 = vmatprep.subr.mxu0 0.0
      %1723 = vmatpush2.msra.mxu0 0.0
      %1724 = vmatprep.subr.mxu0 0.0
      %1725 = vmatpush2.msra.mxu0 0.0
      %1726 = vmatprep.subr.mxu0 0.0
      %1727 = vmatpush2.msra.mxu0 0.0
      %1728 = vmatprep.subr.mxu0 0.0
      %1729 = vmatpush2.msra.mxu0 0.0
      %1730 = vmatprep.subr.mxu0 0.0
      %1731 = vmatpush2.msra.mxu0 0.0
      %1732 = vmatprep.subr.mxu0 0.0
      %1733 = vmatpush2.msra.mxu0 0.0
      %1734 = vmatprep.mubr.f32.mxu0 0.0
      %1735 = vmatmul.mubr.f32.gmra.mxu0 %v1659
      %v1736 = vpop.f32.mrf.mxu0
      %v1737 = vadd.f32 0.0, %v1736
      %v1738 = vpop.f32.mrf.mxu0
      %1739 = vmatprep.mubr.f32.mxu0 0.0
      %1740 = vmatmul.mubr.f32.gmra.mxu0 %v1662
      %v1741 = vpop.f32.mrf.mxu0
      %v1742 = vadd.f32 0.0, %v1741
      %v1743 = vpop.f32.mrf.mxu0
      %1744 = vmatprep.mubr.f32.mxu0 0.0
      %1745 = vmatmul.mubr.f32.gmra.mxu0 %v1665
      %v1746 = vpop.f32.mrf.mxu0
      %v1747 = vadd.f32 0.0, %v1746
      %v1748 = vpop.f32.mrf.mxu0
      %1749 = vmatprep.mubr.f32.mxu0 0.0
      %1750 = vmatmul.mubr.f32.gmra.mxu0 %v1668
      %v1751 = vpop.f32.mrf.mxu0
      %v1752 = vadd.f32 0.0, %v1751
      %v1753 = vpop.f32.mrf.mxu0
      %1754 = vdwg.mxu0
      %v1755 = vadd.f32 %v454, %v1737
      %v1756 = vadd.f32 %v459, %v1742
      %v1757 = vadd.f32 %v464, %v1747
      %v1758 = vadd.f32 %v469, %v1752
      %v1759 = vsel %vm770, %v1755, 0.0
      %v1760 = vsel %vm770, %v1756, 0.0
      %v1761 = vadd.f32 %v1759, %v1760
      %v1762 = vsel %vm770, %v1757, 0.0
      %v1763 = vadd.f32 %v1761, %v1762
      %v1764 = vsel %vm770, %v1758, 0.0
      %v1765 = vadd.f32 %v1763, %v1764
      %v1766 = vrot.slane %v1765, 4
      %v1767 = vadd.f32 %v1765, %v1766
      %v1768 = vrot.slane %v1767, 2
      %v1769 = vadd.f32 %v1767, %v1768
      %v1770 = vrot.slane %v1769, 1
      %v1771 = vadd.f32 %v1769, %v1770
      %v1772 = vmul.f32 %v1755, %v1755
      %v1773 = vmul.f32 %v1756, %v1756
      %v1774 = vmul.f32 %v1757, %v1757
      %v1775 = vmul.f32 %v1758, %v1758
      %v1776 = vsel %vm770, %v1772, 0.0
      %v1777 = vsel %vm770, %v1773, 0.0
      %v1778 = vadd.f32 %v1776, %v1777
      %v1779 = vsel %vm770, %v1774, 0.0
      %v1780 = vadd.f32 %v1778, %v1779
      %v1781 = vsel %vm770, %v1775, 0.0
      %v1782 = vadd.f32 %v1780, %v1781
      %v1783 = vrot.slane %v1782, 4
      %v1784 = vadd.f32 %v1782, %v1783
      %v1785 = vrot.slane %v1784, 2
      %v1786 = vadd.f32 %v1784, %v1785
      %v1787 = vrot.slane %v1786, 1
      %v1788 = vadd.f32 %v1786, %v1787
      %v1789 = vadd.f32 %v1459, %v1771
      %v1790 = vadd.f32 %v1460, %v1788
      %v1791 = vsel %vm1545, inf, %v1461
      %v1792 = vsel %vm1546, inf, %v1462
      %v1793 = vsel %vm1547, inf, %v1463
      %v1794 = vsel %vm1548, inf, %v1464
      %v1795 = vsel %vm472, %v1791, inf
      %1796 = vmin.xlane.f32.xlu0 %v1795
      %v1797 = vpop.xlane.xlu0 %1796
      %v1798 = vsel %vm472, %v1792, inf
      %1799 = vmin.xlane.f32.xlu0 %v1798
      %v1800 = vpop.xlane.xlu0 %1799
      %v1801 = vsel %vm472, %v1793, inf
      %1802 = vmin.xlane.f32.xlu0 %v1801
      %v1803 = vpop.xlane.xlu0 %1802
      %v1804 = vsel %vm472, %v1794, inf
      %1805 = vmin.xlane.f32.xlu0 %v1804
      %v1806 = vpop.xlane.xlu0 %1805
      %vm1807 = vcmp.eq.f32.partialorder %v1791, %v1797
      %vm1808 = vcmp.eq.f32.partialorder %v1792, %v1800
      %vm1809 = vcmp.eq.f32.partialorder %v1793, %v1803
      %vm1810 = vcmp.eq.f32.partialorder %v1794, %v1806
      %v1811 = vsel %vm1807, %v373, 32
      %v1812 = vsel %vm1808, %v373, 32
      %v1813 = vsel %vm1809, %v373, 32
      %v1814 = vsel %vm1810, %v373, 32
      %v1815 = vsel %vm472, %v1811, 2147483647
      %v1816 = vand.u32 %v1815, 65535
      %v1817 = vshra.s32 %v1815, 16
      %v1818 = vcvt.s32.f32 %v1816
      %v1819 = vcvt.s32.f32 %v1817
      %1820 = vmin.xlane.f32.xlu0 %v1819
      %v1821 = vpop.xlane.xlu0 %1820
      %vm1822 = vcmp.eq.f32.partialorder %v1819, %v1821
      %v1823 = vsel %vm1822, %v1818, inf
      %1824 = vmin.xlane.f32.xlu0 %v1823
      %v1825 = vpop.xlane.xlu0 %1824
      %v1826 = vcvt.f32.s32 %v1825
      %v1827 = vcvt.f32.s32 %v1821
      %v1828 = vshll.u32 %v1827, 16
      %v1829 = vadd.s32 %v1828, %v1826
      %v1830 = vsel %vm472, %v1812, 2147483647
      %v1831 = vand.u32 %v1830, 65535
      %v1832 = vshra.s32 %v1830, 16
      %v1833 = vcvt.s32.f32 %v1831
      %v1834 = vcvt.s32.f32 %v1832
      %1835 = vmin.xlane.f32.xlu0 %v1834
      %v1836 = vpop.xlane.xlu0 %1835
      %vm1837 = vcmp.eq.f32.partialorder %v1834, %v1836
      %v1838 = vsel %vm1837, %v1833, inf
      %1839 = vmin.xlane.f32.xlu0 %v1838
      %v1840 = vpop.xlane.xlu0 %1839
      %v1841 = vcvt.f32.s32 %v1840
      %v1842 = vcvt.f32.s32 %v1836
      %v1843 = vshll.u32 %v1842, 16
      %v1844 = vadd.s32 %v1843, %v1841
      %v1845 = vsel %vm472, %v1813, 2147483647
      %v1846 = vand.u32 %v1845, 65535
      %v1847 = vshra.s32 %v1845, 16
      %v1848 = vcvt.s32.f32 %v1846
      %v1849 = vcvt.s32.f32 %v1847
      %1850 = vmin.xlane.f32.xlu0 %v1849
      %v1851 = vpop.xlane.xlu0 %1850
      %vm1852 = vcmp.eq.f32.partialorder %v1849, %v1851
      %v1853 = vsel %vm1852, %v1848, inf
      %1854 = vmin.xlane.f32.xlu0 %v1853
      %v1855 = vpop.xlane.xlu0 %1854
      %v1856 = vcvt.f32.s32 %v1855
      %v1857 = vcvt.f32.s32 %v1851
      %v1858 = vshll.u32 %v1857, 16
      %v1859 = vadd.s32 %v1858, %v1856
      %v1860 = vsel %vm472, %v1814, 2147483647
      %v1861 = vand.u32 %v1860, 65535
      %v1862 = vshra.s32 %v1860, 16
      %v1863 = vcvt.s32.f32 %v1861
      %v1864 = vcvt.s32.f32 %v1862
      %1865 = vmin.xlane.f32.xlu0 %v1864
      %v1866 = vpop.xlane.xlu0 %1865
      %vm1867 = vcmp.eq.f32.partialorder %v1864, %v1866
      %v1868 = vsel %vm1867, %v1863, inf
      %1869 = vmin.xlane.f32.xlu0 %v1868
      %v1870 = vpop.xlane.xlu0 %1869
      %v1871 = vcvt.f32.s32 %v1870
      %v1872 = vcvt.f32.s32 %v1866
      %v1873 = vshll.u32 %v1872, 16
      %v1874 = vadd.s32 %v1873, %v1871
      %vm1875 = vcmp.eq.s32.totalorder %v373, %v1829
      %vm1876 = vcmp.eq.s32.totalorder %v373, %v1844
      %vm1877 = vcmp.eq.s32.totalorder %v373, %v1859
      %vm1878 = vcmp.eq.s32.totalorder %v373, %v1874
      %v1879 = vsel %vm1875, 1, 0
      %v1880 = vsel %vm1876, 1, 0
      %v1881 = vsel %vm1877, 1, 0
      %v1882 = vsel %vm1878, 1, 0
      %v1883 = vcvt.s32.f32 %v1879
      %v1884 = vcvt.s32.f32 %v1880
      %v1885 = vcvt.s32.f32 %v1881
      %v1886 = vcvt.s32.f32 %v1882
      %v1888 = vsel %vm472, %v1883, 0
      %v1891 = vsel %vm472, %v1884, 0
      %v1894 = vsel %vm472, %v1885, 0
      %v1897 = vsel %vm472, %v1886, 0
      %1899 = vmatprep.subr.mxu0 0.0
      %1900 = vmatpush1.msra.mxu0 0.0
      %1901 = vmatprep.subr.mxu0 0.0
      %1902 = vmatpush1.msra.mxu0 0.0
      %1903 = vmatprep.subr.mxu0 0.0
      %1904 = vmatpush1.msra.mxu0 0.0
      %1905 = vmatprep.subr.mxu0 0.0
      %1906 = vmatpush1.msra.mxu0 0.0
      %1907 = vmatprep.subr.mxu0 0.0
      %1908 = vmatpush1.msra.mxu0 0.0
      %1909 = vmatprep.subr.mxu0 0.0
      %1910 = vmatpush1.msra.mxu0 0.0
      %1911 = vmatprep.subr.mxu0 0.0
      %1912 = vmatpush1.msra.mxu0 0.0
      %1913 = vmatprep.subr.mxu0 0.0
      %1914 = vmatpush1.msra.mxu0 0.0
      %1915 = vmatprep.subr.mxu0 0.0
      %1916 = vmatpush1.msra.mxu0 0.0
      %1917 = vmatprep.subr.mxu0 0.0
      %1918 = vmatpush1.msra.mxu0 0.0
      %1919 = vmatprep.subr.mxu0 0.0
      %1920 = vmatpush1.msra.mxu0 0.0
      %1921 = vmatprep.subr.mxu0 0.0
      %1922 = vmatpush1.msra.mxu0 0.0
      %1923 = vmatprep.subr.mxu0 0.0
      %1924 = vmatpush1.msra.mxu0 %v172
      %1925 = vmatprep.subr.mxu0 0.0
      %1926 = vmatpush1.msra.mxu0 %v171
      %1927 = vmatprep.subr.mxu0 0.0
      %1928 = vmatpush1.msra.mxu0 %v170
      %1929 = vmatprep.subr.mxu0 0.0
      %1930 = vmatpush1.msra.mxu0 %v169
      %1931 = vmatprep.subr.mxu0 0.0
      %1932 = vmatpush2.msra.mxu0 0.0
      %1933 = vmatprep.subr.mxu0 0.0
      %1934 = vmatpush2.msra.mxu0 0.0
      %1935 = vmatprep.subr.mxu0 0.0
      %1936 = vmatpush2.msra.mxu0 0.0
      %1937 = vmatprep.subr.mxu0 0.0
      %1938 = vmatpush2.msra.mxu0 0.0
      %1939 = vmatprep.subr.mxu0 0.0
      %1940 = vmatpush2.msra.mxu0 0.0
      %1941 = vmatprep.subr.mxu0 0.0
      %1942 = vmatpush2.msra.mxu0 0.0
      %1943 = vmatprep.subr.mxu0 0.0
      %1944 = vmatpush2.msra.mxu0 0.0
      %1945 = vmatprep.subr.mxu0 0.0
      %1946 = vmatpush2.msra.mxu0 0.0
      %1947 = vmatprep.subr.mxu0 0.0
      %1948 = vmatpush2.msra.mxu0 0.0
      %1949 = vmatprep.subr.mxu0 0.0
      %1950 = vmatpush2.msra.mxu0 0.0
      %1951 = vmatprep.subr.mxu0 0.0
      %1952 = vmatpush2.msra.mxu0 0.0
      %1953 = vmatprep.subr.mxu0 0.0
      %1954 = vmatpush2.msra.mxu0 0.0
      %1955 = vmatprep.subr.mxu0 0.0
      %1956 = vmatpush2.msra.mxu0 0.0
      %1957 = vmatprep.subr.mxu0 0.0
      %1958 = vmatpush2.msra.mxu0 0.0
      %1959 = vmatprep.subr.mxu0 0.0
      %1960 = vmatpush2.msra.mxu0 0.0
      %1961 = vmatprep.subr.mxu0 0.0
      %1962 = vmatpush2.msra.mxu0 0.0
      %1963 = vmatprep.mubr.f32.mxu0 0.0
      %1964 = vmatmul.mubr.f32.gmra.mxu0 %v1888
      %v1965 = vpop.f32.mrf.mxu0
      %v1966 = vadd.f32 0.0, %v1965
      %v1967 = vpop.f32.mrf.mxu0
      %1968 = vmatprep.mubr.f32.mxu0 0.0
      %1969 = vmatmul.mubr.f32.gmra.mxu0 %v1891
      %v1970 = vpop.f32.mrf.mxu0
      %v1971 = vadd.f32 0.0, %v1970
      %v1972 = vpop.f32.mrf.mxu0
      %1973 = vmatprep.mubr.f32.mxu0 0.0
      %1974 = vmatmul.mubr.f32.gmra.mxu0 %v1894
      %v1975 = vpop.f32.mrf.mxu0
      %v1976 = vadd.f32 0.0, %v1975
      %v1977 = vpop.f32.mrf.mxu0
      %1978 = vmatprep.mubr.f32.mxu0 0.0
      %1979 = vmatmul.mubr.f32.gmra.mxu0 %v1897
      %v1980 = vpop.f32.mrf.mxu0
      %v1981 = vadd.f32 0.0, %v1980
      %v1982 = vpop.f32.mrf.mxu0
      %1983 = vdwg.mxu0
      %v1984 = vsub.f32 %v1966, %v169
      %v1985 = vsub.f32 %v1971, %v170
      %v1986 = vsub.f32 %v1976, %v171
      %v1987 = vsub.f32 %v1981, %v172
      %v1989 = vsel %vm173, %v1984, 0
      %v1992 = vsel %vm173, %v1985, 0
      %v1995 = vsel %vm173, %v1986, 0
      %v1998 = vsel %vm173, %v1987, 0
      %2000 = vmatprep.subr.mxu0 0.0
      %2001 = vmatpush1.msra.mxu0 0.0
      %2002 = vmatprep.subr.mxu0 0.0
      %2003 = vmatpush1.msra.mxu0 0.0
      %2004 = vmatprep.subr.mxu0 0.0
      %2005 = vmatpush1.msra.mxu0 0.0
      %2006 = vmatprep.subr.mxu0 0.0
      %2007 = vmatpush1.msra.mxu0 0.0
      %2008 = vmatprep.subr.mxu0 0.0
      %2009 = vmatpush1.msra.mxu0 0.0
      %2010 = vmatprep.subr.mxu0 0.0
      %2011 = vmatpush1.msra.mxu0 0.0
      %2012 = vmatprep.subr.mxu0 0.0
      %2013 = vmatpush1.msra.mxu0 0.0
      %2014 = vmatprep.subr.mxu0 0.0
      %2015 = vmatpush1.msra.mxu0 0.0
      %2016 = vmatprep.subr.mxu0 0.0
      %2017 = vmatpush1.msra.mxu0 0.0
      %2018 = vmatprep.subr.mxu0 0.0
      %2019 = vmatpush1.msra.mxu0 0.0
      %2020 = vmatprep.subr.mxu0 0.0
      %2021 = vmatpush1.msra.mxu0 0.0
      %2022 = vmatprep.subr.mxu0 0.0
      %2023 = vmatpush1.msra.mxu0 0.0
      %2024 = vmatprep.subr.mxu0 0.0
      %2025 = vmatpush1.msra.mxu0 0.0
      %2026 = vmatprep.subr.mxu0 0.0
      %2027 = vmatpush1.msra.mxu0 0.0
      %2028 = vmatprep.subr.mxu0 0.0
      %2029 = vmatpush1.msra.mxu0 0.0
      %2030 = vmatprep.subr.mxu0 0.0
      %2031 = vmatpush1.msra.mxu0 %v679
      %2032 = vmatprep.subr.mxu0 0.0
      %2033 = vmatpush2.msra.mxu0 0.0
      %2034 = vmatprep.subr.mxu0 0.0
      %2035 = vmatpush2.msra.mxu0 0.0
      %2036 = vmatprep.subr.mxu0 0.0
      %2037 = vmatpush2.msra.mxu0 0.0
      %2038 = vmatprep.subr.mxu0 0.0
      %2039 = vmatpush2.msra.mxu0 0.0
      %2040 = vmatprep.subr.mxu0 0.0
      %2041 = vmatpush2.msra.mxu0 0.0
      %2042 = vmatprep.subr.mxu0 0.0
      %2043 = vmatpush2.msra.mxu0 0.0
      %2044 = vmatprep.subr.mxu0 0.0
      %2045 = vmatpush2.msra.mxu0 0.0
      %2046 = vmatprep.subr.mxu0 0.0
      %2047 = vmatpush2.msra.mxu0 0.0
      %2048 = vmatprep.subr.mxu0 0.0
      %2049 = vmatpush2.msra.mxu0 0.0
      %2050 = vmatprep.subr.mxu0 0.0
      %2051 = vmatpush2.msra.mxu0 0.0
      %2052 = vmatprep.subr.mxu0 0.0
      %2053 = vmatpush2.msra.mxu0 0.0
      %2054 = vmatprep.subr.mxu0 0.0
      %2055 = vmatpush2.msra.mxu0 0.0
      %2056 = vmatprep.subr.mxu0 0.0
      %2057 = vmatpush2.msra.mxu0 0.0
      %2058 = vmatprep.subr.mxu0 0.0
      %2059 = vmatpush2.msra.mxu0 0.0
      %2060 = vmatprep.subr.mxu0 0.0
      %2061 = vmatpush2.msra.mxu0 0.0
      %2062 = vmatprep.subr.mxu0 0.0
      %2063 = vmatpush2.msra.mxu0 0.0
      %2064 = vmatprep.mubr.f32.mxu0 0.0
      %2065 = vmatmul.mubr.f32.gmra.mxu0 %v1989
      %v2066 = vpop.f32.mrf.mxu0
      %v2067 = vadd.f32 0.0, %v2066
      %v2068 = vpop.f32.mrf.mxu0
      %2069 = vmatprep.mubr.f32.mxu0 0.0
      %2070 = vmatmul.mubr.f32.gmra.mxu0 %v1992
      %v2071 = vpop.f32.mrf.mxu0
      %v2072 = vadd.f32 0.0, %v2071
      %v2073 = vpop.f32.mrf.mxu0
      %2074 = vmatprep.mubr.f32.mxu0 0.0
      %2075 = vmatmul.mubr.f32.gmra.mxu0 %v1995
      %v2076 = vpop.f32.mrf.mxu0
      %v2077 = vadd.f32 0.0, %v2076
      %v2078 = vpop.f32.mrf.mxu0
      %2079 = vmatprep.mubr.f32.mxu0 0.0
      %2080 = vmatmul.mubr.f32.gmra.mxu0 %v1998
      %v2081 = vpop.f32.mrf.mxu0
      %v2082 = vadd.f32 0.0, %v2081
      %v2083 = vpop.f32.mrf.mxu0
      %2084 = vdwg.mxu0
      %v2085 = vadd.f32 %v454, %v2067
      %v2086 = vadd.f32 %v459, %v2072
      %v2087 = vadd.f32 %v464, %v2077
      %v2088 = vadd.f32 %v469, %v2082
      %v2089 = vsel %vm770, %v2085, 0.0
      %v2090 = vsel %vm770, %v2086, 0.0
      %v2091 = vadd.f32 %v2089, %v2090
      %v2092 = vsel %vm770, %v2087, 0.0
      %v2093 = vadd.f32 %v2091, %v2092
      %v2094 = vsel %vm770, %v2088, 0.0
      %v2095 = vadd.f32 %v2093, %v2094
      %v2096 = vrot.slane %v2095, 4
      %v2097 = vadd.f32 %v2095, %v2096
      %v2098 = vrot.slane %v2097, 2
      %v2099 = vadd.f32 %v2097, %v2098
      %v2100 = vrot.slane %v2099, 1
      %v2101 = vadd.f32 %v2099, %v2100
      %v2102 = vmul.f32 %v2085, %v2085
      %v2103 = vmul.f32 %v2086, %v2086
      %v2104 = vmul.f32 %v2087, %v2087
      %v2105 = vmul.f32 %v2088, %v2088
      %v2106 = vsel %vm770, %v2102, 0.0
      %v2107 = vsel %vm770, %v2103, 0.0
      %v2108 = vadd.f32 %v2106, %v2107
      %v2109 = vsel %vm770, %v2104, 0.0
      %v2110 = vadd.f32 %v2108, %v2109
      %v2111 = vsel %vm770, %v2105, 0.0
      %v2112 = vadd.f32 %v2110, %v2111
      %v2113 = vrot.slane %v2112, 4
      %v2114 = vadd.f32 %v2112, %v2113
      %v2115 = vrot.slane %v2114, 2
      %v2116 = vadd.f32 %v2114, %v2115
      %v2117 = vrot.slane %v2116, 1
      %v2118 = vadd.f32 %v2116, %v2117
      %v2119 = vadd.f32 %v1789, %v2101
      %v2120 = vadd.f32 %v1790, %v2118
      %v2121 = vsel %vm1875, inf, %v1791
      %v2122 = vsel %vm1876, inf, %v1792
      %v2123 = vsel %vm1877, inf, %v1793
      %v2124 = vsel %vm1878, inf, %v1794
      %v2125 = vsel %vm472, %v2121, inf
      %2126 = vmin.xlane.f32.xlu0 %v2125
      %v2127 = vpop.xlane.xlu0 %2126
      %v2128 = vsel %vm472, %v2122, inf
      %2129 = vmin.xlane.f32.xlu0 %v2128
      %v2130 = vpop.xlane.xlu0 %2129
      %v2131 = vsel %vm472, %v2123, inf
      %2132 = vmin.xlane.f32.xlu0 %v2131
      %v2133 = vpop.xlane.xlu0 %2132
      %v2134 = vsel %vm472, %v2124, inf
      %2135 = vmin.xlane.f32.xlu0 %v2134
      %v2136 = vpop.xlane.xlu0 %2135
      %vm2137 = vcmp.eq.f32.partialorder %v2121, %v2127
      %vm2138 = vcmp.eq.f32.partialorder %v2122, %v2130
      %vm2139 = vcmp.eq.f32.partialorder %v2123, %v2133
      %vm2140 = vcmp.eq.f32.partialorder %v2124, %v2136
      %v2141 = vsel %vm2137, %v373, 32
      %v2142 = vsel %vm2138, %v373, 32
      %v2143 = vsel %vm2139, %v373, 32
      %v2144 = vsel %vm2140, %v373, 32
      %v2145 = vsel %vm472, %v2141, 2147483647
      %v2146 = vand.u32 %v2145, 65535
      %v2147 = vshra.s32 %v2145, 16
      %v2148 = vcvt.s32.f32 %v2146
      %v2149 = vcvt.s32.f32 %v2147
      %2150 = vmin.xlane.f32.xlu0 %v2149
      %v2151 = vpop.xlane.xlu0 %2150
      %vm2152 = vcmp.eq.f32.partialorder %v2149, %v2151
      %v2153 = vsel %vm2152, %v2148, inf
      %2154 = vmin.xlane.f32.xlu0 %v2153
      %v2155 = vpop.xlane.xlu0 %2154
      %v2156 = vcvt.f32.s32 %v2155
      %v2157 = vcvt.f32.s32 %v2151
      %v2158 = vshll.u32 %v2157, 16
      %v2159 = vadd.s32 %v2158, %v2156
      %v2160 = vsel %vm472, %v2142, 2147483647
      %v2161 = vand.u32 %v2160, 65535
      %v2162 = vshra.s32 %v2160, 16
      %v2163 = vcvt.s32.f32 %v2161
      %v2164 = vcvt.s32.f32 %v2162
      %2165 = vmin.xlane.f32.xlu0 %v2164
      %v2166 = vpop.xlane.xlu0 %2165
      %vm2167 = vcmp.eq.f32.partialorder %v2164, %v2166
      %v2168 = vsel %vm2167, %v2163, inf
      %2169 = vmin.xlane.f32.xlu0 %v2168
      %v2170 = vpop.xlane.xlu0 %2169
      %v2171 = vcvt.f32.s32 %v2170
      %v2172 = vcvt.f32.s32 %v2166
      %v2173 = vshll.u32 %v2172, 16
      %v2174 = vadd.s32 %v2173, %v2171
      %v2175 = vsel %vm472, %v2143, 2147483647
      %v2176 = vand.u32 %v2175, 65535
      %v2177 = vshra.s32 %v2175, 16
      %v2178 = vcvt.s32.f32 %v2176
      %v2179 = vcvt.s32.f32 %v2177
      %2180 = vmin.xlane.f32.xlu0 %v2179
      %v2181 = vpop.xlane.xlu0 %2180
      %vm2182 = vcmp.eq.f32.partialorder %v2179, %v2181
      %v2183 = vsel %vm2182, %v2178, inf
      %2184 = vmin.xlane.f32.xlu0 %v2183
      %v2185 = vpop.xlane.xlu0 %2184
      %v2186 = vcvt.f32.s32 %v2185
      %v2187 = vcvt.f32.s32 %v2181
      %v2188 = vshll.u32 %v2187, 16
      %v2189 = vadd.s32 %v2188, %v2186
      %v2190 = vsel %vm472, %v2144, 2147483647
      %v2191 = vand.u32 %v2190, 65535
      %v2192 = vshra.s32 %v2190, 16
      %v2193 = vcvt.s32.f32 %v2191
      %v2194 = vcvt.s32.f32 %v2192
      %2195 = vmin.xlane.f32.xlu0 %v2194
      %v2196 = vpop.xlane.xlu0 %2195
      %vm2197 = vcmp.eq.f32.partialorder %v2194, %v2196
      %v2198 = vsel %vm2197, %v2193, inf
      %2199 = vmin.xlane.f32.xlu0 %v2198
      %v2200 = vpop.xlane.xlu0 %2199
      %v2201 = vcvt.f32.s32 %v2200
      %v2202 = vcvt.f32.s32 %v2196
      %v2203 = vshll.u32 %v2202, 16
      %v2204 = vadd.s32 %v2203, %v2201
      %vm2205 = vcmp.eq.s32.totalorder %v373, %v2159
      %vm2206 = vcmp.eq.s32.totalorder %v373, %v2174
      %vm2207 = vcmp.eq.s32.totalorder %v373, %v2189
      %vm2208 = vcmp.eq.s32.totalorder %v373, %v2204
      %v2209 = vsel %vm2205, 1, 0
      %v2210 = vsel %vm2206, 1, 0
      %v2211 = vsel %vm2207, 1, 0
      %v2212 = vsel %vm2208, 1, 0
      %v2213 = vcvt.s32.f32 %v2209
      %v2214 = vcvt.s32.f32 %v2210
      %v2215 = vcvt.s32.f32 %v2211
      %v2216 = vcvt.s32.f32 %v2212
      %v2218 = vsel %vm472, %v2213, 0
      %v2221 = vsel %vm472, %v2214, 0
      %v2224 = vsel %vm472, %v2215, 0
      %v2227 = vsel %vm472, %v2216, 0
      %2229 = vmatprep.subr.mxu0 0.0
      %2230 = vmatpush1.msra.mxu0 0.0
      %2231 = vmatprep.subr.mxu0 0.0
      %2232 = vmatpush1.msra.mxu0 0.0
      %2233 = vmatprep.subr.mxu0 0.0
      %2234 = vmatpush1.msra.mxu0 0.0
      %2235 = vmatprep.subr.mxu0 0.0
      %2236 = vmatpush1.msra.mxu0 0.0
      %2237 = vmatprep.subr.mxu0 0.0
      %2238 = vmatpush1.msra.mxu0 0.0
      %2239 = vmatprep.subr.mxu0 0.0
      %2240 = vmatpush1.msra.mxu0 0.0
      %2241 = vmatprep.subr.mxu0 0.0
      %2242 = vmatpush1.msra.mxu0 0.0
      %2243 = vmatprep.subr.mxu0 0.0
      %2244 = vmatpush1.msra.mxu0 0.0
      %2245 = vmatprep.subr.mxu0 0.0
      %2246 = vmatpush1.msra.mxu0 0.0
      %2247 = vmatprep.subr.mxu0 0.0
      %2248 = vmatpush1.msra.mxu0 0.0
      %2249 = vmatprep.subr.mxu0 0.0
      %2250 = vmatpush1.msra.mxu0 0.0
      %2251 = vmatprep.subr.mxu0 0.0
      %2252 = vmatpush1.msra.mxu0 0.0
      %2253 = vmatprep.subr.mxu0 0.0
      %2254 = vmatpush1.msra.mxu0 %v172
      %2255 = vmatprep.subr.mxu0 0.0
      %2256 = vmatpush1.msra.mxu0 %v171
      %2257 = vmatprep.subr.mxu0 0.0
      %2258 = vmatpush1.msra.mxu0 %v170
      %2259 = vmatprep.subr.mxu0 0.0
      %2260 = vmatpush1.msra.mxu0 %v169
      %2261 = vmatprep.subr.mxu0 0.0
      %2262 = vmatpush2.msra.mxu0 0.0
      %2263 = vmatprep.subr.mxu0 0.0
      %2264 = vmatpush2.msra.mxu0 0.0
      %2265 = vmatprep.subr.mxu0 0.0
      %2266 = vmatpush2.msra.mxu0 0.0
      %2267 = vmatprep.subr.mxu0 0.0
      %2268 = vmatpush2.msra.mxu0 0.0
      %2269 = vmatprep.subr.mxu0 0.0
      %2270 = vmatpush2.msra.mxu0 0.0
      %2271 = vmatprep.subr.mxu0 0.0
      %2272 = vmatpush2.msra.mxu0 0.0
      %2273 = vmatprep.subr.mxu0 0.0
      %2274 = vmatpush2.msra.mxu0 0.0
      %2275 = vmatprep.subr.mxu0 0.0
      %2276 = vmatpush2.msra.mxu0 0.0
      %2277 = vmatprep.subr.mxu0 0.0
      %2278 = vmatpush2.msra.mxu0 0.0
      %2279 = vmatprep.subr.mxu0 0.0
      %2280 = vmatpush2.msra.mxu0 0.0
      %2281 = vmatprep.subr.mxu0 0.0
      %2282 = vmatpush2.msra.mxu0 0.0
      %2283 = vmatprep.subr.mxu0 0.0
      %2284 = vmatpush2.msra.mxu0 0.0
      %2285 = vmatprep.subr.mxu0 0.0
      %2286 = vmatpush2.msra.mxu0 0.0
      %2287 = vmatprep.subr.mxu0 0.0
      %2288 = vmatpush2.msra.mxu0 0.0
      %2289 = vmatprep.subr.mxu0 0.0
      %2290 = vmatpush2.msra.mxu0 0.0
      %2291 = vmatprep.subr.mxu0 0.0
      %2292 = vmatpush2.msra.mxu0 0.0
      %2293 = vmatprep.mubr.f32.mxu0 0.0
      %2294 = vmatmul.mubr.f32.gmra.mxu0 %v2218
      %v2295 = vpop.f32.mrf.mxu0
      %v2296 = vadd.f32 0.0, %v2295
      %v2297 = vpop.f32.mrf.mxu0
      %2298 = vmatprep.mubr.f32.mxu0 0.0
      %2299 = vmatmul.mubr.f32.gmra.mxu0 %v2221
      %v2300 = vpop.f32.mrf.mxu0
      %v2301 = vadd.f32 0.0, %v2300
      %v2302 = vpop.f32.mrf.mxu0
      %2303 = vmatprep.mubr.f32.mxu0 0.0
      %2304 = vmatmul.mubr.f32.gmra.mxu0 %v2224
      %v2305 = vpop.f32.mrf.mxu0
      %v2306 = vadd.f32 0.0, %v2305
      %v2307 = vpop.f32.mrf.mxu0
      %2308 = vmatprep.mubr.f32.mxu0 0.0
      %2309 = vmatmul.mubr.f32.gmra.mxu0 %v2227
      %v2310 = vpop.f32.mrf.mxu0
      %v2311 = vadd.f32 0.0, %v2310
      %v2312 = vpop.f32.mrf.mxu0
      %2313 = vdwg.mxu0
      %v2314 = vsub.f32 %v2296, %v169
      %v2315 = vsub.f32 %v2301, %v170
      %v2316 = vsub.f32 %v2306, %v171
      %v2317 = vsub.f32 %v2311, %v172
      %v2319 = vsel %vm173, %v2314, 0
      %v2322 = vsel %vm173, %v2315, 0
      %v2325 = vsel %vm173, %v2316, 0
      %v2328 = vsel %vm173, %v2317, 0
      %2330 = vmatprep.subr.mxu0 0.0
      %2331 = vmatpush1.msra.mxu0 0.0
      %2332 = vmatprep.subr.mxu0 0.0
      %2333 = vmatpush1.msra.mxu0 0.0
      %2334 = vmatprep.subr.mxu0 0.0
      %2335 = vmatpush1.msra.mxu0 0.0
      %2336 = vmatprep.subr.mxu0 0.0
      %2337 = vmatpush1.msra.mxu0 0.0
      %2338 = vmatprep.subr.mxu0 0.0
      %2339 = vmatpush1.msra.mxu0 0.0
      %2340 = vmatprep.subr.mxu0 0.0
      %2341 = vmatpush1.msra.mxu0 0.0
      %2342 = vmatprep.subr.mxu0 0.0
      %2343 = vmatpush1.msra.mxu0 0.0
      %2344 = vmatprep.subr.mxu0 0.0
      %2345 = vmatpush1.msra.mxu0 0.0
      %2346 = vmatprep.subr.mxu0 0.0
      %2347 = vmatpush1.msra.mxu0 0.0
      %2348 = vmatprep.subr.mxu0 0.0
      %2349 = vmatpush1.msra.mxu0 0.0
      %2350 = vmatprep.subr.mxu0 0.0
      %2351 = vmatpush1.msra.mxu0 0.0
      %2352 = vmatprep.subr.mxu0 0.0
      %2353 = vmatpush1.msra.mxu0 0.0
      %2354 = vmatprep.subr.mxu0 0.0
      %2355 = vmatpush1.msra.mxu0 0.0
      %2356 = vmatprep.subr.mxu0 0.0
      %2357 = vmatpush1.msra.mxu0 0.0
      %2358 = vmatprep.subr.mxu0 0.0
      %2359 = vmatpush1.msra.mxu0 0.0
      %2360 = vmatprep.subr.mxu0 0.0
      %2361 = vmatpush1.msra.mxu0 %v679
      %2362 = vmatprep.subr.mxu0 0.0
      %2363 = vmatpush2.msra.mxu0 0.0
      %2364 = vmatprep.subr.mxu0 0.0
      %2365 = vmatpush2.msra.mxu0 0.0
      %2366 = vmatprep.subr.mxu0 0.0
      %2367 = vmatpush2.msra.mxu0 0.0
      %2368 = vmatprep.subr.mxu0 0.0
      %2369 = vmatpush2.msra.mxu0 0.0
      %2370 = vmatprep.subr.mxu0 0.0
      %2371 = vmatpush2.msra.mxu0 0.0
      %2372 = vmatprep.subr.mxu0 0.0
      %2373 = vmatpush2.msra.mxu0 0.0
      %2374 = vmatprep.subr.mxu0 0.0
      %2375 = vmatpush2.msra.mxu0 0.0
      %2376 = vmatprep.subr.mxu0 0.0
      %2377 = vmatpush2.msra.mxu0 0.0
      %2378 = vmatprep.subr.mxu0 0.0
      %2379 = vmatpush2.msra.mxu0 0.0
      %2380 = vmatprep.subr.mxu0 0.0
      %2381 = vmatpush2.msra.mxu0 0.0
      %2382 = vmatprep.subr.mxu0 0.0
      %2383 = vmatpush2.msra.mxu0 0.0
      %2384 = vmatprep.subr.mxu0 0.0
      %2385 = vmatpush2.msra.mxu0 0.0
      %2386 = vmatprep.subr.mxu0 0.0
      %2387 = vmatpush2.msra.mxu0 0.0
      %2388 = vmatprep.subr.mxu0 0.0
      %2389 = vmatpush2.msra.mxu0 0.0
      %2390 = vmatprep.subr.mxu0 0.0
      %2391 = vmatpush2.msra.mxu0 0.0
      %2392 = vmatprep.subr.mxu0 0.0
      %2393 = vmatpush2.msra.mxu0 0.0
      %2394 = vmatprep.mubr.f32.mxu0 0.0
      %2395 = vmatmul.mubr.f32.gmra.mxu0 %v2319
      %v2396 = vpop.f32.mrf.mxu0
      %v2397 = vadd.f32 0.0, %v2396
      %v2398 = vpop.f32.mrf.mxu0
      %2399 = vmatprep.mubr.f32.mxu0 0.0
      %2400 = vmatmul.mubr.f32.gmra.mxu0 %v2322
      %v2401 = vpop.f32.mrf.mxu0
      %v2402 = vadd.f32 0.0, %v2401
      %v2403 = vpop.f32.mrf.mxu0
      %2404 = vmatprep.mubr.f32.mxu0 0.0
      %2405 = vmatmul.mubr.f32.gmra.mxu0 %v2325
      %v2406 = vpop.f32.mrf.mxu0
      %v2407 = vadd.f32 0.0, %v2406
      %v2408 = vpop.f32.mrf.mxu0
      %2409 = vmatprep.mubr.f32.mxu0 0.0
      %2410 = vmatmul.mubr.f32.gmra.mxu0 %v2328
      %v2411 = vpop.f32.mrf.mxu0
      %v2412 = vadd.f32 0.0, %v2411
      %v2413 = vpop.f32.mrf.mxu0
      %2414 = vdwg.mxu0
      %v2415 = vadd.f32 %v454, %v2397
      %v2416 = vadd.f32 %v459, %v2402
      %v2417 = vadd.f32 %v464, %v2407
      %v2418 = vadd.f32 %v469, %v2412
      %v2419 = vsel %vm770, %v2415, 0.0
      %v2420 = vsel %vm770, %v2416, 0.0
      %v2421 = vadd.f32 %v2419, %v2420
      %v2422 = vsel %vm770, %v2417, 0.0
      %v2423 = vadd.f32 %v2421, %v2422
      %v2424 = vsel %vm770, %v2418, 0.0
      %v2425 = vadd.f32 %v2423, %v2424
      %v2426 = vrot.slane %v2425, 4
      %v2427 = vadd.f32 %v2425, %v2426
      %v2428 = vrot.slane %v2427, 2
      %v2429 = vadd.f32 %v2427, %v2428
      %v2430 = vrot.slane %v2429, 1
      %v2431 = vadd.f32 %v2429, %v2430
      %v2432 = vmul.f32 %v2415, %v2415
      %v2433 = vmul.f32 %v2416, %v2416
      %v2434 = vmul.f32 %v2417, %v2417
      %v2435 = vmul.f32 %v2418, %v2418
      %v2436 = vsel %vm770, %v2432, 0.0
      %v2437 = vsel %vm770, %v2433, 0.0
      %v2438 = vadd.f32 %v2436, %v2437
      %v2439 = vsel %vm770, %v2434, 0.0
      %v2440 = vadd.f32 %v2438, %v2439
      %v2441 = vsel %vm770, %v2435, 0.0
      %v2442 = vadd.f32 %v2440, %v2441
      %v2443 = vrot.slane %v2442, 4
      %v2444 = vadd.f32 %v2442, %v2443
      %v2445 = vrot.slane %v2444, 2
      %v2446 = vadd.f32 %v2444, %v2445
      %v2447 = vrot.slane %v2446, 1
      %v2448 = vadd.f32 %v2446, %v2447
      %v2449 = vadd.f32 %v2119, %v2431
      %v2450 = vadd.f32 %v2120, %v2448
      %v2451 = vsel %vm2205, inf, %v2121
      %v2452 = vsel %vm2206, inf, %v2122
      %v2453 = vsel %vm2207, inf, %v2123
      %v2454 = vsel %vm2208, inf, %v2124
      %v2455 = vsel %vm472, %v2451, inf
      %2456 = vmin.xlane.f32.xlu0 %v2455
      %v2457 = vpop.xlane.xlu0 %2456
      %v2458 = vsel %vm472, %v2452, inf
      %2459 = vmin.xlane.f32.xlu0 %v2458
      %v2460 = vpop.xlane.xlu0 %2459
      %v2461 = vsel %vm472, %v2453, inf
      %2462 = vmin.xlane.f32.xlu0 %v2461
      %v2463 = vpop.xlane.xlu0 %2462
      %v2464 = vsel %vm472, %v2454, inf
      %2465 = vmin.xlane.f32.xlu0 %v2464
      %v2466 = vpop.xlane.xlu0 %2465
      %vm2467 = vcmp.eq.f32.partialorder %v2451, %v2457
      %vm2468 = vcmp.eq.f32.partialorder %v2452, %v2460
      %vm2469 = vcmp.eq.f32.partialorder %v2453, %v2463
      %vm2470 = vcmp.eq.f32.partialorder %v2454, %v2466
      %v2471 = vsel %vm2467, %v373, 32
      %v2472 = vsel %vm2468, %v373, 32
      %v2473 = vsel %vm2469, %v373, 32
      %v2474 = vsel %vm2470, %v373, 32
      %v2475 = vsel %vm472, %v2471, 2147483647
      %v2476 = vand.u32 %v2475, 65535
      %v2477 = vshra.s32 %v2475, 16
      %v2478 = vcvt.s32.f32 %v2476
      %v2479 = vcvt.s32.f32 %v2477
      %2480 = vmin.xlane.f32.xlu0 %v2479
      %v2481 = vpop.xlane.xlu0 %2480
      %vm2482 = vcmp.eq.f32.partialorder %v2479, %v2481
      %v2483 = vsel %vm2482, %v2478, inf
      %2484 = vmin.xlane.f32.xlu0 %v2483
      %v2485 = vpop.xlane.xlu0 %2484
      %v2486 = vcvt.f32.s32 %v2485
      %v2487 = vcvt.f32.s32 %v2481
      %v2488 = vshll.u32 %v2487, 16
      %v2489 = vadd.s32 %v2488, %v2486
      %v2490 = vsel %vm472, %v2472, 2147483647
      %v2491 = vand.u32 %v2490, 65535
      %v2492 = vshra.s32 %v2490, 16
      %v2493 = vcvt.s32.f32 %v2491
      %v2494 = vcvt.s32.f32 %v2492
      %2495 = vmin.xlane.f32.xlu0 %v2494
      %v2496 = vpop.xlane.xlu0 %2495
      %vm2497 = vcmp.eq.f32.partialorder %v2494, %v2496
      %v2498 = vsel %vm2497, %v2493, inf
      %2499 = vmin.xlane.f32.xlu0 %v2498
      %v2500 = vpop.xlane.xlu0 %2499
      %v2501 = vcvt.f32.s32 %v2500
      %v2502 = vcvt.f32.s32 %v2496
      %v2503 = vshll.u32 %v2502, 16
      %v2504 = vadd.s32 %v2503, %v2501
      %v2505 = vsel %vm472, %v2473, 2147483647
      %v2506 = vand.u32 %v2505, 65535
      %v2507 = vshra.s32 %v2505, 16
      %v2508 = vcvt.s32.f32 %v2506
      %v2509 = vcvt.s32.f32 %v2507
      %2510 = vmin.xlane.f32.xlu0 %v2509
      %v2511 = vpop.xlane.xlu0 %2510
      %vm2512 = vcmp.eq.f32.partialorder %v2509, %v2511
      %v2513 = vsel %vm2512, %v2508, inf
      %2514 = vmin.xlane.f32.xlu0 %v2513
      %v2515 = vpop.xlane.xlu0 %2514
      %v2516 = vcvt.f32.s32 %v2515
      %v2517 = vcvt.f32.s32 %v2511
      %v2518 = vshll.u32 %v2517, 16
      %v2519 = vadd.s32 %v2518, %v2516
      %v2520 = vsel %vm472, %v2474, 2147483647
      %v2521 = vand.u32 %v2520, 65535
      %v2522 = vshra.s32 %v2520, 16
      %v2523 = vcvt.s32.f32 %v2521
      %v2524 = vcvt.s32.f32 %v2522
      %2525 = vmin.xlane.f32.xlu0 %v2524
      %v2526 = vpop.xlane.xlu0 %2525
      %vm2527 = vcmp.eq.f32.partialorder %v2524, %v2526
      %v2528 = vsel %vm2527, %v2523, inf
      %2529 = vmin.xlane.f32.xlu0 %v2528
      %v2530 = vpop.xlane.xlu0 %2529
      %v2531 = vcvt.f32.s32 %v2530
      %v2532 = vcvt.f32.s32 %v2526
      %v2533 = vshll.u32 %v2532, 16
      %v2534 = vadd.s32 %v2533, %v2531
      %vm2535 = vcmp.eq.s32.totalorder %v373, %v2489
      %vm2536 = vcmp.eq.s32.totalorder %v373, %v2504
      %vm2537 = vcmp.eq.s32.totalorder %v373, %v2519
      %vm2538 = vcmp.eq.s32.totalorder %v373, %v2534
      %v2539 = vsel %vm2535, 1, 0
      %v2540 = vsel %vm2536, 1, 0
      %v2541 = vsel %vm2537, 1, 0
      %v2542 = vsel %vm2538, 1, 0
      %v2543 = vcvt.s32.f32 %v2539
      %v2544 = vcvt.s32.f32 %v2540
      %v2545 = vcvt.s32.f32 %v2541
      %v2546 = vcvt.s32.f32 %v2542
      %v2548 = vsel %vm472, %v2543, 0
      %v2551 = vsel %vm472, %v2544, 0
      %v2554 = vsel %vm472, %v2545, 0
      %v2557 = vsel %vm472, %v2546, 0
      %2559 = vmatprep.subr.mxu0 0.0
      %2560 = vmatpush1.msra.mxu0 0.0
      %2561 = vmatprep.subr.mxu0 0.0
      %2562 = vmatpush1.msra.mxu0 0.0
      %2563 = vmatprep.subr.mxu0 0.0
      %2564 = vmatpush1.msra.mxu0 0.0
      %2565 = vmatprep.subr.mxu0 0.0
      %2566 = vmatpush1.msra.mxu0 0.0
      %2567 = vmatprep.subr.mxu0 0.0
      %2568 = vmatpush1.msra.mxu0 0.0
      %2569 = vmatprep.subr.mxu0 0.0
      %2570 = vmatpush1.msra.mxu0 0.0
      %2571 = vmatprep.subr.mxu0 0.0
      %2572 = vmatpush1.msra.mxu0 0.0
      %2573 = vmatprep.subr.mxu0 0.0
      %2574 = vmatpush1.msra.mxu0 0.0
      %2575 = vmatprep.subr.mxu0 0.0
      %2576 = vmatpush1.msra.mxu0 0.0
      %2577 = vmatprep.subr.mxu0 0.0
      %2578 = vmatpush1.msra.mxu0 0.0
      %2579 = vmatprep.subr.mxu0 0.0
      %2580 = vmatpush1.msra.mxu0 0.0
      %2581 = vmatprep.subr.mxu0 0.0
      %2582 = vmatpush1.msra.mxu0 0.0
      %2583 = vmatprep.subr.mxu0 0.0
      %2584 = vmatpush1.msra.mxu0 %v172
      %2585 = vmatprep.subr.mxu0 0.0
      %2586 = vmatpush1.msra.mxu0 %v171
      %2587 = vmatprep.subr.mxu0 0.0
      %2588 = vmatpush1.msra.mxu0 %v170
      %2589 = vmatprep.subr.mxu0 0.0
      %2590 = vmatpush1.msra.mxu0 %v169
      %2591 = vmatprep.subr.mxu0 0.0
      %2592 = vmatpush2.msra.mxu0 0.0
      %2593 = vmatprep.subr.mxu0 0.0
      %2594 = vmatpush2.msra.mxu0 0.0
      %2595 = vmatprep.subr.mxu0 0.0
      %2596 = vmatpush2.msra.mxu0 0.0
      %2597 = vmatprep.subr.mxu0 0.0
      %2598 = vmatpush2.msra.mxu0 0.0
      %2599 = vmatprep.subr.mxu0 0.0
      %2600 = vmatpush2.msra.mxu0 0.0
      %2601 = vmatprep.subr.mxu0 0.0
      %2602 = vmatpush2.msra.mxu0 0.0
      %2603 = vmatprep.subr.mxu0 0.0
      %2604 = vmatpush2.msra.mxu0 0.0
      %2605 = vmatprep.subr.mxu0 0.0
      %2606 = vmatpush2.msra.mxu0 0.0
      %2607 = vmatprep.subr.mxu0 0.0
      %2608 = vmatpush2.msra.mxu0 0.0
      %2609 = vmatprep.subr.mxu0 0.0
      %2610 = vmatpush2.msra.mxu0 0.0
      %2611 = vmatprep.subr.mxu0 0.0
      %2612 = vmatpush2.msra.mxu0 0.0
      %2613 = vmatprep.subr.mxu0 0.0
      %2614 = vmatpush2.msra.mxu0 0.0
      %2615 = vmatprep.subr.mxu0 0.0
      %2616 = vmatpush2.msra.mxu0 0.0
      %2617 = vmatprep.subr.mxu0 0.0
      %2618 = vmatpush2.msra.mxu0 0.0
      %2619 = vmatprep.subr.mxu0 0.0
      %2620 = vmatpush2.msra.mxu0 0.0
      %2621 = vmatprep.subr.mxu0 0.0
      %2622 = vmatpush2.msra.mxu0 0.0
      %2623 = vmatprep.mubr.f32.mxu0 0.0
      %2624 = vmatmul.mubr.f32.gmra.mxu0 %v2548
      %v2625 = vpop.f32.mrf.mxu0
      %v2626 = vadd.f32 0.0, %v2625
      %v2627 = vpop.f32.mrf.mxu0
      %2628 = vmatprep.mubr.f32.mxu0 0.0
      %2629 = vmatmul.mubr.f32.gmra.mxu0 %v2551
      %v2630 = vpop.f32.mrf.mxu0
      %v2631 = vadd.f32 0.0, %v2630
      %v2632 = vpop.f32.mrf.mxu0
      %2633 = vmatprep.mubr.f32.mxu0 0.0
      %2634 = vmatmul.mubr.f32.gmra.mxu0 %v2554
      %v2635 = vpop.f32.mrf.mxu0
      %v2636 = vadd.f32 0.0, %v2635
      %v2637 = vpop.f32.mrf.mxu0
      %2638 = vmatprep.mubr.f32.mxu0 0.0
      %2639 = vmatmul.mubr.f32.gmra.mxu0 %v2557
      %v2640 = vpop.f32.mrf.mxu0
      %v2641 = vadd.f32 0.0, %v2640
      %v2642 = vpop.f32.mrf.mxu0
      %2643 = vdwg.mxu0
      %v2644 = vsub.f32 %v2626, %v169
      %v2645 = vsub.f32 %v2631, %v170
      %v2646 = vsub.f32 %v2636, %v171
      %v2647 = vsub.f32 %v2641, %v172
      %v2649 = vsel %vm173, %v2644, 0
      %v2652 = vsel %vm173, %v2645, 0
      %v2655 = vsel %vm173, %v2646, 0
      %v2658 = vsel %vm173, %v2647, 0
      %2660 = vmatprep.subr.mxu0 0.0
      %2661 = vmatpush1.msra.mxu0 0.0
      %2662 = vmatprep.subr.mxu0 0.0
      %2663 = vmatpush1.msra.mxu0 0.0
      %2664 = vmatprep.subr.mxu0 0.0
      %2665 = vmatpush1.msra.mxu0 0.0
      %2666 = vmatprep.subr.mxu0 0.0
      %2667 = vmatpush1.msra.mxu0 0.0
      %2668 = vmatprep.subr.mxu0 0.0
      %2669 = vmatpush1.msra.mxu0 0.0
      %2670 = vmatprep.subr.mxu0 0.0
      %2671 = vmatpush1.msra.mxu0 0.0
      %2672 = vmatprep.subr.mxu0 0.0
      %2673 = vmatpush1.msra.mxu0 0.0
      %2674 = vmatprep.subr.mxu0 0.0
      %2675 = vmatpush1.msra.mxu0 0.0
      %2676 = vmatprep.subr.mxu0 0.0
      %2677 = vmatpush1.msra.mxu0 0.0
      %2678 = vmatprep.subr.mxu0 0.0
      %2679 = vmatpush1.msra.mxu0 0.0
      %2680 = vmatprep.subr.mxu0 0.0
      %2681 = vmatpush1.msra.mxu0 0.0
      %2682 = vmatprep.subr.mxu0 0.0
      %2683 = vmatpush1.msra.mxu0 0.0
      %2684 = vmatprep.subr.mxu0 0.0
      %2685 = vmatpush1.msra.mxu0 0.0
      %2686 = vmatprep.subr.mxu0 0.0
      %2687 = vmatpush1.msra.mxu0 0.0
      %2688 = vmatprep.subr.mxu0 0.0
      %2689 = vmatpush1.msra.mxu0 0.0
      %2690 = vmatprep.subr.mxu0 0.0
      %2691 = vmatpush1.msra.mxu0 %v679
      %2692 = vmatprep.subr.mxu0 0.0
      %2693 = vmatpush2.msra.mxu0 0.0
      %2694 = vmatprep.subr.mxu0 0.0
      %2695 = vmatpush2.msra.mxu0 0.0
      %2696 = vmatprep.subr.mxu0 0.0
      %2697 = vmatpush2.msra.mxu0 0.0
      %2698 = vmatprep.subr.mxu0 0.0
      %2699 = vmatpush2.msra.mxu0 0.0
      %2700 = vmatprep.subr.mxu0 0.0
      %2701 = vmatpush2.msra.mxu0 0.0
      %2702 = vmatprep.subr.mxu0 0.0
      %2703 = vmatpush2.msra.mxu0 0.0
      %2704 = vmatprep.subr.mxu0 0.0
      %2705 = vmatpush2.msra.mxu0 0.0
      %2706 = vmatprep.subr.mxu0 0.0
      %2707 = vmatpush2.msra.mxu0 0.0
      %2708 = vmatprep.subr.mxu0 0.0
      %2709 = vmatpush2.msra.mxu0 0.0
      %2710 = vmatprep.subr.mxu0 0.0
      %2711 = vmatpush2.msra.mxu0 0.0
      %2712 = vmatprep.subr.mxu0 0.0
      %2713 = vmatpush2.msra.mxu0 0.0
      %2714 = vmatprep.subr.mxu0 0.0
      %2715 = vmatpush2.msra.mxu0 0.0
      %2716 = vmatprep.subr.mxu0 0.0
      %2717 = vmatpush2.msra.mxu0 0.0
      %2718 = vmatprep.subr.mxu0 0.0
      %2719 = vmatpush2.msra.mxu0 0.0
      %2720 = vmatprep.subr.mxu0 0.0
      %2721 = vmatpush2.msra.mxu0 0.0
      %2722 = vmatprep.subr.mxu0 0.0
      %2723 = vmatpush2.msra.mxu0 0.0
      %2724 = vmatprep.mubr.f32.mxu0 0.0
      %2725 = vmatmul.mubr.f32.gmra.mxu0 %v2649
      %v2726 = vpop.f32.mrf.mxu0
      %v2727 = vadd.f32 0.0, %v2726
      %v2728 = vpop.f32.mrf.mxu0
      %2729 = vmatprep.mubr.f32.mxu0 0.0
      %2730 = vmatmul.mubr.f32.gmra.mxu0 %v2652
      %v2731 = vpop.f32.mrf.mxu0
      %v2732 = vadd.f32 0.0, %v2731
      %v2733 = vpop.f32.mrf.mxu0
      %2734 = vmatprep.mubr.f32.mxu0 0.0
      %2735 = vmatmul.mubr.f32.gmra.mxu0 %v2655
      %v2736 = vpop.f32.mrf.mxu0
      %v2737 = vadd.f32 0.0, %v2736
      %v2738 = vpop.f32.mrf.mxu0
      %2739 = vmatprep.mubr.f32.mxu0 0.0
      %2740 = vmatmul.mubr.f32.gmra.mxu0 %v2658
      %v2741 = vpop.f32.mrf.mxu0
      %v2742 = vadd.f32 0.0, %v2741
      %v2743 = vpop.f32.mrf.mxu0
      %2744 = vdwg.mxu0
      %v2745 = vadd.f32 %v454, %v2727
      %v2746 = vadd.f32 %v459, %v2732
      %v2747 = vadd.f32 %v464, %v2737
      %v2748 = vadd.f32 %v469, %v2742
      %v2749 = vsel %vm770, %v2745, 0.0
      %v2750 = vsel %vm770, %v2746, 0.0
      %v2751 = vadd.f32 %v2749, %v2750
      %v2752 = vsel %vm770, %v2747, 0.0
      %v2753 = vadd.f32 %v2751, %v2752
      %v2754 = vsel %vm770, %v2748, 0.0
      %v2755 = vadd.f32 %v2753, %v2754
      %v2756 = vrot.slane %v2755, 4
      %v2757 = vadd.f32 %v2755, %v2756
      %v2758 = vrot.slane %v2757, 2
      %v2759 = vadd.f32 %v2757, %v2758
      %v2760 = vrot.slane %v2759, 1
      %v2761 = vadd.f32 %v2759, %v2760
      %v2762 = vmul.f32 %v2745, %v2745
      %v2763 = vmul.f32 %v2746, %v2746
      %v2764 = vmul.f32 %v2747, %v2747
      %v2765 = vmul.f32 %v2748, %v2748
      %v2766 = vsel %vm770, %v2762, 0.0
      %v2767 = vsel %vm770, %v2763, 0.0
      %v2768 = vadd.f32 %v2766, %v2767
      %v2769 = vsel %vm770, %v2764, 0.0
      %v2770 = vadd.f32 %v2768, %v2769
      %v2771 = vsel %vm770, %v2765, 0.0
      %v2772 = vadd.f32 %v2770, %v2771
      %v2773 = vrot.slane %v2772, 4
      %v2774 = vadd.f32 %v2772, %v2773
      %v2775 = vrot.slane %v2774, 2
      %v2776 = vadd.f32 %v2774, %v2775
      %v2777 = vrot.slane %v2776, 1
      %v2778 = vadd.f32 %v2776, %v2777
      %v2779 = vadd.f32 %v2449, %v2761
      %v2780 = vadd.f32 %v2450, %v2778
      %v2781 = vsel %vm2535, inf, %v2451
      %v2782 = vsel %vm2536, inf, %v2452
      %v2783 = vsel %vm2537, inf, %v2453
      %v2784 = vsel %vm2538, inf, %v2454
      %v2785 = vsel %vm472, %v2781, inf
      %2786 = vmin.xlane.f32.xlu0 %v2785
      %v2787 = vpop.xlane.xlu0 %2786
      %v2788 = vsel %vm472, %v2782, inf
      %2789 = vmin.xlane.f32.xlu0 %v2788
      %v2790 = vpop.xlane.xlu0 %2789
      %v2791 = vsel %vm472, %v2783, inf
      %2792 = vmin.xlane.f32.xlu0 %v2791
      %v2793 = vpop.xlane.xlu0 %2792
      %v2794 = vsel %vm472, %v2784, inf
      %2795 = vmin.xlane.f32.xlu0 %v2794
      %v2796 = vpop.xlane.xlu0 %2795
      %vm2797 = vcmp.eq.f32.partialorder %v2781, %v2787
      %vm2798 = vcmp.eq.f32.partialorder %v2782, %v2790
      %vm2799 = vcmp.eq.f32.partialorder %v2783, %v2793
      %vm2800 = vcmp.eq.f32.partialorder %v2784, %v2796
      %v2801 = vsel %vm2797, %v373, 32
      %v2802 = vsel %vm2798, %v373, 32
      %v2803 = vsel %vm2799, %v373, 32
      %v2804 = vsel %vm2800, %v373, 32
      %v2805 = vsel %vm472, %v2801, 2147483647
      %v2806 = vand.u32 %v2805, 65535
      %v2807 = vshra.s32 %v2805, 16
      %v2808 = vcvt.s32.f32 %v2806
      %v2809 = vcvt.s32.f32 %v2807
      %2810 = vmin.xlane.f32.xlu0 %v2809
      %v2811 = vpop.xlane.xlu0 %2810
      %vm2812 = vcmp.eq.f32.partialorder %v2809, %v2811
      %v2813 = vsel %vm2812, %v2808, inf
      %2814 = vmin.xlane.f32.xlu0 %v2813
      %v2815 = vpop.xlane.xlu0 %2814
      %v2816 = vcvt.f32.s32 %v2815
      %v2817 = vcvt.f32.s32 %v2811
      %v2818 = vshll.u32 %v2817, 16
      %v2819 = vadd.s32 %v2818, %v2816
      %v2820 = vsel %vm472, %v2802, 2147483647
      %v2821 = vand.u32 %v2820, 65535
      %v2822 = vshra.s32 %v2820, 16
      %v2823 = vcvt.s32.f32 %v2821
      %v2824 = vcvt.s32.f32 %v2822
      %2825 = vmin.xlane.f32.xlu0 %v2824
      %v2826 = vpop.xlane.xlu0 %2825
      %vm2827 = vcmp.eq.f32.partialorder %v2824, %v2826
      %v2828 = vsel %vm2827, %v2823, inf
      %2829 = vmin.xlane.f32.xlu0 %v2828
      %v2830 = vpop.xlane.xlu0 %2829
      %v2831 = vcvt.f32.s32 %v2830
      %v2832 = vcvt.f32.s32 %v2826
      %v2833 = vshll.u32 %v2832, 16
      %v2834 = vadd.s32 %v2833, %v2831
      %v2835 = vsel %vm472, %v2803, 2147483647
      %v2836 = vand.u32 %v2835, 65535
      %v2837 = vshra.s32 %v2835, 16
      %v2838 = vcvt.s32.f32 %v2836
      %v2839 = vcvt.s32.f32 %v2837
      %2840 = vmin.xlane.f32.xlu0 %v2839
      %v2841 = vpop.xlane.xlu0 %2840
      %vm2842 = vcmp.eq.f32.partialorder %v2839, %v2841
      %v2843 = vsel %vm2842, %v2838, inf
      %2844 = vmin.xlane.f32.xlu0 %v2843
      %v2845 = vpop.xlane.xlu0 %2844
      %v2846 = vcvt.f32.s32 %v2845
      %v2847 = vcvt.f32.s32 %v2841
      %v2848 = vshll.u32 %v2847, 16
      %v2849 = vadd.s32 %v2848, %v2846
      %v2850 = vsel %vm472, %v2804, 2147483647
      %v2851 = vand.u32 %v2850, 65535
      %v2852 = vshra.s32 %v2850, 16
      %v2853 = vcvt.s32.f32 %v2851
      %v2854 = vcvt.s32.f32 %v2852
      %2855 = vmin.xlane.f32.xlu0 %v2854
      %v2856 = vpop.xlane.xlu0 %2855
      %vm2857 = vcmp.eq.f32.partialorder %v2854, %v2856
      %v2858 = vsel %vm2857, %v2853, inf
      %2859 = vmin.xlane.f32.xlu0 %v2858
      %v2860 = vpop.xlane.xlu0 %2859
      %v2861 = vcvt.f32.s32 %v2860
      %v2862 = vcvt.f32.s32 %v2856
      %v2863 = vshll.u32 %v2862, 16
      %v2864 = vadd.s32 %v2863, %v2861
      %vm2865 = vcmp.eq.s32.totalorder %v373, %v2819
      %vm2866 = vcmp.eq.s32.totalorder %v373, %v2834
      %vm2867 = vcmp.eq.s32.totalorder %v373, %v2849
      %vm2868 = vcmp.eq.s32.totalorder %v373, %v2864
      %v2869 = vsel %vm2865, 1, 0
      %v2870 = vsel %vm2866, 1, 0
      %v2871 = vsel %vm2867, 1, 0
      %v2872 = vsel %vm2868, 1, 0
      %v2873 = vcvt.s32.f32 %v2869
      %v2874 = vcvt.s32.f32 %v2870
      %v2875 = vcvt.s32.f32 %v2871
      %v2876 = vcvt.s32.f32 %v2872
      %v2878 = vsel %vm472, %v2873, 0
      %v2881 = vsel %vm472, %v2874, 0
      %v2884 = vsel %vm472, %v2875, 0
      %v2887 = vsel %vm472, %v2876, 0
      %2889 = vmatprep.subr.mxu0 0.0
      %2890 = vmatpush1.msra.mxu0 0.0
      %2891 = vmatprep.subr.mxu0 0.0
      %2892 = vmatpush1.msra.mxu0 0.0
      %2893 = vmatprep.subr.mxu0 0.0
      %2894 = vmatpush1.msra.mxu0 0.0
      %2895 = vmatprep.subr.mxu0 0.0
      %2896 = vmatpush1.msra.mxu0 0.0
      %2897 = vmatprep.subr.mxu0 0.0
      %2898 = vmatpush1.msra.mxu0 0.0
      %2899 = vmatprep.subr.mxu0 0.0
      %2900 = vmatpush1.msra.mxu0 0.0
      %2901 = vmatprep.subr.mxu0 0.0
      %2902 = vmatpush1.msra.mxu0 0.0
      %2903 = vmatprep.subr.mxu0 0.0
      %2904 = vmatpush1.msra.mxu0 0.0
      %2905 = vmatprep.subr.mxu0 0.0
      %2906 = vmatpush1.msra.mxu0 0.0
      %2907 = vmatprep.subr.mxu0 0.0
      %2908 = vmatpush1.msra.mxu0 0.0
      %2909 = vmatprep.subr.mxu0 0.0
      %2910 = vmatpush1.msra.mxu0 0.0
      %2911 = vmatprep.subr.mxu0 0.0
      %2912 = vmatpush1.msra.mxu0 0.0
      %2913 = vmatprep.subr.mxu0 0.0
      %2914 = vmatpush1.msra.mxu0 %v172
      %2915 = vmatprep.subr.mxu0 0.0
      %2916 = vmatpush1.msra.mxu0 %v171
      %2917 = vmatprep.subr.mxu0 0.0
      %2918 = vmatpush1.msra.mxu0 %v170
      %2919 = vmatprep.subr.mxu0 0.0
      %2920 = vmatpush1.msra.mxu0 %v169
      %2921 = vmatprep.subr.mxu0 0.0
      %2922 = vmatpush2.msra.mxu0 0.0
      %2923 = vmatprep.subr.mxu0 0.0
      %2924 = vmatpush2.msra.mxu0 0.0
      %2925 = vmatprep.subr.mxu0 0.0
      %2926 = vmatpush2.msra.mxu0 0.0
      %2927 = vmatprep.subr.mxu0 0.0
      %2928 = vmatpush2.msra.mxu0 0.0
      %2929 = vmatprep.subr.mxu0 0.0
      %2930 = vmatpush2.msra.mxu0 0.0
      %2931 = vmatprep.subr.mxu0 0.0
      %2932 = vmatpush2.msra.mxu0 0.0
      %2933 = vmatprep.subr.mxu0 0.0
      %2934 = vmatpush2.msra.mxu0 0.0
      %2935 = vmatprep.subr.mxu0 0.0
      %2936 = vmatpush2.msra.mxu0 0.0
      %2937 = vmatprep.subr.mxu0 0.0
      %2938 = vmatpush2.msra.mxu0 0.0
      %2939 = vmatprep.subr.mxu0 0.0
      %2940 = vmatpush2.msra.mxu0 0.0
      %2941 = vmatprep.subr.mxu0 0.0
      %2942 = vmatpush2.msra.mxu0 0.0
      %2943 = vmatprep.subr.mxu0 0.0
      %2944 = vmatpush2.msra.mxu0 0.0
      %2945 = vmatprep.subr.mxu0 0.0
      %2946 = vmatpush2.msra.mxu0 0.0
      %2947 = vmatprep.subr.mxu0 0.0
      %2948 = vmatpush2.msra.mxu0 0.0
      %2949 = vmatprep.subr.mxu0 0.0
      %2950 = vmatpush2.msra.mxu0 0.0
      %2951 = vmatprep.subr.mxu0 0.0
      %2952 = vmatpush2.msra.mxu0 0.0
      %2953 = vmatprep.mubr.f32.mxu0 0.0
      %2954 = vmatmul.mubr.f32.gmra.mxu0 %v2878
      %v2955 = vpop.f32.mrf.mxu0
      %v2956 = vadd.f32 0.0, %v2955
      %v2957 = vpop.f32.mrf.mxu0
      %2958 = vmatprep.mubr.f32.mxu0 0.0
      %2959 = vmatmul.mubr.f32.gmra.mxu0 %v2881
      %v2960 = vpop.f32.mrf.mxu0
      %v2961 = vadd.f32 0.0, %v2960
      %v2962 = vpop.f32.mrf.mxu0
      %2963 = vmatprep.mubr.f32.mxu0 0.0
      %2964 = vmatmul.mubr.f32.gmra.mxu0 %v2884
      %v2965 = vpop.f32.mrf.mxu0
      %v2966 = vadd.f32 0.0, %v2965
      %v2967 = vpop.f32.mrf.mxu0
      %2968 = vmatprep.mubr.f32.mxu0 0.0
      %2969 = vmatmul.mubr.f32.gmra.mxu0 %v2887
      %v2970 = vpop.f32.mrf.mxu0
      %v2971 = vadd.f32 0.0, %v2970
      %v2972 = vpop.f32.mrf.mxu0
      %2973 = vdwg.mxu0
      %v2974 = vsub.f32 %v2956, %v169
      %v2975 = vsub.f32 %v2961, %v170
      %v2976 = vsub.f32 %v2966, %v171
      %v2977 = vsub.f32 %v2971, %v172
      %v2979 = vsel %vm173, %v2974, 0
      %v2982 = vsel %vm173, %v2975, 0
      %v2985 = vsel %vm173, %v2976, 0
      %v2988 = vsel %vm173, %v2977, 0
      %2990 = vmatprep.subr.mxu0 0.0
      %2991 = vmatpush1.msra.mxu0 0.0
      %2992 = vmatprep.subr.mxu0 0.0
      %2993 = vmatpush1.msra.mxu0 0.0
      %2994 = vmatprep.subr.mxu0 0.0
      %2995 = vmatpush1.msra.mxu0 0.0
      %2996 = vmatprep.subr.mxu0 0.0
      %2997 = vmatpush1.msra.mxu0 0.0
      %2998 = vmatprep.subr.mxu0 0.0
      %2999 = vmatpush1.msra.mxu0 0.0
      %3000 = vmatprep.subr.mxu0 0.0
      %3001 = vmatpush1.msra.mxu0 0.0
      %3002 = vmatprep.subr.mxu0 0.0
      %3003 = vmatpush1.msra.mxu0 0.0
      %3004 = vmatprep.subr.mxu0 0.0
      %3005 = vmatpush1.msra.mxu0 0.0
      %3006 = vmatprep.subr.mxu0 0.0
      %3007 = vmatpush1.msra.mxu0 0.0
      %3008 = vmatprep.subr.mxu0 0.0
      %3009 = vmatpush1.msra.mxu0 0.0
      %3010 = vmatprep.subr.mxu0 0.0
      %3011 = vmatpush1.msra.mxu0 0.0
      %3012 = vmatprep.subr.mxu0 0.0
      %3013 = vmatpush1.msra.mxu0 0.0
      %3014 = vmatprep.subr.mxu0 0.0
      %3015 = vmatpush1.msra.mxu0 0.0
      %3016 = vmatprep.subr.mxu0 0.0
      %3017 = vmatpush1.msra.mxu0 0.0
      %3018 = vmatprep.subr.mxu0 0.0
      %3019 = vmatpush1.msra.mxu0 0.0
      %3020 = vmatprep.subr.mxu0 0.0
      %3021 = vmatpush1.msra.mxu0 %v679
      %3022 = vmatprep.subr.mxu0 0.0
      %3023 = vmatpush2.msra.mxu0 0.0
      %3024 = vmatprep.subr.mxu0 0.0
      %3025 = vmatpush2.msra.mxu0 0.0
      %3026 = vmatprep.subr.mxu0 0.0
      %3027 = vmatpush2.msra.mxu0 0.0
      %3028 = vmatprep.subr.mxu0 0.0
      %3029 = vmatpush2.msra.mxu0 0.0
      %3030 = vmatprep.subr.mxu0 0.0
      %3031 = vmatpush2.msra.mxu0 0.0
      %3032 = vmatprep.subr.mxu0 0.0
      %3033 = vmatpush2.msra.mxu0 0.0
      %3034 = vmatprep.subr.mxu0 0.0
      %3035 = vmatpush2.msra.mxu0 0.0
      %3036 = vmatprep.subr.mxu0 0.0
      %3037 = vmatpush2.msra.mxu0 0.0
      %3038 = vmatprep.subr.mxu0 0.0
      %3039 = vmatpush2.msra.mxu0 0.0
      %3040 = vmatprep.subr.mxu0 0.0
      %3041 = vmatpush2.msra.mxu0 0.0
      %3042 = vmatprep.subr.mxu0 0.0
      %3043 = vmatpush2.msra.mxu0 0.0
      %3044 = vmatprep.subr.mxu0 0.0
      %3045 = vmatpush2.msra.mxu0 0.0
      %3046 = vmatprep.subr.mxu0 0.0
      %3047 = vmatpush2.msra.mxu0 0.0
      %3048 = vmatprep.subr.mxu0 0.0
      %3049 = vmatpush2.msra.mxu0 0.0
      %3050 = vmatprep.subr.mxu0 0.0
      %3051 = vmatpush2.msra.mxu0 0.0
      %3052 = vmatprep.subr.mxu0 0.0
      %3053 = vmatpush2.msra.mxu0 0.0
      %3054 = vmatprep.mubr.f32.mxu0 0.0
      %3055 = vmatmul.mubr.f32.gmra.mxu0 %v2979
      %v3056 = vpop.f32.mrf.mxu0
      %v3057 = vadd.f32 0.0, %v3056
      %v3058 = vpop.f32.mrf.mxu0
      %3059 = vmatprep.mubr.f32.mxu0 0.0
      %3060 = vmatmul.mubr.f32.gmra.mxu0 %v2982
      %v3061 = vpop.f32.mrf.mxu0
      %v3062 = vadd.f32 0.0, %v3061
      %v3063 = vpop.f32.mrf.mxu0
      %3064 = vmatprep.mubr.f32.mxu0 0.0
      %3065 = vmatmul.mubr.f32.gmra.mxu0 %v2985
      %v3066 = vpop.f32.mrf.mxu0
      %v3067 = vadd.f32 0.0, %v3066
      %v3068 = vpop.f32.mrf.mxu0
      %3069 = vmatprep.mubr.f32.mxu0 0.0
      %3070 = vmatmul.mubr.f32.gmra.mxu0 %v2988
      %v3071 = vpop.f32.mrf.mxu0
      %v3072 = vadd.f32 0.0, %v3071
      %v3073 = vpop.f32.mrf.mxu0
      %3074 = vdwg.mxu0
      %v3075 = vadd.f32 %v454, %v3057
      %v3076 = vadd.f32 %v459, %v3062
      %v3077 = vadd.f32 %v464, %v3067
      %v3078 = vadd.f32 %v469, %v3072
      %v3079 = vsel %vm770, %v3075, 0.0
      %v3080 = vsel %vm770, %v3076, 0.0
      %v3081 = vadd.f32 %v3079, %v3080
      %v3082 = vsel %vm770, %v3077, 0.0
      %v3083 = vadd.f32 %v3081, %v3082
      %v3084 = vsel %vm770, %v3078, 0.0
      %v3085 = vadd.f32 %v3083, %v3084
      %v3086 = vrot.slane %v3085, 4
      %v3087 = vadd.f32 %v3085, %v3086
      %v3088 = vrot.slane %v3087, 2
      %v3089 = vadd.f32 %v3087, %v3088
      %v3090 = vrot.slane %v3089, 1
      %v3091 = vadd.f32 %v3089, %v3090
      %v3092 = vmul.f32 %v3075, %v3075
      %v3093 = vmul.f32 %v3076, %v3076
      %v3094 = vmul.f32 %v3077, %v3077
      %v3095 = vmul.f32 %v3078, %v3078
      %v3096 = vsel %vm770, %v3092, 0.0
      %v3097 = vsel %vm770, %v3093, 0.0
      %v3098 = vadd.f32 %v3096, %v3097
      %v3099 = vsel %vm770, %v3094, 0.0
      %v3100 = vadd.f32 %v3098, %v3099
      %v3101 = vsel %vm770, %v3095, 0.0
      %v3102 = vadd.f32 %v3100, %v3101
      %v3103 = vrot.slane %v3102, 4
      %v3104 = vadd.f32 %v3102, %v3103
      %v3105 = vrot.slane %v3104, 2
      %v3106 = vadd.f32 %v3104, %v3105
      %v3107 = vrot.slane %v3106, 1
      %v3108 = vadd.f32 %v3106, %v3107
      %v3109 = vadd.f32 %v2779, %v3091
      %v3110 = vadd.f32 %v2780, %v3108
      %vm3111 = vcmask 1040384
      %v3112 = vsel %vm3111, %v3109, %v3110
      %vm3113 = vcmask 517120
      %3114 = vst.msk [vmem:[%s168] sm:$0x3] %vm3113, %v3112
      %p3115 = scmp.lt.s32.totalorder %s14, 3
      %s3116 = scalar_select %p3115, %s14, 3
      %s3117 = smul.addr %s3116, 2
      %s3118 = scalar_lea.vmem %s3, %s3117
      // Predicated region
      $region33: #{model_forward.4} parent=31 // pred_check
        %p3119 = pneg %p100
      $region34: #{model_forward.4} parent=31 // pred_check_branch
        %3121 = sbr.rel (%p3119) target = $region36
      $region35: #{model_forward.4} parent=31 // pred_region
        _
      $region36: #{model_forward.4} parent=31 // pred_fallthru
        _
    $region32: #{model_forward.4} parent=5 // pred_fallthru
      _
    %p3122 = scmp.le.s32.totalorder 2, %s9
    // Predicated region
    $region37: #{model_forward.4} parent=5 // pred_check
      %p3123 = pneg %p3122
    $region38: #{model_forward.4} parent=5 // pred_check_branch
      %3125 = sbr.rel (%p3123) target = $region40
    $region39: #{model_forward.4} parent=5 // pred_region
      %s3126 = ssub.s32 %s9, 2
      // Predicated region
      $region41: #{model_forward.4} parent=39 // pred_check
        %p3127 = pneg %p106
      $region42: #{model_forward.4} parent=39 // pred_check_branch
        %3129 = sbr.rel (%p3127) target = $region44
      $region43: #{model_forward.4} parent=39 // pred_region
        %p3130 = scmp.lt.s32.totalorder %s15, 3
        %s3131 = scalar_select %p3130, %s15, 3
        %s3132 = smul.addr %s3131, 2
        %s3133 = scalar_lea.vmem %s3, %s3132
      $region44: #{model_forward.4} parent=39 // pred_fallthru
        _
    $region40: #{model_forward.4} parent=5 // pred_fallthru
      _
  $region6: #{model_forward.4} parent=0 // loop_footer
    %s13 = sadd.s32 1, %s9
  $region7: #{model_forward.4} parent=0 // loop_footer_branch
    %8 = sbr.rel target = $region3
  $region8: #{model_forward.4} parent=0 // loop_exit
    _

// kernel: model_forward.5
$region0: #{model_forward.5}
  #allocation0 [shape = 'u32[]', space=smem, size = 0x4, offset = 0x4, fixed_abs, tag = 'smem constant byte address 0x4 - core index']
  #allocation1 [shape = 'u32[144,128]{1,0:T(1,128)}', space=vmem, size = 0x12000, scoped, tag = 'internal scratch']
  %s0 = inlined_call_operand.vmem [shape: f32[4,32,3], index: 0, kind: input, shape index: {}]
  %s1 = inlined_call_operand.vmem [shape: f32[4,2,64], index: 1, kind: input, shape index: {}]
  %s2 = inlined_call_operand.vmem [shape: f32[6,64], index: 2, kind: input, shape index: {}]
  %s3 = inlined_call_operand.vmem [shape: f32[1,64], index: 3, kind: input, shape index: {}]
  %s4 = inlined_call_operand.vmem [shape: f32[64,64], index: 4, kind: input, shape index: {}]
  %s5 = inlined_call_operand.vmem [shape: f32[1,64], index: 5, kind: input, shape index: {}]
  %s6 = inlined_call_operand.vmem [shape: f32[128,128], index: 6, kind: input, shape index: {}]
  %s7 = inlined_call_operand.vmem [shape: f32[1,128], index: 7, kind: input, shape index: {}]
  %s8 = inlined_call_operand.vmem [shape: f32[192,128], index: 8, kind: input, shape index: {}]
  %s9 = inlined_call_operand.vmem [shape: f32[1,128], index: 9, kind: input, shape index: {}]
  %s10 = inlined_call_operand.vmem [shape: f32[128,256], index: 10, kind: input, shape index: {}]
  %s11 = inlined_call_operand.vmem [shape: f32[1,256], index: 11, kind: input, shape index: {}]
  %s12 = inlined_call_operand.vmem [shape: f32[256,32], index: 12, kind: input, shape index: {}]
  %s13 = inlined_call_operand.vmem [shape: f32[1,32], index: 13, kind: input, shape index: {}]
  %s14 = inlined_call_operand.vmem [shape: f32[4,1,128], index: 14, kind: output, shape index: {0}]
  %s15 = inlined_call_operand.vmem [shape: f32[4,1,32], index: 15, kind: output, shape index: {1}]
  %16 = xla_tuple %s14, %s15
  %s17 = sld [smem:[#allocation0]]
  $region97: #{model_forward.5} parent=0
    _
  %s19 = ssub.s32 1, %s17
  %s20 = scalar_select 0, %s19, %s17
  loop: start=0, step=1, limit=6
  $region2: #{model_forward.5} parent=0 // loop_pre_header
    _
  $region3: #{model_forward.5} parent=0 // loop_header
    %s22 = sphi 0, %s26
    %p23 = scmp.ge.s32.totalorder %s22, 6
    %s32 = sphi 0, %s34
    %s35 = sphi 0, %s32
    %s36 = sphi 0, %s35
    %s52 = sphi 0, %s36
    %s58 = sphi 0, %s60
    %s61 = sphi 0, %s58
    %s62 = sphi 0, %s61
    %s78 = sphi 0, %s62
    %s82 = sphi 0, %s82
    %s84 = sphi 0, %s82
    %s85 = sphi 0, %s84
    %s99 = sphi 0, %s85
    %s103 = sphi 0, %s103
    %s105 = sphi 0, %s103
    %s106 = sphi 0, %s105
    %s120 = sphi 0, %s106
    %s124 = sphi 0, %s124
    %s126 = sphi 0, %s124
    %s127 = sphi 0, %s126
    %s141 = sphi 0, %s127
    %s145 = sphi 0, %s145
    %s147 = sphi 0, %s145
    %s148 = sphi 0, %s147
    %s162 = sphi 0, %s148
    %s166 = sphi 0, %s166
    %s168 = sphi 0, %s166
    %s169 = sphi 0, %s168
    %s183 = sphi 0, %s169
    %s187 = sphi 0, %s187
    %s189 = sphi 0, %s187
    %s190 = sphi 0, %s189
    %s204 = sphi 0, %s190
    %s208 = sphi 0, %s208
    %s210 = sphi 0, %s208
    %s211 = sphi 0, %s210
    %s225 = sphi 0, %s211
    %s229 = sphi 0, %s229
    %s231 = sphi 0, %s229
    %s232 = sphi 0, %s231
    %s246 = sphi 0, %s232
    %s250 = sphi 0, %s250
    %s252 = sphi 0, %s250
    %s253 = sphi 0, %s252
    %s267 = sphi 0, %s253
    %s271 = sphi 0, %s271
    %s273 = sphi 0, %s271
    %s274 = sphi 0, %s273
    %s288 = sphi 0, %s274
    %s292 = sphi 0, %s292
    %s294 = sphi 0, %s292
    %s295 = sphi 0, %s294
    %s309 = sphi 0, %s295
    %s313 = sphi 0, %s313
    %s315 = sphi 0, %s313
    %s316 = sphi 0, %s315
    %s330 = sphi 0, %s316
    %s336 = sphi 0, %s338
    %s339 = sphi 0, %s336
    %s340 = sphi 0, %s339
    %s356 = sphi 0, %s340
    %s362 = sphi 0, %s364
    %s365 = sphi 0, %s362
    %s366 = sphi 0, %s365
    %s382 = sphi 0, %s366
  $region4: #{model_forward.5} parent=0 // loop_header_branch
    %25 = sbr.rel (%p23) target = $region8
  $region5: #{model_forward.5} parent=0 // loop_body
    %s27 = ssub.s32 %s22, 1
    %s28 = ssub.s32 %s22, 2
    %s29 = sadd.s32 %s22, 1
    %s30 = ssub.s32 %s22, %s29
    %p31 = scmp.eq.s32.totalorder %s30, 0
    %s33 = sadd.s32 %s32, 1
    %s34 = scalar_select %p31, %s32, %s33
    %p37 = pneg %p31
    %p38 = scmp.eq.s32.totalorder %s22, 3
    %p39 = por %p37, %p38
    %p40 = scmp.ne.s32.totalorder %s32, %s35
    %p41 = scmp.eq.s32.totalorder %s22, 0
    %p42 = por %p40, %p41
    %p43 = scmp.ne.s32.totalorder %s32, %s35
    %p44 = scmp.eq.s32.totalorder %s27, 3
    %p45 = por %p43, %p44
    %p46 = scmp.ne.s32.totalorder %s35, %s36
    %p47 = scmp.eq.s32.totalorder %s27, 0
    %p48 = por %p46, %p47
    %p49 = scmp.ne.s32.totalorder %s35, %s36
    %p50 = scmp.eq.s32.totalorder %s28, 3
    %p51 = por %p49, %p50
    %p53 = scmp.ne.s32.totalorder %s36, %s52
    %p54 = scmp.eq.s32.totalorder %s28, 0
    %p55 = por %p53, %p54
    %s56 = ssub.s32 %s22, %s29
    %p57 = scmp.eq.s32.totalorder %s56, 0
    %s59 = sadd.s32 %s58, 1
    %s60 = scalar_select %p57, %s58, %s59
    %p63 = pneg %p57
    %p64 = scmp.eq.s32.totalorder %s22, 3
    %p65 = por %p63, %p64
    %p66 = scmp.ne.s32.totalorder %s58, %s61
    %p67 = scmp.eq.s32.totalorder %s22, 0
    %p68 = por %p66, %p67
    %p69 = scmp.ne.s32.totalorder %s58, %s61
    %p70 = scmp.eq.s32.totalorder %s27, 3
    %p71 = por %p69, %p70
    %p72 = scmp.ne.s32.totalorder %s61, %s62
    %p73 = scmp.eq.s32.totalorder %s27, 0
    %p74 = por %p72, %p73
    %p75 = scmp.ne.s32.totalorder %s61, %s62
    %p76 = scmp.eq.s32.totalorder %s28, 3
    %p77 = por %p75, %p76
    %p79 = scmp.ne.s32.totalorder %s62, %s78
    %p80 = scmp.eq.s32.totalorder %s28, 0
    %p81 = por %p79, %p80
    %s83 = sadd.s32 %s82, 1
    %p86 = scmp.eq.s32.totalorder %s22, 3
    %p87 = scmp.ne.s32.totalorder %s82, %s84
    %p88 = scmp.eq.s32.totalorder %s22, 0
    %p89 = por %p87, %p88
    %p90 = scmp.ne.s32.totalorder %s82, %s84
    %p91 = scmp.eq.s32.totalorder %s27, 3
    %p92 = por %p90, %p91
    %p93 = scmp.ne.s32.totalorder %s84, %s85
    %p94 = scmp.eq.s32.totalorder %s27, 0
    %p95 = por %p93, %p94
    %p96 = scmp.ne.s32.totalorder %s84, %s85
    %p97 = scmp.eq.s32.totalorder %s28, 3
    %p98 = por %p96, %p97
    %p100 = scmp.ne.s32.totalorder %s85, %s99
    %p101 = scmp.eq.s32.totalorder %s28, 0
    %p102 = por %p100, %p101
    %s104 = sadd.s32 %s103, 1
    %p107 = scmp.eq.s32.totalorder %s22, 3
    %p108 = scmp.ne.s32.totalorder %s103, %s105
    %p109 = scmp.eq.s32.totalorder %s22, 0
    %p110 = por %p108, %p109
    %p111 = scmp.ne.s32.totalorder %s103, %s105
    %p112 = scmp.eq.s32.totalorder %s27, 3
    %p113 = por %p111, %p112
    %p114 = scmp.ne.s32.totalorder %s105, %s106
    %p115 = scmp.eq.s32.totalorder %s27, 0
    %p116 = por %p114, %p115
    %p117 = scmp.ne.s32.totalorder %s105, %s106
    %p118 = scmp.eq.s32.totalorder %s28, 3
    %p119 = por %p117, %p118
    %p121 = scmp.ne.s32.totalorder %s106, %s120
    %p122 = scmp.eq.s32.totalorder %s28, 0
    %p123 = por %p121, %p122
    %s125 = sadd.s32 %s124, 1
    %p128 = scmp.eq.s32.totalorder %s22, 3
    %p129 = scmp.ne.s32.totalorder %s124, %s126
    %p130 = scmp.eq.s32.totalorder %s22, 0
    %p131 = por %p129, %p130
    %p132 = scmp.ne.s32.totalorder %s124, %s126
    %p133 = scmp.eq.s32.totalorder %s27, 3
    %p134 = por %p132, %p133
    %p135 = scmp.ne.s32.totalorder %s126, %s127
    %p136 = scmp.eq.s32.totalorder %s27, 0
    %p137 = por %p135, %p136
    %p138 = scmp.ne.s32.totalorder %s126, %s127
    %p139 = scmp.eq.s32.totalorder %s28, 3
    %p140 = por %p138, %p139
    %p142 = scmp.ne.s32.totalorder %s127, %s141
    %p143 = scmp.eq.s32.totalorder %s28, 0
    %p144 = por %p142, %p143
    %s146 = sadd.s32 %s145, 1
    %p149 = scmp.eq.s32.totalorder %s22, 3
    %p150 = scmp.ne.s32.totalorder %s145, %s147
    %p151 = scmp.eq.s32.totalorder %s22, 0
    %p152 = por %p150, %p151
    %p153 = scmp.ne.s32.totalorder %s145, %s147
    %p154 = scmp.eq.s32.totalorder %s27, 3
    %p155 = por %p153, %p154
    %p156 = scmp.ne.s32.totalorder %s147, %s148
    %p157 = scmp.eq.s32.totalorder %s27, 0
    %p158 = por %p156, %p157
    %p159 = scmp.ne.s32.totalorder %s147, %s148
    %p160 = scmp.eq.s32.totalorder %s28, 3
    %p161 = por %p159, %p160
    %p163 = scmp.ne.s32.totalorder %s148, %s162
    %p164 = scmp.eq.s32.totalorder %s28, 0
    %p165 = por %p163, %p164
    %s167 = sadd.s32 %s166, 1
    %p170 = scmp.eq.s32.totalorder %s22, 3
    %p171 = scmp.ne.s32.totalorder %s166, %s168
    %p172 = scmp.eq.s32.totalorder %s22, 0
    %p173 = por %p171, %p172
    %p174 = scmp.ne.s32.totalorder %s166, %s168
    %p175 = scmp.eq.s32.totalorder %s27, 3
    %p176 = por %p174, %p175
    %p177 = scmp.ne.s32.totalorder %s168, %s169
    %p178 = scmp.eq.s32.totalorder %s27, 0
    %p179 = por %p177, %p178
    %p180 = scmp.ne.s32.totalorder %s168, %s169
    %p181 = scmp.eq.s32.totalorder %s28, 3
    %p182 = por %p180, %p181
    %p184 = scmp.ne.s32.totalorder %s169, %s183
    %p185 = scmp.eq.s32.totalorder %s28, 0
    %p186 = por %p184, %p185
    %s188 = sadd.s32 %s187, 1
    %p191 = scmp.eq.s32.totalorder %s22, 3
    %p192 = scmp.ne.s32.totalorder %s187, %s189
    %p193 = scmp.eq.s32.totalorder %s22, 0
    %p194 = por %p192, %p193
    %p195 = scmp.ne.s32.totalorder %s187, %s189
    %p196 = scmp.eq.s32.totalorder %s27, 3
    %p197 = por %p195, %p196
    %p198 = scmp.ne.s32.totalorder %s189, %s190
    %p199 = scmp.eq.s32.totalorder %s27, 0
    %p200 = por %p198, %p199
    %p201 = scmp.ne.s32.totalorder %s189, %s190
    %p202 = scmp.eq.s32.totalorder %s28, 3
    %p203 = por %p201, %p202
    %p205 = scmp.ne.s32.totalorder %s190, %s204
    %p206 = scmp.eq.s32.totalorder %s28, 0
    %p207 = por %p205, %p206
    %s209 = sadd.s32 %s208, 1
    %p212 = scmp.eq.s32.totalorder %s22, 3
    %p213 = scmp.ne.s32.totalorder %s208, %s210
    %p214 = scmp.eq.s32.totalorder %s22, 0
    %p215 = por %p213, %p214
    %p216 = scmp.ne.s32.totalorder %s208, %s210
    %p217 = scmp.eq.s32.totalorder %s27, 3
    %p218 = por %p216, %p217
    %p219 = scmp.ne.s32.totalorder %s210, %s211
    %p220 = scmp.eq.s32.totalorder %s27, 0
    %p221 = por %p219, %p220
    %p222 = scmp.ne.s32.totalorder %s210, %s211
    %p223 = scmp.eq.s32.totalorder %s28, 3
    %p224 = por %p222, %p223
    %p226 = scmp.ne.s32.totalorder %s211, %s225
    %p227 = scmp.eq.s32.totalorder %s28, 0
    %p228 = por %p226, %p227
    %s230 = sadd.s32 %s229, 1
    %p233 = scmp.eq.s32.totalorder %s22, 3
    %p234 = scmp.ne.s32.totalorder %s229, %s231
    %p235 = scmp.eq.s32.totalorder %s22, 0
    %p236 = por %p234, %p235
    %p237 = scmp.ne.s32.totalorder %s229, %s231
    %p238 = scmp.eq.s32.totalorder %s27, 3
    %p239 = por %p237, %p238
    %p240 = scmp.ne.s32.totalorder %s231, %s232
    %p241 = scmp.eq.s32.totalorder %s27, 0
    %p242 = por %p240, %p241
    %p243 = scmp.ne.s32.totalorder %s231, %s232
    %p244 = scmp.eq.s32.totalorder %s28, 3
    %p245 = por %p243, %p244
    %p247 = scmp.ne.s32.totalorder %s232, %s246
    %p248 = scmp.eq.s32.totalorder %s28, 0
    %p249 = por %p247, %p248
    %s251 = sadd.s32 %s250, 1
    %p254 = scmp.eq.s32.totalorder %s22, 3
    %p255 = scmp.ne.s32.totalorder %s250, %s252
    %p256 = scmp.eq.s32.totalorder %s22, 0
    %p257 = por %p255, %p256
    %p258 = scmp.ne.s32.totalorder %s250, %s252
    %p259 = scmp.eq.s32.totalorder %s27, 3
    %p260 = por %p258, %p259
    %p261 = scmp.ne.s32.totalorder %s252, %s253
    %p262 = scmp.eq.s32.totalorder %s27, 0
    %p263 = por %p261, %p262
    %p264 = scmp.ne.s32.totalorder %s252, %s253
    %p265 = scmp.eq.s32.totalorder %s28, 3
    %p266 = por %p264, %p265
    %p268 = scmp.ne.s32.totalorder %s253, %s267
    %p269 = scmp.eq.s32.totalorder %s28, 0
    %p270 = por %p268, %p269
    %s272 = sadd.s32 %s271, 1
    %p275 = scmp.eq.s32.totalorder %s22, 3
    %p276 = scmp.ne.s32.totalorder %s271, %s273
    %p277 = scmp.eq.s32.totalorder %s22, 0
    %p278 = por %p276, %p277
    %p279 = scmp.ne.s32.totalorder %s271, %s273
    %p280 = scmp.eq.s32.totalorder %s27, 3
    %p281 = por %p279, %p280
    %p282 = scmp.ne.s32.totalorder %s273, %s274
    %p283 = scmp.eq.s32.totalorder %s27, 0
    %p284 = por %p282, %p283
    %p285 = scmp.ne.s32.totalorder %s273, %s274
    %p286 = scmp.eq.s32.totalorder %s28, 3
    %p287 = por %p285, %p286
    %p289 = scmp.ne.s32.totalorder %s274, %s288
    %p290 = scmp.eq.s32.totalorder %s28, 0
    %p291 = por %p289, %p290
    %s293 = sadd.s32 %s292, 1
    %p296 = scmp.eq.s32.totalorder %s22, 3
    %p297 = scmp.ne.s32.totalorder %s292, %s294
    %p298 = scmp.eq.s32.totalorder %s22, 0
    %p299 = por %p297, %p298
    %p300 = scmp.ne.s32.totalorder %s292, %s294
    %p301 = scmp.eq.s32.totalorder %s27, 3
    %p302 = por %p300, %p301
    %p303 = scmp.ne.s32.totalorder %s294, %s295
    %p304 = scmp.eq.s32.totalorder %s27, 0
    %p305 = por %p303, %p304
    %p306 = scmp.ne.s32.totalorder %s294, %s295
    %p307 = scmp.eq.s32.totalorder %s28, 3
    %p308 = por %p306, %p307
    %p310 = scmp.ne.s32.totalorder %s295, %s309
    %p311 = scmp.eq.s32.totalorder %s28, 0
    %p312 = por %p310, %p311
    %s314 = sadd.s32 %s313, 1
    %p317 = scmp.eq.s32.totalorder %s22, 3
    %p318 = scmp.ne.s32.totalorder %s313, %s315
    %p319 = scmp.eq.s32.totalorder %s22, 0
    %p320 = por %p318, %p319
    %p321 = scmp.ne.s32.totalorder %s313, %s315
    %p322 = scmp.eq.s32.totalorder %s27, 3
    %p323 = por %p321, %p322
    %p324 = scmp.ne.s32.totalorder %s315, %s316
    %p325 = scmp.eq.s32.totalorder %s27, 0
    %p326 = por %p324, %p325
    %p327 = scmp.ne.s32.totalorder %s315, %s316
    %p328 = scmp.eq.s32.totalorder %s28, 3
    %p329 = por %p327, %p328
    %p331 = scmp.ne.s32.totalorder %s316, %s330
    %p332 = scmp.eq.s32.totalorder %s28, 0
    %p333 = por %p331, %p332
    %s334 = ssub.s32 %s22, %s29
    %p335 = scmp.eq.s32.totalorder %s334, 0
    %s337 = sadd.s32 %s336, 1
    %s338 = scalar_select %p335, %s336, %s337
    %p341 = pneg %p335
    %p342 = scmp.eq.s32.totalorder %s22, 3
    %p343 = por %p341, %p342
    %p344 = scmp.ne.s32.totalorder %s336, %s339
    %p345 = scmp.eq.s32.totalorder %s22, 0
    %p346 = por %p344, %p345
    %p347 = scmp.ne.s32.totalorder %s336, %s339
    %p348 = scmp.eq.s32.totalorder %s27, 3
    %p349 = por %p347, %p348
    %p350 = scmp.ne.s32.totalorder %s339, %s340
    %p351 = scmp.eq.s32.totalorder %s27, 0
    %p352 = por %p350, %p351
    %p353 = scmp.ne.s32.totalorder %s339, %s340
    %p354 = scmp.eq.s32.totalorder %s28, 3
    %p355 = por %p353, %p354
    %p357 = scmp.ne.s32.totalorder %s340, %s356
    %p358 = scmp.eq.s32.totalorder %s28, 0
    %p359 = por %p357, %p358
    %s360 = ssub.s32 %s22, %s29
    %p361 = scmp.eq.s32.totalorder %s360, 0
    %s363 = sadd.s32 %s362, 1
    %s364 = scalar_select %p361, %s362, %s363
    %p367 = pneg %p361
    %p368 = scmp.eq.s32.totalorder %s22, 3
    %p369 = por %p367, %p368
    %p370 = scmp.ne.s32.totalorder %s362, %s365
    %p371 = scmp.eq.s32.totalorder %s22, 0
    %p372 = por %p370, %p371
    %p373 = scmp.ne.s32.totalorder %s362, %s365
    %p374 = scmp.eq.s32.totalorder %s27, 3
    %p375 = por %p373, %p374
    %p376 = scmp.ne.s32.totalorder %s365, %s366
    %p377 = scmp.eq.s32.totalorder %s27, 0
    %p378 = por %p376, %p377
    %p379 = scmp.ne.s32.totalorder %s365, %s366
    %p380 = scmp.eq.s32.totalorder %s28, 3
    %p381 = por %p379, %p380
    %p383 = scmp.ne.s32.totalorder %s366, %s382
    %p384 = scmp.eq.s32.totalorder %s28, 0
    %p385 = por %p383, %p384
    %p386 = scmp.le.s32.totalorder 1, %s22
    %p387 = scmp.lt.s32.totalorder %s22, 5
    %p388 = pnand %p386, %p387
    %p389 = pneg %p388
    // Predicated region
    $region9: #{model_forward.5} parent=5 // pred_check
      _
    $region10: #{model_forward.5} parent=5 // pred_check_branch
      %391 = sbr.rel (%p388) target = $region12
    $region11: #{model_forward.5} parent=5 // pred_region
      %s392 = ssub.s32 %s22, 1
      // Predicated region
      $region13: #{model_forward.5} parent=11 // pred_check
        %p393 = pneg %p95
      $region14: #{model_forward.5} parent=11 // pred_check_branch
        %395 = sbr.rel (%p393) target = $region16
      $region15: #{model_forward.5} parent=11 // pred_region
        _
      $region16: #{model_forward.5} parent=11 // pred_fallthru
        _
      // Predicated region
      $region17: #{model_forward.5} parent=11 // pred_check
        %p396 = pneg %p116
      $region18: #{model_forward.5} parent=11 // pred_check_branch
        %398 = sbr.rel (%p396) target = $region20
      $region19: #{model_forward.5} parent=11 // pred_region
        _
      $region20: #{model_forward.5} parent=11 // pred_fallthru
        _
      // Predicated region
      $region21: #{model_forward.5} parent=11 // pred_check
        %p399 = pneg %p137
      $region22: #{model_forward.5} parent=11 // pred_check_branch
        %401 = sbr.rel (%p399) target = $region24
      $region23: #{model_forward.5} parent=11 // pred_region
        _
      $region24: #{model_forward.5} parent=11 // pred_fallthru
        _
      // Predicated region
      $region25: #{model_forward.5} parent=11 // pred_check
        %p402 = pneg %p158
      $region26: #{model_forward.5} parent=11 // pred_check_branch
        %404 = sbr.rel (%p402) target = $region28
      $region27: #{model_forward.5} parent=11 // pred_region
        _
      $region28: #{model_forward.5} parent=11 // pred_fallthru
        _
      // Predicated region
      $region29: #{model_forward.5} parent=11 // pred_check
        %p405 = pneg %p179
      $region30: #{model_forward.5} parent=11 // pred_check_branch
        %407 = sbr.rel (%p405) target = $region32
      $region31: #{model_forward.5} parent=11 // pred_region
        _
      $region32: #{model_forward.5} parent=11 // pred_fallthru
        _
      // Predicated region
      $region33: #{model_forward.5} parent=11 // pred_check
        %p408 = pneg %p200
      $region34: #{model_forward.5} parent=11 // pred_check_branch
        %410 = sbr.rel (%p408) target = $region36
      $region35: #{model_forward.5} parent=11 // pred_region
        _
      $region36: #{model_forward.5} parent=11 // pred_fallthru
        _
      // Predicated region
      $region37: #{model_forward.5} parent=11 // pred_check
        %p411 = pneg %p221
      $region38: #{model_forward.5} parent=11 // pred_check_branch
        %413 = sbr.rel (%p411) target = $region40
      $region39: #{model_forward.5} parent=11 // pred_region
        _
      $region40: #{model_forward.5} parent=11 // pred_fallthru
        _
      // Predicated region
      $region41: #{model_forward.5} parent=11 // pred_check
        %p414 = pneg %p242
      $region42: #{model_forward.5} parent=11 // pred_check_branch
        %416 = sbr.rel (%p414) target = $region44
      $region43: #{model_forward.5} parent=11 // pred_region
        _
      $region44: #{model_forward.5} parent=11 // pred_fallthru
        _
      // Predicated region
      $region45: #{model_forward.5} parent=11 // pred_check
        %p417 = pneg %p263
      $region46: #{model_forward.5} parent=11 // pred_check_branch
        %419 = sbr.rel (%p417) target = $region48
      $region47: #{model_forward.5} parent=11 // pred_region
        _
      $region48: #{model_forward.5} parent=11 // pred_fallthru
        _
      // Predicated region
      $region49: #{model_forward.5} parent=11 // pred_check
        %p420 = pneg %p284
      $region50: #{model_forward.5} parent=11 // pred_check_branch
        %422 = sbr.rel (%p420) target = $region52
      $region51: #{model_forward.5} parent=11 // pred_region
        _
      $region52: #{model_forward.5} parent=11 // pred_fallthru
        _
      // Predicated region
      $region53: #{model_forward.5} parent=11 // pred_check
        %p423 = pneg %p305
      $region54: #{model_forward.5} parent=11 // pred_check_branch
        %425 = sbr.rel (%p423) target = $region56
      $region55: #{model_forward.5} parent=11 // pred_region
        _
      $region56: #{model_forward.5} parent=11 // pred_fallthru
        _
      // Predicated region
      $region57: #{model_forward.5} parent=11 // pred_check
        %p426 = pneg %p326
      $region58: #{model_forward.5} parent=11 // pred_check_branch
        %428 = sbr.rel (%p426) target = $region60
      $region59: #{model_forward.5} parent=11 // pred_region
        _
      $region60: #{model_forward.5} parent=11 // pred_fallthru
        _
    $region12: #{model_forward.5} parent=5 // pred_fallthru
      _
    %p429 = scmp.lt.s32.totalorder %s22, 4
    // Predicated region
    $region61: #{model_forward.5} parent=5 // pred_check
      %p430 = pneg %p429
    $region62: #{model_forward.5} parent=5 // pred_check_branch
      %432 = sbr.rel (%p430) target = $region64
    $region63: #{model_forward.5} parent=5 // pred_region
      // Predicated region
      $region65: #{model_forward.5} parent=63 // pred_check
        %p433 = pneg %p42
      $region66: #{model_forward.5} parent=63 // pred_check_branch
        %435 = sbr.rel (%p433) target = $region68
      $region67: #{model_forward.5} parent=63 // pred_region
        %p436 = scmp.lt.s32.totalorder %s22, 3
        %s437 = scalar_select %p436, %s22, 3
        %s438 = smul.addr %s437, 4
        %s439 = smul.addr %s438, 8
        %s440 = scalar_lea.vmem %s0, %s439
      $region68: #{model_forward.5} parent=63 // pred_fallthru
        _
      // Predicated region
      $region69: #{model_forward.5} parent=63 // pred_check
        %p441 = pneg %p68
      $region70: #{model_forward.5} parent=63 // pred_check_branch
        %443 = sbr.rel (%p441) target = $region72
      $region71: #{model_forward.5} parent=63 // pred_region
        %p444 = scmp.lt.s32.totalorder %s22, 3
        %s445 = scalar_select %p444, %s22, 3
        %s446 = smul.addr %s445, 2
        %s447 = scalar_lea.vmem %s1, %s446
      $region72: #{model_forward.5} parent=63 // pred_fallthru
        _
    $region64: #{model_forward.5} parent=5 // pred_fallthru
      _
    %p448 = scmp.le.s32.totalorder 1, %s22
    %p449 = scmp.lt.s32.totalorder %s22, 5
    %p450 = pnand %p448, %p449
    %p451 = pneg %p450
    // Predicated region
    $region73: #{model_forward.5} parent=5 // pred_check
      _
    $region74: #{model_forward.5} parent=5 // pred_check_branch
      %453 = sbr.rel (%p450) target = $region76
    $region75: #{model_forward.5} parent=5 // pred_region
      %s454 = ssub.s32 %s22, 1
      %p455 = scmp.lt.s32.totalorder %s27, 3
      %s456 = scalar_select %p455, %s27, 3
      %s457 = smul.addr %s456, 4
      %s458 = smul.addr %s457, 8
      %s459 = scalar_lea.vmem %s0, %s458
      %p460 = pneg %p48
      %p461 = pneg %p45
      %p462 = scmp.lt.s32.totalorder %s27, 3
      %s463 = scalar_select %p462, %s27, 3
      %s464 = smul.addr %s463, 2
      %s465 = scalar_lea.vmem %s1, %s464
      %p466 = pneg %p74
      %p467 = pneg %p71
      %p468 = pneg %p95
      %p469 = pneg %p92
      %p470 = pneg %p116
      %p471 = pneg %p113
      %p472 = pneg %p137
      %p473 = pneg %p134
      %p474 = pneg %p158
      %p475 = pneg %p155
      %p476 = pneg %p179
      %p477 = pneg %p176
      %p478 = pneg %p200
      %p479 = pneg %p197
      %p480 = pneg %p221
      %p481 = pneg %p218
      %p482 = pneg %p242
      %p483 = pneg %p239
      %p484 = pneg %p263
      %p485 = pneg %p260
      %p486 = pneg %p284
      %p487 = pneg %p281
      %p488 = pneg %p305
      %p489 = pneg %p302
      %p490 = pneg %p326
      %p491 = pneg %p323
      %p492 = pneg %p352
      %p493 = pneg %p349
      %p494 = scmp.lt.s32.totalorder %s27, 3
      %s495 = scalar_select %p494, %s27, 3
      %s496 = scalar_lea.vmem %s14, %s495
      %p497 = pneg %p378
      %p498 = pneg %p375
      %p499 = scmp.lt.s32.totalorder %s27, 3
      %s500 = scalar_select %p499, %s27, 3
      %s501 = scalar_lea.vmem %s15, %s500
      %p502 = scmp.lt.s32.totalorder %s27, 3
      %s503 = scalar_select %p502, %s27, 3
      %s504 = smul.addr %s503, 4
      %s505 = smul.addr %s504, 8
      %s506 = scalar_lea.vmem %s0, %s505
      %p507 = scmp.lt.s32.totalorder %s27, 3
      %s508 = scalar_select %p507, %s27, 3
      %s509 = smul.addr %s508, 2
      %s510 = scalar_lea.vmem %s1, %s509
      %p511 = scmp.lt.s32.totalorder %s27, 3
      %s512 = scalar_select %p511, %s27, 3
      %s513 = scalar_lea.vmem %s14, %s512
      %p514 = scmp.lt.s32.totalorder %s27, 3
      %s515 = scalar_select %p514, %s27, 3
      %s516 = scalar_lea.vmem %s15, %s515
      %v517 = vld [vmem:[%s506] sm:$0xff]
      %v518 = vld [vmem:[%s506 + $0x8] sm:$0xff]
      %v519 = vld [vmem:[%s506 + $0x10] sm:$0xff]
      %v520 = vld [vmem:[%s506 + $0x18] sm:$0xff]
      %v521 = vld [vmem:[%s510] sm:$0x1]
      %v522 = vld [vmem:[%s510 + $0x1] sm:$0x1]
      %v523 = vlaneseq
      %v524 = vand.u32 %v523, 127
      %vm525 = vcmask 23552
      %v527 = vsel %vm525, %v517, 0
      %v530 = vsel %vm525, %v518, 0
      %v533 = vsel %vm525, %v519, 0
      %v536 = vsel %vm525, %v520, 0
      %538 = vmatprep.subr.mxu0 0.0
      %539 = vmatpush1.xpose.msra.mxu0 0.0
      %540 = vmatprep.subr.mxu0 0.0
      %541 = vmatpush1.xpose.msra.mxu0 0.0
      %542 = vmatprep.subr.mxu0 0.0
      %543 = vmatpush1.xpose.msra.mxu0 0.0
      %544 = vmatprep.subr.mxu0 0.0
      %545 = vmatpush1.xpose.msra.mxu0 0.0
      %546 = vmatprep.subr.mxu0 0.0
      %547 = vmatpush1.xpose.msra.mxu0 0.0
      %548 = vmatprep.subr.mxu0 0.0
      %549 = vmatpush1.xpose.msra.mxu0 0.0
      %550 = vmatprep.subr.mxu0 0.0
      %551 = vmatpush1.xpose.msra.mxu0 0.0
      %552 = vmatprep.subr.mxu0 0.0
      %553 = vmatpush1.xpose.msra.mxu0 0.0
      %554 = vmatprep.subr.mxu0 0.0
      %555 = vmatpush1.xpose.msra.mxu0 0.0
      %556 = vmatprep.subr.mxu0 0.0
      %557 = vmatpush1.xpose.msra.mxu0 0.0
      %558 = vmatprep.subr.mxu0 0.0
      %559 = vmatpush1.xpose.msra.mxu0 0.0
      %560 = vmatprep.subr.mxu0 0.0
      %561 = vmatpush1.xpose.msra.mxu0 0.0
      %562 = vmatprep.subr.mxu0 0.0
      %563 = vmatpush1.xpose.msra.mxu0 %v536
      %564 = vmatprep.subr.mxu0 0.0
      %565 = vmatpush1.xpose.msra.mxu0 %v533
      %566 = vmatprep.subr.mxu0 0.0
      %567 = vmatpush1.xpose.msra.mxu0 %v530
      %568 = vmatprep.subr.mxu0 0.0
      %569 = vmatpush1.xpose.msra.mxu0 %v527
      %570 = vmatprep.subr.mxu0 0.0
      %571 = vmatpush2.xpose.msra.mxu0 0.0
      %572 = vmatprep.subr.mxu0 0.0
      %573 = vmatpush2.xpose.msra.mxu0 0.0
      %574 = vmatprep.subr.mxu0 0.0
      %575 = vmatpush2.xpose.msra.mxu0 0.0
      %576 = vmatprep.subr.mxu0 0.0
      %577 = vmatpush2.xpose.msra.mxu0 0.0
      %578 = vmatprep.subr.mxu0 0.0
      %579 = vmatpush2.xpose.msra.mxu0 0.0
      %580 = vmatprep.subr.mxu0 0.0
      %581 = vmatpush2.xpose.msra.mxu0 0.0
      %582 = vmatprep.subr.mxu0 0.0
      %583 = vmatpush2.xpose.msra.mxu0 0.0
      %584 = vmatprep.subr.mxu0 0.0
      %585 = vmatpush2.xpose.msra.mxu0 0.0
      %586 = vmatprep.subr.mxu0 0.0
      %587 = vmatpush2.xpose.msra.mxu0 0.0
      %588 = vmatprep.subr.mxu0 0.0
      %589 = vmatpush2.xpose.msra.mxu0 0.0
      %590 = vmatprep.subr.mxu0 0.0
      %591 = vmatpush2.xpose.msra.mxu0 0.0
      %592 = vmatprep.subr.mxu0 0.0
      %593 = vmatpush2.xpose.msra.mxu0 0.0
      %594 = vmatprep.subr.mxu0 0.0
      %595 = vmatpush2.xpose.msra.mxu0 0.0
      %596 = vmatprep.subr.mxu0 0.0
      %597 = vmatpush2.xpose.msra.mxu0 0.0
      %598 = vmatprep.subr.mxu0 0.0
      %599 = vmatpush2.xpose.msra.mxu0 0.0
      %600 = vmatprep.subr.mxu0 0.0
      %601 = vmatpush2.xpose.msra.mxu0 0.0
      %602 = vmatprep.mubr.f32.mxu0 0.0
      %603 = vmatmul.mubr.f32.gmra.mxu0 %v527
      %v604 = vpop.f32.mrf.mxu0
      %v605 = vadd.f32 0.0, %v604
      %v606 = vpop.f32.mrf.mxu0
      %607 = vmatprep.mubr.f32.mxu0 0.0
      %608 = vmatmul.mubr.f32.gmra.mxu0 %v530
      %v609 = vpop.f32.mrf.mxu0
      %v610 = vadd.f32 0.0, %v609
      %v611 = vpop.f32.mrf.mxu0
      %612 = vmatprep.mubr.f32.mxu0 0.0
      %613 = vmatmul.mubr.f32.gmra.mxu0 %v533
      %v614 = vpop.f32.mrf.mxu0
      %v615 = vadd.f32 0.0, %v614
      %v616 = vpop.f32.mrf.mxu0
      %617 = vmatprep.mubr.f32.mxu0 0.0
      %618 = vmatmul.mubr.f32.gmra.mxu0 %v536
      %v619 = vpop.f32.mrf.mxu0
      %v620 = vadd.f32 0.0, %v619
      %v621 = vpop.f32.mrf.mxu0
      %622 = vdwg.mxu0
      %v623 = vmul.f32 %v517, %v517
      %v624 = vmul.f32 %v518, %v518
      %v625 = vmul.f32 %v519, %v519
      %v626 = vmul.f32 %v520, %v520
      %v628 = vsel %vm525, 1.0, 0
      %v631 = vsel %vm525, %v623, 0
      %v634 = vsel %vm525, %v624, 0
      %v637 = vsel %vm525, %v625, 0
      %v640 = vsel %vm525, %v626, 0
      %642 = vmatprep.subr.mxu0 0.0
      %643 = vmatpush1.xpose.msra.mxu0 0.0
      %644 = vmatprep.subr.mxu0 0.0
      %645 = vmatpush1.xpose.msra.mxu0 0.0
      %646 = vmatprep.subr.mxu0 0.0
      %647 = vmatpush1.xpose.msra.mxu0 0.0
      %648 = vmatprep.subr.mxu0 0.0
      %649 = vmatpush1.xpose.msra.mxu0 0.0
      %650 = vmatprep.subr.mxu0 0.0
      %651 = vmatpush1.xpose.msra.mxu0 0.0
      %652 = vmatprep.subr.mxu0 0.0
      %653 = vmatpush1.xpose.msra.mxu0 0.0
      %654 = vmatprep.subr.mxu0 0.0
      %655 = vmatpush1.xpose.msra.mxu0 0.0
      %656 = vmatprep.subr.mxu0 0.0
      %657 = vmatpush1.xpose.msra.mxu0 0.0
      %658 = vmatprep.subr.mxu0 0.0
      %659 = vmatpush1.xpose.msra.mxu0 0.0
      %660 = vmatprep.subr.mxu0 0.0
      %661 = vmatpush1.xpose.msra.mxu0 0.0
      %662 = vmatprep.subr.mxu0 0.0
      %663 = vmatpush1.xpose.msra.mxu0 0.0
      %664 = vmatprep.subr.mxu0 0.0
      %665 = vmatpush1.xpose.msra.mxu0 0.0
      %666 = vmatprep.subr.mxu0 0.0
      %667 = vmatpush1.xpose.msra.mxu0 %v640
      %668 = vmatprep.subr.mxu0 0.0
      %669 = vmatpush1.xpose.msra.mxu0 %v637
      %670 = vmatprep.subr.mxu0 0.0
      %671 = vmatpush1.xpose.msra.mxu0 %v634
      %672 = vmatprep.subr.mxu0 0.0
      %673 = vmatpush1.xpose.msra.mxu0 %v631
      %674 = vmatprep.subr.mxu0 0.0
      %675 = vmatpush2.xpose.msra.mxu0 0.0
      %676 = vmatprep.subr.mxu0 0.0
      %677 = vmatpush2.xpose.msra.mxu0 0.0
      %678 = vmatprep.subr.mxu0 0.0
      %679 = vmatpush2.xpose.msra.mxu0 0.0
      %680 = vmatprep.subr.mxu0 0.0
      %681 = vmatpush2.xpose.msra.mxu0 0.0
      %682 = vmatprep.subr.mxu0 0.0
      %683 = vmatpush2.xpose.msra.mxu0 0.0
      %684 = vmatprep.subr.mxu0 0.0
      %685 = vmatpush2.xpose.msra.mxu0 0.0
      %686 = vmatprep.subr.mxu0 0.0
      %687 = vmatpush2.xpose.msra.mxu0 0.0
      %688 = vmatprep.subr.mxu0 0.0
      %689 = vmatpush2.xpose.msra.mxu0 0.0
      %690 = vmatprep.subr.mxu0 0.0
      %691 = vmatpush2.xpose.msra.mxu0 0.0
      %692 = vmatprep.subr.mxu0 0.0
      %693 = vmatpush2.xpose.msra.mxu0 0.0
      %694 = vmatprep.subr.mxu0 0.0
      %695 = vmatpush2.xpose.msra.mxu0 0.0
      %696 = vmatprep.subr.mxu0 0.0
      %697 = vmatpush2.xpose.msra.mxu0 0.0
      %698 = vmatprep.subr.mxu0 0.0
      %699 = vmatpush2.xpose.msra.mxu0 0.0
      %700 = vmatprep.subr.mxu0 0.0
      %701 = vmatpush2.xpose.msra.mxu0 0.0
      %702 = vmatprep.subr.mxu0 0.0
      %703 = vmatpush2.xpose.msra.mxu0 0.0
      %704 = vmatprep.subr.mxu0 0.0
      %705 = vmatpush2.xpose.msra.mxu0 0.0
      %706 = vmatprep.mubr.f32.mxu0 0.0
      %707 = vmatmul.mubr.f32.gmra.mxu0 %v628
      %v708 = vpop.f32.mrf.mxu0
      %v709 = vadd.f32 0.0, %v708
      %v710 = vpop.f32.mrf.mxu0
      %711 = vdwg.mxu0
      %v712 = vmul.f32 %v605, 2.0
      %v713 = vmul.f32 %v610, 2.0
      %v714 = vmul.f32 %v615, 2.0
      %v715 = vmul.f32 %v620, 2.0
      %v716 = vlaneseq
      %v717 = vshrl.u32 %v716, 7
      %v718 = vsub.s32 0, %v717
      %v719 = vrot.slane %v709, %v718
      %v720 = vsub.f32 %v719, %v712
      %v721 = vsub.f32 %v719, %v713
      %v722 = vsub.f32 %v719, %v714
      %v723 = vsub.f32 %v719, %v715
      %v724 = vld [vmem:[%s2] sm:$0x7]
      %v725 = vld [vmem:[%s2 + $0x3] sm:$0x7]
      %v726 = vld [vmem:[%s3] sm:$0x1]
      %v728 = vlaneseq
      %v729 = vshrl.u32 %v728, 7
      %v730 = vsub.s32 0, %v729
      %v731 = vrot.slane %v726, %v730
      %vm733 = vcmask 1042432
      %v735 = vsel %vm733, %v724, 0
      %737 = vmatprep.subr.mxu0 0.0
      %738 = vmatpush1.msra.mxu0 0.0
      %739 = vmatprep.subr.mxu0 0.0
      %740 = vmatpush1.msra.mxu0 0.0
      %741 = vmatprep.subr.mxu0 0.0
      %742 = vmatpush1.msra.mxu0 0.0
      %743 = vmatprep.subr.mxu0 0.0
      %744 = vmatpush1.msra.mxu0 0.0
      %745 = vmatprep.subr.mxu0 0.0
      %746 = vmatpush1.msra.mxu0 0.0
      %747 = vmatprep.subr.mxu0 0.0
      %748 = vmatpush1.msra.mxu0 0.0
      %749 = vmatprep.subr.mxu0 0.0
      %750 = vmatpush1.msra.mxu0 0.0
      %751 = vmatprep.subr.mxu0 0.0
      %752 = vmatpush1.msra.mxu0 0.0
      %753 = vmatprep.subr.mxu0 0.0
      %754 = vmatpush1.msra.mxu0 0.0
      %755 = vmatprep.subr.mxu0 0.0
      %756 = vmatpush1.msra.mxu0 0.0
      %757 = vmatprep.subr.mxu0 0.0
      %758 = vmatpush1.msra.mxu0 0.0
      %759 = vmatprep.subr.mxu0 0.0
      %760 = vmatpush1.msra.mxu0 0.0
      %761 = vmatprep.subr.mxu0 0.0
      %762 = vmatpush1.msra.mxu0 0.0
      %763 = vmatprep.subr.mxu0 0.0
      %764 = vmatpush1.msra.mxu0 0.0
      %765 = vmatprep.subr.mxu0 0.0
      %766 = vmatpush1.msra.mxu0 0.0
      %767 = vmatprep.subr.mxu0 0.0
      %768 = vmatpush1.msra.mxu0 %v735
      %769 = vmatprep.subr.mxu0 0.0
      %770 = vmatpush2.msra.mxu0 0.0
      %771 = vmatprep.subr.mxu0 0.0
      %772 = vmatpush2.msra.mxu0 0.0
      %773 = vmatprep.subr.mxu0 0.0
      %774 = vmatpush2.msra.mxu0 0.0
      %775 = vmatprep.subr.mxu0 0.0
      %776 = vmatpush2.msra.mxu0 0.0
      %777 = vmatprep.subr.mxu0 0.0
      %778 = vmatpush2.msra.mxu0 0.0
      %779 = vmatprep.subr.mxu0 0.0
      %780 = vmatpush2.msra.mxu0 0.0
      %781 = vmatprep.subr.mxu0 0.0
      %782 = vmatpush2.msra.mxu0 0.0
      %783 = vmatprep.subr.mxu0 0.0
      %784 = vmatpush2.msra.mxu0 0.0
      %785 = vmatprep.subr.mxu0 0.0
      %786 = vmatpush2.msra.mxu0 0.0
      %787 = vmatprep.subr.mxu0 0.0
      %788 = vmatpush2.msra.mxu0 0.0
      %789 = vmatprep.subr.mxu0 0.0
      %790 = vmatpush2.msra.mxu0 0.0
      %791 = vmatprep.subr.mxu0 0.0
      %792 = vmatpush2.msra.mxu0 0.0
      %793 = vmatprep.subr.mxu0 0.0
      %794 = vmatpush2.msra.mxu0 0.0
      %795 = vmatprep.subr.mxu0 0.0
      %796 = vmatpush2.msra.mxu0 0.0
      %797 = vmatprep.subr.mxu0 0.0
      %798 = vmatpush2.msra.mxu0 0.0
      %799 = vmatprep.subr.mxu0 0.0
      %800 = vmatpush2.msra.mxu0 0.0
      %801 = vmatprep.mubr.f32.mxu0 0.0
      %802 = vmatmul.mubr.f32.gmra.mxu0 %v527
      %v803 = vpop.f32.mrf.mxu0
      %v804 = vadd.f32 %v731, %v803
      %v805 = vpop.f32.mrf.mxu0
      %806 = vmatprep.mubr.f32.mxu0 0.0
      %807 = vmatmul.mubr.f32.gmra.mxu0 %v530
      %v808 = vpop.f32.mrf.mxu0
      %v809 = vadd.f32 %v731, %v808
      %v810 = vpop.f32.mrf.mxu0
      %811 = vmatprep.mubr.f32.mxu0 0.0
      %812 = vmatmul.mubr.f32.gmra.mxu0 %v533
      %v813 = vpop.f32.mrf.mxu0
      %v814 = vadd.f32 %v731, %v813
      %v815 = vpop.f32.mrf.mxu0
      %816 = vmatprep.mubr.f32.mxu0 0.0
      %817 = vmatmul.mubr.f32.gmra.mxu0 %v536
      %v818 = vpop.f32.mrf.mxu0
      %v819 = vadd.f32 %v731, %v818
      %v820 = vpop.f32.mrf.mxu0
      %821 = vdwg.mxu0
      %vm822 = vcmask 261120
      %v823 = vsel %vm822, %v720, inf
      %824 = vmin.xlane.f32.xlu0 %v823
      %v825 = vpop.xlane.xlu0 %824
      %v826 = vsel %vm822, %v721, inf
      %827 = vmin.xlane.f32.xlu0 %v826
      %v828 = vpop.xlane.xlu0 %827
      %v829 = vsel %vm822, %v722, inf
      %830 = vmin.xlane.f32.xlu0 %v829
      %v831 = vpop.xlane.xlu0 %830
      %v832 = vsel %vm822, %v723, inf
      %833 = vmin.xlane.f32.xlu0 %v832
      %v834 = vpop.xlane.xlu0 %833
      %vm835 = vcmp.eq.f32.partialorder %v720, %v825
      %vm836 = vcmp.eq.f32.partialorder %v721, %v828
      %vm837 = vcmp.eq.f32.partialorder %v722, %v831
      %vm838 = vcmp.eq.f32.partialorder %v723, %v834
      %v839 = vsel %vm835, %v524, 32
      %v840 = vsel %vm836, %v524, 32
      %v841 = vsel %vm837, %v524, 32
      %v842 = vsel %vm838, %v524, 32
      %v843 = vsel %vm822, %v839, 2147483647
      %v844 = vand.u32 %v843, 65535
      %v845 = vshra.s32 %v843, 16
      %v846 = vcvt.s32.f32 %v844
      %v847 = vcvt.s32.f32 %v845
      %848 = vmin.xlane.f32.xlu0 %v847
      %v849 = vpop.xlane.xlu0 %848
      %vm850 = vcmp.eq.f32.partialorder %v847, %v849
      %v851 = vsel %vm850, %v846, inf
      %852 = vmin.xlane.f32.xlu0 %v851
      %v853 = vpop.xlane.xlu0 %852
      %v854 = vcvt.f32.s32 %v853
      %v855 = vcvt.f32.s32 %v849
      %v856 = vshll.u32 %v855, 16
      %v857 = vadd.s32 %v856, %v854
      %v858 = vsel %vm822, %v840, 2147483647
      %v859 = vand.u32 %v858, 65535
      %v860 = vshra.s32 %v858, 16
      %v861 = vcvt.s32.f32 %v859
      %v862 = vcvt.s32.f32 %v860
      %863 = vmin.xlane.f32.xlu0 %v862
      %v864 = vpop.xlane.xlu0 %863
      %vm865 = vcmp.eq.f32.partialorder %v862, %v864
      %v866 = vsel %vm865, %v861, inf
      %867 = vmin.xlane.f32.xlu0 %v866
      %v868 = vpop.xlane.xlu0 %867
      %v869 = vcvt.f32.s32 %v868
      %v870 = vcvt.f32.s32 %v864
      %v871 = vshll.u32 %v870, 16
      %v872 = vadd.s32 %v871, %v869
      %v873 = vsel %vm822, %v841, 2147483647
      %v874 = vand.u32 %v873, 65535
      %v875 = vshra.s32 %v873, 16
      %v876 = vcvt.s32.f32 %v874
      %v877 = vcvt.s32.f32 %v875
      %878 = vmin.xlane.f32.xlu0 %v877
      %v879 = vpop.xlane.xlu0 %878
      %vm880 = vcmp.eq.f32.partialorder %v877, %v879
      %v881 = vsel %vm880, %v876, inf
      %882 = vmin.xlane.f32.xlu0 %v881
      %v883 = vpop.xlane.xlu0 %882
      %v884 = vcvt.f32.s32 %v883
      %v885 = vcvt.f32.s32 %v879
      %v886 = vshll.u32 %v885, 16
      %v887 = vadd.s32 %v886, %v884
      %v888 = vsel %vm822, %v842, 2147483647
      %v889 = vand.u32 %v888, 65535
      %v890 = vshra.s32 %v888, 16
      %v891 = vcvt.s32.f32 %v889
      %v892 = vcvt.s32.f32 %v890
      %893 = vmin.xlane.f32.xlu0 %v892
      %v894 = vpop.xlane.xlu0 %893
      %vm895 = vcmp.eq.f32.partialorder %v892, %v894
      %v896 = vsel %vm895, %v891, inf
      %897 = vmin.xlane.f32.xlu0 %v896
      %v898 = vpop.xlane.xlu0 %897
      %v899 = vcvt.f32.s32 %v898
      %v900 = vcvt.f32.s32 %v894
      %v901 = vshll.u32 %v900, 16
      %v902 = vadd.s32 %v901, %v899
      %vm903 = vcmp.eq.s32.totalorder %v524, %v857
      %vm904 = vcmp.eq.s32.totalorder %v524, %v872
      %vm905 = vcmp.eq.s32.totalorder %v524, %v887
      %vm906 = vcmp.eq.s32.totalorder %v524, %v902
      %v907 = vsel %vm903, 1, 0
      %v908 = vsel %vm904, 1, 0
      %v909 = vsel %vm905, 1, 0
      %v910 = vsel %vm906, 1, 0
      %v911 = vcvt.s32.f32 %v907
      %v912 = vcvt.s32.f32 %v908
      %v913 = vcvt.s32.f32 %v909
      %v914 = vcvt.s32.f32 %v910
      %v916 = vsel %vm822, %v911, 0
      %v919 = vsel %vm822, %v912, 0
      %v922 = vsel %vm822, %v913, 0
      %v925 = vsel %vm822, %v914, 0
      %927 = vmatprep.subr.mxu0 0.0
      %928 = vmatpush1.msra.mxu0 0.0
      %929 = vmatprep.subr.mxu0 0.0
      %930 = vmatpush1.msra.mxu0 0.0
      %931 = vmatprep.subr.mxu0 0.0
      %932 = vmatpush1.msra.mxu0 0.0
      %933 = vmatprep.subr.mxu0 0.0
      %934 = vmatpush1.msra.mxu0 0.0
      %935 = vmatprep.subr.mxu0 0.0
      %936 = vmatpush1.msra.mxu0 0.0
      %937 = vmatprep.subr.mxu0 0.0
      %938 = vmatpush1.msra.mxu0 0.0
      %939 = vmatprep.subr.mxu0 0.0
      %940 = vmatpush1.msra.mxu0 0.0
      %941 = vmatprep.subr.mxu0 0.0
      %942 = vmatpush1.msra.mxu0 0.0
      %943 = vmatprep.subr.mxu0 0.0
      %944 = vmatpush1.msra.mxu0 0.0
      %945 = vmatprep.subr.mxu0 0.0
      %946 = vmatpush1.msra.mxu0 0.0
      %947 = vmatprep.subr.mxu0 0.0
      %948 = vmatpush1.msra.mxu0 0.0
      %949 = vmatprep.subr.mxu0 0.0
      %950 = vmatpush1.msra.mxu0 0.0
      %951 = vmatprep.subr.mxu0 0.0
      %952 = vmatpush1.msra.mxu0 %v520
      %953 = vmatprep.subr.mxu0 0.0
      %954 = vmatpush1.msra.mxu0 %v519
      %955 = vmatprep.subr.mxu0 0.0
      %956 = vmatpush1.msra.mxu0 %v518
      %957 = vmatprep.subr.mxu0 0.0
      %958 = vmatpush1.msra.mxu0 %v517
      %959 = vmatprep.subr.mxu0 0.0
      %960 = vmatpush2.msra.mxu0 0.0
      %961 = vmatprep.subr.mxu0 0.0
      %962 = vmatpush2.msra.mxu0 0.0
      %963 = vmatprep.subr.mxu0 0.0
      %964 = vmatpush2.msra.mxu0 0.0
      %965 = vmatprep.subr.mxu0 0.0
      %966 = vmatpush2.msra.mxu0 0.0
      %967 = vmatprep.subr.mxu0 0.0
      %968 = vmatpush2.msra.mxu0 0.0
      %969 = vmatprep.subr.mxu0 0.0
      %970 = vmatpush2.msra.mxu0 0.0
      %971 = vmatprep.subr.mxu0 0.0
      %972 = vmatpush2.msra.mxu0 0.0
      %973 = vmatprep.subr.mxu0 0.0
      %974 = vmatpush2.msra.mxu0 0.0
      %975 = vmatprep.subr.mxu0 0.0
      %976 = vmatpush2.msra.mxu0 0.0
      %977 = vmatprep.subr.mxu0 0.0
      %978 = vmatpush2.msra.mxu0 0.0
      %979 = vmatprep.subr.mxu0 0.0
      %980 = vmatpush2.msra.mxu0 0.0
      %981 = vmatprep.subr.mxu0 0.0
      %982 = vmatpush2.msra.mxu0 0.0
      %983 = vmatprep.subr.mxu0 0.0
      %984 = vmatpush2.msra.mxu0 0.0
      %985 = vmatprep.subr.mxu0 0.0
      %986 = vmatpush2.msra.mxu0 0.0
      %987 = vmatprep.subr.mxu0 0.0
      %988 = vmatpush2.msra.mxu0 0.0
      %989 = vmatprep.subr.mxu0 0.0
      %990 = vmatpush2.msra.mxu0 0.0
      %991 = vmatprep.mubr.f32.mxu0 0.0
      %992 = vmatmul.mubr.f32.gmra.mxu0 %v916
      %v993 = vpop.f32.mrf.mxu0
      %v994 = vadd.f32 0.0, %v993
      %v995 = vpop.f32.mrf.mxu0
      %996 = vmatprep.mubr.f32.mxu0 0.0
      %997 = vmatmul.mubr.f32.gmra.mxu0 %v919
      %v998 = vpop.f32.mrf.mxu0
      %v999 = vadd.f32 0.0, %v998
      %v1000 = vpop.f32.mrf.mxu0
      %1001 = vmatprep.mubr.f32.mxu0 0.0
      %1002 = vmatmul.mubr.f32.gmra.mxu0 %v922
      %v1003 = vpop.f32.mrf.mxu0
      %v1004 = vadd.f32 0.0, %v1003
      %v1005 = vpop.f32.mrf.mxu0
      %1006 = vmatprep.mubr.f32.mxu0 0.0
      %1007 = vmatmul.mubr.f32.gmra.mxu0 %v925
      %v1008 = vpop.f32.mrf.mxu0
      %v1009 = vadd.f32 0.0, %v1008
      %v1010 = vpop.f32.mrf.mxu0
      %1011 = vdwg.mxu0
      %v1012 = vsub.f32 %v994, %v517
      %v1013 = vsub.f32 %v999, %v518
      %v1014 = vsub.f32 %v1004, %v519
      %v1015 = vsub.f32 %v1009, %v520
      %v1017 = vsel %vm525, %v1012, 0
      %v1020 = vsel %vm525, %v1013, 0
      %v1023 = vsel %vm525, %v1014, 0
      %v1026 = vsel %vm525, %v1015, 0
      %v1029 = vsel %vm733, %v725, 0
      %1031 = vmatprep.subr.mxu0 0.0
      %1032 = vmatpush1.msra.mxu0 0.0
      %1033 = vmatprep.subr.mxu0 0.0
      %1034 = vmatpush1.msra.mxu0 0.0
      %1035 = vmatprep.subr.mxu0 0.0
      %1036 = vmatpush1.msra.mxu0 0.0
      %1037 = vmatprep.subr.mxu0 0.0
      %1038 = vmatpush1.msra.mxu0 0.0
      %1039 = vmatprep.subr.mxu0 0.0
      %1040 = vmatpush1.msra.mxu0 0.0
      %1041 = vmatprep.subr.mxu0 0.0
      %1042 = vmatpush1.msra.mxu0 0.0
      %1043 = vmatprep.subr.mxu0 0.0
      %1044 = vmatpush1.msra.mxu0 0.0
      %1045 = vmatprep.subr.mxu0 0.0
      %1046 = vmatpush1.msra.mxu0 0.0
      %1047 = vmatprep.subr.mxu0 0.0
      %1048 = vmatpush1.msra.mxu0 0.0
      %1049 = vmatprep.subr.mxu0 0.0
      %1050 = vmatpush1.msra.mxu0 0.0
      %1051 = vmatprep.subr.mxu0 0.0
      %1052 = vmatpush1.msra.mxu0 0.0
      %1053 = vmatprep.subr.mxu0 0.0
      %1054 = vmatpush1.msra.mxu0 0.0
      %1055 = vmatprep.subr.mxu0 0.0
      %1056 = vmatpush1.msra.mxu0 0.0
      %1057 = vmatprep.subr.mxu0 0.0
      %1058 = vmatpush1.msra.mxu0 0.0
      %1059 = vmatprep.subr.mxu0 0.0
      %1060 = vmatpush1.msra.mxu0 0.0
      %1061 = vmatprep.subr.mxu0 0.0
      %1062 = vmatpush1.msra.mxu0 %v1029
      %1063 = vmatprep.subr.mxu0 0.0
      %1064 = vmatpush2.msra.mxu0 0.0
      %1065 = vmatprep.subr.mxu0 0.0
      %1066 = vmatpush2.msra.mxu0 0.0
      %1067 = vmatprep.subr.mxu0 0.0
      %1068 = vmatpush2.msra.mxu0 0.0
      %1069 = vmatprep.subr.mxu0 0.0
      %1070 = vmatpush2.msra.mxu0 0.0
      %1071 = vmatprep.subr.mxu0 0.0
      %1072 = vmatpush2.msra.mxu0 0.0
      %1073 = vmatprep.subr.mxu0 0.0
      %1074 = vmatpush2.msra.mxu0 0.0
      %1075 = vmatprep.subr.mxu0 0.0
      %1076 = vmatpush2.msra.mxu0 0.0
      %1077 = vmatprep.subr.mxu0 0.0
      %1078 = vmatpush2.msra.mxu0 0.0
      %1079 = vmatprep.subr.mxu0 0.0
      %1080 = vmatpush2.msra.mxu0 0.0
      %1081 = vmatprep.subr.mxu0 0.0
      %1082 = vmatpush2.msra.mxu0 0.0
      %1083 = vmatprep.subr.mxu0 0.0
      %1084 = vmatpush2.msra.mxu0 0.0
      %1085 = vmatprep.subr.mxu0 0.0
      %1086 = vmatpush2.msra.mxu0 0.0
      %1087 = vmatprep.subr.mxu0 0.0
      %1088 = vmatpush2.msra.mxu0 0.0
      %1089 = vmatprep.subr.mxu0 0.0
      %1090 = vmatpush2.msra.mxu0 0.0
      %1091 = vmatprep.subr.mxu0 0.0
      %1092 = vmatpush2.msra.mxu0 0.0
      %1093 = vmatprep.subr.mxu0 0.0
      %1094 = vmatpush2.msra.mxu0 0.0
      %1095 = vmatprep.mubr.f32.mxu0 0.0
      %1096 = vmatmul.mubr.f32.gmra.mxu0 %v1017
      %v1097 = vpop.f32.mrf.mxu0
      %v1098 = vadd.f32 0.0, %v1097
      %v1099 = vpop.f32.mrf.mxu0
      %1100 = vmatprep.mubr.f32.mxu0 0.0
      %1101 = vmatmul.mubr.f32.gmra.mxu0 %v1020
      %v1102 = vpop.f32.mrf.mxu0
      %v1103 = vadd.f32 0.0, %v1102
      %v1104 = vpop.f32.mrf.mxu0
      %1105 = vmatprep.mubr.f32.mxu0 0.0
      %1106 = vmatmul.mubr.f32.gmra.mxu0 %v1023
      %v1107 = vpop.f32.mrf.mxu0
      %v1108 = vadd.f32 0.0, %v1107
      %v1109 = vpop.f32.mrf.mxu0
      %1110 = vmatprep.mubr.f32.mxu0 0.0
      %1111 = vmatmul.mubr.f32.gmra.mxu0 %v1026
      %v1112 = vpop.f32.mrf.mxu0
      %v1113 = vadd.f32 0.0, %v1112
      %v1114 = vpop.f32.mrf.mxu0
      %1115 = vdwg.mxu0
      %v1116 = vadd.f32 %v804, %v1098
      %v1117 = vadd.f32 %v809, %v1103
      %v1118 = vadd.f32 %v814, %v1108
      %v1119 = vadd.f32 %v819, %v1113
      %v1120 = vlaneseq
      %v1121 = vshrl.u32 %v1120, 7
      %v1122 = vsub.s32 0, %v1121
      %v1123 = vrot.slane %v521, %v1122
      %v1124 = vmul.f32 %v1116, %v1123
      %v1125 = vmul.f32 %v1117, %v1123
      %v1126 = vmul.f32 %v1118, %v1123
      %v1127 = vmul.f32 %v1119, %v1123
      %v1128 = vlaneseq
      %v1129 = vshrl.u32 %v1128, 7
      %v1130 = vsub.s32 0, %v1129
      %v1131 = vrot.slane %v522, %v1130
      %v1132 = vadd.f32 %v1124, %v1131
      %v1133 = vadd.f32 %v1125, %v1131
      %v1134 = vadd.f32 %v1126, %v1131
      %v1135 = vadd.f32 %v1127, %v1131
      %v1136 = vmax.f32 %v1132, 0.0
      %v1137 = vmax.f32 %v1133, 0.0
      %v1138 = vmax.f32 %v1134, 0.0
      %v1139 = vmax.f32 %v1135, 0.0
      %v1140 = vld [vmem:[%s4] sm:$0xff]
      %v1141 = vld [vmem:[%s4 + $0x8] sm:$0xff]
      %v1142 = vld [vmem:[%s4 + $0x10] sm:$0xff]
      %v1143 = vld [vmem:[%s4 + $0x18] sm:$0xff]
      %v1144 = vld [vmem:[%s4 + $0x20] sm:$0xff]
      %v1145 = vld [vmem:[%s4 + $0x28] sm:$0xff]
      %v1146 = vld [vmem:[%s4 + $0x30] sm:$0xff]
      %v1147 = vld [vmem:[%s4 + $0x38] sm:$0xff]
      %v1148 = vld [vmem:[%s5] sm:$0x1]
      %v1150 = vlaneseq
      %v1151 = vshrl.u32 %v1150, 7
      %v1152 = vsub.s32 0, %v1151
      %v1153 = vrot.slane %v1148, %v1152
      %vm1155 = vcmask 523264
      %v1157 = vsel %vm1155, %v1136, 0
      %v1160 = vsel %vm1155, %v1137, 0
      %v1163 = vsel %vm1155, %v1138, 0
      %v1166 = vsel %vm1155, %v1139, 0
      %1168 = vmatprep.subr.mxu0 0.0
      %1169 = vmatpush1.msra.mxu0 0.0
      %1170 = vmatprep.subr.mxu0 0.0
      %1171 = vmatpush1.msra.mxu0 0.0
      %1172 = vmatprep.subr.mxu0 0.0
      %1173 = vmatpush1.msra.mxu0 0.0
      %1174 = vmatprep.subr.mxu0 0.0
      %1175 = vmatpush1.msra.mxu0 0.0
      %1176 = vmatprep.subr.mxu0 0.0
      %1177 = vmatpush1.msra.mxu0 0.0
      %1178 = vmatprep.subr.mxu0 0.0
      %1179 = vmatpush1.msra.mxu0 0.0
      %1180 = vmatprep.subr.mxu0 0.0
      %1181 = vmatpush1.msra.mxu0 0.0
      %1182 = vmatprep.subr.mxu0 0.0
      %1183 = vmatpush1.msra.mxu0 0.0
      %1184 = vmatprep.subr.mxu0 0.0
      %1185 = vmatpush1.msra.mxu0 %v1147
      %1186 = vmatprep.subr.mxu0 0.0
      %1187 = vmatpush1.msra.mxu0 %v1146
      %1188 = vmatprep.subr.mxu0 0.0
      %1189 = vmatpush1.msra.mxu0 %v1145
      %1190 = vmatprep.subr.mxu0 0.0
      %1191 = vmatpush1.msra.mxu0 %v1144
      %1192 = vmatprep.subr.mxu0 0.0
      %1193 = vmatpush1.msra.mxu0 %v1143
      %1194 = vmatprep.subr.mxu0 0.0
      %1195 = vmatpush1.msra.mxu0 %v1142
      %1196 = vmatprep.subr.mxu0 0.0
      %1197 = vmatpush1.msra.mxu0 %v1141
      %1198 = vmatprep.subr.mxu0 0.0
      %1199 = vmatpush1.msra.mxu0 %v1140
      %1200 = vmatprep.subr.mxu0 0.0
      %1201 = vmatpush2.msra.mxu0 0.0
      %1202 = vmatprep.subr.mxu0 0.0
      %1203 = vmatpush2.msra.mxu0 0.0
      %1204 = vmatprep.subr.mxu0 0.0
      %1205 = vmatpush2.msra.mxu0 0.0
      %1206 = vmatprep.subr.mxu0 0.0
      %1207 = vmatpush2.msra.mxu0 0.0
      %1208 = vmatprep.subr.mxu0 0.0
      %1209 = vmatpush2.msra.mxu0 0.0
      %1210 = vmatprep.subr.mxu0 0.0
      %1211 = vmatpush2.msra.mxu0 0.0
      %1212 = vmatprep.subr.mxu0 0.0
      %1213 = vmatpush2.msra.mxu0 0.0
      %1214 = vmatprep.subr.mxu0 0.0
      %1215 = vmatpush2.msra.mxu0 0.0
      %1216 = vmatprep.subr.mxu0 0.0
      %1217 = vmatpush2.msra.mxu0 0.0
      %1218 = vmatprep.subr.mxu0 0.0
      %1219 = vmatpush2.msra.mxu0 0.0
      %1220 = vmatprep.subr.mxu0 0.0
      %1221 = vmatpush2.msra.mxu0 0.0
      %1222 = vmatprep.subr.mxu0 0.0
      %1223 = vmatpush2.msra.mxu0 0.0
      %1224 = vmatprep.subr.mxu0 0.0
      %1225 = vmatpush2.msra.mxu0 0.0
      %1226 = vmatprep.subr.mxu0 0.0
      %1227 = vmatpush2.msra.mxu0 0.0
      %1228 = vmatprep.subr.mxu0 0.0
      %1229 = vmatpush2.msra.mxu0 0.0
      %1230 = vmatprep.subr.mxu0 0.0
      %1231 = vmatpush2.msra.mxu0 0.0
      %1232 = vmatprep.mubr.f32.mxu0 0.0
      %1233 = vmatmul.mubr.f32.gmra.mxu0 %v1157
      %v1234 = vpop.f32.mrf.mxu0
      %v1235 = vadd.f32 %v1153, %v1234
      %v1236 = vpop.f32.mrf.mxu0
      %1237 = vmatprep.mubr.f32.mxu0 0.0
      %1238 = vmatmul.mubr.f32.gmra.mxu0 %v1160
      %v1239 = vpop.f32.mrf.mxu0
      %v1240 = vadd.f32 %v1153, %v1239
      %v1241 = vpop.f32.mrf.mxu0
      %1242 = vmatprep.mubr.f32.mxu0 0.0
      %1243 = vmatmul.mubr.f32.gmra.mxu0 %v1163
      %v1244 = vpop.f32.mrf.mxu0
      %v1245 = vadd.f32 %v1153, %v1244
      %v1246 = vpop.f32.mrf.mxu0
      %1247 = vmatprep.mubr.f32.mxu0 0.0
      %1248 = vmatmul.mubr.f32.gmra.mxu0 %v1166
      %v1249 = vpop.f32.mrf.mxu0
      %v1250 = vadd.f32 %v1153, %v1249
      %v1251 = vpop.f32.mrf.mxu0
      %1252 = vdwg.mxu0
      %v1253 = vsel %vm903, inf, %v720
      %v1254 = vsel %vm904, inf, %v721
      %v1255 = vsel %vm905, inf, %v722
      %v1256 = vsel %vm906, inf, %v723
      %v1257 = vsel %vm822, %v1253, inf
      %1258 = vmin.xlane.f32.xlu0 %v1257
      %v1259 = vpop.xlane.xlu0 %1258
      %v1260 = vsel %vm822, %v1254, inf
      %1261 = vmin.xlane.f32.xlu0 %v1260
      %v1262 = vpop.xlane.xlu0 %1261
      %v1263 = vsel %vm822, %v1255, inf
      %1264 = vmin.xlane.f32.xlu0 %v1263
      %v1265 = vpop.xlane.xlu0 %1264
      %v1266 = vsel %vm822, %v1256, inf
      %1267 = vmin.xlane.f32.xlu0 %v1266
      %v1268 = vpop.xlane.xlu0 %1267
      %vm1269 = vcmp.eq.f32.partialorder %v1253, %v1259
      %vm1270 = vcmp.eq.f32.partialorder %v1254, %v1262
      %vm1271 = vcmp.eq.f32.partialorder %v1255, %v1265
      %vm1272 = vcmp.eq.f32.partialorder %v1256, %v1268
      %v1273 = vsel %vm1269, %v524, 32
      %v1274 = vsel %vm1270, %v524, 32
      %v1275 = vsel %vm1271, %v524, 32
      %v1276 = vsel %vm1272, %v524, 32
      %v1277 = vsel %vm822, %v1273, 2147483647
      %v1278 = vand.u32 %v1277, 65535
      %v1279 = vshra.s32 %v1277, 16
      %v1280 = vcvt.s32.f32 %v1278
      %v1281 = vcvt.s32.f32 %v1279
      %1282 = vmin.xlane.f32.xlu0 %v1281
      %v1283 = vpop.xlane.xlu0 %1282
      %vm1284 = vcmp.eq.f32.partialorder %v1281, %v1283
      %v1285 = vsel %vm1284, %v1280, inf
      %1286 = vmin.xlane.f32.xlu0 %v1285
      %v1287 = vpop.xlane.xlu0 %1286
      %v1288 = vcvt.f32.s32 %v1287
      %v1289 = vcvt.f32.s32 %v1283
      %v1290 = vshll.u32 %v1289, 16
      %v1291 = vadd.s32 %v1290, %v1288
      %v1292 = vsel %vm822, %v1274, 2147483647
      %v1293 = vand.u32 %v1292, 65535
      %v1294 = vshra.s32 %v1292, 16
      %v1295 = vcvt.s32.f32 %v1293
      %v1296 = vcvt.s32.f32 %v1294
      %1297 = vmin.xlane.f32.xlu0 %v1296
      %v1298 = vpop.xlane.xlu0 %1297
      %vm1299 = vcmp.eq.f32.partialorder %v1296, %v1298
      %v1300 = vsel %vm1299, %v1295, inf
      %1301 = vmin.xlane.f32.xlu0 %v1300
      %v1302 = vpop.xlane.xlu0 %1301
      %v1303 = vcvt.f32.s32 %v1302
      %v1304 = vcvt.f32.s32 %v1298
      %v1305 = vshll.u32 %v1304, 16
      %v1306 = vadd.s32 %v1305, %v1303
      %v1307 = vsel %vm822, %v1275, 2147483647
      %v1308 = vand.u32 %v1307, 65535
      %v1309 = vshra.s32 %v1307, 16
      %v1310 = vcvt.s32.f32 %v1308
      %v1311 = vcvt.s32.f32 %v1309
      %1312 = vmin.xlane.f32.xlu0 %v1311
      %v1313 = vpop.xlane.xlu0 %1312
      %vm1314 = vcmp.eq.f32.partialorder %v1311, %v1313
      %v1315 = vsel %vm1314, %v1310, inf
      %1316 = vmin.xlane.f32.xlu0 %v1315
      %v1317 = vpop.xlane.xlu0 %1316
      %v1318 = vcvt.f32.s32 %v1317
      %v1319 = vcvt.f32.s32 %v1313
      %v1320 = vshll.u32 %v1319, 16
      %v1321 = vadd.s32 %v1320, %v1318
      %v1322 = vsel %vm822, %v1276, 2147483647
      %v1323 = vand.u32 %v1322, 65535
      %v1324 = vshra.s32 %v1322, 16
      %v1325 = vcvt.s32.f32 %v1323
      %v1326 = vcvt.s32.f32 %v1324
      %1327 = vmin.xlane.f32.xlu0 %v1326
      %v1328 = vpop.xlane.xlu0 %1327
      %vm1329 = vcmp.eq.f32.partialorder %v1326, %v1328
      %v1330 = vsel %vm1329, %v1325, inf
      %1331 = vmin.xlane.f32.xlu0 %v1330
      %v1332 = vpop.xlane.xlu0 %1331
      %v1333 = vcvt.f32.s32 %v1332
      %v1334 = vcvt.f32.s32 %v1328
      %v1335 = vshll.u32 %v1334, 16
      %v1336 = vadd.s32 %v1335, %v1333
      %vm1337 = vcmp.eq.s32.totalorder %v524, %v1291
      %vm1338 = vcmp.eq.s32.totalorder %v524, %v1306
      %vm1339 = vcmp.eq.s32.totalorder %v524, %v1321
      %vm1340 = vcmp.eq.s32.totalorder %v524, %v1336
      %v1341 = vsel %vm1337, 1, 0
      %v1342 = vsel %vm1338, 1, 0
      %v1343 = vsel %vm1339, 1, 0
      %v1344 = vsel %vm1340, 1, 0
      %v1345 = vcvt.s32.f32 %v1341
      %v1346 = vcvt.s32.f32 %v1342
      %v1347 = vcvt.s32.f32 %v1343
      %v1348 = vcvt.s32.f32 %v1344
      %v1350 = vsel %vm822, %v1345, 0
      %v1353 = vsel %vm822, %v1346, 0
      %v1356 = vsel %vm822, %v1347, 0
      %v1359 = vsel %vm822, %v1348, 0
      %1361 = vmatprep.subr.mxu0 0.0
      %1362 = vmatpush1.msra.mxu0 0.0
      %1363 = vmatprep.subr.mxu0 0.0
      %1364 = vmatpush1.msra.mxu0 0.0
      %1365 = vmatprep.subr.mxu0 0.0
      %1366 = vmatpush1.msra.mxu0 0.0
      %1367 = vmatprep.subr.mxu0 0.0
      %1368 = vmatpush1.msra.mxu0 0.0
      %1369 = vmatprep.subr.mxu0 0.0
      %1370 = vmatpush1.msra.mxu0 0.0
      %1371 = vmatprep.subr.mxu0 0.0
      %1372 = vmatpush1.msra.mxu0 0.0
      %1373 = vmatprep.subr.mxu0 0.0
      %1374 = vmatpush1.msra.mxu0 0.0
      %1375 = vmatprep.subr.mxu0 0.0
      %1376 = vmatpush1.msra.mxu0 0.0
      %1377 = vmatprep.subr.mxu0 0.0
      %1378 = vmatpush1.msra.mxu0 0.0
      %1379 = vmatprep.subr.mxu0 0.0
      %1380 = vmatpush1.msra.mxu0 0.0
      %1381 = vmatprep.subr.mxu0 0.0
      %1382 = vmatpush1.msra.mxu0 0.0
      %1383 = vmatprep.subr.mxu0 0.0
      %1384 = vmatpush1.msra.mxu0 0.0
      %1385 = vmatprep.subr.mxu0 0.0
      %1386 = vmatpush1.msra.mxu0 %v520
      %1387 = vmatprep.subr.mxu0 0.0
      %1388 = vmatpush1.msra.mxu0 %v519
      %1389 = vmatprep.subr.mxu0 0.0
      %1390 = vmatpush1.msra.mxu0 %v518
      %1391 = vmatprep.subr.mxu0 0.0
      %1392 = vmatpush1.msra.mxu0 %v517
      %1393 = vmatprep.subr.mxu0 0.0
      %1394 = vmatpush2.msra.mxu0 0.0
      %1395 = vmatprep.subr.mxu0 0.0
      %1396 = vmatpush2.msra.mxu0 0.0
      %1397 = vmatprep.subr.mxu0 0.0
      %1398 = vmatpush2.msra.mxu0 0.0
      %1399 = vmatprep.subr.mxu0 0.0
      %1400 = vmatpush2.msra.mxu0 0.0
      %1401 = vmatprep.subr.mxu0 0.0
      %1402 = vmatpush2.msra.mxu0 0.0
      %1403 = vmatprep.subr.mxu0 0.0
      %1404 = vmatpush2.msra.mxu0 0.0
      %1405 = vmatprep.subr.mxu0 0.0
      %1406 = vmatpush2.msra.mxu0 0.0
      %1407 = vmatprep.subr.mxu0 0.0
      %1408 = vmatpush2.msra.mxu0 0.0
      %1409 = vmatprep.subr.mxu0 0.0
      %1410 = vmatpush2.msra.mxu0 0.0
      %1411 = vmatprep.subr.mxu0 0.0
      %1412 = vmatpush2.msra.mxu0 0.0
      %1413 = vmatprep.subr.mxu0 0.0
      %1414 = vmatpush2.msra.mxu0 0.0
      %1415 = vmatprep.subr.mxu0 0.0
      %1416 = vmatpush2.msra.mxu0 0.0
      %1417 = vmatprep.subr.mxu0 0.0
      %1418 = vmatpush2.msra.mxu0 0.0
      %1419 = vmatprep.subr.mxu0 0.0
      %1420 = vmatpush2.msra.mxu0 0.0
      %1421 = vmatprep.subr.mxu0 0.0
      %1422 = vmatpush2.msra.mxu0 0.0
      %1423 = vmatprep.subr.mxu0 0.0
      %1424 = vmatpush2.msra.mxu0 0.0
      %1425 = vmatprep.mubr.f32.mxu0 0.0
      %1426 = vmatmul.mubr.f32.gmra.mxu0 %v1350
      %v1427 = vpop.f32.mrf.mxu0
      %v1428 = vadd.f32 0.0, %v1427
      %v1429 = vpop.f32.mrf.mxu0
      %1430 = vmatprep.mubr.f32.mxu0 0.0
      %1431 = vmatmul.mubr.f32.gmra.mxu0 %v1353
      %v1432 = vpop.f32.mrf.mxu0
      %v1433 = vadd.f32 0.0, %v1432
      %v1434 = vpop.f32.mrf.mxu0
      %1435 = vmatprep.mubr.f32.mxu0 0.0
      %1436 = vmatmul.mubr.f32.gmra.mxu0 %v1356
      %v1437 = vpop.f32.mrf.mxu0
      %v1438 = vadd.f32 0.0, %v1437
      %v1439 = vpop.f32.mrf.mxu0
      %1440 = vmatprep.mubr.f32.mxu0 0.0
      %1441 = vmatmul.mubr.f32.gmra.mxu0 %v1359
      %v1442 = vpop.f32.mrf.mxu0
      %v1443 = vadd.f32 0.0, %v1442
      %v1444 = vpop.f32.mrf.mxu0
      %1445 = vdwg.mxu0
      %v1446 = vsub.f32 %v1428, %v517
      %v1447 = vsub.f32 %v1433, %v518
      %v1448 = vsub.f32 %v1438, %v519
      %v1449 = vsub.f32 %v1443, %v520
      %v1451 = vsel %vm525, %v1446, 0
      %v1454 = vsel %vm525, %v1447, 0
      %v1457 = vsel %vm525, %v1448, 0
      %v1460 = vsel %vm525, %v1449, 0
      %1462 = vmatprep.subr.mxu0 0.0
      %1463 = vmatpush1.msra.mxu0 0.0
      %1464 = vmatprep.subr.mxu0 0.0
      %1465 = vmatpush1.msra.mxu0 0.0
      %1466 = vmatprep.subr.mxu0 0.0
      %1467 = vmatpush1.msra.mxu0 0.0
      %1468 = vmatprep.subr.mxu0 0.0
      %1469 = vmatpush1.msra.mxu0 0.0
      %1470 = vmatprep.subr.mxu0 0.0
      %1471 = vmatpush1.msra.mxu0 0.0
      %1472 = vmatprep.subr.mxu0 0.0
      %1473 = vmatpush1.msra.mxu0 0.0
      %1474 = vmatprep.subr.mxu0 0.0
      %1475 = vmatpush1.msra.mxu0 0.0
      %1476 = vmatprep.subr.mxu0 0.0
      %1477 = vmatpush1.msra.mxu0 0.0
      %1478 = vmatprep.subr.mxu0 0.0
      %1479 = vmatpush1.msra.mxu0 0.0
      %1480 = vmatprep.subr.mxu0 0.0
      %1481 = vmatpush1.msra.mxu0 0.0
      %1482 = vmatprep.subr.mxu0 0.0
      %1483 = vmatpush1.msra.mxu0 0.0
      %1484 = vmatprep.subr.mxu0 0.0
      %1485 = vmatpush1.msra.mxu0 0.0
      %1486 = vmatprep.subr.mxu0 0.0
      %1487 = vmatpush1.msra.mxu0 0.0
      %1488 = vmatprep.subr.mxu0 0.0
      %1489 = vmatpush1.msra.mxu0 0.0
      %1490 = vmatprep.subr.mxu0 0.0
      %1491 = vmatpush1.msra.mxu0 0.0
      %1492 = vmatprep.subr.mxu0 0.0
      %1493 = vmatpush1.msra.mxu0 %v1029
      %1494 = vmatprep.subr.mxu0 0.0
      %1495 = vmatpush2.msra.mxu0 0.0
      %1496 = vmatprep.subr.mxu0 0.0
      %1497 = vmatpush2.msra.mxu0 0.0
      %1498 = vmatprep.subr.mxu0 0.0
      %1499 = vmatpush2.msra.mxu0 0.0
      %1500 = vmatprep.subr.mxu0 0.0
      %1501 = vmatpush2.msra.mxu0 0.0
      %1502 = vmatprep.subr.mxu0 0.0
      %1503 = vmatpush2.msra.mxu0 0.0
      %1504 = vmatprep.subr.mxu0 0.0
      %1505 = vmatpush2.msra.mxu0 0.0
      %1506 = vmatprep.subr.mxu0 0.0
      %1507 = vmatpush2.msra.mxu0 0.0
      %1508 = vmatprep.subr.mxu0 0.0
      %1509 = vmatpush2.msra.mxu0 0.0
      %1510 = vmatprep.subr.mxu0 0.0
      %1511 = vmatpush2.msra.mxu0 0.0
      %1512 = vmatprep.subr.mxu0 0.0
      %1513 = vmatpush2.msra.mxu0 0.0
      %1514 = vmatprep.subr.mxu0 0.0
      %1515 = vmatpush2.msra.mxu0 0.0
      %1516 = vmatprep.subr.mxu0 0.0
      %1517 = vmatpush2.msra.mxu0 0.0
      %1518 = vmatprep.subr.mxu0 0.0
      %1519 = vmatpush2.msra.mxu0 0.0
      %1520 = vmatprep.subr.mxu0 0.0
      %1521 = vmatpush2.msra.mxu0 0.0
      %1522 = vmatprep.subr.mxu0 0.0
      %1523 = vmatpush2.msra.mxu0 0.0
      %1524 = vmatprep.subr.mxu0 0.0
      %1525 = vmatpush2.msra.mxu0 0.0
      %1526 = vmatprep.mubr.f32.mxu0 0.0
      %1527 = vmatmul.mubr.f32.gmra.mxu0 %v1451
      %v1528 = vpop.f32.mrf.mxu0
      %v1529 = vadd.f32 0.0, %v1528
      %v1530 = vpop.f32.mrf.mxu0
      %1531 = vmatprep.mubr.f32.mxu0 0.0
      %1532 = vmatmul.mubr.f32.gmra.mxu0 %v1454
      %v1533 = vpop.f32.mrf.mxu0
      %v1534 = vadd.f32 0.0, %v1533
      %v1535 = vpop.f32.mrf.mxu0
      %1536 = vmatprep.mubr.f32.mxu0 0.0
      %1537 = vmatmul.mubr.f32.gmra.mxu0 %v1457
      %v1538 = vpop.f32.mrf.mxu0
      %v1539 = vadd.f32 0.0, %v1538
      %v1540 = vpop.f32.mrf.mxu0
      %1541 = vmatprep.mubr.f32.mxu0 0.0
      %1542 = vmatmul.mubr.f32.gmra.mxu0 %v1460
      %v1543 = vpop.f32.mrf.mxu0
      %v1544 = vadd.f32 0.0, %v1543
      %v1545 = vpop.f32.mrf.mxu0
      %1546 = vdwg.mxu0
      %v1547 = vadd.f32 %v804, %v1529
      %v1548 = vadd.f32 %v809, %v1534
      %v1549 = vadd.f32 %v814, %v1539
      %v1550 = vadd.f32 %v819, %v1544
      %v1551 = vmul.f32 %v1547, %v1123
      %v1552 = vmul.f32 %v1548, %v1123
      %v1553 = vmul.f32 %v1549, %v1123
      %v1554 = vmul.f32 %v1550, %v1123
      %v1555 = vadd.f32 %v1551, %v1131
      %v1556 = vadd.f32 %v1552, %v1131
      %v1557 = vadd.f32 %v1553, %v1131
      %v1558 = vadd.f32 %v1554, %v1131
      %v1559 = vmax.f32 %v1555, 0.0
      %v1560 = vmax.f32 %v1556, 0.0
      %v1561 = vmax.f32 %v1557, 0.0
      %v1562 = vmax.f32 %v1558, 0.0
      %v1564 = vsel %vm1155, %v1559, 0
      %v1567 = vsel %vm1155, %v1560, 0
      %v1570 = vsel %vm1155, %v1561, 0
      %v1573 = vsel %vm1155, %v1562, 0
      %1575 = vmatprep.subr.mxu0 0.0
      %1576 = vmatpush1.msra.mxu0 0.0
      %1577 = vmatprep.subr.mxu0 0.0
      %1578 = vmatpush1.msra.mxu0 0.0
      %1579 = vmatprep.subr.mxu0 0.0
      %1580 = vmatpush1.msra.mxu0 0.0
      %1581 = vmatprep.subr.mxu0 0.0
      %1582 = vmatpush1.msra.mxu0 0.0
      %1583 = vmatprep.subr.mxu0 0.0
      %1584 = vmatpush1.msra.mxu0 0.0
      %1585 = vmatprep.subr.mxu0 0.0
      %1586 = vmatpush1.msra.mxu0 0.0
      %1587 = vmatprep.subr.mxu0 0.0
      %1588 = vmatpush1.msra.mxu0 0.0
      %1589 = vmatprep.subr.mxu0 0.0
      %1590 = vmatpush1.msra.mxu0 0.0
      %1591 = vmatprep.subr.mxu0 0.0
      %1592 = vmatpush1.msra.mxu0 %v1147
      %1593 = vmatprep.subr.mxu0 0.0
      %1594 = vmatpush1.msra.mxu0 %v1146
      %1595 = vmatprep.subr.mxu0 0.0
      %1596 = vmatpush1.msra.mxu0 %v1145
      %1597 = vmatprep.subr.mxu0 0.0
      %1598 = vmatpush1.msra.mxu0 %v1144
      %1599 = vmatprep.subr.mxu0 0.0
      %1600 = vmatpush1.msra.mxu0 %v1143
      %1601 = vmatprep.subr.mxu0 0.0
      %1602 = vmatpush1.msra.mxu0 %v1142
      %1603 = vmatprep.subr.mxu0 0.0
      %1604 = vmatpush1.msra.mxu0 %v1141
      %1605 = vmatprep.subr.mxu0 0.0
      %1606 = vmatpush1.msra.mxu0 %v1140
      %1607 = vmatprep.subr.mxu0 0.0
      %1608 = vmatpush2.msra.mxu0 0.0
      %1609 = vmatprep.subr.mxu0 0.0
      %1610 = vmatpush2.msra.mxu0 0.0
      %1611 = vmatprep.subr.mxu0 0.0
      %1612 = vmatpush2.msra.mxu0 0.0
      %1613 = vmatprep.subr.mxu0 0.0
      %1614 = vmatpush2.msra.mxu0 0.0
      %1615 = vmatprep.subr.mxu0 0.0
      %1616 = vmatpush2.msra.mxu0 0.0
      %1617 = vmatprep.subr.mxu0 0.0
      %1618 = vmatpush2.msra.mxu0 0.0
      %1619 = vmatprep.subr.mxu0 0.0
      %1620 = vmatpush2.msra.mxu0 0.0
      %1621 = vmatprep.subr.mxu0 0.0
      %1622 = vmatpush2.msra.mxu0 0.0
      %1623 = vmatprep.subr.mxu0 0.0
      %1624 = vmatpush2.msra.mxu0 0.0
      %1625 = vmatprep.subr.mxu0 0.0
      %1626 = vmatpush2.msra.mxu0 0.0
      %1627 = vmatprep.subr.mxu0 0.0
      %1628 = vmatpush2.msra.mxu0 0.0
      %1629 = vmatprep.subr.mxu0 0.0
      %1630 = vmatpush2.msra.mxu0 0.0
      %1631 = vmatprep.subr.mxu0 0.0
      %1632 = vmatpush2.msra.mxu0 0.0
      %1633 = vmatprep.subr.mxu0 0.0
      %1634 = vmatpush2.msra.mxu0 0.0
      %1635 = vmatprep.subr.mxu0 0.0
      %1636 = vmatpush2.msra.mxu0 0.0
      %1637 = vmatprep.subr.mxu0 0.0
      %1638 = vmatpush2.msra.mxu0 0.0
      %1639 = vmatprep.mubr.f32.mxu0 0.0
      %1640 = vmatmul.mubr.f32.gmra.mxu0 %v1564
      %v1641 = vpop.f32.mrf.mxu0
      %v1642 = vadd.f32 %v1153, %v1641
      %v1643 = vpop.f32.mrf.mxu0
      %1644 = vmatprep.mubr.f32.mxu0 0.0
      %1645 = vmatmul.mubr.f32.gmra.mxu0 %v1567
      %v1646 = vpop.f32.mrf.mxu0
      %v1647 = vadd.f32 %v1153, %v1646
      %v1648 = vpop.f32.mrf.mxu0
      %1649 = vmatprep.mubr.f32.mxu0 0.0
      %1650 = vmatmul.mubr.f32.gmra.mxu0 %v1570
      %v1651 = vpop.f32.mrf.mxu0
      %v1652 = vadd.f32 %v1153, %v1651
      %v1653 = vpop.f32.mrf.mxu0
      %1654 = vmatprep.mubr.f32.mxu0 0.0
      %1655 = vmatmul.mubr.f32.gmra.mxu0 %v1573
      %v1656 = vpop.f32.mrf.mxu0
      %v1657 = vadd.f32 %v1153, %v1656
      %v1658 = vpop.f32.mrf.mxu0
      %1659 = vdwg.mxu0
      %v1660 = vmax.f32 %v1235, %v1642
      %v1661 = vmax.f32 %v1240, %v1647
      %v1662 = vmax.f32 %v1245, %v1652
      %v1663 = vmax.f32 %v1250, %v1657
      %v1664 = vsel %vm1337, inf, %v1253
      %v1665 = vsel %vm1338, inf, %v1254
      %v1666 = vsel %vm1339, inf, %v1255
      %v1667 = vsel %vm1340, inf, %v1256
      %v1668 = vsel %vm822, %v1664, inf
      %1669 = vmin.xlane.f32.xlu0 %v1668
      %v1670 = vpop.xlane.xlu0 %1669
      %v1671 = vsel %vm822, %v1665, inf
      %1672 = vmin.xlane.f32.xlu0 %v1671
      %v1673 = vpop.xlane.xlu0 %1672
      %v1674 = vsel %vm822, %v1666, inf
      %1675 = vmin.xlane.f32.xlu0 %v1674
      %v1676 = vpop.xlane.xlu0 %1675
      %v1677 = vsel %vm822, %v1667, inf
      %1678 = vmin.xlane.f32.xlu0 %v1677
      %v1679 = vpop.xlane.xlu0 %1678
      %vm1680 = vcmp.eq.f32.partialorder %v1664, %v1670
      %vm1681 = vcmp.eq.f32.partialorder %v1665, %v1673
      %vm1682 = vcmp.eq.f32.partialorder %v1666, %v1676
      %vm1683 = vcmp.eq.f32.partialorder %v1667, %v1679
      %v1684 = vsel %vm1680, %v524, 32
      %v1685 = vsel %vm1681, %v524, 32
      %v1686 = vsel %vm1682, %v524, 32
      %v1687 = vsel %vm1683, %v524, 32
      %v1688 = vsel %vm822, %v1684, 2147483647
      %v1689 = vand.u32 %v1688, 65535
      %v1690 = vshra.s32 %v1688, 16
      %v1691 = vcvt.s32.f32 %v1689
      %v1692 = vcvt.s32.f32 %v1690
      %1693 = vmin.xlane.f32.xlu0 %v1692
      %v1694 = vpop.xlane.xlu0 %1693
      %vm1695 = vcmp.eq.f32.partialorder %v1692, %v1694
      %v1696 = vsel %vm1695, %v1691, inf
      %1697 = vmin.xlane.f32.xlu0 %v1696
      %v1698 = vpop.xlane.xlu0 %1697
      %v1699 = vcvt.f32.s32 %v1698
      %v1700 = vcvt.f32.s32 %v1694
      %v1701 = vshll.u32 %v1700, 16
      %v1702 = vadd.s32 %v1701, %v1699
      %v1703 = vsel %vm822, %v1685, 2147483647
      %v1704 = vand.u32 %v1703, 65535
      %v1705 = vshra.s32 %v1703, 16
      %v1706 = vcvt.s32.f32 %v1704
      %v1707 = vcvt.s32.f32 %v1705
      %1708 = vmin.xlane.f32.xlu0 %v1707
      %v1709 = vpop.xlane.xlu0 %1708
      %vm1710 = vcmp.eq.f32.partialorder %v1707, %v1709
      %v1711 = vsel %vm1710, %v1706, inf
      %1712 = vmin.xlane.f32.xlu0 %v1711
      %v1713 = vpop.xlane.xlu0 %1712
      %v1714 = vcvt.f32.s32 %v1713
      %v1715 = vcvt.f32.s32 %v1709
      %v1716 = vshll.u32 %v1715, 16
      %v1717 = vadd.s32 %v1716, %v1714
      %v1718 = vsel %vm822, %v1686, 2147483647
      %v1719 = vand.u32 %v1718, 65535
      %v1720 = vshra.s32 %v1718, 16
      %v1721 = vcvt.s32.f32 %v1719
      %v1722 = vcvt.s32.f32 %v1720
      %1723 = vmin.xlane.f32.xlu0 %v1722
      %v1724 = vpop.xlane.xlu0 %1723
      %vm1725 = vcmp.eq.f32.partialorder %v1722, %v1724
      %v1726 = vsel %vm1725, %v1721, inf
      %1727 = vmin.xlane.f32.xlu0 %v1726
      %v1728 = vpop.xlane.xlu0 %1727
      %v1729 = vcvt.f32.s32 %v1728
      %v1730 = vcvt.f32.s32 %v1724
      %v1731 = vshll.u32 %v1730, 16
      %v1732 = vadd.s32 %v1731, %v1729
      %v1733 = vsel %vm822, %v1687, 2147483647
      %v1734 = vand.u32 %v1733, 65535
      %v1735 = vshra.s32 %v1733, 16
      %v1736 = vcvt.s32.f32 %v1734
      %v1737 = vcvt.s32.f32 %v1735
      %1738 = vmin.xlane.f32.xlu0 %v1737
      %v1739 = vpop.xlane.xlu0 %1738
      %vm1740 = vcmp.eq.f32.partialorder %v1737, %v1739
      %v1741 = vsel %vm1740, %v1736, inf
      %1742 = vmin.xlane.f32.xlu0 %v1741
      %v1743 = vpop.xlane.xlu0 %1742
      %v1744 = vcvt.f32.s32 %v1743
      %v1745 = vcvt.f32.s32 %v1739
      %v1746 = vshll.u32 %v1745, 16
      %v1747 = vadd.s32 %v1746, %v1744
      %vm1748 = vcmp.eq.s32.totalorder %v524, %v1702
      %vm1749 = vcmp.eq.s32.totalorder %v524, %v1717
      %vm1750 = vcmp.eq.s32.totalorder %v524, %v1732
      %vm1751 = vcmp.eq.s32.totalorder %v524, %v1747
      %v1752 = vsel %vm1748, 1, 0
      %v1753 = vsel %vm1749, 1, 0
      %v1754 = vsel %vm1750, 1, 0
      %v1755 = vsel %vm1751, 1, 0
      %v1756 = vcvt.s32.f32 %v1752
      %v1757 = vcvt.s32.f32 %v1753
      %v1758 = vcvt.s32.f32 %v1754
      %v1759 = vcvt.s32.f32 %v1755
      %v1761 = vsel %vm822, %v1756, 0
      %v1764 = vsel %vm822, %v1757, 0
      %v1767 = vsel %vm822, %v1758, 0
      %v1770 = vsel %vm822, %v1759, 0
      %1772 = vmatprep.subr.mxu0 0.0
      %1773 = vmatpush1.msra.mxu0 0.0
      %1774 = vmatprep.subr.mxu0 0.0
      %1775 = vmatpush1.msra.mxu0 0.0
      %1776 = vmatprep.subr.mxu0 0.0
      %1777 = vmatpush1.msra.mxu0 0.0
      %1778 = vmatprep.subr.mxu0 0.0
      %1779 = vmatpush1.msra.mxu0 0.0
      %1780 = vmatprep.subr.mxu0 0.0
      %1781 = vmatpush1.msra.mxu0 0.0
      %1782 = vmatprep.subr.mxu0 0.0
      %1783 = vmatpush1.msra.mxu0 0.0
      %1784 = vmatprep.subr.mxu0 0.0
      %1785 = vmatpush1.msra.mxu0 0.0
      %1786 = vmatprep.subr.mxu0 0.0
      %1787 = vmatpush1.msra.mxu0 0.0
      %1788 = vmatprep.subr.mxu0 0.0
      %1789 = vmatpush1.msra.mxu0 0.0
      %1790 = vmatprep.subr.mxu0 0.0
      %1791 = vmatpush1.msra.mxu0 0.0
      %1792 = vmatprep.subr.mxu0 0.0
      %1793 = vmatpush1.msra.mxu0 0.0
      %1794 = vmatprep.subr.mxu0 0.0
      %1795 = vmatpush1.msra.mxu0 0.0
      %1796 = vmatprep.subr.mxu0 0.0
      %1797 = vmatpush1.msra.mxu0 %v520
      %1798 = vmatprep.subr.mxu0 0.0
      %1799 = vmatpush1.msra.mxu0 %v519
      %1800 = vmatprep.subr.mxu0 0.0
      %1801 = vmatpush1.msra.mxu0 %v518
      %1802 = vmatprep.subr.mxu0 0.0
      %1803 = vmatpush1.msra.mxu0 %v517
      %1804 = vmatprep.subr.mxu0 0.0
      %1805 = vmatpush2.msra.mxu0 0.0
      %1806 = vmatprep.subr.mxu0 0.0
      %1807 = vmatpush2.msra.mxu0 0.0
      %1808 = vmatprep.subr.mxu0 0.0
      %1809 = vmatpush2.msra.mxu0 0.0
      %1810 = vmatprep.subr.mxu0 0.0
      %1811 = vmatpush2.msra.mxu0 0.0
      %1812 = vmatprep.subr.mxu0 0.0
      %1813 = vmatpush2.msra.mxu0 0.0
      %1814 = vmatprep.subr.mxu0 0.0
      %1815 = vmatpush2.msra.mxu0 0.0
      %1816 = vmatprep.subr.mxu0 0.0
      %1817 = vmatpush2.msra.mxu0 0.0
      %1818 = vmatprep.subr.mxu0 0.0
      %1819 = vmatpush2.msra.mxu0 0.0
      %1820 = vmatprep.subr.mxu0 0.0
      %1821 = vmatpush2.msra.mxu0 0.0
      %1822 = vmatprep.subr.mxu0 0.0
      %1823 = vmatpush2.msra.mxu0 0.0
      %1824 = vmatprep.subr.mxu0 0.0
      %1825 = vmatpush2.msra.mxu0 0.0
      %1826 = vmatprep.subr.mxu0 0.0
      %1827 = vmatpush2.msra.mxu0 0.0
      %1828 = vmatprep.subr.mxu0 0.0
      %1829 = vmatpush2.msra.mxu0 0.0
      %1830 = vmatprep.subr.mxu0 0.0
      %1831 = vmatpush2.msra.mxu0 0.0
      %1832 = vmatprep.subr.mxu0 0.0
      %1833 = vmatpush2.msra.mxu0 0.0
      %1834 = vmatprep.subr.mxu0 0.0
      %1835 = vmatpush2.msra.mxu0 0.0
      %1836 = vmatprep.mubr.f32.mxu0 0.0
      %1837 = vmatmul.mubr.f32.gmra.mxu0 %v1761
      %v1838 = vpop.f32.mrf.mxu0
      %v1839 = vadd.f32 0.0, %v1838
      %v1840 = vpop.f32.mrf.mxu0
      %1841 = vmatprep.mubr.f32.mxu0 0.0
      %1842 = vmatmul.mubr.f32.gmra.mxu0 %v1764
      %v1843 = vpop.f32.mrf.mxu0
      %v1844 = vadd.f32 0.0, %v1843
      %v1845 = vpop.f32.mrf.mxu0
      %1846 = vmatprep.mubr.f32.mxu0 0.0
      %1847 = vmatmul.mubr.f32.gmra.mxu0 %v1767
      %v1848 = vpop.f32.mrf.mxu0
      %v1849 = vadd.f32 0.0, %v1848
      %v1850 = vpop.f32.mrf.mxu0
      %1851 = vmatprep.mubr.f32.mxu0 0.0
      %1852 = vmatmul.mubr.f32.gmra.mxu0 %v1770
      %v1853 = vpop.f32.mrf.mxu0
      %v1854 = vadd.f32 0.0, %v1853
      %v1855 = vpop.f32.mrf.mxu0
      %1856 = vdwg.mxu0
      %v1857 = vsub.f32 %v1839, %v517
      %v1858 = vsub.f32 %v1844, %v518
      %v1859 = vsub.f32 %v1849, %v519
      %v1860 = vsub.f32 %v1854, %v520
      %v1862 = vsel %vm525, %v1857, 0
      %v1865 = vsel %vm525, %v1858, 0
      %v1868 = vsel %vm525, %v1859, 0
      %v1871 = vsel %vm525, %v1860, 0
      %1873 = vmatprep.subr.mxu0 0.0
      %1874 = vmatpush1.msra.mxu0 0.0
      %1875 = vmatprep.subr.mxu0 0.0
      %1876 = vmatpush1.msra.mxu0 0.0
      %1877 = vmatprep.subr.mxu0 0.0
      %1878 = vmatpush1.msra.mxu0 0.0
      %1879 = vmatprep.subr.mxu0 0.0
      %1880 = vmatpush1.msra.mxu0 0.0
      %1881 = vmatprep.subr.mxu0 0.0
      %1882 = vmatpush1.msra.mxu0 0.0
      %1883 = vmatprep.subr.mxu0 0.0
      %1884 = vmatpush1.msra.mxu0 0.0
      %1885 = vmatprep.subr.mxu0 0.0
      %1886 = vmatpush1.msra.mxu0 0.0
      %1887 = vmatprep.subr.mxu0 0.0
      %1888 = vmatpush1.msra.mxu0 0.0
      %1889 = vmatprep.subr.mxu0 0.0
      %1890 = vmatpush1.msra.mxu0 0.0
      %1891 = vmatprep.subr.mxu0 0.0
      %1892 = vmatpush1.msra.mxu0 0.0
      %1893 = vmatprep.subr.mxu0 0.0
      %1894 = vmatpush1.msra.mxu0 0.0
      %1895 = vmatprep.subr.mxu0 0.0
      %1896 = vmatpush1.msra.mxu0 0.0
      %1897 = vmatprep.subr.mxu0 0.0
      %1898 = vmatpush1.msra.mxu0 0.0
      %1899 = vmatprep.subr.mxu0 0.0
      %1900 = vmatpush1.msra.mxu0 0.0
      %1901 = vmatprep.subr.mxu0 0.0
      %1902 = vmatpush1.msra.mxu0 0.0
      %1903 = vmatprep.subr.mxu0 0.0
      %1904 = vmatpush1.msra.mxu0 %v1029
      %1905 = vmatprep.subr.mxu0 0.0
      %1906 = vmatpush2.msra.mxu0 0.0
      %1907 = vmatprep.subr.mxu0 0.0
      %1908 = vmatpush2.msra.mxu0 0.0
      %1909 = vmatprep.subr.mxu0 0.0
      %1910 = vmatpush2.msra.mxu0 0.0
      %1911 = vmatprep.subr.mxu0 0.0
      %1912 = vmatpush2.msra.mxu0 0.0
      %1913 = vmatprep.subr.mxu0 0.0
      %1914 = vmatpush2.msra.mxu0 0.0
      %1915 = vmatprep.subr.mxu0 0.0
      %1916 = vmatpush2.msra.mxu0 0.0
      %1917 = vmatprep.subr.mxu0 0.0
      %1918 = vmatpush2.msra.mxu0 0.0
      %1919 = vmatprep.subr.mxu0 0.0
      %1920 = vmatpush2.msra.mxu0 0.0
      %1921 = vmatprep.subr.mxu0 0.0
      %1922 = vmatpush2.msra.mxu0 0.0
      %1923 = vmatprep.subr.mxu0 0.0
      %1924 = vmatpush2.msra.mxu0 0.0
      %1925 = vmatprep.subr.mxu0 0.0
      %1926 = vmatpush2.msra.mxu0 0.0
      %1927 = vmatprep.subr.mxu0 0.0
      %1928 = vmatpush2.msra.mxu0 0.0
      %1929 = vmatprep.subr.mxu0 0.0
      %1930 = vmatpush2.msra.mxu0 0.0
      %1931 = vmatprep.subr.mxu0 0.0
      %1932 = vmatpush2.msra.mxu0 0.0
      %1933 = vmatprep.subr.mxu0 0.0
      %1934 = vmatpush2.msra.mxu0 0.0
      %1935 = vmatprep.subr.mxu0 0.0
      %1936 = vmatpush2.msra.mxu0 0.0
      %1937 = vmatprep.mubr.f32.mxu0 0.0
      %1938 = vmatmul.mubr.f32.gmra.mxu0 %v1862
      %v1939 = vpop.f32.mrf.mxu0
      %v1940 = vadd.f32 0.0, %v1939
      %v1941 = vpop.f32.mrf.mxu0
      %1942 = vmatprep.mubr.f32.mxu0 0.0
      %1943 = vmatmul.mubr.f32.gmra.mxu0 %v1865
      %v1944 = vpop.f32.mrf.mxu0
      %v1945 = vadd.f32 0.0, %v1944
      %v1946 = vpop.f32.mrf.mxu0
      %1947 = vmatprep.mubr.f32.mxu0 0.0
      %1948 = vmatmul.mubr.f32.gmra.mxu0 %v1868
      %v1949 = vpop.f32.mrf.mxu0
      %v1950 = vadd.f32 0.0, %v1949
      %v1951 = vpop.f32.mrf.mxu0
      %1952 = vmatprep.mubr.f32.mxu0 0.0
      %1953 = vmatmul.mubr.f32.gmra.mxu0 %v1871
      %v1954 = vpop.f32.mrf.mxu0
      %v1955 = vadd.f32 0.0, %v1954
      %v1956 = vpop.f32.mrf.mxu0
      %1957 = vdwg.mxu0
      %v1958 = vadd.f32 %v804, %v1940
      %v1959 = vadd.f32 %v809, %v1945
      %v1960 = vadd.f32 %v814, %v1950
      %v1961 = vadd.f32 %v819, %v1955
      %v1962 = vmul.f32 %v1958, %v1123
      %v1963 = vmul.f32 %v1959, %v1123
      %v1964 = vmul.f32 %v1960, %v1123
      %v1965 = vmul.f32 %v1961, %v1123
      %v1966 = vadd.f32 %v1962, %v1131
      %v1967 = vadd.f32 %v1963, %v1131
      %v1968 = vadd.f32 %v1964, %v1131
      %v1969 = vadd.f32 %v1965, %v1131
      %v1970 = vmax.f32 %v1966, 0.0
      %v1971 = vmax.f32 %v1967, 0.0
      %v1972 = vmax.f32 %v1968, 0.0
      %v1973 = vmax.f32 %v1969, 0.0
      %v1975 = vsel %vm1155, %v1970, 0
      %v1978 = vsel %vm1155, %v1971, 0
      %v1981 = vsel %vm1155, %v1972, 0
      %v1984 = vsel %vm1155, %v1973, 0
      %1986 = vmatprep.subr.mxu0 0.0
      %1987 = vmatpush1.msra.mxu0 0.0
      %1988 = vmatprep.subr.mxu0 0.0
      %1989 = vmatpush1.msra.mxu0 0.0
      %1990 = vmatprep.subr.mxu0 0.0
      %1991 = vmatpush1.msra.mxu0 0.0
      %1992 = vmatprep.subr.mxu0 0.0
      %1993 = vmatpush1.msra.mxu0 0.0
      %1994 = vmatprep.subr.mxu0 0.0
      %1995 = vmatpush1.msra.mxu0 0.0
      %1996 = vmatprep.subr.mxu0 0.0
      %1997 = vmatpush1.msra.mxu0 0.0
      %1998 = vmatprep.subr.mxu0 0.0
      %1999 = vmatpush1.msra.mxu0 0.0
      %2000 = vmatprep.subr.mxu0 0.0
      %2001 = vmatpush1.msra.mxu0 0.0
      %2002 = vmatprep.subr.mxu0 0.0
      %2003 = vmatpush1.msra.mxu0 %v1147
      %2004 = vmatprep.subr.mxu0 0.0
      %2005 = vmatpush1.msra.mxu0 %v1146
      %2006 = vmatprep.subr.mxu0 0.0
      %2007 = vmatpush1.msra.mxu0 %v1145
      %2008 = vmatprep.subr.mxu0 0.0
      %2009 = vmatpush1.msra.mxu0 %v1144
      %2010 = vmatprep.subr.mxu0 0.0
      %2011 = vmatpush1.msra.mxu0 %v1143
      %2012 = vmatprep.subr.mxu0 0.0
      %2013 = vmatpush1.msra.mxu0 %v1142
      %2014 = vmatprep.subr.mxu0 0.0
      %2015 = vmatpush1.msra.mxu0 %v1141
      %2016 = vmatprep.subr.mxu0 0.0
      %2017 = vmatpush1.msra.mxu0 %v1140
      %2018 = vmatprep.subr.mxu0 0.0
      %2019 = vmatpush2.msra.mxu0 0.0
      %2020 = vmatprep.subr.mxu0 0.0
      %2021 = vmatpush2.msra.mxu0 0.0
      %2022 = vmatprep.subr.mxu0 0.0
      %2023 = vmatpush2.msra.mxu0 0.0
      %2024 = vmatprep.subr.mxu0 0.0
      %2025 = vmatpush2.msra.mxu0 0.0
      %2026 = vmatprep.subr.mxu0 0.0
      %2027 = vmatpush2.msra.mxu0 0.0
      %2028 = vmatprep.subr.mxu0 0.0
      %2029 = vmatpush2.msra.mxu0 0.0
      %2030 = vmatprep.subr.mxu0 0.0
      %2031 = vmatpush2.msra.mxu0 0.0
      %2032 = vmatprep.subr.mxu0 0.0
      %2033 = vmatpush2.msra.mxu0 0.0
      %2034 = vmatprep.subr.mxu0 0.0
      %2035 = vmatpush2.msra.mxu0 0.0
      %2036 = vmatprep.subr.mxu0 0.0
      %2037 = vmatpush2.msra.mxu0 0.0
      %2038 = vmatprep.subr.mxu0 0.0
      %2039 = vmatpush2.msra.mxu0 0.0
      %2040 = vmatprep.subr.mxu0 0.0
      %2041 = vmatpush2.msra.mxu0 0.0
      %2042 = vmatprep.subr.mxu0 0.0
      %2043 = vmatpush2.msra.mxu0 0.0
      %2044 = vmatprep.subr.mxu0 0.0
      %2045 = vmatpush2.msra.mxu0 0.0
      %2046 = vmatprep.subr.mxu0 0.0
      %2047 = vmatpush2.msra.mxu0 0.0
      %2048 = vmatprep.subr.mxu0 0.0
      %2049 = vmatpush2.msra.mxu0 0.0
      %2050 = vmatprep.mubr.f32.mxu0 0.0
      %2051 = vmatmul.mubr.f32.gmra.mxu0 %v1975
      %v2052 = vpop.f32.mrf.mxu0
      %v2053 = vadd.f32 %v1153, %v2052
      %v2054 = vpop.f32.mrf.mxu0
      %2055 = vmatprep.mubr.f32.mxu0 0.0
      %2056 = vmatmul.mubr.f32.gmra.mxu0 %v1978
      %v2057 = vpop.f32.mrf.mxu0
      %v2058 = vadd.f32 %v1153, %v2057
      %v2059 = vpop.f32.mrf.mxu0
      %2060 = vmatprep.mubr.f32.mxu0 0.0
      %2061 = vmatmul.mubr.f32.gmra.mxu0 %v1981
      %v2062 = vpop.f32.mrf.mxu0
      %v2063 = vadd.f32 %v1153, %v2062
      %v2064 = vpop.f32.mrf.mxu0
      %2065 = vmatprep.mubr.f32.mxu0 0.0
      %2066 = vmatmul.mubr.f32.gmra.mxu0 %v1984
      %v2067 = vpop.f32.mrf.mxu0
      %v2068 = vadd.f32 %v1153, %v2067
      %v2069 = vpop.f32.mrf.mxu0
      %2070 = vdwg.mxu0
      %v2071 = vmax.f32 %v1660, %v2053
      %v2072 = vmax.f32 %v1661, %v2058
      %v2073 = vmax.f32 %v1662, %v2063
      %v2074 = vmax.f32 %v1663, %v2068
      %v2075 = vsel %vm1748, inf, %v1664
      %v2076 = vsel %vm1749, inf, %v1665
      %v2077 = vsel %vm1750, inf, %v1666
      %v2078 = vsel %vm1751, inf, %v1667
      %v2079 = vsel %vm822, %v2075, inf
      %2080 = vmin.xlane.f32.xlu0 %v2079
      %v2081 = vpop.xlane.xlu0 %2080
      %v2082 = vsel %vm822, %v2076, inf
      %2083 = vmin.xlane.f32.xlu0 %v2082
      %v2084 = vpop.xlane.xlu0 %2083
      %v2085 = vsel %vm822, %v2077, inf
      %2086 = vmin.xlane.f32.xlu0 %v2085
      %v2087 = vpop.xlane.xlu0 %2086
      %v2088 = vsel %vm822, %v2078, inf
      %2089 = vmin.xlane.f32.xlu0 %v2088
      %v2090 = vpop.xlane.xlu0 %2089
      %vm2091 = vcmp.eq.f32.partialorder %v2075, %v2081
      %vm2092 = vcmp.eq.f32.partialorder %v2076, %v2084
      %vm2093 = vcmp.eq.f32.partialorder %v2077, %v2087
      %vm2094 = vcmp.eq.f32.partialorder %v2078, %v2090
      %v2095 = vsel %vm2091, %v524, 32
      %v2096 = vsel %vm2092, %v524, 32
      %v2097 = vsel %vm2093, %v524, 32
      %v2098 = vsel %vm2094, %v524, 32
      %v2099 = vsel %vm822, %v2095, 2147483647
      %v2100 = vand.u32 %v2099, 65535
      %v2101 = vshra.s32 %v2099, 16
      %v2102 = vcvt.s32.f32 %v2100
      %v2103 = vcvt.s32.f32 %v2101
      %2104 = vmin.xlane.f32.xlu0 %v2103
      %v2105 = vpop.xlane.xlu0 %2104
      %vm2106 = vcmp.eq.f32.partialorder %v2103, %v2105
      %v2107 = vsel %vm2106, %v2102, inf
      %2108 = vmin.xlane.f32.xlu0 %v2107
      %v2109 = vpop.xlane.xlu0 %2108
      %v2110 = vcvt.f32.s32 %v2109
      %v2111 = vcvt.f32.s32 %v2105
      %v2112 = vshll.u32 %v2111, 16
      %v2113 = vadd.s32 %v2112, %v2110
      %v2114 = vsel %vm822, %v2096, 2147483647
      %v2115 = vand.u32 %v2114, 65535
      %v2116 = vshra.s32 %v2114, 16
      %v2117 = vcvt.s32.f32 %v2115
      %v2118 = vcvt.s32.f32 %v2116
      %2119 = vmin.xlane.f32.xlu0 %v2118
      %v2120 = vpop.xlane.xlu0 %2119
      %vm2121 = vcmp.eq.f32.partialorder %v2118, %v2120
      %v2122 = vsel %vm2121, %v2117, inf
      %2123 = vmin.xlane.f32.xlu0 %v2122
      %v2124 = vpop.xlane.xlu0 %2123
      %v2125 = vcvt.f32.s32 %v2124
      %v2126 = vcvt.f32.s32 %v2120
      %v2127 = vshll.u32 %v2126, 16
      %v2128 = vadd.s32 %v2127, %v2125
      %v2129 = vsel %vm822, %v2097, 2147483647
      %v2130 = vand.u32 %v2129, 65535
      %v2131 = vshra.s32 %v2129, 16
      %v2132 = vcvt.s32.f32 %v2130
      %v2133 = vcvt.s32.f32 %v2131
      %2134 = vmin.xlane.f32.xlu0 %v2133
      %v2135 = vpop.xlane.xlu0 %2134
      %vm2136 = vcmp.eq.f32.partialorder %v2133, %v2135
      %v2137 = vsel %vm2136, %v2132, inf
      %2138 = vmin.xlane.f32.xlu0 %v2137
      %v2139 = vpop.xlane.xlu0 %2138
      %v2140 = vcvt.f32.s32 %v2139
      %v2141 = vcvt.f32.s32 %v2135
      %v2142 = vshll.u32 %v2141, 16
      %v2143 = vadd.s32 %v2142, %v2140
      %v2144 = vsel %vm822, %v2098, 2147483647
      %v2145 = vand.u32 %v2144, 65535
      %v2146 = vshra.s32 %v2144, 16
      %v2147 = vcvt.s32.f32 %v2145
      %v2148 = vcvt.s32.f32 %v2146
      %2149 = vmin.xlane.f32.xlu0 %v2148
      %v2150 = vpop.xlane.xlu0 %2149
      %vm2151 = vcmp.eq.f32.partialorder %v2148, %v2150
      %v2152 = vsel %vm2151, %v2147, inf
      %2153 = vmin.xlane.f32.xlu0 %v2152
      %v2154 = vpop.xlane.xlu0 %2153
      %v2155 = vcvt.f32.s32 %v2154
      %v2156 = vcvt.f32.s32 %v2150
      %v2157 = vshll.u32 %v2156, 16
      %v2158 = vadd.s32 %v2157, %v2155
      %vm2159 = vcmp.eq.s32.totalorder %v524, %v2113
      %vm2160 = vcmp.eq.s32.totalorder %v524, %v2128
      %vm2161 = vcmp.eq.s32.totalorder %v524, %v2143
      %vm2162 = vcmp.eq.s32.totalorder %v524, %v2158
      %v2163 = vsel %vm2159, 1, 0
      %v2164 = vsel %vm2160, 1, 0
      %v2165 = vsel %vm2161, 1, 0
      %v2166 = vsel %vm2162, 1, 0
      %v2167 = vcvt.s32.f32 %v2163
      %v2168 = vcvt.s32.f32 %v2164
      %v2169 = vcvt.s32.f32 %v2165
      %v2170 = vcvt.s32.f32 %v2166
      %v2172 = vsel %vm822, %v2167, 0
      %v2175 = vsel %vm822, %v2168, 0
      %v2178 = vsel %vm822, %v2169, 0
      %v2181 = vsel %vm822, %v2170, 0
      %2183 = vmatprep.subr.mxu0 0.0
      %2184 = vmatpush1.msra.mxu0 0.0
      %2185 = vmatprep.subr.mxu0 0.0
      %2186 = vmatpush1.msra.mxu0 0.0
      %2187 = vmatprep.subr.mxu0 0.0
      %2188 = vmatpush1.msra.mxu0 0.0
      %2189 = vmatprep.subr.mxu0 0.0
      %2190 = vmatpush1.msra.mxu0 0.0
      %2191 = vmatprep.subr.mxu0 0.0
      %2192 = vmatpush1.msra.mxu0 0.0
      %2193 = vmatprep.subr.mxu0 0.0
      %2194 = vmatpush1.msra.mxu0 0.0
      %2195 = vmatprep.subr.mxu0 0.0
      %2196 = vmatpush1.msra.mxu0 0.0
      %2197 = vmatprep.subr.mxu0 0.0
      %2198 = vmatpush1.msra.mxu0 0.0
      %2199 = vmatprep.subr.mxu0 0.0
      %2200 = vmatpush1.msra.mxu0 0.0
      %2201 = vmatprep.subr.mxu0 0.0
      %2202 = vmatpush1.msra.mxu0 0.0
      %2203 = vmatprep.subr.mxu0 0.0
      %2204 = vmatpush1.msra.mxu0 0.0
      %2205 = vmatprep.subr.mxu0 0.0
      %2206 = vmatpush1.msra.mxu0 0.0
      %2207 = vmatprep.subr.mxu0 0.0
      %2208 = vmatpush1.msra.mxu0 %v520
      %2209 = vmatprep.subr.mxu0 0.0
      %2210 = vmatpush1.msra.mxu0 %v519
      %2211 = vmatprep.subr.mxu0 0.0
      %2212 = vmatpush1.msra.mxu0 %v518
      %2213 = vmatprep.subr.mxu0 0.0
      %2214 = vmatpush1.msra.mxu0 %v517
      %2215 = vmatprep.subr.mxu0 0.0
      %2216 = vmatpush2.msra.mxu0 0.0
      %2217 = vmatprep.subr.mxu0 0.0
      %2218 = vmatpush2.msra.mxu0 0.0
      %2219 = vmatprep.subr.mxu0 0.0
      %2220 = vmatpush2.msra.mxu0 0.0
      %2221 = vmatprep.subr.mxu0 0.0
      %2222 = vmatpush2.msra.mxu0 0.0
      %2223 = vmatprep.subr.mxu0 0.0
      %2224 = vmatpush2.msra.mxu0 0.0
      %2225 = vmatprep.subr.mxu0 0.0
      %2226 = vmatpush2.msra.mxu0 0.0
      %2227 = vmatprep.subr.mxu0 0.0
      %2228 = vmatpush2.msra.mxu0 0.0
      %2229 = vmatprep.subr.mxu0 0.0
      %2230 = vmatpush2.msra.mxu0 0.0
      %2231 = vmatprep.subr.mxu0 0.0
      %2232 = vmatpush2.msra.mxu0 0.0
      %2233 = vmatprep.subr.mxu0 0.0
      %2234 = vmatpush2.msra.mxu0 0.0
      %2235 = vmatprep.subr.mxu0 0.0
      %2236 = vmatpush2.msra.mxu0 0.0
      %2237 = vmatprep.subr.mxu0 0.0
      %2238 = vmatpush2.msra.mxu0 0.0
      %2239 = vmatprep.subr.mxu0 0.0
      %2240 = vmatpush2.msra.mxu0 0.0
      %2241 = vmatprep.subr.mxu0 0.0
      %2242 = vmatpush2.msra.mxu0 0.0
      %2243 = vmatprep.subr.mxu0 0.0
      %2244 = vmatpush2.msra.mxu0 0.0
      %2245 = vmatprep.subr.mxu0 0.0
      %2246 = vmatpush2.msra.mxu0 0.0
      %2247 = vmatprep.mubr.f32.mxu0 0.0
      %2248 = vmatmul.mubr.f32.gmra.mxu0 %v2172
      %v2249 = vpop.f32.mrf.mxu0
      %v2250 = vadd.f32 0.0, %v2249
      %v2251 = vpop.f32.mrf.mxu0
      %2252 = vmatprep.mubr.f32.mxu0 0.0
      %2253 = vmatmul.mubr.f32.gmra.mxu0 %v2175
      %v2254 = vpop.f32.mrf.mxu0
      %v2255 = vadd.f32 0.0, %v2254
      %v2256 = vpop.f32.mrf.mxu0
      %2257 = vmatprep.mubr.f32.mxu0 0.0
      %2258 = vmatmul.mubr.f32.gmra.mxu0 %v2178
      %v2259 = vpop.f32.mrf.mxu0
      %v2260 = vadd.f32 0.0, %v2259
      %v2261 = vpop.f32.mrf.mxu0
      %2262 = vmatprep.mubr.f32.mxu0 0.0
      %2263 = vmatmul.mubr.f32.gmra.mxu0 %v2181
      %v2264 = vpop.f32.mrf.mxu0
      %v2265 = vadd.f32 0.0, %v2264
      %v2266 = vpop.f32.mrf.mxu0
      %2267 = vdwg.mxu0
      %v2268 = vsub.f32 %v2250, %v517
      %v2269 = vsub.f32 %v2255, %v518
      %v2270 = vsub.f32 %v2260, %v519
      %v2271 = vsub.f32 %v2265, %v520
      %v2273 = vsel %vm525, %v2268, 0
      %v2276 = vsel %vm525, %v2269, 0
      %v2279 = vsel %vm525, %v2270, 0
      %v2282 = vsel %vm525, %v2271, 0
      %2284 = vmatprep.subr.mxu0 0.0
      %2285 = vmatpush1.msra.mxu0 0.0
      %2286 = vmatprep.subr.mxu0 0.0
      %2287 = vmatpush1.msra.mxu0 0.0
      %2288 = vmatprep.subr.mxu0 0.0
      %2289 = vmatpush1.msra.mxu0 0.0
      %2290 = vmatprep.subr.mxu0 0.0
      %2291 = vmatpush1.msra.mxu0 0.0
      %2292 = vmatprep.subr.mxu0 0.0
      %2293 = vmatpush1.msra.mxu0 0.0
      %2294 = vmatprep.subr.mxu0 0.0
      %2295 = vmatpush1.msra.mxu0 0.0
      %2296 = vmatprep.subr.mxu0 0.0
      %2297 = vmatpush1.msra.mxu0 0.0
      %2298 = vmatprep.subr.mxu0 0.0
      %2299 = vmatpush1.msra.mxu0 0.0
      %2300 = vmatprep.subr.mxu0 0.0
      %2301 = vmatpush1.msra.mxu0 0.0
      %2302 = vmatprep.subr.mxu0 0.0
      %2303 = vmatpush1.msra.mxu0 0.0
      %2304 = vmatprep.subr.mxu0 0.0
      %2305 = vmatpush1.msra.mxu0 0.0
      %2306 = vmatprep.subr.mxu0 0.0
      %2307 = vmatpush1.msra.mxu0 0.0
      %2308 = vmatprep.subr.mxu0 0.0
      %2309 = vmatpush1.msra.mxu0 0.0
      %2310 = vmatprep.subr.mxu0 0.0
      %2311 = vmatpush1.msra.mxu0 0.0
      %2312 = vmatprep.subr.mxu0 0.0
      %2313 = vmatpush1.msra.mxu0 0.0
      %2314 = vmatprep.subr.mxu0 0.0
      %2315 = vmatpush1.msra.mxu0 %v1029
      %2316 = vmatprep.subr.mxu0 0.0
      %2317 = vmatpush2.msra.mxu0 0.0
      %2318 = vmatprep.subr.mxu0 0.0
      %2319 = vmatpush2.msra.mxu0 0.0
      %2320 = vmatprep.subr.mxu0 0.0
      %2321 = vmatpush2.msra.mxu0 0.0
      %2322 = vmatprep.subr.mxu0 0.0
      %2323 = vmatpush2.msra.mxu0 0.0
      %2324 = vmatprep.subr.mxu0 0.0
      %2325 = vmatpush2.msra.mxu0 0.0
      %2326 = vmatprep.subr.mxu0 0.0
      %2327 = vmatpush2.msra.mxu0 0.0
      %2328 = vmatprep.subr.mxu0 0.0
      %2329 = vmatpush2.msra.mxu0 0.0
      %2330 = vmatprep.subr.mxu0 0.0
      %2331 = vmatpush2.msra.mxu0 0.0
      %2332 = vmatprep.subr.mxu0 0.0
      %2333 = vmatpush2.msra.mxu0 0.0
      %2334 = vmatprep.subr.mxu0 0.0
      %2335 = vmatpush2.msra.mxu0 0.0
      %2336 = vmatprep.subr.mxu0 0.0
      %2337 = vmatpush2.msra.mxu0 0.0
      %2338 = vmatprep.subr.mxu0 0.0
      %2339 = vmatpush2.msra.mxu0 0.0
      %2340 = vmatprep.subr.mxu0 0.0
      %2341 = vmatpush2.msra.mxu0 0.0
      %2342 = vmatprep.subr.mxu0 0.0
      %2343 = vmatpush2.msra.mxu0 0.0
      %2344 = vmatprep.subr.mxu0 0.0
      %2345 = vmatpush2.msra.mxu0 0.0
      %2346 = vmatprep.subr.mxu0 0.0
      %2347 = vmatpush2.msra.mxu0 0.0
      %2348 = vmatprep.mubr.f32.mxu0 0.0
      %2349 = vmatmul.mubr.f32.gmra.mxu0 %v2273
      %v2350 = vpop.f32.mrf.mxu0
      %v2351 = vadd.f32 0.0, %v2350
      %v2352 = vpop.f32.mrf.mxu0
      %2353 = vmatprep.mubr.f32.mxu0 0.0
      %2354 = vmatmul.mubr.f32.gmra.mxu0 %v2276
      %v2355 = vpop.f32.mrf.mxu0
      %v2356 = vadd.f32 0.0, %v2355
      %v2357 = vpop.f32.mrf.mxu0
      %2358 = vmatprep.mubr.f32.mxu0 0.0
      %2359 = vmatmul.mubr.f32.gmra.mxu0 %v2279
      %v2360 = vpop.f32.mrf.mxu0
      %v2361 = vadd.f32 0.0, %v2360
      %v2362 = vpop.f32.mrf.mxu0
      %2363 = vmatprep.mubr.f32.mxu0 0.0
      %2364 = vmatmul.mubr.f32.gmra.mxu0 %v2282
      %v2365 = vpop.f32.mrf.mxu0
      %v2366 = vadd.f32 0.0, %v2365
      %v2367 = vpop.f32.mrf.mxu0
      %2368 = vdwg.mxu0
      %v2369 = vadd.f32 %v804, %v2351
      %v2370 = vadd.f32 %v809, %v2356
      %v2371 = vadd.f32 %v814, %v2361
      %v2372 = vadd.f32 %v819, %v2366
      %v2373 = vmul.f32 %v2369, %v1123
      %v2374 = vmul.f32 %v2370, %v1123
      %v2375 = vmul.f32 %v2371, %v1123
      %v2376 = vmul.f32 %v2372, %v1123
      %v2377 = vadd.f32 %v2373, %v1131
      %v2378 = vadd.f32 %v2374, %v1131
      %v2379 = vadd.f32 %v2375, %v1131
      %v2380 = vadd.f32 %v2376, %v1131
      %v2381 = vmax.f32 %v2377, 0.0
      %v2382 = vmax.f32 %v2378, 0.0
      %v2383 = vmax.f32 %v2379, 0.0
      %v2384 = vmax.f32 %v2380, 0.0
      %v2386 = vsel %vm1155, %v2381, 0
      %v2389 = vsel %vm1155, %v2382, 0
      %v2392 = vsel %vm1155, %v2383, 0
      %v2395 = vsel %vm1155, %v2384, 0
      %2397 = vmatprep.subr.mxu0 0.0
      %2398 = vmatpush1.msra.mxu0 0.0
      %2399 = vmatprep.subr.mxu0 0.0
      %2400 = vmatpush1.msra.mxu0 0.0
      %2401 = vmatprep.subr.mxu0 0.0
      %2402 = vmatpush1.msra.mxu0 0.0
      %2403 = vmatprep.subr.mxu0 0.0
      %2404 = vmatpush1.msra.mxu0 0.0
      %2405 = vmatprep.subr.mxu0 0.0
      %2406 = vmatpush1.msra.mxu0 0.0
      %2407 = vmatprep.subr.mxu0 0.0
      %2408 = vmatpush1.msra.mxu0 0.0
      %2409 = vmatprep.subr.mxu0 0.0
      %2410 = vmatpush1.msra.mxu0 0.0
      %2411 = vmatprep.subr.mxu0 0.0
      %2412 = vmatpush1.msra.mxu0 0.0
      %2413 = vmatprep.subr.mxu0 0.0
      %2414 = vmatpush1.msra.mxu0 %v1147
      %2415 = vmatprep.subr.mxu0 0.0
      %2416 = vmatpush1.msra.mxu0 %v1146
      %2417 = vmatprep.subr.mxu0 0.0
      %2418 = vmatpush1.msra.mxu0 %v1145
      %2419 = vmatprep.subr.mxu0 0.0
      %2420 = vmatpush1.msra.mxu0 %v1144
      %2421 = vmatprep.subr.mxu0 0.0
      %2422 = vmatpush1.msra.mxu0 %v1143
      %2423 = vmatprep.subr.mxu0 0.0
      %2424 = vmatpush1.msra.mxu0 %v1142
      %2425 = vmatprep.subr.mxu0 0.0
      %2426 = vmatpush1.msra.mxu0 %v1141
      %2427 = vmatprep.subr.mxu0 0.0
      %2428 = vmatpush1.msra.mxu0 %v1140
      %2429 = vmatprep.subr.mxu0 0.0
      %2430 = vmatpush2.msra.mxu0 0.0
      %2431 = vmatprep.subr.mxu0 0.0
      %2432 = vmatpush2.msra.mxu0 0.0
      %2433 = vmatprep.subr.mxu0 0.0
      %2434 = vmatpush2.msra.mxu0 0.0
      %2435 = vmatprep.subr.mxu0 0.0
      %2436 = vmatpush2.msra.mxu0 0.0
      %2437 = vmatprep.subr.mxu0 0.0
      %2438 = vmatpush2.msra.mxu0 0.0
      %2439 = vmatprep.subr.mxu0 0.0
      %2440 = vmatpush2.msra.mxu0 0.0
      %2441 = vmatprep.subr.mxu0 0.0
      %2442 = vmatpush2.msra.mxu0 0.0
      %2443 = vmatprep.subr.mxu0 0.0
      %2444 = vmatpush2.msra.mxu0 0.0
      %2445 = vmatprep.subr.mxu0 0.0
      %2446 = vmatpush2.msra.mxu0 0.0
      %2447 = vmatprep.subr.mxu0 0.0
      %2448 = vmatpush2.msra.mxu0 0.0
      %2449 = vmatprep.subr.mxu0 0.0
      %2450 = vmatpush2.msra.mxu0 0.0
      %2451 = vmatprep.subr.mxu0 0.0
      %2452 = vmatpush2.msra.mxu0 0.0
      %2453 = vmatprep.subr.mxu0 0.0
      %2454 = vmatpush2.msra.mxu0 0.0
      %2455 = vmatprep.subr.mxu0 0.0
      %2456 = vmatpush2.msra.mxu0 0.0
      %2457 = vmatprep.subr.mxu0 0.0
      %2458 = vmatpush2.msra.mxu0 0.0
      %2459 = vmatprep.subr.mxu0 0.0
      %2460 = vmatpush2.msra.mxu0 0.0
      %2461 = vmatprep.mubr.f32.mxu0 0.0
      %2462 = vmatmul.mubr.f32.gmra.mxu0 %v2386
      %v2463 = vpop.f32.mrf.mxu0
      %v2464 = vadd.f32 %v1153, %v2463
      %v2465 = vpop.f32.mrf.mxu0
      %2466 = vmatprep.mubr.f32.mxu0 0.0
      %2467 = vmatmul.mubr.f32.gmra.mxu0 %v2389
      %v2468 = vpop.f32.mrf.mxu0
      %v2469 = vadd.f32 %v1153, %v2468
      %v2470 = vpop.f32.mrf.mxu0
      %2471 = vmatprep.mubr.f32.mxu0 0.0
      %2472 = vmatmul.mubr.f32.gmra.mxu0 %v2392
      %v2473 = vpop.f32.mrf.mxu0
      %v2474 = vadd.f32 %v1153, %v2473
      %v2475 = vpop.f32.mrf.mxu0
      %2476 = vmatprep.mubr.f32.mxu0 0.0
      %2477 = vmatmul.mubr.f32.gmra.mxu0 %v2395
      %v2478 = vpop.f32.mrf.mxu0
      %v2479 = vadd.f32 %v1153, %v2478
      %v2480 = vpop.f32.mrf.mxu0
      %2481 = vdwg.mxu0
      %v2482 = vmax.f32 %v2071, %v2464
      %v2483 = vmax.f32 %v2072, %v2469
      %v2484 = vmax.f32 %v2073, %v2474
      %v2485 = vmax.f32 %v2074, %v2479
      %v2486 = vsel %vm2159, inf, %v2075
      %v2487 = vsel %vm2160, inf, %v2076
      %v2488 = vsel %vm2161, inf, %v2077
      %v2489 = vsel %vm2162, inf, %v2078
      %v2490 = vsel %vm822, %v2486, inf
      %2491 = vmin.xlane.f32.xlu0 %v2490
      %v2492 = vpop.xlane.xlu0 %2491
      %v2493 = vsel %vm822, %v2487, inf
      %2494 = vmin.xlane.f32.xlu0 %v2493
      %v2495 = vpop.xlane.xlu0 %2494
      %v2496 = vsel %vm822, %v2488, inf
      %2497 = vmin.xlane.f32.xlu0 %v2496
      %v2498 = vpop.xlane.xlu0 %2497
      %v2499 = vsel %vm822, %v2489, inf
      %2500 = vmin.xlane.f32.xlu0 %v2499
      %v2501 = vpop.xlane.xlu0 %2500
      %vm2502 = vcmp.eq.f32.partialorder %v2486, %v2492
      %vm2503 = vcmp.eq.f32.partialorder %v2487, %v2495
      %vm2504 = vcmp.eq.f32.partialorder %v2488, %v2498
      %vm2505 = vcmp.eq.f32.partialorder %v2489, %v2501
      %v2506 = vsel %vm2502, %v524, 32
      %v2507 = vsel %vm2503, %v524, 32
      %v2508 = vsel %vm2504, %v524, 32
      %v2509 = vsel %vm2505, %v524, 32
      %v2510 = vsel %vm822, %v2506, 2147483647
      %v2511 = vand.u32 %v2510, 65535
      %v2512 = vshra.s32 %v2510, 16
      %v2513 = vcvt.s32.f32 %v2511
      %v2514 = vcvt.s32.f32 %v2512
      %2515 = vmin.xlane.f32.xlu0 %v2514
      %v2516 = vpop.xlane.xlu0 %2515
      %vm2517 = vcmp.eq.f32.partialorder %v2514, %v2516
      %v2518 = vsel %vm2517, %v2513, inf
      %2519 = vmin.xlane.f32.xlu0 %v2518
      %v2520 = vpop.xlane.xlu0 %2519
      %v2521 = vcvt.f32.s32 %v2520
      %v2522 = vcvt.f32.s32 %v2516
      %v2523 = vshll.u32 %v2522, 16
      %v2524 = vadd.s32 %v2523, %v2521
      %v2525 = vsel %vm822, %v2507, 2147483647
      %v2526 = vand.u32 %v2525, 65535
      %v2527 = vshra.s32 %v2525, 16
      %v2528 = vcvt.s32.f32 %v2526
      %v2529 = vcvt.s32.f32 %v2527
      %2530 = vmin.xlane.f32.xlu0 %v2529
      %v2531 = vpop.xlane.xlu0 %2530
      %vm2532 = vcmp.eq.f32.partialorder %v2529, %v2531
      %v2533 = vsel %vm2532, %v2528, inf
      %2534 = vmin.xlane.f32.xlu0 %v2533
      %v2535 = vpop.xlane.xlu0 %2534
      %v2536 = vcvt.f32.s32 %v2535
      %v2537 = vcvt.f32.s32 %v2531
      %v2538 = vshll.u32 %v2537, 16
      %v2539 = vadd.s32 %v2538, %v2536
      %v2540 = vsel %vm822, %v2508, 2147483647
      %v2541 = vand.u32 %v2540, 65535
      %v2542 = vshra.s32 %v2540, 16
      %v2543 = vcvt.s32.f32 %v2541
      %v2544 = vcvt.s32.f32 %v2542
      %2545 = vmin.xlane.f32.xlu0 %v2544
      %v2546 = vpop.xlane.xlu0 %2545
      %vm2547 = vcmp.eq.f32.partialorder %v2544, %v2546
      %v2548 = vsel %vm2547, %v2543, inf
      %2549 = vmin.xlane.f32.xlu0 %v2548
      %v2550 = vpop.xlane.xlu0 %2549
      %v2551 = vcvt.f32.s32 %v2550
      %v2552 = vcvt.f32.s32 %v2546
      %v2553 = vshll.u32 %v2552, 16
      %v2554 = vadd.s32 %v2553, %v2551
      %v2555 = vsel %vm822, %v2509, 2147483647
      %v2556 = vand.u32 %v2555, 65535
      %v2557 = vshra.s32 %v2555, 16
      %v2558 = vcvt.s32.f32 %v2556
      %v2559 = vcvt.s32.f32 %v2557
      %2560 = vmin.xlane.f32.xlu0 %v2559
      %v2561 = vpop.xlane.xlu0 %2560
      %vm2562 = vcmp.eq.f32.partialorder %v2559, %v2561
      %v2563 = vsel %vm2562, %v2558, inf
      %2564 = vmin.xlane.f32.xlu0 %v2563
      %v2565 = vpop.xlane.xlu0 %2564
      %v2566 = vcvt.f32.s32 %v2565
      %v2567 = vcvt.f32.s32 %v2561
      %v2568 = vshll.u32 %v2567, 16
      %v2569 = vadd.s32 %v2568, %v2566
      %vm2570 = vcmp.eq.s32.totalorder %v524, %v2524
      %vm2571 = vcmp.eq.s32.totalorder %v524, %v2539
      %vm2572 = vcmp.eq.s32.totalorder %v524, %v2554
      %vm2573 = vcmp.eq.s32.totalorder %v524, %v2569
      %v2574 = vsel %vm2570, 1, 0
      %v2575 = vsel %vm2571, 1, 0
      %v2576 = vsel %vm2572, 1, 0
      %v2577 = vsel %vm2573, 1, 0
      %v2578 = vcvt.s32.f32 %v2574
      %v2579 = vcvt.s32.f32 %v2575
      %v2580 = vcvt.s32.f32 %v2576
      %v2581 = vcvt.s32.f32 %v2577
      %v2583 = vsel %vm822, %v2578, 0
      %v2586 = vsel %vm822, %v2579, 0
      %v2589 = vsel %vm822, %v2580, 0
      %v2592 = vsel %vm822, %v2581, 0
      %2594 = vmatprep.subr.mxu0 0.0
      %2595 = vmatpush1.msra.mxu0 0.0
      %2596 = vmatprep.subr.mxu0 0.0
      %2597 = vmatpush1.msra.mxu0 0.0
      %2598 = vmatprep.subr.mxu0 0.0
      %2599 = vmatpush1.msra.mxu0 0.0
      %2600 = vmatprep.subr.mxu0 0.0
      %2601 = vmatpush1.msra.mxu0 0.0
      %2602 = vmatprep.subr.mxu0 0.0
      %2603 = vmatpush1.msra.mxu0 0.0
      %2604 = vmatprep.subr.mxu0 0.0
      %2605 = vmatpush1.msra.mxu0 0.0
      %2606 = vmatprep.subr.mxu0 0.0
      %2607 = vmatpush1.msra.mxu0 0.0
      %2608 = vmatprep.subr.mxu0 0.0
      %2609 = vmatpush1.msra.mxu0 0.0
      %2610 = vmatprep.subr.mxu0 0.0
      %2611 = vmatpush1.msra.mxu0 0.0
      %2612 = vmatprep.subr.mxu0 0.0
      %2613 = vmatpush1.msra.mxu0 0.0
      %2614 = vmatprep.subr.mxu0 0.0
      %2615 = vmatpush1.msra.mxu0 0.0
      %2616 = vmatprep.subr.mxu0 0.0
      %2617 = vmatpush1.msra.mxu0 0.0
      %2618 = vmatprep.subr.mxu0 0.0
      %2619 = vmatpush1.msra.mxu0 %v520
      %2620 = vmatprep.subr.mxu0 0.0
      %2621 = vmatpush1.msra.mxu0 %v519
      %2622 = vmatprep.subr.mxu0 0.0
      %2623 = vmatpush1.msra.mxu0 %v518
      %2624 = vmatprep.subr.mxu0 0.0
      %2625 = vmatpush1.msra.mxu0 %v517
      %2626 = vmatprep.subr.mxu0 0.0
      %2627 = vmatpush2.msra.mxu0 0.0
      %2628 = vmatprep.subr.mxu0 0.0
      %2629 = vmatpush2.msra.mxu0 0.0
      %2630 = vmatprep.subr.mxu0 0.0
      %2631 = vmatpush2.msra.mxu0 0.0
      %2632 = vmatprep.subr.mxu0 0.0
      %2633 = vmatpush2.msra.mxu0 0.0
      %2634 = vmatprep.subr.mxu0 0.0
      %2635 = vmatpush2.msra.mxu0 0.0
      %2636 = vmatprep.subr.mxu0 0.0
      %2637 = vmatpush2.msra.mxu0 0.0
      %2638 = vmatprep.subr.mxu0 0.0
      %2639 = vmatpush2.msra.mxu0 0.0
      %2640 = vmatprep.subr.mxu0 0.0
      %2641 = vmatpush2.msra.mxu0 0.0
      %2642 = vmatprep.subr.mxu0 0.0
      %2643 = vmatpush2.msra.mxu0 0.0
      %2644 = vmatprep.subr.mxu0 0.0
      %2645 = vmatpush2.msra.mxu0 0.0
      %2646 = vmatprep.subr.mxu0 0.0
      %2647 = vmatpush2.msra.mxu0 0.0
      %2648 = vmatprep.subr.mxu0 0.0
      %2649 = vmatpush2.msra.mxu0 0.0
      %2650 = vmatprep.subr.mxu0 0.0
      %2651 = vmatpush2.msra.mxu0 0.0
      %2652 = vmatprep.subr.mxu0 0.0
      %2653 = vmatpush2.msra.mxu0 0.0
      %2654 = vmatprep.subr.mxu0 0.0
      %2655 = vmatpush2.msra.mxu0 0.0
      %2656 = vmatprep.subr.mxu0 0.0
      %2657 = vmatpush2.msra.mxu0 0.0
      %2658 = vmatprep.mubr.f32.mxu0 0.0
      %2659 = vmatmul.mubr.f32.gmra.mxu0 %v2583
      %v2660 = vpop.f32.mrf.mxu0
      %v2661 = vadd.f32 0.0, %v2660
      %v2662 = vpop.f32.mrf.mxu0
      %2663 = vmatprep.mubr.f32.mxu0 0.0
      %2664 = vmatmul.mubr.f32.gmra.mxu0 %v2586
      %v2665 = vpop.f32.mrf.mxu0
      %v2666 = vadd.f32 0.0, %v2665
      %v2667 = vpop.f32.mrf.mxu0
      %2668 = vmatprep.mubr.f32.mxu0 0.0
      %2669 = vmatmul.mubr.f32.gmra.mxu0 %v2589
      %v2670 = vpop.f32.mrf.mxu0
      %v2671 = vadd.f32 0.0, %v2670
      %v2672 = vpop.f32.mrf.mxu0
      %2673 = vmatprep.mubr.f32.mxu0 0.0
      %2674 = vmatmul.mubr.f32.gmra.mxu0 %v2592
      %v2675 = vpop.f32.mrf.mxu0
      %v2676 = vadd.f32 0.0, %v2675
      %v2677 = vpop.f32.mrf.mxu0
      %2678 = vdwg.mxu0
      %v2679 = vsub.f32 %v2661, %v517
      %v2680 = vsub.f32 %v2666, %v518
      %v2681 = vsub.f32 %v2671, %v519
      %v2682 = vsub.f32 %v2676, %v520
      %v2684 = vsel %vm525, %v2679, 0
      %v2687 = vsel %vm525, %v2680, 0
      %v2690 = vsel %vm525, %v2681, 0
      %v2693 = vsel %vm525, %v2682, 0
      %2695 = vmatprep.subr.mxu0 0.0
      %2696 = vmatpush1.msra.mxu0 0.0
      %2697 = vmatprep.subr.mxu0 0.0
      %2698 = vmatpush1.msra.mxu0 0.0
      %2699 = vmatprep.subr.mxu0 0.0
      %2700 = vmatpush1.msra.mxu0 0.0
      %2701 = vmatprep.subr.mxu0 0.0
      %2702 = vmatpush1.msra.mxu0 0.0
      %2703 = vmatprep.subr.mxu0 0.0
      %2704 = vmatpush1.msra.mxu0 0.0
      %2705 = vmatprep.subr.mxu0 0.0
      %2706 = vmatpush1.msra.mxu0 0.0
      %2707 = vmatprep.subr.mxu0 0.0
      %2708 = vmatpush1.msra.mxu0 0.0
      %2709 = vmatprep.subr.mxu0 0.0
      %2710 = vmatpush1.msra.mxu0 0.0
      %2711 = vmatprep.subr.mxu0 0.0
      %2712 = vmatpush1.msra.mxu0 0.0
      %2713 = vmatprep.subr.mxu0 0.0
      %2714 = vmatpush1.msra.mxu0 0.0
      %2715 = vmatprep.subr.mxu0 0.0
      %2716 = vmatpush1.msra.mxu0 0.0
      %2717 = vmatprep.subr.mxu0 0.0
      %2718 = vmatpush1.msra.mxu0 0.0
      %2719 = vmatprep.subr.mxu0 0.0
      %2720 = vmatpush1.msra.mxu0 0.0
      %2721 = vmatprep.subr.mxu0 0.0
      %2722 = vmatpush1.msra.mxu0 0.0
      %2723 = vmatprep.subr.mxu0 0.0
      %2724 = vmatpush1.msra.mxu0 0.0
      %2725 = vmatprep.subr.mxu0 0.0
      %2726 = vmatpush1.msra.mxu0 %v1029
      %2727 = vmatprep.subr.mxu0 0.0
      %2728 = vmatpush2.msra.mxu0 0.0
      %2729 = vmatprep.subr.mxu0 0.0
      %2730 = vmatpush2.msra.mxu0 0.0
      %2731 = vmatprep.subr.mxu0 0.0
      %2732 = vmatpush2.msra.mxu0 0.0
      %2733 = vmatprep.subr.mxu0 0.0
      %2734 = vmatpush2.msra.mxu0 0.0
      %2735 = vmatprep.subr.mxu0 0.0
      %2736 = vmatpush2.msra.mxu0 0.0
      %2737 = vmatprep.subr.mxu0 0.0
      %2738 = vmatpush2.msra.mxu0 0.0
      %2739 = vmatprep.subr.mxu0 0.0
      %2740 = vmatpush2.msra.mxu0 0.0
      %2741 = vmatprep.subr.mxu0 0.0
      %2742 = vmatpush2.msra.mxu0 0.0
      %2743 = vmatprep.subr.mxu0 0.0
      %2744 = vmatpush2.msra.mxu0 0.0
      %2745 = vmatprep.subr.mxu0 0.0
      %2746 = vmatpush2.msra.mxu0 0.0
      %2747 = vmatprep.subr.mxu0 0.0
      %2748 = vmatpush2.msra.mxu0 0.0
      %2749 = vmatprep.subr.mxu0 0.0
      %2750 = vmatpush2.msra.mxu0 0.0
      %2751 = vmatprep.subr.mxu0 0.0
      %2752 = vmatpush2.msra.mxu0 0.0
      %2753 = vmatprep.subr.mxu0 0.0
      %2754 = vmatpush2.msra.mxu0 0.0
      %2755 = vmatprep.subr.mxu0 0.0
      %2756 = vmatpush2.msra.mxu0 0.0
      %2757 = vmatprep.subr.mxu0 0.0
      %2758 = vmatpush2.msra.mxu0 0.0
      %2759 = vmatprep.mubr.f32.mxu0 0.0
      %2760 = vmatmul.mubr.f32.gmra.mxu0 %v2684
      %v2761 = vpop.f32.mrf.mxu0
      %v2762 = vadd.f32 0.0, %v2761
      %v2763 = vpop.f32.mrf.mxu0
      %2764 = vmatprep.mubr.f32.mxu0 0.0
      %2765 = vmatmul.mubr.f32.gmra.mxu0 %v2687
      %v2766 = vpop.f32.mrf.mxu0
      %v2767 = vadd.f32 0.0, %v2766
      %v2768 = vpop.f32.mrf.mxu0
      %2769 = vmatprep.mubr.f32.mxu0 0.0
      %2770 = vmatmul.mubr.f32.gmra.mxu0 %v2690
      %v2771 = vpop.f32.mrf.mxu0
      %v2772 = vadd.f32 0.0, %v2771
      %v2773 = vpop.f32.mrf.mxu0
      %2774 = vmatprep.mubr.f32.mxu0 0.0
      %2775 = vmatmul.mubr.f32.gmra.mxu0 %v2693
      %v2776 = vpop.f32.mrf.mxu0
      %v2777 = vadd.f32 0.0, %v2776
      %v2778 = vpop.f32.mrf.mxu0
      %2779 = vdwg.mxu0
      %v2780 = vadd.f32 %v804, %v2762
      %v2781 = vadd.f32 %v809, %v2767
      %v2782 = vadd.f32 %v814, %v2772
      %v2783 = vadd.f32 %v819, %v2777
      %v2784 = vmul.f32 %v2780, %v1123
      %v2785 = vmul.f32 %v2781, %v1123
      %v2786 = vmul.f32 %v2782, %v1123
      %v2787 = vmul.f32 %v2783, %v1123
      %v2788 = vadd.f32 %v2784, %v1131
      %v2789 = vadd.f32 %v2785, %v1131
      %v2790 = vadd.f32 %v2786, %v1131
      %v2791 = vadd.f32 %v2787, %v1131
      %v2792 = vmax.f32 %v2788, 0.0
      %v2793 = vmax.f32 %v2789, 0.0
      %v2794 = vmax.f32 %v2790, 0.0
      %v2795 = vmax.f32 %v2791, 0.0
      %v2797 = vsel %vm1155, %v2792, 0
      %v2800 = vsel %vm1155, %v2793, 0
      %v2803 = vsel %vm1155, %v2794, 0
      %v2806 = vsel %vm1155, %v2795, 0
      %2808 = vmatprep.subr.mxu0 0.0
      %2809 = vmatpush1.msra.mxu0 0.0
      %2810 = vmatprep.subr.mxu0 0.0
      %2811 = vmatpush1.msra.mxu0 0.0
      %2812 = vmatprep.subr.mxu0 0.0
      %2813 = vmatpush1.msra.mxu0 0.0
      %2814 = vmatprep.subr.mxu0 0.0
      %2815 = vmatpush1.msra.mxu0 0.0
      %2816 = vmatprep.subr.mxu0 0.0
      %2817 = vmatpush1.msra.mxu0 0.0
      %2818 = vmatprep.subr.mxu0 0.0
      %2819 = vmatpush1.msra.mxu0 0.0
      %2820 = vmatprep.subr.mxu0 0.0
      %2821 = vmatpush1.msra.mxu0 0.0
      %2822 = vmatprep.subr.mxu0 0.0
      %2823 = vmatpush1.msra.mxu0 0.0
      %2824 = vmatprep.subr.mxu0 0.0
      %2825 = vmatpush1.msra.mxu0 %v1147
      %2826 = vmatprep.subr.mxu0 0.0
      %2827 = vmatpush1.msra.mxu0 %v1146
      %2828 = vmatprep.subr.mxu0 0.0
      %2829 = vmatpush1.msra.mxu0 %v1145
      %2830 = vmatprep.subr.mxu0 0.0
      %2831 = vmatpush1.msra.mxu0 %v1144
      %2832 = vmatprep.subr.mxu0 0.0
      %2833 = vmatpush1.msra.mxu0 %v1143
      %2834 = vmatprep.subr.mxu0 0.0
      %2835 = vmatpush1.msra.mxu0 %v1142
      %2836 = vmatprep.subr.mxu0 0.0
      %2837 = vmatpush1.msra.mxu0 %v1141
      %2838 = vmatprep.subr.mxu0 0.0
      %2839 = vmatpush1.msra.mxu0 %v1140
      %2840 = vmatprep.subr.mxu0 0.0
      %2841 = vmatpush2.msra.mxu0 0.0
      %2842 = vmatprep.subr.mxu0 0.0
      %2843 = vmatpush2.msra.mxu0 0.0
      %2844 = vmatprep.subr.mxu0 0.0
      %2845 = vmatpush2.msra.mxu0 0.0
      %2846 = vmatprep.subr.mxu0 0.0
      %2847 = vmatpush2.msra.mxu0 0.0
      %2848 = vmatprep.subr.mxu0 0.0
      %2849 = vmatpush2.msra.mxu0 0.0
      %2850 = vmatprep.subr.mxu0 0.0
      %2851 = vmatpush2.msra.mxu0 0.0
      %2852 = vmatprep.subr.mxu0 0.0
      %2853 = vmatpush2.msra.mxu0 0.0
      %2854 = vmatprep.subr.mxu0 0.0
      %2855 = vmatpush2.msra.mxu0 0.0
      %2856 = vmatprep.subr.mxu0 0.0
      %2857 = vmatpush2.msra.mxu0 0.0
      %2858 = vmatprep.subr.mxu0 0.0
      %2859 = vmatpush2.msra.mxu0 0.0
      %2860 = vmatprep.subr.mxu0 0.0
      %2861 = vmatpush2.msra.mxu0 0.0
      %2862 = vmatprep.subr.mxu0 0.0
      %2863 = vmatpush2.msra.mxu0 0.0
      %2864 = vmatprep.subr.mxu0 0.0
      %2865 = vmatpush2.msra.mxu0 0.0
      %2866 = vmatprep.subr.mxu0 0.0
      %2867 = vmatpush2.msra.mxu0 0.0
      %2868 = vmatprep.subr.mxu0 0.0
      %2869 = vmatpush2.msra.mxu0 0.0
      %2870 = vmatprep.subr.mxu0 0.0
      %2871 = vmatpush2.msra.mxu0 0.0
      %2872 = vmatprep.mubr.f32.mxu0 0.0
      %2873 = vmatmul.mubr.f32.gmra.mxu0 %v2797
      %v2874 = vpop.f32.mrf.mxu0
      %v2875 = vadd.f32 %v1153, %v2874
      %v2876 = vpop.f32.mrf.mxu0
      %2877 = vmatprep.mubr.f32.mxu0 0.0
      %2878 = vmatmul.mubr.f32.gmra.mxu0 %v2800
      %v2879 = vpop.f32.mrf.mxu0
      %v2880 = vadd.f32 %v1153, %v2879
      %v2881 = vpop.f32.mrf.mxu0
      %2882 = vmatprep.mubr.f32.mxu0 0.0
      %2883 = vmatmul.mubr.f32.gmra.mxu0 %v2803
      %v2884 = vpop.f32.mrf.mxu0
      %v2885 = vadd.f32 %v1153, %v2884
      %v2886 = vpop.f32.mrf.mxu0
      %2887 = vmatprep.mubr.f32.mxu0 0.0
      %2888 = vmatmul.mubr.f32.gmra.mxu0 %v2806
      %v2889 = vpop.f32.mrf.mxu0
      %v2890 = vadd.f32 %v1153, %v2889
      %v2891 = vpop.f32.mrf.mxu0
      %2892 = vdwg.mxu0
      %v2893 = vmax.f32 %v2482, %v2875
      %v2894 = vmax.f32 %v2483, %v2880
      %v2895 = vmax.f32 %v2484, %v2885
      %v2896 = vmax.f32 %v2485, %v2890
      %v2897 = vsel %vm2570, inf, %v2486
      %v2898 = vsel %vm2571, inf, %v2487
      %v2899 = vsel %vm2572, inf, %v2488
      %v2900 = vsel %vm2573, inf, %v2489
      %v2901 = vsel %vm822, %v2897, inf
      %2902 = vmin.xlane.f32.xlu0 %v2901
      %v2903 = vpop.xlane.xlu0 %2902
      %v2904 = vsel %vm822, %v2898, inf
      %2905 = vmin.xlane.f32.xlu0 %v2904
      %v2906 = vpop.xlane.xlu0 %2905
      %v2907 = vsel %vm822, %v2899, inf
      %2908 = vmin.xlane.f32.xlu0 %v2907
      %v2909 = vpop.xlane.xlu0 %2908
      %v2910 = vsel %vm822, %v2900, inf
      %2911 = vmin.xlane.f32.xlu0 %v2910
      %v2912 = vpop.xlane.xlu0 %2911
      %vm2913 = vcmp.eq.f32.partialorder %v2897, %v2903
      %vm2914 = vcmp.eq.f32.partialorder %v2898, %v2906
      %vm2915 = vcmp.eq.f32.partialorder %v2899, %v2909
      %vm2916 = vcmp.eq.f32.partialorder %v2900, %v2912
      %v2917 = vsel %vm2913, %v524, 32
      %v2918 = vsel %vm2914, %v524, 32
      %v2919 = vsel %vm2915, %v524, 32
      %v2920 = vsel %vm2916, %v524, 32
      %v2921 = vsel %vm822, %v2917, 2147483647
      %v2922 = vand.u32 %v2921, 65535
      %v2923 = vshra.s32 %v2921, 16
      %v2924 = vcvt.s32.f32 %v2922
      %v2925 = vcvt.s32.f32 %v2923
      %2926 = vmin.xlane.f32.xlu0 %v2925
      %v2927 = vpop.xlane.xlu0 %2926
      %vm2928 = vcmp.eq.f32.partialorder %v2925, %v2927
      %v2929 = vsel %vm2928, %v2924, inf
      %2930 = vmin.xlane.f32.xlu0 %v2929
      %v2931 = vpop.xlane.xlu0 %2930
      %v2932 = vcvt.f32.s32 %v2931
      %v2933 = vcvt.f32.s32 %v2927
      %v2934 = vshll.u32 %v2933, 16
      %v2935 = vadd.s32 %v2934, %v2932
      %v2936 = vsel %vm822, %v2918, 2147483647
      %v2937 = vand.u32 %v2936, 65535
      %v2938 = vshra.s32 %v2936, 16
      %v2939 = vcvt.s32.f32 %v2937
      %v2940 = vcvt.s32.f32 %v2938
      %2941 = vmin.xlane.f32.xlu0 %v2940
      %v2942 = vpop.xlane.xlu0 %2941
      %vm2943 = vcmp.eq.f32.partialorder %v2940, %v2942
      %v2944 = vsel %vm2943, %v2939, inf
      %2945 = vmin.xlane.f32.xlu0 %v2944
      %v2946 = vpop.xlane.xlu0 %2945
      %v2947 = vcvt.f32.s32 %v2946
      %v2948 = vcvt.f32.s32 %v2942
      %v2949 = vshll.u32 %v2948, 16
      %v2950 = vadd.s32 %v2949, %v2947
      %v2951 = vsel %vm822, %v2919, 2147483647
      %v2952 = vand.u32 %v2951, 65535
      %v2953 = vshra.s32 %v2951, 16
      %v2954 = vcvt.s32.f32 %v2952
      %v2955 = vcvt.s32.f32 %v2953
      %2956 = vmin.xlane.f32.xlu0 %v2955
      %v2957 = vpop.xlane.xlu0 %2956
      %vm2958 = vcmp.eq.f32.partialorder %v2955, %v2957
      %v2959 = vsel %vm2958, %v2954, inf
      %2960 = vmin.xlane.f32.xlu0 %v2959
      %v2961 = vpop.xlane.xlu0 %2960
      %v2962 = vcvt.f32.s32 %v2961
      %v2963 = vcvt.f32.s32 %v2957
      %v2964 = vshll.u32 %v2963, 16
      %v2965 = vadd.s32 %v2964, %v2962
      %v2966 = vsel %vm822, %v2920, 2147483647
      %v2967 = vand.u32 %v2966, 65535
      %v2968 = vshra.s32 %v2966, 16
      %v2969 = vcvt.s32.f32 %v2967
      %v2970 = vcvt.s32.f32 %v2968
      %2971 = vmin.xlane.f32.xlu0 %v2970
      %v2972 = vpop.xlane.xlu0 %2971
      %vm2973 = vcmp.eq.f32.partialorder %v2970, %v2972
      %v2974 = vsel %vm2973, %v2969, inf
      %2975 = vmin.xlane.f32.xlu0 %v2974
      %v2976 = vpop.xlane.xlu0 %2975
      %v2977 = vcvt.f32.s32 %v2976
      %v2978 = vcvt.f32.s32 %v2972
      %v2979 = vshll.u32 %v2978, 16
      %v2980 = vadd.s32 %v2979, %v2977
      %vm2981 = vcmp.eq.s32.totalorder %v524, %v2935
      %vm2982 = vcmp.eq.s32.totalorder %v524, %v2950
      %vm2983 = vcmp.eq.s32.totalorder %v524, %v2965
      %vm2984 = vcmp.eq.s32.totalorder %v524, %v2980
      %v2985 = vsel %vm2981, 1, 0
      %v2986 = vsel %vm2982, 1, 0
      %v2987 = vsel %vm2983, 1, 0
      %v2988 = vsel %vm2984, 1, 0
      %v2989 = vcvt.s32.f32 %v2985
      %v2990 = vcvt.s32.f32 %v2986
      %v2991 = vcvt.s32.f32 %v2987
      %v2992 = vcvt.s32.f32 %v2988
      %v2994 = vsel %vm822, %v2989, 0
      %v2997 = vsel %vm822, %v2990, 0
      %v3000 = vsel %vm822, %v2991, 0
      %v3003 = vsel %vm822, %v2992, 0
      %3005 = vmatprep.subr.mxu0 0.0
      %3006 = vmatpush1.msra.mxu0 0.0
      %3007 = vmatprep.subr.mxu0 0.0
      %3008 = vmatpush1.msra.mxu0 0.0
      %3009 = vmatprep.subr.mxu0 0.0
      %3010 = vmatpush1.msra.mxu0 0.0
      %3011 = vmatprep.subr.mxu0 0.0
      %3012 = vmatpush1.msra.mxu0 0.0
      %3013 = vmatprep.subr.mxu0 0.0
      %3014 = vmatpush1.msra.mxu0 0.0
      %3015 = vmatprep.subr.mxu0 0.0
      %3016 = vmatpush1.msra.mxu0 0.0
      %3017 = vmatprep.subr.mxu0 0.0
      %3018 = vmatpush1.msra.mxu0 0.0
      %3019 = vmatprep.subr.mxu0 0.0
      %3020 = vmatpush1.msra.mxu0 0.0
      %3021 = vmatprep.subr.mxu0 0.0
      %3022 = vmatpush1.msra.mxu0 0.0
      %3023 = vmatprep.subr.mxu0 0.0
      %3024 = vmatpush1.msra.mxu0 0.0
      %3025 = vmatprep.subr.mxu0 0.0
      %3026 = vmatpush1.msra.mxu0 0.0
      %3027 = vmatprep.subr.mxu0 0.0
      %3028 = vmatpush1.msra.mxu0 0.0
      %3029 = vmatprep.subr.mxu0 0.0
      %3030 = vmatpush1.msra.mxu0 %v520
      %3031 = vmatprep.subr.mxu0 0.0
      %3032 = vmatpush1.msra.mxu0 %v519
      %3033 = vmatprep.subr.mxu0 0.0
      %3034 = vmatpush1.msra.mxu0 %v518
      %3035 = vmatprep.subr.mxu0 0.0
      %3036 = vmatpush1.msra.mxu0 %v517
      %3037 = vmatprep.subr.mxu0 0.0
      %3038 = vmatpush2.msra.mxu0 0.0
      %3039 = vmatprep.subr.mxu0 0.0
      %3040 = vmatpush2.msra.mxu0 0.0
      %3041 = vmatprep.subr.mxu0 0.0
      %3042 = vmatpush2.msra.mxu0 0.0
      %3043 = vmatprep.subr.mxu0 0.0
      %3044 = vmatpush2.msra.mxu0 0.0
      %3045 = vmatprep.subr.mxu0 0.0
      %3046 = vmatpush2.msra.mxu0 0.0
      %3047 = vmatprep.subr.mxu0 0.0
      %3048 = vmatpush2.msra.mxu0 0.0
      %3049 = vmatprep.subr.mxu0 0.0
      %3050 = vmatpush2.msra.mxu0 0.0
      %3051 = vmatprep.subr.mxu0 0.0
      %3052 = vmatpush2.msra.mxu0 0.0
      %3053 = vmatprep.subr.mxu0 0.0
      %3054 = vmatpush2.msra.mxu0 0.0
      %3055 = vmatprep.subr.mxu0 0.0
      %3056 = vmatpush2.msra.mxu0 0.0
      %3057 = vmatprep.subr.mxu0 0.0
      %3058 = vmatpush2.msra.mxu0 0.0
      %3059 = vmatprep.subr.mxu0 0.0
      %3060 = vmatpush2.msra.mxu0 0.0
      %3061 = vmatprep.subr.mxu0 0.0
      %3062 = vmatpush2.msra.mxu0 0.0
      %3063 = vmatprep.subr.mxu0 0.0
      %3064 = vmatpush2.msra.mxu0 0.0
      %3065 = vmatprep.subr.mxu0 0.0
      %3066 = vmatpush2.msra.mxu0 0.0
      %3067 = vmatprep.subr.mxu0 0.0
      %3068 = vmatpush2.msra.mxu0 0.0
      %3069 = vmatprep.mubr.f32.mxu0 0.0
      %3070 = vmatmul.mubr.f32.gmra.mxu0 %v2994
      %v3071 = vpop.f32.mrf.mxu0
      %v3072 = vadd.f32 0.0, %v3071
      %v3073 = vpop.f32.mrf.mxu0
      %3074 = vmatprep.mubr.f32.mxu0 0.0
      %3075 = vmatmul.mubr.f32.gmra.mxu0 %v2997
      %v3076 = vpop.f32.mrf.mxu0
      %v3077 = vadd.f32 0.0, %v3076
      %v3078 = vpop.f32.mrf.mxu0
      %3079 = vmatprep.mubr.f32.mxu0 0.0
      %3080 = vmatmul.mubr.f32.gmra.mxu0 %v3000
      %v3081 = vpop.f32.mrf.mxu0
      %v3082 = vadd.f32 0.0, %v3081
      %v3083 = vpop.f32.mrf.mxu0
      %3084 = vmatprep.mubr.f32.mxu0 0.0
      %3085 = vmatmul.mubr.f32.gmra.mxu0 %v3003
      %v3086 = vpop.f32.mrf.mxu0
      %v3087 = vadd.f32 0.0, %v3086
      %v3088 = vpop.f32.mrf.mxu0
      %3089 = vdwg.mxu0
      %v3090 = vsub.f32 %v3072, %v517
      %v3091 = vsub.f32 %v3077, %v518
      %v3092 = vsub.f32 %v3082, %v519
      %v3093 = vsub.f32 %v3087, %v520
      %v3095 = vsel %vm525, %v3090, 0
      %v3098 = vsel %vm525, %v3091, 0
      %v3101 = vsel %vm525, %v3092, 0
      %v3104 = vsel %vm525, %v3093, 0
      %3106 = vmatprep.subr.mxu0 0.0
      %3107 = vmatpush1.msra.mxu0 0.0
      %3108 = vmatprep.subr.mxu0 0.0
      %3109 = vmatpush1.msra.mxu0 0.0
      %3110 = vmatprep.subr.mxu0 0.0
      %3111 = vmatpush1.msra.mxu0 0.0
      %3112 = vmatprep.subr.mxu0 0.0
      %3113 = vmatpush1.msra.mxu0 0.0
      %3114 = vmatprep.subr.mxu0 0.0
      %3115 = vmatpush1.msra.mxu0 0.0
      %3116 = vmatprep.subr.mxu0 0.0
      %3117 = vmatpush1.msra.mxu0 0.0
      %3118 = vmatprep.subr.mxu0 0.0
      %3119 = vmatpush1.msra.mxu0 0.0
      %3120 = vmatprep.subr.mxu0 0.0
      %3121 = vmatpush1.msra.mxu0 0.0
      %3122 = vmatprep.subr.mxu0 0.0
      %3123 = vmatpush1.msra.mxu0 0.0
      %3124 = vmatprep.subr.mxu0 0.0
      %3125 = vmatpush1.msra.mxu0 0.0
      %3126 = vmatprep.subr.mxu0 0.0
      %3127 = vmatpush1.msra.mxu0 0.0
      %3128 = vmatprep.subr.mxu0 0.0
      %3129 = vmatpush1.msra.mxu0 0.0
      %3130 = vmatprep.subr.mxu0 0.0
      %3131 = vmatpush1.msra.mxu0 0.0
      %3132 = vmatprep.subr.mxu0 0.0
      %3133 = vmatpush1.msra.mxu0 0.0
      %3134 = vmatprep.subr.mxu0 0.0
      %3135 = vmatpush1.msra.mxu0 0.0
      %3136 = vmatprep.subr.mxu0 0.0
      %3137 = vmatpush1.msra.mxu0 %v1029
      %3138 = vmatprep.subr.mxu0 0.0
      %3139 = vmatpush2.msra.mxu0 0.0
      %3140 = vmatprep.subr.mxu0 0.0
      %3141 = vmatpush2.msra.mxu0 0.0
      %3142 = vmatprep.subr.mxu0 0.0
      %3143 = vmatpush2.msra.mxu0 0.0
      %3144 = vmatprep.subr.mxu0 0.0
      %3145 = vmatpush2.msra.mxu0 0.0
      %3146 = vmatprep.subr.mxu0 0.0
      %3147 = vmatpush2.msra.mxu0 0.0
      %3148 = vmatprep.subr.mxu0 0.0
      %3149 = vmatpush2.msra.mxu0 0.0
      %3150 = vmatprep.subr.mxu0 0.0
      %3151 = vmatpush2.msra.mxu0 0.0
      %3152 = vmatprep.subr.mxu0 0.0
      %3153 = vmatpush2.msra.mxu0 0.0
      %3154 = vmatprep.subr.mxu0 0.0
      %3155 = vmatpush2.msra.mxu0 0.0
      %3156 = vmatprep.subr.mxu0 0.0
      %3157 = vmatpush2.msra.mxu0 0.0
      %3158 = vmatprep.subr.mxu0 0.0
      %3159 = vmatpush2.msra.mxu0 0.0
      %3160 = vmatprep.subr.mxu0 0.0
      %3161 = vmatpush2.msra.mxu0 0.0
      %3162 = vmatprep.subr.mxu0 0.0
      %3163 = vmatpush2.msra.mxu0 0.0
      %3164 = vmatprep.subr.mxu0 0.0
      %3165 = vmatpush2.msra.mxu0 0.0
      %3166 = vmatprep.subr.mxu0 0.0
      %3167 = vmatpush2.msra.mxu0 0.0
      %3168 = vmatprep.subr.mxu0 0.0
      %3169 = vmatpush2.msra.mxu0 0.0
      %3170 = vmatprep.mubr.f32.mxu0 0.0
      %3171 = vmatmul.mubr.f32.gmra.mxu0 %v3095
      %v3172 = vpop.f32.mrf.mxu0
      %v3173 = vadd.f32 0.0, %v3172
      %v3174 = vpop.f32.mrf.mxu0
      %3175 = vmatprep.mubr.f32.mxu0 0.0
      %3176 = vmatmul.mubr.f32.gmra.mxu0 %v3098
      %v3177 = vpop.f32.mrf.mxu0
      %v3178 = vadd.f32 0.0, %v3177
      %v3179 = vpop.f32.mrf.mxu0
      %3180 = vmatprep.mubr.f32.mxu0 0.0
      %3181 = vmatmul.mubr.f32.gmra.mxu0 %v3101
      %v3182 = vpop.f32.mrf.mxu0
      %v3183 = vadd.f32 0.0, %v3182
      %v3184 = vpop.f32.mrf.mxu0
      %3185 = vmatprep.mubr.f32.mxu0 0.0
      %3186 = vmatmul.mubr.f32.gmra.mxu0 %v3104
      %v3187 = vpop.f32.mrf.mxu0
      %v3188 = vadd.f32 0.0, %v3187
      %v3189 = vpop.f32.mrf.mxu0
      %3190 = vdwg.mxu0
      %v3191 = vadd.f32 %v804, %v3173
      %v3192 = vadd.f32 %v809, %v3178
      %v3193 = vadd.f32 %v814, %v3183
      %v3194 = vadd.f32 %v819, %v3188
      %v3195 = vmul.f32 %v3191, %v1123
      %v3196 = vmul.f32 %v3192, %v1123
      %v3197 = vmul.f32 %v3193, %v1123
      %v3198 = vmul.f32 %v3194, %v1123
      %v3199 = vadd.f32 %v3195, %v1131
      %v3200 = vadd.f32 %v3196, %v1131
      %v3201 = vadd.f32 %v3197, %v1131
      %v3202 = vadd.f32 %v3198, %v1131
      %v3203 = vmax.f32 %v3199, 0.0
      %v3204 = vmax.f32 %v3200, 0.0
      %v3205 = vmax.f32 %v3201, 0.0
      %v3206 = vmax.f32 %v3202, 0.0
      %v3208 = vsel %vm1155, %v3203, 0
      %v3211 = vsel %vm1155, %v3204, 0
      %v3214 = vsel %vm1155, %v3205, 0
      %v3217 = vsel %vm1155, %v3206, 0
      %3219 = vmatprep.subr.mxu0 0.0
      %3220 = vmatpush1.msra.mxu0 0.0
      %3221 = vmatprep.subr.mxu0 0.0
      %3222 = vmatpush1.msra.mxu0 0.0
      %3223 = vmatprep.subr.mxu0 0.0
      %3224 = vmatpush1.msra.mxu0 0.0
      %3225 = vmatprep.subr.mxu0 0.0
      %3226 = vmatpush1.msra.mxu0 0.0
      %3227 = vmatprep.subr.mxu0 0.0
      %3228 = vmatpush1.msra.mxu0 0.0
      %3229 = vmatprep.subr.mxu0 0.0
      %3230 = vmatpush1.msra.mxu0 0.0
      %3231 = vmatprep.subr.mxu0 0.0
      %3232 = vmatpush1.msra.mxu0 0.0
      %3233 = vmatprep.subr.mxu0 0.0
      %3234 = vmatpush1.msra.mxu0 0.0
      %3235 = vmatprep.subr.mxu0 0.0
      %3236 = vmatpush1.msra.mxu0 %v1147
      %3237 = vmatprep.subr.mxu0 0.0
      %3238 = vmatpush1.msra.mxu0 %v1146
      %3239 = vmatprep.subr.mxu0 0.0
      %3240 = vmatpush1.msra.mxu0 %v1145
      %3241 = vmatprep.subr.mxu0 0.0
      %3242 = vmatpush1.msra.mxu0 %v1144
      %3243 = vmatprep.subr.mxu0 0.0
      %3244 = vmatpush1.msra.mxu0 %v1143
      %3245 = vmatprep.subr.mxu0 0.0
      %3246 = vmatpush1.msra.mxu0 %v1142
      %3247 = vmatprep.subr.mxu0 0.0
      %3248 = vmatpush1.msra.mxu0 %v1141
      %3249 = vmatprep.subr.mxu0 0.0
      %3250 = vmatpush1.msra.mxu0 %v1140
      %3251 = vmatprep.subr.mxu0 0.0
      %3252 = vmatpush2.msra.mxu0 0.0
      %3253 = vmatprep.subr.mxu0 0.0
      %3254 = vmatpush2.msra.mxu0 0.0
      %3255 = vmatprep.subr.mxu0 0.0
      %3256 = vmatpush2.msra.mxu0 0.0
      %3257 = vmatprep.subr.mxu0 0.0
      %3258 = vmatpush2.msra.mxu0 0.0
      %3259 = vmatprep.subr.mxu0 0.0
      %3260 = vmatpush2.msra.mxu0 0.0
      %3261 = vmatprep.subr.mxu0 0.0
      %3262 = vmatpush2.msra.mxu0 0.0
      %3263 = vmatprep.subr.mxu0 0.0
      %3264 = vmatpush2.msra.mxu0 0.0
      %3265 = vmatprep.subr.mxu0 0.0
      %3266 = vmatpush2.msra.mxu0 0.0
      %3267 = vmatprep.subr.mxu0 0.0
      %3268 = vmatpush2.msra.mxu0 0.0
      %3269 = vmatprep.subr.mxu0 0.0
      %3270 = vmatpush2.msra.mxu0 0.0
      %3271 = vmatprep.subr.mxu0 0.0
      %3272 = vmatpush2.msra.mxu0 0.0
      %3273 = vmatprep.subr.mxu0 0.0
      %3274 = vmatpush2.msra.mxu0 0.0
      %3275 = vmatprep.subr.mxu0 0.0
      %3276 = vmatpush2.msra.mxu0 0.0
      %3277 = vmatprep.subr.mxu0 0.0
      %3278 = vmatpush2.msra.mxu0 0.0
      %3279 = vmatprep.subr.mxu0 0.0
      %3280 = vmatpush2.msra.mxu0 0.0
      %3281 = vmatprep.subr.mxu0 0.0
      %3282 = vmatpush2.msra.mxu0 0.0
      %3283 = vmatprep.mubr.f32.mxu0 0.0
      %3284 = vmatmul.mubr.f32.gmra.mxu0 %v3208
      %v3285 = vpop.f32.mrf.mxu0
      %v3286 = vadd.f32 %v1153, %v3285
      %v3287 = vpop.f32.mrf.mxu0
      %3288 = vmatprep.mubr.f32.mxu0 0.0
      %3289 = vmatmul.mubr.f32.gmra.mxu0 %v3211
      %v3290 = vpop.f32.mrf.mxu0
      %v3291 = vadd.f32 %v1153, %v3290
      %v3292 = vpop.f32.mrf.mxu0
      %3293 = vmatprep.mubr.f32.mxu0 0.0
      %3294 = vmatmul.mubr.f32.gmra.mxu0 %v3214
      %v3295 = vpop.f32.mrf.mxu0
      %v3296 = vadd.f32 %v1153, %v3295
      %v3297 = vpop.f32.mrf.mxu0
      %3298 = vmatprep.mubr.f32.mxu0 0.0
      %3299 = vmatmul.mubr.f32.gmra.mxu0 %v3217
      %v3300 = vpop.f32.mrf.mxu0
      %v3301 = vadd.f32 %v1153, %v3300
      %v3302 = vpop.f32.mrf.mxu0
      %3303 = vdwg.mxu0
      %v3304 = vmax.f32 %v2893, %v3286
      %v3305 = vmax.f32 %v2894, %v3291
      %v3306 = vmax.f32 %v2895, %v3296
      %v3307 = vmax.f32 %v2896, %v3301
      %v3308 = vsel %vm2981, inf, %v2897
      %v3309 = vsel %vm2982, inf, %v2898
      %v3310 = vsel %vm2983, inf, %v2899
      %v3311 = vsel %vm2984, inf, %v2900
      %v3312 = vsel %vm822, %v3308, inf
      %3313 = vmin.xlane.f32.xlu0 %v3312
      %v3314 = vpop.xlane.xlu0 %3313
      %v3315 = vsel %vm822, %v3309, inf
      %3316 = vmin.xlane.f32.xlu0 %v3315
      %v3317 = vpop.xlane.xlu0 %3316
      %v3318 = vsel %vm822, %v3310, inf
      %3319 = vmin.xlane.f32.xlu0 %v3318
      %v3320 = vpop.xlane.xlu0 %3319
      %v3321 = vsel %vm822, %v3311, inf
      %3322 = vmin.xlane.f32.xlu0 %v3321
      %v3323 = vpop.xlane.xlu0 %3322
      %vm3324 = vcmp.eq.f32.partialorder %v3308, %v3314
      %vm3325 = vcmp.eq.f32.partialorder %v3309, %v3317
      %vm3326 = vcmp.eq.f32.partialorder %v3310, %v3320
      %vm3327 = vcmp.eq.f32.partialorder %v3311, %v3323
      %v3328 = vsel %vm3324, %v524, 32
      %v3329 = vsel %vm3325, %v524, 32
      %v3330 = vsel %vm3326, %v524, 32
      %v3331 = vsel %vm3327, %v524, 32
      %v3332 = vsel %vm822, %v3328, 2147483647
      %v3333 = vand.u32 %v3332, 65535
      %v3334 = vshra.s32 %v3332, 16
      %v3335 = vcvt.s32.f32 %v3333
      %v3336 = vcvt.s32.f32 %v3334
      %3337 = vmin.xlane.f32.xlu0 %v3336
      %v3338 = vpop.xlane.xlu0 %3337
      %vm3339 = vcmp.eq.f32.partialorder %v3336, %v3338
      %v3340 = vsel %vm3339, %v3335, inf
      %3341 = vmin.xlane.f32.xlu0 %v3340
      %v3342 = vpop.xlane.xlu0 %3341
      %v3343 = vcvt.f32.s32 %v3342
      %v3344 = vcvt.f32.s32 %v3338
      %v3345 = vshll.u32 %v3344, 16
      %v3346 = vadd.s32 %v3345, %v3343
      %v3347 = vsel %vm822, %v3329, 2147483647
      %v3348 = vand.u32 %v3347, 65535
      %v3349 = vshra.s32 %v3347, 16
      %v3350 = vcvt.s32.f32 %v3348
      %v3351 = vcvt.s32.f32 %v3349
      %3352 = vmin.xlane.f32.xlu0 %v3351
      %v3353 = vpop.xlane.xlu0 %3352
      %vm3354 = vcmp.eq.f32.partialorder %v3351, %v3353
      %v3355 = vsel %vm3354, %v3350, inf
      %3356 = vmin.xlane.f32.xlu0 %v3355
      %v3357 = vpop.xlane.xlu0 %3356
      %v3358 = vcvt.f32.s32 %v3357
      %v3359 = vcvt.f32.s32 %v3353
      %v3360 = vshll.u32 %v3359, 16
      %v3361 = vadd.s32 %v3360, %v3358
      %v3362 = vsel %vm822, %v3330, 2147483647
      %v3363 = vand.u32 %v3362, 65535
      %v3364 = vshra.s32 %v3362, 16
      %v3365 = vcvt.s32.f32 %v3363
      %v3366 = vcvt.s32.f32 %v3364
      %3367 = vmin.xlane.f32.xlu0 %v3366
      %v3368 = vpop.xlane.xlu0 %3367
      %vm3369 = vcmp.eq.f32.partialorder %v3366, %v3368
      %v3370 = vsel %vm3369, %v3365, inf
      %3371 = vmin.xlane.f32.xlu0 %v3370
      %v3372 = vpop.xlane.xlu0 %3371
      %v3373 = vcvt.f32.s32 %v3372
      %v3374 = vcvt.f32.s32 %v3368
      %v3375 = vshll.u32 %v3374, 16
      %v3376 = vadd.s32 %v3375, %v3373
      %v3377 = vsel %vm822, %v3331, 2147483647
      %v3378 = vand.u32 %v3377, 65535
      %v3379 = vshra.s32 %v3377, 16
      %v3380 = vcvt.s32.f32 %v3378
      %v3381 = vcvt.s32.f32 %v3379
      %3382 = vmin.xlane.f32.xlu0 %v3381
      %v3383 = vpop.xlane.xlu0 %3382
      %vm3384 = vcmp.eq.f32.partialorder %v3381, %v3383
      %v3385 = vsel %vm3384, %v3380, inf
      %3386 = vmin.xlane.f32.xlu0 %v3385
      %v3387 = vpop.xlane.xlu0 %3386
      %v3388 = vcvt.f32.s32 %v3387
      %v3389 = vcvt.f32.s32 %v3383
      %v3390 = vshll.u32 %v3389, 16
      %v3391 = vadd.s32 %v3390, %v3388
      %vm3392 = vcmp.eq.s32.totalorder %v524, %v3346
      %vm3393 = vcmp.eq.s32.totalorder %v524, %v3361
      %vm3394 = vcmp.eq.s32.totalorder %v524, %v3376
      %vm3395 = vcmp.eq.s32.totalorder %v524, %v3391
      %v3396 = vsel %vm3392, 1, 0
      %v3397 = vsel %vm3393, 1, 0
      %v3398 = vsel %vm3394, 1, 0
      %v3399 = vsel %vm3395, 1, 0
      %v3400 = vcvt.s32.f32 %v3396
      %v3401 = vcvt.s32.f32 %v3397
      %v3402 = vcvt.s32.f32 %v3398
      %v3403 = vcvt.s32.f32 %v3399
      %v3405 = vsel %vm822, %v3400, 0
      %v3408 = vsel %vm822, %v3401, 0
      %v3411 = vsel %vm822, %v3402, 0
      %v3414 = vsel %vm822, %v3403, 0
      %3416 = vmatprep.subr.mxu0 0.0
      %3417 = vmatpush1.msra.mxu0 0.0
      %3418 = vmatprep.subr.mxu0 0.0
      %3419 = vmatpush1.msra.mxu0 0.0
      %3420 = vmatprep.subr.mxu0 0.0
      %3421 = vmatpush1.msra.mxu0 0.0
      %3422 = vmatprep.subr.mxu0 0.0
      %3423 = vmatpush1.msra.mxu0 0.0
      %3424 = vmatprep.subr.mxu0 0.0
      %3425 = vmatpush1.msra.mxu0 0.0
      %3426 = vmatprep.subr.mxu0 0.0
      %3427 = vmatpush1.msra.mxu0 0.0
      %3428 = vmatprep.subr.mxu0 0.0
      %3429 = vmatpush1.msra.mxu0 0.0
      %3430 = vmatprep.subr.mxu0 0.0
      %3431 = vmatpush1.msra.mxu0 0.0
      %3432 = vmatprep.subr.mxu0 0.0
      %3433 = vmatpush1.msra.mxu0 0.0
      %3434 = vmatprep.subr.mxu0 0.0
      %3435 = vmatpush1.msra.mxu0 0.0
      %3436 = vmatprep.subr.mxu0 0.0
      %3437 = vmatpush1.msra.mxu0 0.0
      %3438 = vmatprep.subr.mxu0 0.0
      %3439 = vmatpush1.msra.mxu0 0.0
      %3440 = vmatprep.subr.mxu0 0.0
      %3441 = vmatpush1.msra.mxu0 %v520
      %3442 = vmatprep.subr.mxu0 0.0
      %3443 = vmatpush1.msra.mxu0 %v519
      %3444 = vmatprep.subr.mxu0 0.0
      %3445 = vmatpush1.msra.mxu0 %v518
      %3446 = vmatprep.subr.mxu0 0.0
      %3447 = vmatpush1.msra.mxu0 %v517
      %3448 = vmatprep.subr.mxu0 0.0
      %3449 = vmatpush2.msra.mxu0 0.0
      %3450 = vmatprep.subr.mxu0 0.0
      %3451 = vmatpush2.msra.mxu0 0.0
      %3452 = vmatprep.subr.mxu0 0.0
      %3453 = vmatpush2.msra.mxu0 0.0
      %3454 = vmatprep.subr.mxu0 0.0
      %3455 = vmatpush2.msra.mxu0 0.0
      %3456 = vmatprep.subr.mxu0 0.0
      %3457 = vmatpush2.msra.mxu0 0.0
      %3458 = vmatprep.subr.mxu0 0.0
      %3459 = vmatpush2.msra.mxu0 0.0
      %3460 = vmatprep.subr.mxu0 0.0
      %3461 = vmatpush2.msra.mxu0 0.0
      %3462 = vmatprep.subr.mxu0 0.0
      %3463 = vmatpush2.msra.mxu0 0.0
      %3464 = vmatprep.subr.mxu0 0.0
      %3465 = vmatpush2.msra.mxu0 0.0
      %3466 = vmatprep.subr.mxu0 0.0
      %3467 = vmatpush2.msra.mxu0 0.0
      %3468 = vmatprep.subr.mxu0 0.0
      %3469 = vmatpush2.msra.mxu0 0.0
      %3470 = vmatprep.subr.mxu0 0.0
      %3471 = vmatpush2.msra.mxu0 0.0
      %3472 = vmatprep.subr.mxu0 0.0
      %3473 = vmatpush2.msra.mxu0 0.0
      %3474 = vmatprep.subr.mxu0 0.0
      %3475 = vmatpush2.msra.mxu0 0.0
      %3476 = vmatprep.subr.mxu0 0.0
      %3477 = vmatpush2.msra.mxu0 0.0
      %3478 = vmatprep.subr.mxu0 0.0
      %3479 = vmatpush2.msra.mxu0 0.0
      %3480 = vmatprep.mubr.f32.mxu0 0.0
      %3481 = vmatmul.mubr.f32.gmra.mxu0 %v3405
      %v3482 = vpop.f32.mrf.mxu0
      %v3483 = vadd.f32 0.0, %v3482
      %v3484 = vpop.f32.mrf.mxu0
      %3485 = vmatprep.mubr.f32.mxu0 0.0
      %3486 = vmatmul.mubr.f32.gmra.mxu0 %v3408
      %v3487 = vpop.f32.mrf.mxu0
      %v3488 = vadd.f32 0.0, %v3487
      %v3489 = vpop.f32.mrf.mxu0
      %3490 = vmatprep.mubr.f32.mxu0 0.0
      %3491 = vmatmul.mubr.f32.gmra.mxu0 %v3411
      %v3492 = vpop.f32.mrf.mxu0
      %v3493 = vadd.f32 0.0, %v3492
      %v3494 = vpop.f32.mrf.mxu0
      %3495 = vmatprep.mubr.f32.mxu0 0.0
      %3496 = vmatmul.mubr.f32.gmra.mxu0 %v3414
      %v3497 = vpop.f32.mrf.mxu0
      %v3498 = vadd.f32 0.0, %v3497
      %v3499 = vpop.f32.mrf.mxu0
      %3500 = vdwg.mxu0
      %v3501 = vsub.f32 %v3483, %v517
      %v3502 = vsub.f32 %v3488, %v518
      %v3503 = vsub.f32 %v3493, %v519
      %v3504 = vsub.f32 %v3498, %v520
      %v3506 = vsel %vm525, %v3501, 0
      %v3509 = vsel %vm525, %v3502, 0
      %v3512 = vsel %vm525, %v3503, 0
      %v3515 = vsel %vm525, %v3504, 0
      %3517 = vmatprep.subr.mxu0 0.0
      %3518 = vmatpush1.msra.mxu0 0.0
      %3519 = vmatprep.subr.mxu0 0.0
      %3520 = vmatpush1.msra.mxu0 0.0
      %3521 = vmatprep.subr.mxu0 0.0
      %3522 = vmatpush1.msra.mxu0 0.0
      %3523 = vmatprep.subr.mxu0 0.0
      %3524 = vmatpush1.msra.mxu0 0.0
      %3525 = vmatprep.subr.mxu0 0.0
      %3526 = vmatpush1.msra.mxu0 0.0
      %3527 = vmatprep.subr.mxu0 0.0
      %3528 = vmatpush1.msra.mxu0 0.0
      %3529 = vmatprep.subr.mxu0 0.0
      %3530 = vmatpush1.msra.mxu0 0.0
      %3531 = vmatprep.subr.mxu0 0.0
      %3532 = vmatpush1.msra.mxu0 0.0
      %3533 = vmatprep.subr.mxu0 0.0
      %3534 = vmatpush1.msra.mxu0 0.0
      %3535 = vmatprep.subr.mxu0 0.0
      %3536 = vmatpush1.msra.mxu0 0.0
      %3537 = vmatprep.subr.mxu0 0.0
      %3538 = vmatpush1.msra.mxu0 0.0
      %3539 = vmatprep.subr.mxu0 0.0
      %3540 = vmatpush1.msra.mxu0 0.0
      %3541 = vmatprep.subr.mxu0 0.0
      %3542 = vmatpush1.msra.mxu0 0.0
      %3543 = vmatprep.subr.mxu0 0.0
      %3544 = vmatpush1.msra.mxu0 0.0
      %3545 = vmatprep.subr.mxu0 0.0
      %3546 = vmatpush1.msra.mxu0 0.0
      %3547 = vmatprep.subr.mxu0 0.0
      %3548 = vmatpush1.msra.mxu0 %v1029
      %3549 = vmatprep.subr.mxu0 0.0
      %3550 = vmatpush2.msra.mxu0 0.0
      %3551 = vmatprep.subr.mxu0 0.0
      %3552 = vmatpush2.msra.mxu0 0.0
      %3553 = vmatprep.subr.mxu0 0.0
      %3554 = vmatpush2.msra.mxu0 0.0
      %3555 = vmatprep.subr.mxu0 0.0
      %3556 = vmatpush2.msra.mxu0 0.0
      %3557 = vmatprep.subr.mxu0 0.0
      %3558 = vmatpush2.msra.mxu0 0.0
      %3559 = vmatprep.subr.mxu0 0.0
      %3560 = vmatpush2.msra.mxu0 0.0
      %3561 = vmatprep.subr.mxu0 0.0
      %3562 = vmatpush2.msra.mxu0 0.0
      %3563 = vmatprep.subr.mxu0 0.0
      %3564 = vmatpush2.msra.mxu0 0.0
      %3565 = vmatprep.subr.mxu0 0.0
      %3566 = vmatpush2.msra.mxu0 0.0
      %3567 = vmatprep.subr.mxu0 0.0
      %3568 = vmatpush2.msra.mxu0 0.0
      %3569 = vmatprep.subr.mxu0 0.0
      %3570 = vmatpush2.msra.mxu0 0.0
      %3571 = vmatprep.subr.mxu0 0.0
      %3572 = vmatpush2.msra.mxu0 0.0
      %3573 = vmatprep.subr.mxu0 0.0
      %3574 = vmatpush2.msra.mxu0 0.0
      %3575 = vmatprep.subr.mxu0 0.0
      %3576 = vmatpush2.msra.mxu0 0.0
      %3577 = vmatprep.subr.mxu0 0.0
      %3578 = vmatpush2.msra.mxu0 0.0
      %3579 = vmatprep.subr.mxu0 0.0
      %3580 = vmatpush2.msra.mxu0 0.0
      %3581 = vmatprep.mubr.f32.mxu0 0.0
      %3582 = vmatmul.mubr.f32.gmra.mxu0 %v3506
      %v3583 = vpop.f32.mrf.mxu0
      %v3584 = vadd.f32 0.0, %v3583
      %v3585 = vpop.f32.mrf.mxu0
      %3586 = vmatprep.mubr.f32.mxu0 0.0
      %3587 = vmatmul.mubr.f32.gmra.mxu0 %v3509
      %v3588 = vpop.f32.mrf.mxu0
      %v3589 = vadd.f32 0.0, %v3588
      %v3590 = vpop.f32.mrf.mxu0
      %3591 = vmatprep.mubr.f32.mxu0 0.0
      %3592 = vmatmul.mubr.f32.gmra.mxu0 %v3512
      %v3593 = vpop.f32.mrf.mxu0
      %v3594 = vadd.f32 0.0, %v3593
      %v3595 = vpop.f32.mrf.mxu0
      %3596 = vmatprep.mubr.f32.mxu0 0.0
      %3597 = vmatmul.mubr.f32.gmra.mxu0 %v3515
      %v3598 = vpop.f32.mrf.mxu0
      %v3599 = vadd.f32 0.0, %v3598
      %v3600 = vpop.f32.mrf.mxu0
      %3601 = vdwg.mxu0
      %v3602 = vadd.f32 %v804, %v3584
      %v3603 = vadd.f32 %v809, %v3589
      %v3604 = vadd.f32 %v814, %v3594
      %v3605 = vadd.f32 %v819, %v3599
      %v3606 = vmul.f32 %v3602, %v1123
      %v3607 = vmul.f32 %v3603, %v1123
      %v3608 = vmul.f32 %v3604, %v1123
      %v3609 = vmul.f32 %v3605, %v1123
      %v3610 = vadd.f32 %v3606, %v1131
      %v3611 = vadd.f32 %v3607, %v1131
      %v3612 = vadd.f32 %v3608, %v1131
      %v3613 = vadd.f32 %v3609, %v1131
      %v3614 = vmax.f32 %v3610, 0.0
      %v3615 = vmax.f32 %v3611, 0.0
      %v3616 = vmax.f32 %v3612, 0.0
      %v3617 = vmax.f32 %v3613, 0.0
      %v3619 = vsel %vm1155, %v3614, 0
      %v3622 = vsel %vm1155, %v3615, 0
      %v3625 = vsel %vm1155, %v3616, 0
      %v3628 = vsel %vm1155, %v3617, 0
      %3630 = vmatprep.subr.mxu0 0.0
      %3631 = vmatpush1.msra.mxu0 0.0
      %3632 = vmatprep.subr.mxu0 0.0
      %3633 = vmatpush1.msra.mxu0 0.0
      %3634 = vmatprep.subr.mxu0 0.0
      %3635 = vmatpush1.msra.mxu0 0.0
      %3636 = vmatprep.subr.mxu0 0.0
      %3637 = vmatpush1.msra.mxu0 0.0
      %3638 = vmatprep.subr.mxu0 0.0
      %3639 = vmatpush1.msra.mxu0 0.0
      %3640 = vmatprep.subr.mxu0 0.0
      %3641 = vmatpush1.msra.mxu0 0.0
      %3642 = vmatprep.subr.mxu0 0.0
      %3643 = vmatpush1.msra.mxu0 0.0
      %3644 = vmatprep.subr.mxu0 0.0
      %3645 = vmatpush1.msra.mxu0 0.0
      %3646 = vmatprep.subr.mxu0 0.0
      %3647 = vmatpush1.msra.mxu0 %v1147
      %3648 = vmatprep.subr.mxu0 0.0
      %3649 = vmatpush1.msra.mxu0 %v1146
      %3650 = vmatprep.subr.mxu0 0.0
      %3651 = vmatpush1.msra.mxu0 %v1145
      %3652 = vmatprep.subr.mxu0 0.0
      %3653 = vmatpush1.msra.mxu0 %v1144
      %3654 = vmatprep.subr.mxu0 0.0
      %3655 = vmatpush1.msra.mxu0 %v1143
      %3656 = vmatprep.subr.mxu0 0.0
      %3657 = vmatpush1.msra.mxu0 %v1142
      %3658 = vmatprep.subr.mxu0 0.0
      %3659 = vmatpush1.msra.mxu0 %v1141
      %3660 = vmatprep.subr.mxu0 0.0
      %3661 = vmatpush1.msra.mxu0 %v1140
      %3662 = vmatprep.subr.mxu0 0.0
      %3663 = vmatpush2.msra.mxu0 0.0
      %3664 = vmatprep.subr.mxu0 0.0
      %3665 = vmatpush2.msra.mxu0 0.0
      %3666 = vmatprep.subr.mxu0 0.0
      %3667 = vmatpush2.msra.mxu0 0.0
      %3668 = vmatprep.subr.mxu0 0.0
      %3669 = vmatpush2.msra.mxu0 0.0
      %3670 = vmatprep.subr.mxu0 0.0
      %3671 = vmatpush2.msra.mxu0 0.0
      %3672 = vmatprep.subr.mxu0 0.0
      %3673 = vmatpush2.msra.mxu0 0.0
      %3674 = vmatprep.subr.mxu0 0.0
      %3675 = vmatpush2.msra.mxu0 0.0
      %3676 = vmatprep.subr.mxu0 0.0
      %3677 = vmatpush2.msra.mxu0 0.0
      %3678 = vmatprep.subr.mxu0 0.0
      %3679 = vmatpush2.msra.mxu0 0.0
      %3680 = vmatprep.subr.mxu0 0.0
      %3681 = vmatpush2.msra.mxu0 0.0
      %3682 = vmatprep.subr.mxu0 0.0
      %3683 = vmatpush2.msra.mxu0 0.0
      %3684 = vmatprep.subr.mxu0 0.0
      %3685 = vmatpush2.msra.mxu0 0.0
      %3686 = vmatprep.subr.mxu0 0.0
      %3687 = vmatpush2.msra.mxu0 0.0
      %3688 = vmatprep.subr.mxu0 0.0
      %3689 = vmatpush2.msra.mxu0 0.0
      %3690 = vmatprep.subr.mxu0 0.0
      %3691 = vmatpush2.msra.mxu0 0.0
      %3692 = vmatprep.subr.mxu0 0.0
      %3693 = vmatpush2.msra.mxu0 0.0
      %3694 = vmatprep.mubr.f32.mxu0 0.0
      %3695 = vmatmul.mubr.f32.gmra.mxu0 %v3619
      %v3696 = vpop.f32.mrf.mxu0
      %v3697 = vadd.f32 %v1153, %v3696
      %v3698 = vpop.f32.mrf.mxu0
      %3699 = vmatprep.mubr.f32.mxu0 0.0
      %3700 = vmatmul.mubr.f32.gmra.mxu0 %v3622
      %v3701 = vpop.f32.mrf.mxu0
      %v3702 = vadd.f32 %v1153, %v3701
      %v3703 = vpop.f32.mrf.mxu0
      %3704 = vmatprep.mubr.f32.mxu0 0.0
      %3705 = vmatmul.mubr.f32.gmra.mxu0 %v3625
      %v3706 = vpop.f32.mrf.mxu0
      %v3707 = vadd.f32 %v1153, %v3706
      %v3708 = vpop.f32.mrf.mxu0
      %3709 = vmatprep.mubr.f32.mxu0 0.0
      %3710 = vmatmul.mubr.f32.gmra.mxu0 %v3628
      %v3711 = vpop.f32.mrf.mxu0
      %v3712 = vadd.f32 %v1153, %v3711
      %v3713 = vpop.f32.mrf.mxu0
      %3714 = vdwg.mxu0
      %v3715 = vmax.f32 %v3304, %v3697
      %v3716 = vmax.f32 %v3305, %v3702
      %v3717 = vmax.f32 %v3306, %v3707
      %v3718 = vmax.f32 %v3307, %v3712
      %v3719 = vsel %vm3392, inf, %v3308
      %v3720 = vsel %vm3393, inf, %v3309
      %v3721 = vsel %vm3394, inf, %v3310
      %v3722 = vsel %vm3395, inf, %v3311
      %v3723 = vsel %vm822, %v3719, inf
      %3724 = vmin.xlane.f32.xlu0 %v3723
      %v3725 = vpop.xlane.xlu0 %3724
      %v3726 = vsel %vm822, %v3720, inf
      %3727 = vmin.xlane.f32.xlu0 %v3726
      %v3728 = vpop.xlane.xlu0 %3727
      %v3729 = vsel %vm822, %v3721, inf
      %3730 = vmin.xlane.f32.xlu0 %v3729
      %v3731 = vpop.xlane.xlu0 %3730
      %v3732 = vsel %vm822, %v3722, inf
      %3733 = vmin.xlane.f32.xlu0 %v3732
      %v3734 = vpop.xlane.xlu0 %3733
      %vm3735 = vcmp.eq.f32.partialorder %v3719, %v3725
      %vm3736 = vcmp.eq.f32.partialorder %v3720, %v3728
      %vm3737 = vcmp.eq.f32.partialorder %v3721, %v3731
      %vm3738 = vcmp.eq.f32.partialorder %v3722, %v3734
      %v3739 = vsel %vm3735, %v524, 32
      %v3740 = vsel %vm3736, %v524, 32
      %v3741 = vsel %vm3737, %v524, 32
      %v3742 = vsel %vm3738, %v524, 32
      %v3743 = vsel %vm822, %v3739, 2147483647
      %v3744 = vand.u32 %v3743, 65535
      %v3745 = vshra.s32 %v3743, 16
      %v3746 = vcvt.s32.f32 %v3744
      %v3747 = vcvt.s32.f32 %v3745
      %3748 = vmin.xlane.f32.xlu0 %v3747
      %v3749 = vpop.xlane.xlu0 %3748
      %vm3750 = vcmp.eq.f32.partialorder %v3747, %v3749
      %v3751 = vsel %vm3750, %v3746, inf
      %3752 = vmin.xlane.f32.xlu0 %v3751
      %v3753 = vpop.xlane.xlu0 %3752
      %v3754 = vcvt.f32.s32 %v3753
      %v3755 = vcvt.f32.s32 %v3749
      %v3756 = vshll.u32 %v3755, 16
      %v3757 = vadd.s32 %v3756, %v3754
      %v3758 = vsel %vm822, %v3740, 2147483647
      %v3759 = vand.u32 %v3758, 65535
      %v3760 = vshra.s32 %v3758, 16
      %v3761 = vcvt.s32.f32 %v3759
      %v3762 = vcvt.s32.f32 %v3760
      %3763 = vmin.xlane.f32.xlu0 %v3762
      %v3764 = vpop.xlane.xlu0 %3763
      %vm3765 = vcmp.eq.f32.partialorder %v3762, %v3764
      %v3766 = vsel %vm3765, %v3761, inf
      %3767 = vmin.xlane.f32.xlu0 %v3766
      %v3768 = vpop.xlane.xlu0 %3767
      %v3769 = vcvt.f32.s32 %v3768
      %v3770 = vcvt.f32.s32 %v3764
      %v3771 = vshll.u32 %v3770, 16
      %v3772 = vadd.s32 %v3771, %v3769
      %v3773 = vsel %vm822, %v3741, 2147483647
      %v3774 = vand.u32 %v3773, 65535
      %v3775 = vshra.s32 %v3773, 16
      %v3776 = vcvt.s32.f32 %v3774
      %v3777 = vcvt.s32.f32 %v3775
      %3778 = vmin.xlane.f32.xlu0 %v3777
      %v3779 = vpop.xlane.xlu0 %3778
      %vm3780 = vcmp.eq.f32.partialorder %v3777, %v3779
      %v3781 = vsel %vm3780, %v3776, inf
      %3782 = vmin.xlane.f32.xlu0 %v3781
      %v3783 = vpop.xlane.xlu0 %3782
      %v3784 = vcvt.f32.s32 %v3783
      %v3785 = vcvt.f32.s32 %v3779
      %v3786 = vshll.u32 %v3785, 16
      %v3787 = vadd.s32 %v3786, %v3784
      %v3788 = vsel %vm822, %v3742, 2147483647
      %v3789 = vand.u32 %v3788, 65535
      %v3790 = vshra.s32 %v3788, 16
      %v3791 = vcvt.s32.f32 %v3789
      %v3792 = vcvt.s32.f32 %v3790
      %3793 = vmin.xlane.f32.xlu0 %v3792
      %v3794 = vpop.xlane.xlu0 %3793
      %vm3795 = vcmp.eq.f32.partialorder %v3792, %v3794
      %v3796 = vsel %vm3795, %v3791, inf
      %3797 = vmin.xlane.f32.xlu0 %v3796
      %v3798 = vpop.xlane.xlu0 %3797
      %v3799 = vcvt.f32.s32 %v3798
      %v3800 = vcvt.f32.s32 %v3794
      %v3801 = vshll.u32 %v3800, 16
      %v3802 = vadd.s32 %v3801, %v3799
      %vm3803 = vcmp.eq.s32.totalorder %v524, %v3757
      %vm3804 = vcmp.eq.s32.totalorder %v524, %v3772
      %vm3805 = vcmp.eq.s32.totalorder %v524, %v3787
      %vm3806 = vcmp.eq.s32.totalorder %v524, %v3802
      %v3807 = vsel %vm3803, 1, 0
      %v3808 = vsel %vm3804, 1, 0
      %v3809 = vsel %vm3805, 1, 0
      %v3810 = vsel %vm3806, 1, 0
      %v3811 = vcvt.s32.f32 %v3807
      %v3812 = vcvt.s32.f32 %v3808
      %v3813 = vcvt.s32.f32 %v3809
      %v3814 = vcvt.s32.f32 %v3810
      %v3816 = vsel %vm822, %v3811, 0
      %v3819 = vsel %vm822, %v3812, 0
      %v3822 = vsel %vm822, %v3813, 0
      %v3825 = vsel %vm822, %v3814, 0
      %3827 = vmatprep.subr.mxu0 0.0
      %3828 = vmatpush1.msra.mxu0 0.0
      %3829 = vmatprep.subr.mxu0 0.0
      %3830 = vmatpush1.msra.mxu0 0.0
      %3831 = vmatprep.subr.mxu0 0.0
      %3832 = vmatpush1.msra.mxu0 0.0
      %3833 = vmatprep.subr.mxu0 0.0
      %3834 = vmatpush1.msra.mxu0 0.0
      %3835 = vmatprep.subr.mxu0 0.0
      %3836 = vmatpush1.msra.mxu0 0.0
      %3837 = vmatprep.subr.mxu0 0.0
      %3838 = vmatpush1.msra.mxu0 0.0
      %3839 = vmatprep.subr.mxu0 0.0
      %3840 = vmatpush1.msra.mxu0 0.0
      %3841 = vmatprep.subr.mxu0 0.0
      %3842 = vmatpush1.msra.mxu0 0.0
      %3843 = vmatprep.subr.mxu0 0.0
      %3844 = vmatpush1.msra.mxu0 0.0
      %3845 = vmatprep.subr.mxu0 0.0
      %3846 = vmatpush1.msra.mxu0 0.0
      %3847 = vmatprep.subr.mxu0 0.0
      %3848 = vmatpush1.msra.mxu0 0.0
      %3849 = vmatprep.subr.mxu0 0.0
      %3850 = vmatpush1.msra.mxu0 0.0
      %3851 = vmatprep.subr.mxu0 0.0
      %3852 = vmatpush1.msra.mxu0 %v520
      %3853 = vmatprep.subr.mxu0 0.0
      %3854 = vmatpush1.msra.mxu0 %v519
      %3855 = vmatprep.subr.mxu0 0.0
      %3856 = vmatpush1.msra.mxu0 %v518
      %3857 = vmatprep.subr.mxu0 0.0
      %3858 = vmatpush1.msra.mxu0 %v517
      %3859 = vmatprep.subr.mxu0 0.0
      %3860 = vmatpush2.msra.mxu0 0.0
      %3861 = vmatprep.subr.mxu0 0.0
      %3862 = vmatpush2.msra.mxu0 0.0
      %3863 = vmatprep.subr.mxu0 0.0
      %3864 = vmatpush2.msra.mxu0 0.0
      %3865 = vmatprep.subr.mxu0 0.0
      %3866 = vmatpush2.msra.mxu0 0.0
      %3867 = vmatprep.subr.mxu0 0.0
      %3868 = vmatpush2.msra.mxu0 0.0
      %3869 = vmatprep.subr.mxu0 0.0
      %3870 = vmatpush2.msra.mxu0 0.0
      %3871 = vmatprep.subr.mxu0 0.0
      %3872 = vmatpush2.msra.mxu0 0.0
      %3873 = vmatprep.subr.mxu0 0.0
      %3874 = vmatpush2.msra.mxu0 0.0
      %3875 = vmatprep.subr.mxu0 0.0
      %3876 = vmatpush2.msra.mxu0 0.0
      %3877 = vmatprep.subr.mxu0 0.0
      %3878 = vmatpush2.msra.mxu0 0.0
      %3879 = vmatprep.subr.mxu0 0.0
      %3880 = vmatpush2.msra.mxu0 0.0
      %3881 = vmatprep.subr.mxu0 0.0
      %3882 = vmatpush2.msra.mxu0 0.0
      %3883 = vmatprep.subr.mxu0 0.0
      %3884 = vmatpush2.msra.mxu0 0.0
      %3885 = vmatprep.subr.mxu0 0.0
      %3886 = vmatpush2.msra.mxu0 0.0
      %3887 = vmatprep.subr.mxu0 0.0
      %3888 = vmatpush2.msra.mxu0 0.0
      %3889 = vmatprep.subr.mxu0 0.0
      %3890 = vmatpush2.msra.mxu0 0.0
      %3891 = vmatprep.mubr.f32.mxu0 0.0
      %3892 = vmatmul.mubr.f32.gmra.mxu0 %v3816
      %v3893 = vpop.f32.mrf.mxu0
      %v3894 = vadd.f32 0.0, %v3893
      %v3895 = vpop.f32.mrf.mxu0
      %3896 = vmatprep.mubr.f32.mxu0 0.0
      %3897 = vmatmul.mubr.f32.gmra.mxu0 %v3819
      %v3898 = vpop.f32.mrf.mxu0
      %v3899 = vadd.f32 0.0, %v3898
      %v3900 = vpop.f32.mrf.mxu0
      %3901 = vmatprep.mubr.f32.mxu0 0.0
      %3902 = vmatmul.mubr.f32.gmra.mxu0 %v3822
      %v3903 = vpop.f32.mrf.mxu0
      %v3904 = vadd.f32 0.0, %v3903
      %v3905 = vpop.f32.mrf.mxu0
      %3906 = vmatprep.mubr.f32.mxu0 0.0
      %3907 = vmatmul.mubr.f32.gmra.mxu0 %v3825
      %v3908 = vpop.f32.mrf.mxu0
      %v3909 = vadd.f32 0.0, %v3908
      %v3910 = vpop.f32.mrf.mxu0
      %3911 = vdwg.mxu0
      %v3912 = vsub.f32 %v3894, %v517
      %v3913 = vsub.f32 %v3899, %v518
      %v3914 = vsub.f32 %v3904, %v519
      %v3915 = vsub.f32 %v3909, %v520
      %v3917 = vsel %vm525, %v3912, 0
      %v3920 = vsel %vm525, %v3913, 0
      %v3923 = vsel %vm525, %v3914, 0
      %v3926 = vsel %vm525, %v3915, 0
      %3928 = vmatprep.subr.mxu0 0.0
      %3929 = vmatpush1.msra.mxu0 0.0
      %3930 = vmatprep.subr.mxu0 0.0
      %3931 = vmatpush1.msra.mxu0 0.0
      %3932 = vmatprep.subr.mxu0 0.0
      %3933 = vmatpush1.msra.mxu0 0.0
      %3934 = vmatprep.subr.mxu0 0.0
      %3935 = vmatpush1.msra.mxu0 0.0
      %3936 = vmatprep.subr.mxu0 0.0
      %3937 = vmatpush1.msra.mxu0 0.0
      %3938 = vmatprep.subr.mxu0 0.0
      %3939 = vmatpush1.msra.mxu0 0.0
      %3940 = vmatprep.subr.mxu0 0.0
      %3941 = vmatpush1.msra.mxu0 0.0
      %3942 = vmatprep.subr.mxu0 0.0
      %3943 = vmatpush1.msra.mxu0 0.0
      %3944 = vmatprep.subr.mxu0 0.0
      %3945 = vmatpush1.msra.mxu0 0.0
      %3946 = vmatprep.subr.mxu0 0.0
      %3947 = vmatpush1.msra.mxu0 0.0
      %3948 = vmatprep.subr.mxu0 0.0
      %3949 = vmatpush1.msra.mxu0 0.0
      %3950 = vmatprep.subr.mxu0 0.0
      %3951 = vmatpush1.msra.mxu0 0.0
      %3952 = vmatprep.subr.mxu0 0.0
      %3953 = vmatpush1.msra.mxu0 0.0
      %3954 = vmatprep.subr.mxu0 0.0
      %3955 = vmatpush1.msra.mxu0 0.0
      %3956 = vmatprep.subr.mxu0 0.0
      %3957 = vmatpush1.msra.mxu0 0.0
      %3958 = vmatprep.subr.mxu0 0.0
      %3959 = vmatpush1.msra.mxu0 %v1029
      %3960 = vmatprep.subr.mxu0 0.0
      %3961 = vmatpush2.msra.mxu0 0.0
      %3962 = vmatprep.subr.mxu0 0.0
      %3963 = vmatpush2.msra.mxu0 0.0
      %3964 = vmatprep.subr.mxu0 0.0
      %3965 = vmatpush2.msra.mxu0 0.0
      %3966 = vmatprep.subr.mxu0 0.0
      %3967 = vmatpush2.msra.mxu0 0.0
      %3968 = vmatprep.subr.mxu0 0.0
      %3969 = vmatpush2.msra.mxu0 0.0
      %3970 = vmatprep.subr.mxu0 0.0
      %3971 = vmatpush2.msra.mxu0 0.0
      %3972 = vmatprep.subr.mxu0 0.0
      %3973 = vmatpush2.msra.mxu0 0.0
      %3974 = vmatprep.subr.mxu0 0.0
      %3975 = vmatpush2.msra.mxu0 0.0
      %3976 = vmatprep.subr.mxu0 0.0
      %3977 = vmatpush2.msra.mxu0 0.0
      %3978 = vmatprep.subr.mxu0 0.0
      %3979 = vmatpush2.msra.mxu0 0.0
      %3980 = vmatprep.subr.mxu0 0.0
      %3981 = vmatpush2.msra.mxu0 0.0
      %3982 = vmatprep.subr.mxu0 0.0
      %3983 = vmatpush2.msra.mxu0 0.0
      %3984 = vmatprep.subr.mxu0 0.0
      %3985 = vmatpush2.msra.mxu0 0.0
      %3986 = vmatprep.subr.mxu0 0.0
      %3987 = vmatpush2.msra.mxu0 0.0
      %3988 = vmatprep.subr.mxu0 0.0
      %3989 = vmatpush2.msra.mxu0 0.0
      %3990 = vmatprep.subr.mxu0 0.0
      %3991 = vmatpush2.msra.mxu0 0.0
      %3992 = vmatprep.mubr.f32.mxu0 0.0
      %3993 = vmatmul.mubr.f32.gmra.mxu0 %v3917
      %v3994 = vpop.f32.mrf.mxu0
      %v3995 = vadd.f32 0.0, %v3994
      %v3996 = vpop.f32.mrf.mxu0
      %3997 = vmatprep.mubr.f32.mxu0 0.0
      %3998 = vmatmul.mubr.f32.gmra.mxu0 %v3920
      %v3999 = vpop.f32.mrf.mxu0
      %v4000 = vadd.f32 0.0, %v3999
      %v4001 = vpop.f32.mrf.mxu0
      %4002 = vmatprep.mubr.f32.mxu0 0.0
      %4003 = vmatmul.mubr.f32.gmra.mxu0 %v3923
      %v4004 = vpop.f32.mrf.mxu0
      %v4005 = vadd.f32 0.0, %v4004
      %v4006 = vpop.f32.mrf.mxu0
      %4007 = vmatprep.mubr.f32.mxu0 0.0
      %4008 = vmatmul.mubr.f32.gmra.mxu0 %v3926
      %v4009 = vpop.f32.mrf.mxu0
      %v4010 = vadd.f32 0.0, %v4009
      %v4011 = vpop.f32.mrf.mxu0
      %4012 = vdwg.mxu0
      %v4013 = vadd.f32 %v804, %v3995
      %v4014 = vadd.f32 %v809, %v4000
      %v4015 = vadd.f32 %v814, %v4005
      %v4016 = vadd.f32 %v819, %v4010
      %v4017 = vmul.f32 %v4013, %v1123
      %v4018 = vmul.f32 %v4014, %v1123
      %v4019 = vmul.f32 %v4015, %v1123
      %v4020 = vmul.f32 %v4016, %v1123
      %v4021 = vadd.f32 %v4017, %v1131
      %v4022 = vadd.f32 %v4018, %v1131
      %v4023 = vadd.f32 %v4019, %v1131
      %v4024 = vadd.f32 %v4020, %v1131
      %v4025 = vmax.f32 %v4021, 0.0
      %v4026 = vmax.f32 %v4022, 0.0
      %v4027 = vmax.f32 %v4023, 0.0
      %v4028 = vmax.f32 %v4024, 0.0
      %v4030 = vsel %vm1155, %v4025, 0
      %v4033 = vsel %vm1155, %v4026, 0
      %v4036 = vsel %vm1155, %v4027, 0
      %v4039 = vsel %vm1155, %v4028, 0
      %4041 = vmatprep.subr.mxu0 0.0
      %4042 = vmatpush1.msra.mxu0 0.0
      %4043 = vmatprep.subr.mxu0 0.0
      %4044 = vmatpush1.msra.mxu0 0.0
      %4045 = vmatprep.subr.mxu0 0.0
      %4046 = vmatpush1.msra.mxu0 0.0
      %4047 = vmatprep.subr.mxu0 0.0
      %4048 = vmatpush1.msra.mxu0 0.0
      %4049 = vmatprep.subr.mxu0 0.0
      %4050 = vmatpush1.msra.mxu0 0.0
      %4051 = vmatprep.subr.mxu0 0.0
      %4052 = vmatpush1.msra.mxu0 0.0
      %4053 = vmatprep.subr.mxu0 0.0
      %4054 = vmatpush1.msra.mxu0 0.0
      %4055 = vmatprep.subr.mxu0 0.0
      %4056 = vmatpush1.msra.mxu0 0.0
      %4057 = vmatprep.subr.mxu0 0.0
      %4058 = vmatpush1.msra.mxu0 %v1147
      %4059 = vmatprep.subr.mxu0 0.0
      %4060 = vmatpush1.msra.mxu0 %v1146
      %4061 = vmatprep.subr.mxu0 0.0
      %4062 = vmatpush1.msra.mxu0 %v1145
      %4063 = vmatprep.subr.mxu0 0.0
      %4064 = vmatpush1.msra.mxu0 %v1144
      %4065 = vmatprep.subr.mxu0 0.0
      %4066 = vmatpush1.msra.mxu0 %v1143
      %4067 = vmatprep.subr.mxu0 0.0
      %4068 = vmatpush1.msra.mxu0 %v1142
      %4069 = vmatprep.subr.mxu0 0.0
      %4070 = vmatpush1.msra.mxu0 %v1141
      %4071 = vmatprep.subr.mxu0 0.0
      %4072 = vmatpush1.msra.mxu0 %v1140
      %4073 = vmatprep.subr.mxu0 0.0
      %4074 = vmatpush2.msra.mxu0 0.0
      %4075 = vmatprep.subr.mxu0 0.0
      %4076 = vmatpush2.msra.mxu0 0.0
      %4077 = vmatprep.subr.mxu0 0.0
      %4078 = vmatpush2.msra.mxu0 0.0
      %4079 = vmatprep.subr.mxu0 0.0
      %4080 = vmatpush2.msra.mxu0 0.0
      %4081 = vmatprep.subr.mxu0 0.0
      %4082 = vmatpush2.msra.mxu0 0.0
      %4083 = vmatprep.subr.mxu0 0.0
      %4084 = vmatpush2.msra.mxu0 0.0
      %4085 = vmatprep.subr.mxu0 0.0
      %4086 = vmatpush2.msra.mxu0 0.0
      %4087 = vmatprep.subr.mxu0 0.0
      %4088 = vmatpush2.msra.mxu0 0.0
      %4089 = vmatprep.subr.mxu0 0.0
      %4090 = vmatpush2.msra.mxu0 0.0
      %4091 = vmatprep.subr.mxu0 0.0
      %4092 = vmatpush2.msra.mxu0 0.0
      %4093 = vmatprep.subr.mxu0 0.0
      %4094 = vmatpush2.msra.mxu0 0.0
      %4095 = vmatprep.subr.mxu0 0.0
      %4096 = vmatpush2.msra.mxu0 0.0
      %4097 = vmatprep.subr.mxu0 0.0
      %4098 = vmatpush2.msra.mxu0 0.0
      %4099 = vmatprep.subr.mxu0 0.0
      %4100 = vmatpush2.msra.mxu0 0.0
      %4101 = vmatprep.subr.mxu0 0.0
      %4102 = vmatpush2.msra.mxu0 0.0
      %4103 = vmatprep.subr.mxu0 0.0
      %4104 = vmatpush2.msra.mxu0 0.0
      %4105 = vmatprep.mubr.f32.mxu0 0.0
      %4106 = vmatmul.mubr.f32.gmra.mxu0 %v4030
      %v4107 = vpop.f32.mrf.mxu0
      %v4108 = vadd.f32 %v1153, %v4107
      %v4109 = vpop.f32.mrf.mxu0
      %4110 = vmatprep.mubr.f32.mxu0 0.0
      %4111 = vmatmul.mubr.f32.gmra.mxu0 %v4033
      %v4112 = vpop.f32.mrf.mxu0
      %v4113 = vadd.f32 %v1153, %v4112
      %v4114 = vpop.f32.mrf.mxu0
      %4115 = vmatprep.mubr.f32.mxu0 0.0
      %4116 = vmatmul.mubr.f32.gmra.mxu0 %v4036
      %v4117 = vpop.f32.mrf.mxu0
      %v4118 = vadd.f32 %v1153, %v4117
      %v4119 = vpop.f32.mrf.mxu0
      %4120 = vmatprep.mubr.f32.mxu0 0.0
      %4121 = vmatmul.mubr.f32.gmra.mxu0 %v4039
      %v4122 = vpop.f32.mrf.mxu0
      %v4123 = vadd.f32 %v1153, %v4122
      %v4124 = vpop.f32.mrf.mxu0
      %4125 = vdwg.mxu0
      %v4126 = vmax.f32 %v3715, %v4108
      %v4127 = vmax.f32 %v3716, %v4113
      %v4128 = vmax.f32 %v3717, %v4118
      %v4129 = vmax.f32 %v3718, %v4123
      %v4131 = vsel %vm1155, %v4126, 0
      %v4134 = vsel %vm1155, %v4127, 0
      %v4137 = vsel %vm1155, %v4128, 0
      %v4140 = vsel %vm1155, %v4129, 0
      %4142 = vmatprep.subr.mxu0 0.0
      %4143 = vmatpush1.xpose.msra.mxu0 0.0
      %4144 = vmatprep.subr.mxu0 0.0
      %4145 = vmatpush1.xpose.msra.mxu0 0.0
      %4146 = vmatprep.subr.mxu0 0.0
      %4147 = vmatpush1.xpose.msra.mxu0 0.0
      %4148 = vmatprep.subr.mxu0 0.0
      %4149 = vmatpush1.xpose.msra.mxu0 0.0
      %4150 = vmatprep.subr.mxu0 0.0
      %4151 = vmatpush1.xpose.msra.mxu0 0.0
      %4152 = vmatprep.subr.mxu0 0.0
      %4153 = vmatpush1.xpose.msra.mxu0 0.0
      %4154 = vmatprep.subr.mxu0 0.0
      %4155 = vmatpush1.xpose.msra.mxu0 0.0
      %4156 = vmatprep.subr.mxu0 0.0
      %4157 = vmatpush1.xpose.msra.mxu0 0.0
      %4158 = vmatprep.subr.mxu0 0.0
      %4159 = vmatpush1.xpose.msra.mxu0 0.0
      %4160 = vmatprep.subr.mxu0 0.0
      %4161 = vmatpush1.xpose.msra.mxu0 0.0
      %4162 = vmatprep.subr.mxu0 0.0
      %4163 = vmatpush1.xpose.msra.mxu0 0.0
      %4164 = vmatprep.subr.mxu0 0.0
      %4165 = vmatpush1.xpose.msra.mxu0 0.0
      %4166 = vmatprep.subr.mxu0 0.0
      %4167 = vmatpush1.xpose.msra.mxu0 %v4140
      %4168 = vmatprep.subr.mxu0 0.0
      %4169 = vmatpush1.xpose.msra.mxu0 %v4137
      %4170 = vmatprep.subr.mxu0 0.0
      %4171 = vmatpush1.xpose.msra.mxu0 %v4134
      %4172 = vmatprep.subr.mxu0 0.0
      %4173 = vmatpush1.xpose.msra.mxu0 %v4131
      %4174 = vmatprep.subr.mxu0 0.0
      %4175 = vmatpush2.xpose.msra.mxu0 0.0
      %4176 = vmatprep.subr.mxu0 0.0
      %4177 = vmatpush2.xpose.msra.mxu0 0.0
      %4178 = vmatprep.subr.mxu0 0.0
      %4179 = vmatpush2.xpose.msra.mxu0 0.0
      %4180 = vmatprep.subr.mxu0 0.0
      %4181 = vmatpush2.xpose.msra.mxu0 0.0
      %4182 = vmatprep.subr.mxu0 0.0
      %4183 = vmatpush2.xpose.msra.mxu0 0.0
      %4184 = vmatprep.subr.mxu0 0.0
      %4185 = vmatpush2.xpose.msra.mxu0 0.0
      %4186 = vmatprep.subr.mxu0 0.0
      %4187 = vmatpush2.xpose.msra.mxu0 0.0
      %4188 = vmatprep.subr.mxu0 0.0
      %4189 = vmatpush2.xpose.msra.mxu0 0.0
      %4190 = vmatprep.subr.mxu0 0.0
      %4191 = vmatpush2.xpose.msra.mxu0 0.0
      %4192 = vmatprep.subr.mxu0 0.0
      %4193 = vmatpush2.xpose.msra.mxu0 0.0
      %4194 = vmatprep.subr.mxu0 0.0
      %4195 = vmatpush2.xpose.msra.mxu0 0.0
      %4196 = vmatprep.subr.mxu0 0.0
      %4197 = vmatpush2.xpose.msra.mxu0 0.0
      %4198 = vmatprep.subr.mxu0 0.0
      %4199 = vmatpush2.xpose.msra.mxu0 0.0
      %4200 = vmatprep.subr.mxu0 0.0
      %4201 = vmatpush2.xpose.msra.mxu0 0.0
      %4202 = vmatprep.subr.mxu0 0.0
      %4203 = vmatpush2.xpose.msra.mxu0 0.0
      %4204 = vmatprep.subr.mxu0 0.0
      %4205 = vmatpush2.xpose.msra.mxu0 0.0
      %4206 = vmatprep.mubr.f32.mxu0 0.0
      %4207 = vmatmul.mubr.f32.gmra.mxu0 %v4131
      %v4208 = vpop.f32.mrf.mxu0
      %v4209 = vadd.f32 0.0, %v4208
      %v4210 = vpop.f32.mrf.mxu0
      %4211 = vmatprep.mubr.f32.mxu0 0.0
      %4212 = vmatmul.mubr.f32.gmra.mxu0 %v4134
      %v4213 = vpop.f32.mrf.mxu0
      %v4214 = vadd.f32 0.0, %v4213
      %v4215 = vpop.f32.mrf.mxu0
      %4216 = vmatprep.mubr.f32.mxu0 0.0
      %4217 = vmatmul.mubr.f32.gmra.mxu0 %v4137
      %v4218 = vpop.f32.mrf.mxu0
      %v4219 = vadd.f32 0.0, %v4218
      %v4220 = vpop.f32.mrf.mxu0
      %4221 = vmatprep.mubr.f32.mxu0 0.0
      %4222 = vmatmul.mubr.f32.gmra.mxu0 %v4140
      %v4223 = vpop.f32.mrf.mxu0
      %v4224 = vadd.f32 0.0, %v4223
      %v4225 = vpop.f32.mrf.mxu0
      %4226 = vdwg.mxu0
      %v4227 = vmul.f32 %v4126, %v4126
      %v4228 = vmul.f32 %v4127, %v4127
      %v4229 = vmul.f32 %v4128, %v4128
      %v4230 = vmul.f32 %v4129, %v4129
      %v4231 = vsel %vm1155, 1.0, 0
      %v4234 = vsel %vm1155, %v4227, 0
      %v4237 = vsel %vm1155, %v4228, 0
      %v4240 = vsel %vm1155, %v4229, 0
      %v4243 = vsel %vm1155, %v4230, 0
      %4245 = vmatprep.subr.mxu0 0.0
      %4246 = vmatpush1.xpose.msra.mxu0 0.0
      %4247 = vmatprep.subr.mxu0 0.0
      %4248 = vmatpush1.xpose.msra.mxu0 0.0
      %4249 = vmatprep.subr.mxu0 0.0
      %4250 = vmatpush1.xpose.msra.mxu0 0.0
      %4251 = vmatprep.subr.mxu0 0.0
      %4252 = vmatpush1.xpose.msra.mxu0 0.0
      %4253 = vmatprep.subr.mxu0 0.0
      %4254 = vmatpush1.xpose.msra.mxu0 0.0
      %4255 = vmatprep.subr.mxu0 0.0
      %4256 = vmatpush1.xpose.msra.mxu0 0.0
      %4257 = vmatprep.subr.mxu0 0.0
      %4258 = vmatpush1.xpose.msra.mxu0 0.0
      %4259 = vmatprep.subr.mxu0 0.0
      %4260 = vmatpush1.xpose.msra.mxu0 0.0
      %4261 = vmatprep.subr.mxu0 0.0
      %4262 = vmatpush1.xpose.msra.mxu0 0.0
      %4263 = vmatprep.subr.mxu0 0.0
      %4264 = vmatpush1.xpose.msra.mxu0 0.0
      %4265 = vmatprep.subr.mxu0 0.0
      %4266 = vmatpush1.xpose.msra.mxu0 0.0
      %4267 = vmatprep.subr.mxu0 0.0
      %4268 = vmatpush1.xpose.msra.mxu0 0.0
      %4269 = vmatprep.subr.mxu0 0.0
      %4270 = vmatpush1.xpose.msra.mxu0 %v4243
      %4271 = vmatprep.subr.mxu0 0.0
      %4272 = vmatpush1.xpose.msra.mxu0 %v4240
      %4273 = vmatprep.subr.mxu0 0.0
      %4274 = vmatpush1.xpose.msra.mxu0 %v4237
      %4275 = vmatprep.subr.mxu0 0.0
      %4276 = vmatpush1.xpose.msra.mxu0 %v4234
      %4277 = vmatprep.subr.mxu0 0.0
      %4278 = vmatpush2.xpose.msra.mxu0 0.0
      %4279 = vmatprep.subr.mxu0 0.0
      %4280 = vmatpush2.xpose.msra.mxu0 0.0
      %4281 = vmatprep.subr.mxu0 0.0
      %4282 = vmatpush2.xpose.msra.mxu0 0.0
      %4283 = vmatprep.subr.mxu0 0.0
      %4284 = vmatpush2.xpose.msra.mxu0 0.0
      %4285 = vmatprep.subr.mxu0 0.0
      %4286 = vmatpush2.xpose.msra.mxu0 0.0
      %4287 = vmatprep.subr.mxu0 0.0
      %4288 = vmatpush2.xpose.msra.mxu0 0.0
      %4289 = vmatprep.subr.mxu0 0.0
      %4290 = vmatpush2.xpose.msra.mxu0 0.0
      %4291 = vmatprep.subr.mxu0 0.0
      %4292 = vmatpush2.xpose.msra.mxu0 0.0
      %4293 = vmatprep.subr.mxu0 0.0
      %4294 = vmatpush2.xpose.msra.mxu0 0.0
      %4295 = vmatprep.subr.mxu0 0.0
      %4296 = vmatpush2.xpose.msra.mxu0 0.0
      %4297 = vmatprep.subr.mxu0 0.0
      %4298 = vmatpush2.xpose.msra.mxu0 0.0
      %4299 = vmatprep.subr.mxu0 0.0
      %4300 = vmatpush2.xpose.msra.mxu0 0.0
      %4301 = vmatprep.subr.mxu0 0.0
      %4302 = vmatpush2.xpose.msra.mxu0 0.0
      %4303 = vmatprep.subr.mxu0 0.0
      %4304 = vmatpush2.xpose.msra.mxu0 0.0
      %4305 = vmatprep.subr.mxu0 0.0
      %4306 = vmatpush2.xpose.msra.mxu0 0.0
      %4307 = vmatprep.subr.mxu0 0.0
      %4308 = vmatpush2.xpose.msra.mxu0 0.0
      %4309 = vmatprep.mubr.f32.mxu0 0.0
      %4310 = vmatmul.mubr.f32.gmra.mxu0 %v4231
      %v4311 = vpop.f32.mrf.mxu0
      %v4312 = vadd.f32 0.0, %v4311
      %v4313 = vpop.f32.mrf.mxu0
      %4314 = vdwg.mxu0
      %v4315 = vmul.f32 %v4209, 2.0
      %v4316 = vmul.f32 %v4214, 2.0
      %v4317 = vmul.f32 %v4219, 2.0
      %v4318 = vmul.f32 %v4224, 2.0
      %v4319 = vlaneseq
      %v4320 = vshrl.u32 %v4319, 7
      %v4321 = vsub.s32 0, %v4320
      %v4322 = vrot.slane %v4312, %v4321
      %v4323 = vsub.f32 %v4322, %v4315
      %v4324 = vsub.f32 %v4322, %v4316
      %v4325 = vsub.f32 %v4322, %v4317
      %v4326 = vsub.f32 %v4322, %v4318
      %v4327 = vld [vmem:[%s6] sm:$0xff]
      %v4328 = vld [vmem:[%s6 + $0x8] sm:$0xff]
      %v4329 = vld [vmem:[%s6 + $0x10] sm:$0xff]
      %v4330 = vld [vmem:[%s6 + $0x18] sm:$0xff]
      %v4331 = vld [vmem:[%s6 + $0x20] sm:$0xff]
      %v4332 = vld [vmem:[%s6 + $0x28] sm:$0xff]
      %v4333 = vld [vmem:[%s6 + $0x30] sm:$0xff]
      %v4334 = vld [vmem:[%s6 + $0x38] sm:$0xff]
      %v4335 = vld [vmem:[%s6 + $0x40] sm:$0xff]
      %v4336 = vld [vmem:[%s6 + $0x48] sm:$0xff]
      %v4337 = vld [vmem:[%s6 + $0x50] sm:$0xff]
      %v4338 = vld [vmem:[%s6 + $0x58] sm:$0xff]
      %v4339 = vld [vmem:[%s6 + $0x60] sm:$0xff]
      %v4340 = vld [vmem:[%s6 + $0x68] sm:$0xff]
      %v4341 = vld [vmem:[%s6 + $0x70] sm:$0xff]
      %v4342 = vld [vmem:[%s6 + $0x78] sm:$0xff]
      %v4343 = vld [vmem:[%s7] sm:$0x1]
      %v4345 = vlaneseq
      %v4346 = vshrl.u32 %v4345, 7
      %v4347 = vsub.s32 0, %v4346
      %v4348 = vrot.slane %v4343, %v4347
      %4350 = vmatprep.subr.mxu0 0.0
      %4351 = vmatpush1.msra.mxu0 0.0
      %4352 = vmatprep.subr.mxu0 0.0
      %4353 = vmatpush1.msra.mxu0 0.0
      %4354 = vmatprep.subr.mxu0 0.0
      %4355 = vmatpush1.msra.mxu0 0.0
      %4356 = vmatprep.subr.mxu0 0.0
      %4357 = vmatpush1.msra.mxu0 0.0
      %4358 = vmatprep.subr.mxu0 0.0
      %4359 = vmatpush1.msra.mxu0 0.0
      %4360 = vmatprep.subr.mxu0 0.0
      %4361 = vmatpush1.msra.mxu0 0.0
      %4362 = vmatprep.subr.mxu0 0.0
      %4363 = vmatpush1.msra.mxu0 0.0
      %4364 = vmatprep.subr.mxu0 0.0
      %4365 = vmatpush1.msra.mxu0 0.0
      %4366 = vmatprep.subr.mxu0 0.0
      %4367 = vmatpush1.msra.mxu0 %v4334
      %4368 = vmatprep.subr.mxu0 0.0
      %4369 = vmatpush1.msra.mxu0 %v4333
      %4370 = vmatprep.subr.mxu0 0.0
      %4371 = vmatpush1.msra.mxu0 %v4332
      %4372 = vmatprep.subr.mxu0 0.0
      %4373 = vmatpush1.msra.mxu0 %v4331
      %4374 = vmatprep.subr.mxu0 0.0
      %4375 = vmatpush1.msra.mxu0 %v4330
      %4376 = vmatprep.subr.mxu0 0.0
      %4377 = vmatpush1.msra.mxu0 %v4329
      %4378 = vmatprep.subr.mxu0 0.0
      %4379 = vmatpush1.msra.mxu0 %v4328
      %4380 = vmatprep.subr.mxu0 0.0
      %4381 = vmatpush1.msra.mxu0 %v4327
      %4382 = vmatprep.subr.mxu0 0.0
      %4383 = vmatpush2.msra.mxu0 0.0
      %4384 = vmatprep.subr.mxu0 0.0
      %4385 = vmatpush2.msra.mxu0 0.0
      %4386 = vmatprep.subr.mxu0 0.0
      %4387 = vmatpush2.msra.mxu0 0.0
      %4388 = vmatprep.subr.mxu0 0.0
      %4389 = vmatpush2.msra.mxu0 0.0
      %4390 = vmatprep.subr.mxu0 0.0
      %4391 = vmatpush2.msra.mxu0 0.0
      %4392 = vmatprep.subr.mxu0 0.0
      %4393 = vmatpush2.msra.mxu0 0.0
      %4394 = vmatprep.subr.mxu0 0.0
      %4395 = vmatpush2.msra.mxu0 0.0
      %4396 = vmatprep.subr.mxu0 0.0
      %4397 = vmatpush2.msra.mxu0 0.0
      %4398 = vmatprep.subr.mxu0 0.0
      %4399 = vmatpush2.msra.mxu0 0.0
      %4400 = vmatprep.subr.mxu0 0.0
      %4401 = vmatpush2.msra.mxu0 0.0
      %4402 = vmatprep.subr.mxu0 0.0
      %4403 = vmatpush2.msra.mxu0 0.0
      %4404 = vmatprep.subr.mxu0 0.0
      %4405 = vmatpush2.msra.mxu0 0.0
      %4406 = vmatprep.subr.mxu0 0.0
      %4407 = vmatpush2.msra.mxu0 0.0
      %4408 = vmatprep.subr.mxu0 0.0
      %4409 = vmatpush2.msra.mxu0 0.0
      %4410 = vmatprep.subr.mxu0 0.0
      %4411 = vmatpush2.msra.mxu0 0.0
      %4412 = vmatprep.subr.mxu0 0.0
      %4413 = vmatpush2.msra.mxu0 0.0
      %4414 = vmatprep.mubr.f32.mxu0 0.0
      %4415 = vmatmul.mubr.f32.gmra.mxu0 %v4131
      %v4416 = vpop.f32.mrf.mxu0
      %v4417 = vadd.f32 %v4348, %v4416
      %v4418 = vpop.f32.mrf.mxu0
      %4419 = vmatprep.mubr.f32.mxu0 0.0
      %4420 = vmatmul.mubr.f32.gmra.mxu0 %v4134
      %v4421 = vpop.f32.mrf.mxu0
      %v4422 = vadd.f32 %v4348, %v4421
      %v4423 = vpop.f32.mrf.mxu0
      %4424 = vmatprep.mubr.f32.mxu0 0.0
      %4425 = vmatmul.mubr.f32.gmra.mxu0 %v4137
      %v4426 = vpop.f32.mrf.mxu0
      %v4427 = vadd.f32 %v4348, %v4426
      %v4428 = vpop.f32.mrf.mxu0
      %4429 = vmatprep.mubr.f32.mxu0 0.0
      %4430 = vmatmul.mubr.f32.gmra.mxu0 %v4140
      %v4431 = vpop.f32.mrf.mxu0
      %v4432 = vadd.f32 %v4348, %v4431
      %v4433 = vpop.f32.mrf.mxu0
      %4434 = vdwg.mxu0
      %v4435 = vsel %vm822, %v4323, inf
      %4436 = vmin.xlane.f32.xlu0 %v4435
      %v4437 = vpop.xlane.xlu0 %4436
      %v4438 = vsel %vm822, %v4324, inf
      %4439 = vmin.xlane.f32.xlu0 %v4438
      %v4440 = vpop.xlane.xlu0 %4439
      %v4441 = vsel %vm822, %v4325, inf
      %4442 = vmin.xlane.f32.xlu0 %v4441
      %v4443 = vpop.xlane.xlu0 %4442
      %v4444 = vsel %vm822, %v4326, inf
      %4445 = vmin.xlane.f32.xlu0 %v4444
      %v4446 = vpop.xlane.xlu0 %4445
      %vm4447 = vcmp.eq.f32.partialorder %v4323, %v4437
      %vm4448 = vcmp.eq.f32.partialorder %v4324, %v4440
      %vm4449 = vcmp.eq.f32.partialorder %v4325, %v4443
      %vm4450 = vcmp.eq.f32.partialorder %v4326, %v4446
      %v4451 = vsel %vm4447, %v524, 32
      %v4452 = vsel %vm4448, %v524, 32
      %v4453 = vsel %vm4449, %v524, 32
      %v4454 = vsel %vm4450, %v524, 32
      %v4455 = vsel %vm822, %v4451, 2147483647
      %v4456 = vand.u32 %v4455, 65535
      %v4457 = vshra.s32 %v4455, 16
      %v4458 = vcvt.s32.f32 %v4456
      %v4459 = vcvt.s32.f32 %v4457
      %4460 = vmin.xlane.f32.xlu0 %v4459
      %v4461 = vpop.xlane.xlu0 %4460
      %vm4462 = vcmp.eq.f32.partialorder %v4459, %v4461
      %v4463 = vsel %vm4462, %v4458, inf
      %4464 = vmin.xlane.f32.xlu0 %v4463
      %v4465 = vpop.xlane.xlu0 %4464
      %v4466 = vcvt.f32.s32 %v4465
      %v4467 = vcvt.f32.s32 %v4461
      %v4468 = vshll.u32 %v4467, 16
      %v4469 = vadd.s32 %v4468, %v4466
      %v4470 = vsel %vm822, %v4452, 2147483647
      %v4471 = vand.u32 %v4470, 65535
      %v4472 = vshra.s32 %v4470, 16
      %v4473 = vcvt.s32.f32 %v4471
      %v4474 = vcvt.s32.f32 %v4472
      %4475 = vmin.xlane.f32.xlu0 %v4474
      %v4476 = vpop.xlane.xlu0 %4475
      %vm4477 = vcmp.eq.f32.partialorder %v4474, %v4476
      %v4478 = vsel %vm4477, %v4473, inf
      %4479 = vmin.xlane.f32.xlu0 %v4478
      %v4480 = vpop.xlane.xlu0 %4479
      %v4481 = vcvt.f32.s32 %v4480
      %v4482 = vcvt.f32.s32 %v4476
      %v4483 = vshll.u32 %v4482, 16
      %v4484 = vadd.s32 %v4483, %v4481
      %v4485 = vsel %vm822, %v4453, 2147483647
      %v4486 = vand.u32 %v4485, 65535
      %v4487 = vshra.s32 %v4485, 16
      %v4488 = vcvt.s32.f32 %v4486
      %v4489 = vcvt.s32.f32 %v4487
      %4490 = vmin.xlane.f32.xlu0 %v4489
      %v4491 = vpop.xlane.xlu0 %4490
      %vm4492 = vcmp.eq.f32.partialorder %v4489, %v4491
      %v4493 = vsel %vm4492, %v4488, inf
      %4494 = vmin.xlane.f32.xlu0 %v4493
      %v4495 = vpop.xlane.xlu0 %4494
      %v4496 = vcvt.f32.s32 %v4495
      %v4497 = vcvt.f32.s32 %v4491
      %v4498 = vshll.u32 %v4497, 16
      %v4499 = vadd.s32 %v4498, %v4496
      %v4500 = vsel %vm822, %v4454, 2147483647
      %v4501 = vand.u32 %v4500, 65535
      %v4502 = vshra.s32 %v4500, 16
      %v4503 = vcvt.s32.f32 %v4501
      %v4504 = vcvt.s32.f32 %v4502
      %4505 = vmin.xlane.f32.xlu0 %v4504
      %v4506 = vpop.xlane.xlu0 %4505
      %vm4507 = vcmp.eq.f32.partialorder %v4504, %v4506
      %v4508 = vsel %vm4507, %v4503, inf
      %4509 = vmin.xlane.f32.xlu0 %v4508
      %v4510 = vpop.xlane.xlu0 %4509
      %v4511 = vcvt.f32.s32 %v4510
      %v4512 = vcvt.f32.s32 %v4506
      %v4513 = vshll.u32 %v4512, 16
      %v4514 = vadd.s32 %v4513, %v4511
      %vm4515 = vcmp.eq.s32.totalorder %v524, %v4469
      %vm4516 = vcmp.eq.s32.totalorder %v524, %v4484
      %vm4517 = vcmp.eq.s32.totalorder %v524, %v4499
      %vm4518 = vcmp.eq.s32.totalorder %v524, %v4514
      %v4519 = vsel %vm4515, 1, 0
      %v4520 = vsel %vm4516, 1, 0
      %v4521 = vsel %vm4517, 1, 0
      %v4522 = vsel %vm4518, 1, 0
      %v4523 = vcvt.s32.f32 %v4519
      %v4524 = vcvt.s32.f32 %v4520
      %v4525 = vcvt.s32.f32 %v4521
      %v4526 = vcvt.s32.f32 %v4522
      %v4528 = vsel %vm822, %v4523, 0
      %v4531 = vsel %vm822, %v4524, 0
      %v4534 = vsel %vm822, %v4525, 0
      %v4537 = vsel %vm822, %v4526, 0
      %4539 = vmatprep.subr.mxu0 0.0
      %4540 = vmatpush1.msra.mxu0 0.0
      %4541 = vmatprep.subr.mxu0 0.0
      %4542 = vmatpush1.msra.mxu0 0.0
      %4543 = vmatprep.subr.mxu0 0.0
      %4544 = vmatpush1.msra.mxu0 0.0
      %4545 = vmatprep.subr.mxu0 0.0
      %4546 = vmatpush1.msra.mxu0 0.0
      %4547 = vmatprep.subr.mxu0 0.0
      %4548 = vmatpush1.msra.mxu0 0.0
      %4549 = vmatprep.subr.mxu0 0.0
      %4550 = vmatpush1.msra.mxu0 0.0
      %4551 = vmatprep.subr.mxu0 0.0
      %4552 = vmatpush1.msra.mxu0 0.0
      %4553 = vmatprep.subr.mxu0 0.0
      %4554 = vmatpush1.msra.mxu0 0.0
      %4555 = vmatprep.subr.mxu0 0.0
      %4556 = vmatpush1.msra.mxu0 0.0
      %4557 = vmatprep.subr.mxu0 0.0
      %4558 = vmatpush1.msra.mxu0 0.0
      %4559 = vmatprep.subr.mxu0 0.0
      %4560 = vmatpush1.msra.mxu0 0.0
      %4561 = vmatprep.subr.mxu0 0.0
      %4562 = vmatpush1.msra.mxu0 0.0
      %4563 = vmatprep.subr.mxu0 0.0
      %4564 = vmatpush1.msra.mxu0 %v4129
      %4565 = vmatprep.subr.mxu0 0.0
      %4566 = vmatpush1.msra.mxu0 %v4128
      %4567 = vmatprep.subr.mxu0 0.0
      %4568 = vmatpush1.msra.mxu0 %v4127
      %4569 = vmatprep.subr.mxu0 0.0
      %4570 = vmatpush1.msra.mxu0 %v4126
      %4571 = vmatprep.subr.mxu0 0.0
      %4572 = vmatpush2.msra.mxu0 0.0
      %4573 = vmatprep.subr.mxu0 0.0
      %4574 = vmatpush2.msra.mxu0 0.0
      %4575 = vmatprep.subr.mxu0 0.0
      %4576 = vmatpush2.msra.mxu0 0.0
      %4577 = vmatprep.subr.mxu0 0.0
      %4578 = vmatpush2.msra.mxu0 0.0
      %4579 = vmatprep.subr.mxu0 0.0
      %4580 = vmatpush2.msra.mxu0 0.0
      %4581 = vmatprep.subr.mxu0 0.0
      %4582 = vmatpush2.msra.mxu0 0.0
      %4583 = vmatprep.subr.mxu0 0.0
      %4584 = vmatpush2.msra.mxu0 0.0
      %4585 = vmatprep.subr.mxu0 0.0
      %4586 = vmatpush2.msra.mxu0 0.0
      %4587 = vmatprep.subr.mxu0 0.0
      %4588 = vmatpush2.msra.mxu0 0.0
      %4589 = vmatprep.subr.mxu0 0.0
      %4590 = vmatpush2.msra.mxu0 0.0
      %4591 = vmatprep.subr.mxu0 0.0
      %4592 = vmatpush2.msra.mxu0 0.0
      %4593 = vmatprep.subr.mxu0 0.0
      %4594 = vmatpush2.msra.mxu0 0.0
      %4595 = vmatprep.subr.mxu0 0.0
      %4596 = vmatpush2.msra.mxu0 0.0
      %4597 = vmatprep.subr.mxu0 0.0
      %4598 = vmatpush2.msra.mxu0 0.0
      %4599 = vmatprep.subr.mxu0 0.0
      %4600 = vmatpush2.msra.mxu0 0.0
      %4601 = vmatprep.subr.mxu0 0.0
      %4602 = vmatpush2.msra.mxu0 0.0
      %4603 = vmatprep.mubr.f32.mxu0 0.0
      %4604 = vmatmul.mubr.f32.gmra.mxu0 %v4528
      %v4605 = vpop.f32.mrf.mxu0
      %v4606 = vadd.f32 0.0, %v4605
      %v4607 = vpop.f32.mrf.mxu0
      %4608 = vmatprep.mubr.f32.mxu0 0.0
      %4609 = vmatmul.mubr.f32.gmra.mxu0 %v4531
      %v4610 = vpop.f32.mrf.mxu0
      %v4611 = vadd.f32 0.0, %v4610
      %v4612 = vpop.f32.mrf.mxu0
      %4613 = vmatprep.mubr.f32.mxu0 0.0
      %4614 = vmatmul.mubr.f32.gmra.mxu0 %v4534
      %v4615 = vpop.f32.mrf.mxu0
      %v4616 = vadd.f32 0.0, %v4615
      %v4617 = vpop.f32.mrf.mxu0
      %4618 = vmatprep.mubr.f32.mxu0 0.0
      %4619 = vmatmul.mubr.f32.gmra.mxu0 %v4537
      %v4620 = vpop.f32.mrf.mxu0
      %v4621 = vadd.f32 0.0, %v4620
      %v4622 = vpop.f32.mrf.mxu0
      %4623 = vdwg.mxu0
      %v4624 = vsub.f32 %v4606, %v4126
      %v4625 = vsub.f32 %v4611, %v4127
      %v4626 = vsub.f32 %v4616, %v4128
      %v4627 = vsub.f32 %v4621, %v4129
      %v4629 = vsel %vm1155, %v4624, 0
      %v4632 = vsel %vm1155, %v4625, 0
      %v4635 = vsel %vm1155, %v4626, 0
      %v4638 = vsel %vm1155, %v4627, 0
      %4640 = vmatprep.subr.mxu0 0.0
      %4641 = vmatpush1.msra.mxu0 0.0
      %4642 = vmatprep.subr.mxu0 0.0
      %4643 = vmatpush1.msra.mxu0 0.0
      %4644 = vmatprep.subr.mxu0 0.0
      %4645 = vmatpush1.msra.mxu0 0.0
      %4646 = vmatprep.subr.mxu0 0.0
      %4647 = vmatpush1.msra.mxu0 0.0
      %4648 = vmatprep.subr.mxu0 0.0
      %4649 = vmatpush1.msra.mxu0 0.0
      %4650 = vmatprep.subr.mxu0 0.0
      %4651 = vmatpush1.msra.mxu0 0.0
      %4652 = vmatprep.subr.mxu0 0.0
      %4653 = vmatpush1.msra.mxu0 0.0
      %4654 = vmatprep.subr.mxu0 0.0
      %4655 = vmatpush1.msra.mxu0 0.0
      %4656 = vmatprep.subr.mxu0 0.0
      %4657 = vmatpush1.msra.mxu0 %v4342
      %4658 = vmatprep.subr.mxu0 0.0
      %4659 = vmatpush1.msra.mxu0 %v4341
      %4660 = vmatprep.subr.mxu0 0.0
      %4661 = vmatpush1.msra.mxu0 %v4340
      %4662 = vmatprep.subr.mxu0 0.0
      %4663 = vmatpush1.msra.mxu0 %v4339
      %4664 = vmatprep.subr.mxu0 0.0
      %4665 = vmatpush1.msra.mxu0 %v4338
      %4666 = vmatprep.subr.mxu0 0.0
      %4667 = vmatpush1.msra.mxu0 %v4337
      %4668 = vmatprep.subr.mxu0 0.0
      %4669 = vmatpush1.msra.mxu0 %v4336
      %4670 = vmatprep.subr.mxu0 0.0
      %4671 = vmatpush1.msra.mxu0 %v4335
      %4672 = vmatprep.subr.mxu0 0.0
      %4673 = vmatpush2.msra.mxu0 0.0
      %4674 = vmatprep.subr.mxu0 0.0
      %4675 = vmatpush2.msra.mxu0 0.0
      %4676 = vmatprep.subr.mxu0 0.0
      %4677 = vmatpush2.msra.mxu0 0.0
      %4678 = vmatprep.subr.mxu0 0.0
      %4679 = vmatpush2.msra.mxu0 0.0
      %4680 = vmatprep.subr.mxu0 0.0
      %4681 = vmatpush2.msra.mxu0 0.0
      %4682 = vmatprep.subr.mxu0 0.0
      %4683 = vmatpush2.msra.mxu0 0.0
      %4684 = vmatprep.subr.mxu0 0.0
      %4685 = vmatpush2.msra.mxu0 0.0
      %4686 = vmatprep.subr.mxu0 0.0
      %4687 = vmatpush2.msra.mxu0 0.0
      %4688 = vmatprep.subr.mxu0 0.0
      %4689 = vmatpush2.msra.mxu0 0.0
      %4690 = vmatprep.subr.mxu0 0.0
      %4691 = vmatpush2.msra.mxu0 0.0
      %4692 = vmatprep.subr.mxu0 0.0
      %4693 = vmatpush2.msra.mxu0 0.0
      %4694 = vmatprep.subr.mxu0 0.0
      %4695 = vmatpush2.msra.mxu0 0.0
      %4696 = vmatprep.subr.mxu0 0.0
      %4697 = vmatpush2.msra.mxu0 0.0
      %4698 = vmatprep.subr.mxu0 0.0
      %4699 = vmatpush2.msra.mxu0 0.0
      %4700 = vmatprep.subr.mxu0 0.0
      %4701 = vmatpush2.msra.mxu0 0.0
      %4702 = vmatprep.subr.mxu0 0.0
      %4703 = vmatpush2.msra.mxu0 0.0
      %4704 = vmatprep.mubr.f32.mxu0 0.0
      %4705 = vmatmul.mubr.f32.gmra.mxu0 %v4629
      %v4706 = vpop.f32.mrf.mxu0
      %v4707 = vadd.f32 0.0, %v4706
      %v4708 = vpop.f32.mrf.mxu0
      %4709 = vmatprep.mubr.f32.mxu0 0.0
      %4710 = vmatmul.mubr.f32.gmra.mxu0 %v4632
      %v4711 = vpop.f32.mrf.mxu0
      %v4712 = vadd.f32 0.0, %v4711
      %v4713 = vpop.f32.mrf.mxu0
      %4714 = vmatprep.mubr.f32.mxu0 0.0
      %4715 = vmatmul.mubr.f32.gmra.mxu0 %v4635
      %v4716 = vpop.f32.mrf.mxu0
      %v4717 = vadd.f32 0.0, %v4716
      %v4718 = vpop.f32.mrf.mxu0
      %4719 = vmatprep.mubr.f32.mxu0 0.0
      %4720 = vmatmul.mubr.f32.gmra.mxu0 %v4638
      %v4721 = vpop.f32.mrf.mxu0
      %v4722 = vadd.f32 0.0, %v4721
      %v4723 = vpop.f32.mrf.mxu0
      %4724 = vdwg.mxu0
      %v4725 = vsel %vm4515, inf, %v4323
      %v4726 = vsel %vm4516, inf, %v4324
      %v4727 = vsel %vm4517, inf, %v4325
      %v4728 = vsel %vm4518, inf, %v4326
      %v4729 = vsel %vm822, %v4725, inf
      %4730 = vmin.xlane.f32.xlu0 %v4729
      %v4731 = vpop.xlane.xlu0 %4730
      %v4732 = vsel %vm822, %v4726, inf
      %4733 = vmin.xlane.f32.xlu0 %v4732
      %v4734 = vpop.xlane.xlu0 %4733
      %v4735 = vsel %vm822, %v4727, inf
      %4736 = vmin.xlane.f32.xlu0 %v4735
      %v4737 = vpop.xlane.xlu0 %4736
      %v4738 = vsel %vm822, %v4728, inf
      %4739 = vmin.xlane.f32.xlu0 %v4738
      %v4740 = vpop.xlane.xlu0 %4739
      %vm4741 = vcmp.eq.f32.partialorder %v4725, %v4731
      %vm4742 = vcmp.eq.f32.partialorder %v4726, %v4734
      %vm4743 = vcmp.eq.f32.partialorder %v4727, %v4737
      %vm4744 = vcmp.eq.f32.partialorder %v4728, %v4740
      %v4745 = vsel %vm4741, %v524, 32
      %v4746 = vsel %vm4742, %v524, 32
      %v4747 = vsel %vm4743, %v524, 32
      %v4748 = vsel %vm4744, %v524, 32
      %v4749 = vsel %vm822, %v4745, 2147483647
      %v4750 = vand.u32 %v4749, 65535
      %v4751 = vshra.s32 %v4749, 16
      %v4752 = vcvt.s32.f32 %v4750
      %v4753 = vcvt.s32.f32 %v4751
      %4754 = vmin.xlane.f32.xlu0 %v4753
      %v4755 = vpop.xlane.xlu0 %4754
      %vm4756 = vcmp.eq.f32.partialorder %v4753, %v4755
      %v4757 = vsel %vm4756, %v4752, inf
      %4758 = vmin.xlane.f32.xlu0 %v4757
      %v4759 = vpop.xlane.xlu0 %4758
      %v4760 = vcvt.f32.s32 %v4759
      %v4761 = vcvt.f32.s32 %v4755
      %v4762 = vshll.u32 %v4761, 16
      %v4763 = vadd.s32 %v4762, %v4760
      %v4764 = vsel %vm822, %v4746, 2147483647
      %v4765 = vand.u32 %v4764, 65535
      %v4766 = vshra.s32 %v4764, 16
      %v4767 = vcvt.s32.f32 %v4765
      %v4768 = vcvt.s32.f32 %v4766
      %4769 = vmin.xlane.f32.xlu0 %v4768
      %v4770 = vpop.xlane.xlu0 %4769
      %vm4771 = vcmp.eq.f32.partialorder %v4768, %v4770
      %v4772 = vsel %vm4771, %v4767, inf
      %4773 = vmin.xlane.f32.xlu0 %v4772
      %v4774 = vpop.xlane.xlu0 %4773
      %v4775 = vcvt.f32.s32 %v4774
      %v4776 = vcvt.f32.s32 %v4770
      %v4777 = vshll.u32 %v4776, 16
      %v4778 = vadd.s32 %v4777, %v4775
      %v4779 = vsel %vm822, %v4747, 2147483647
      %v4780 = vand.u32 %v4779, 65535
      %v4781 = vshra.s32 %v4779, 16
      %v4782 = vcvt.s32.f32 %v4780
      %v4783 = vcvt.s32.f32 %v4781
      %4784 = vmin.xlane.f32.xlu0 %v4783
      %v4785 = vpop.xlane.xlu0 %4784
      %vm4786 = vcmp.eq.f32.partialorder %v4783, %v4785
      %v4787 = vsel %vm4786, %v4782, inf
      %4788 = vmin.xlane.f32.xlu0 %v4787
      %v4789 = vpop.xlane.xlu0 %4788
      %v4790 = vcvt.f32.s32 %v4789
      %v4791 = vcvt.f32.s32 %v4785
      %v4792 = vshll.u32 %v4791, 16
      %v4793 = vadd.s32 %v4792, %v4790
      %v4794 = vsel %vm822, %v4748, 2147483647
      %v4795 = vand.u32 %v4794, 65535
      %v4796 = vshra.s32 %v4794, 16
      %v4797 = vcvt.s32.f32 %v4795
      %v4798 = vcvt.s32.f32 %v4796
      %4799 = vmin.xlane.f32.xlu0 %v4798
      %v4800 = vpop.xlane.xlu0 %4799
      %vm4801 = vcmp.eq.f32.partialorder %v4798, %v4800
      %v4802 = vsel %vm4801, %v4797, inf
      %4803 = vmin.xlane.f32.xlu0 %v4802
      %v4804 = vpop.xlane.xlu0 %4803
      %v4805 = vcvt.f32.s32 %v4804
      %v4806 = vcvt.f32.s32 %v4800
      %v4807 = vshll.u32 %v4806, 16
      %v4808 = vadd.s32 %v4807, %v4805
      %vm4809 = vcmp.eq.s32.totalorder %v524, %v4763
      %vm4810 = vcmp.eq.s32.totalorder %v524, %v4778
      %vm4811 = vcmp.eq.s32.totalorder %v524, %v4793
      %vm4812 = vcmp.eq.s32.totalorder %v524, %v4808
      %v4813 = vsel %vm4809, 1, 0
      %v4814 = vsel %vm4810, 1, 0
      %v4815 = vsel %vm4811, 1, 0
      %v4816 = vsel %vm4812, 1, 0
      %v4817 = vcvt.s32.f32 %v4813
      %v4818 = vcvt.s32.f32 %v4814
      %v4819 = vcvt.s32.f32 %v4815
      %v4820 = vcvt.s32.f32 %v4816
      %v4822 = vsel %vm822, %v4817, 0
      %v4825 = vsel %vm822, %v4818, 0
      %v4828 = vsel %vm822, %v4819, 0
      %v4831 = vsel %vm822, %v4820, 0
      %4833 = vmatprep.subr.mxu0 0.0
      %4834 = vmatpush1.msra.mxu0 0.0
      %4835 = vmatprep.subr.mxu0 0.0
      %4836 = vmatpush1.msra.mxu0 0.0
      %4837 = vmatprep.subr.mxu0 0.0
      %4838 = vmatpush1.msra.mxu0 0.0
      %4839 = vmatprep.subr.mxu0 0.0
      %4840 = vmatpush1.msra.mxu0 0.0
      %4841 = vmatprep.subr.mxu0 0.0
      %4842 = vmatpush1.msra.mxu0 0.0
      %4843 = vmatprep.subr.mxu0 0.0
      %4844 = vmatpush1.msra.mxu0 0.0
      %4845 = vmatprep.subr.mxu0 0.0
      %4846 = vmatpush1.msra.mxu0 0.0
      %4847 = vmatprep.subr.mxu0 0.0
      %4848 = vmatpush1.msra.mxu0 0.0
      %4849 = vmatprep.subr.mxu0 0.0
      %4850 = vmatpush1.msra.mxu0 0.0
      %4851 = vmatprep.subr.mxu0 0.0
      %4852 = vmatpush1.msra.mxu0 0.0
      %4853 = vmatprep.subr.mxu0 0.0
      %4854 = vmatpush1.msra.mxu0 0.0
      %4855 = vmatprep.subr.mxu0 0.0
      %4856 = vmatpush1.msra.mxu0 0.0
      %4857 = vmatprep.subr.mxu0 0.0
      %4858 = vmatpush1.msra.mxu0 %v4129
      %4859 = vmatprep.subr.mxu0 0.0
      %4860 = vmatpush1.msra.mxu0 %v4128
      %4861 = vmatprep.subr.mxu0 0.0
      %4862 = vmatpush1.msra.mxu0 %v4127
      %4863 = vmatprep.subr.mxu0 0.0
      %4864 = vmatpush1.msra.mxu0 %v4126
      %4865 = vmatprep.subr.mxu0 0.0
      %4866 = vmatpush2.msra.mxu0 0.0
      %4867 = vmatprep.subr.mxu0 0.0
      %4868 = vmatpush2.msra.mxu0 0.0
      %4869 = vmatprep.subr.mxu0 0.0
      %4870 = vmatpush2.msra.mxu0 0.0
      %4871 = vmatprep.subr.mxu0 0.0
      %4872 = vmatpush2.msra.mxu0 0.0
      %4873 = vmatprep.subr.mxu0 0.0
      %4874 = vmatpush2.msra.mxu0 0.0
      %4875 = vmatprep.subr.mxu0 0.0
      %4876 = vmatpush2.msra.mxu0 0.0
      %4877 = vmatprep.subr.mxu0 0.0
      %4878 = vmatpush2.msra.mxu0 0.0
      %4879 = vmatprep.subr.mxu0 0.0
      %4880 = vmatpush2.msra.mxu0 0.0
      %4881 = vmatprep.subr.mxu0 0.0
      %4882 = vmatpush2.msra.mxu0 0.0
      %4883 = vmatprep.subr.mxu0 0.0
      %4884 = vmatpush2.msra.mxu0 0.0
      %4885 = vmatprep.subr.mxu0 0.0
      %4886 = vmatpush2.msra.mxu0 0.0
      %4887 = vmatprep.subr.mxu0 0.0
      %4888 = vmatpush2.msra.mxu0 0.0
      %4889 = vmatprep.subr.mxu0 0.0
      %4890 = vmatpush2.msra.mxu0 0.0
      %4891 = vmatprep.subr.mxu0 0.0
      %4892 = vmatpush2.msra.mxu0 0.0
      %4893 = vmatprep.subr.mxu0 0.0
      %4894 = vmatpush2.msra.mxu0 0.0
      %4895 = vmatprep.subr.mxu0 0.0
      %4896 = vmatpush2.msra.mxu0 0.0
      %4897 = vmatprep.mubr.f32.mxu0 0.0
      %4898 = vmatmul.mubr.f32.gmra.mxu0 %v4822
      %v4899 = vpop.f32.mrf.mxu0
      %v4900 = vadd.f32 0.0, %v4899
      %v4901 = vpop.f32.mrf.mxu0
      %4902 = vmatprep.mubr.f32.mxu0 0.0
      %4903 = vmatmul.mubr.f32.gmra.mxu0 %v4825
      %v4904 = vpop.f32.mrf.mxu0
      %v4905 = vadd.f32 0.0, %v4904
      %v4906 = vpop.f32.mrf.mxu0
      %4907 = vmatprep.mubr.f32.mxu0 0.0
      %4908 = vmatmul.mubr.f32.gmra.mxu0 %v4828
      %v4909 = vpop.f32.mrf.mxu0
      %v4910 = vadd.f32 0.0, %v4909
      %v4911 = vpop.f32.mrf.mxu0
      %4912 = vmatprep.mubr.f32.mxu0 0.0
      %4913 = vmatmul.mubr.f32.gmra.mxu0 %v4831
      %v4914 = vpop.f32.mrf.mxu0
      %v4915 = vadd.f32 0.0, %v4914
      %v4916 = vpop.f32.mrf.mxu0
      %4917 = vdwg.mxu0
      %v4918 = vsub.f32 %v4900, %v4126
      %v4919 = vsub.f32 %v4905, %v4127
      %v4920 = vsub.f32 %v4910, %v4128
      %v4921 = vsub.f32 %v4915, %v4129
      %v4923 = vsel %vm1155, %v4918, 0
      %v4926 = vsel %vm1155, %v4919, 0
      %v4929 = vsel %vm1155, %v4920, 0
      %v4932 = vsel %vm1155, %v4921, 0
      %4934 = vmatprep.subr.mxu0 0.0
      %4935 = vmatpush1.msra.mxu0 0.0
      %4936 = vmatprep.subr.mxu0 0.0
      %4937 = vmatpush1.msra.mxu0 0.0
      %4938 = vmatprep.subr.mxu0 0.0
      %4939 = vmatpush1.msra.mxu0 0.0
      %4940 = vmatprep.subr.mxu0 0.0
      %4941 = vmatpush1.msra.mxu0 0.0
      %4942 = vmatprep.subr.mxu0 0.0
      %4943 = vmatpush1.msra.mxu0 0.0
      %4944 = vmatprep.subr.mxu0 0.0
      %4945 = vmatpush1.msra.mxu0 0.0
      %4946 = vmatprep.subr.mxu0 0.0
      %4947 = vmatpush1.msra.mxu0 0.0
      %4948 = vmatprep.subr.mxu0 0.0
      %4949 = vmatpush1.msra.mxu0 0.0
      %4950 = vmatprep.subr.mxu0 0.0
      %4951 = vmatpush1.msra.mxu0 %v4342
      %4952 = vmatprep.subr.mxu0 0.0
      %4953 = vmatpush1.msra.mxu0 %v4341
      %4954 = vmatprep.subr.mxu0 0.0
      %4955 = vmatpush1.msra.mxu0 %v4340
      %4956 = vmatprep.subr.mxu0 0.0
      %4957 = vmatpush1.msra.mxu0 %v4339
      %4958 = vmatprep.subr.mxu0 0.0
      %4959 = vmatpush1.msra.mxu0 %v4338
      %4960 = vmatprep.subr.mxu0 0.0
      %4961 = vmatpush1.msra.mxu0 %v4337
      %4962 = vmatprep.subr.mxu0 0.0
      %4963 = vmatpush1.msra.mxu0 %v4336
      %4964 = vmatprep.subr.mxu0 0.0
      %4965 = vmatpush1.msra.mxu0 %v4335
      %4966 = vmatprep.subr.mxu0 0.0
      %4967 = vmatpush2.msra.mxu0 0.0
      %4968 = vmatprep.subr.mxu0 0.0
      %4969 = vmatpush2.msra.mxu0 0.0
      %4970 = vmatprep.subr.mxu0 0.0
      %4971 = vmatpush2.msra.mxu0 0.0
      %4972 = vmatprep.subr.mxu0 0.0
      %4973 = vmatpush2.msra.mxu0 0.0
      %4974 = vmatprep.subr.mxu0 0.0
      %4975 = vmatpush2.msra.mxu0 0.0
      %4976 = vmatprep.subr.mxu0 0.0
      %4977 = vmatpush2.msra.mxu0 0.0
      %4978 = vmatprep.subr.mxu0 0.0
      %4979 = vmatpush2.msra.mxu0 0.0
      %4980 = vmatprep.subr.mxu0 0.0
      %4981 = vmatpush2.msra.mxu0 0.0
      %4982 = vmatprep.subr.mxu0 0.0
      %4983 = vmatpush2.msra.mxu0 0.0
      %4984 = vmatprep.subr.mxu0 0.0
      %4985 = vmatpush2.msra.mxu0 0.0
      %4986 = vmatprep.subr.mxu0 0.0
      %4987 = vmatpush2.msra.mxu0 0.0
      %4988 = vmatprep.subr.mxu0 0.0
      %4989 = vmatpush2.msra.mxu0 0.0
      %4990 = vmatprep.subr.mxu0 0.0
      %4991 = vmatpush2.msra.mxu0 0.0
      %4992 = vmatprep.subr.mxu0 0.0
      %4993 = vmatpush2.msra.mxu0 0.0
      %4994 = vmatprep.subr.mxu0 0.0
      %4995 = vmatpush2.msra.mxu0 0.0
      %4996 = vmatprep.subr.mxu0 0.0
      %4997 = vmatpush2.msra.mxu0 0.0
      %4998 = vmatprep.mubr.f32.mxu0 0.0
      %4999 = vmatmul.mubr.f32.gmra.mxu0 %v4923
      %v5000 = vpop.f32.mrf.mxu0
      %v5001 = vadd.f32 0.0, %v5000
      %v5002 = vpop.f32.mrf.mxu0
      %5003 = vmatprep.mubr.f32.mxu0 0.0
      %5004 = vmatmul.mubr.f32.gmra.mxu0 %v4926
      %v5005 = vpop.f32.mrf.mxu0
      %v5006 = vadd.f32 0.0, %v5005
      %v5007 = vpop.f32.mrf.mxu0
      %5008 = vmatprep.mubr.f32.mxu0 0.0
      %5009 = vmatmul.mubr.f32.gmra.mxu0 %v4929
      %v5010 = vpop.f32.mrf.mxu0
      %v5011 = vadd.f32 0.0, %v5010
      %v5012 = vpop.f32.mrf.mxu0
      %5013 = vmatprep.mubr.f32.mxu0 0.0
      %5014 = vmatmul.mubr.f32.gmra.mxu0 %v4932
      %v5015 = vpop.f32.mrf.mxu0
      %v5016 = vadd.f32 0.0, %v5015
      %v5017 = vpop.f32.mrf.mxu0
      %5018 = vdwg.mxu0
      %v5019 = vmax.f32 %v4707, %v5001
      %v5020 = vmax.f32 %v4712, %v5006
      %v5021 = vmax.f32 %v4717, %v5011
      %v5022 = vmax.f32 %v4722, %v5016
      %v5023 = vsel %vm4809, inf, %v4725
      %v5024 = vsel %vm4810, inf, %v4726
      %v5025 = vsel %vm4811, inf, %v4727
      %v5026 = vsel %vm4812, inf, %v4728
      %v5027 = vsel %vm822, %v5023, inf
      %5028 = vmin.xlane.f32.xlu0 %v5027
      %v5029 = vpop.xlane.xlu0 %5028
      %v5030 = vsel %vm822, %v5024, inf
      %5031 = vmin.xlane.f32.xlu0 %v5030
      %v5032 = vpop.xlane.xlu0 %5031
      %v5033 = vsel %vm822, %v5025, inf
      %5034 = vmin.xlane.f32.xlu0 %v5033
      %v5035 = vpop.xlane.xlu0 %5034
      %v5036 = vsel %vm822, %v5026, inf
      %5037 = vmin.xlane.f32.xlu0 %v5036
      %v5038 = vpop.xlane.xlu0 %5037
      %vm5039 = vcmp.eq.f32.partialorder %v5023, %v5029
      %vm5040 = vcmp.eq.f32.partialorder %v5024, %v5032
      %vm5041 = vcmp.eq.f32.partialorder %v5025, %v5035
      %vm5042 = vcmp.eq.f32.partialorder %v5026, %v5038
      %v5043 = vsel %vm5039, %v524, 32
      %v5044 = vsel %vm5040, %v524, 32
      %v5045 = vsel %vm5041, %v524, 32
      %v5046 = vsel %vm5042, %v524, 32
      %v5047 = vsel %vm822, %v5043, 2147483647
      %v5048 = vand.u32 %v5047, 65535
      %v5049 = vshra.s32 %v5047, 16
      %v5050 = vcvt.s32.f32 %v5048
      %v5051 = vcvt.s32.f32 %v5049
      %5052 = vmin.xlane.f32.xlu0 %v5051
      %v5053 = vpop.xlane.xlu0 %5052
      %vm5054 = vcmp.eq.f32.partialorder %v5051, %v5053
      %v5055 = vsel %vm5054, %v5050, inf
      %5056 = vmin.xlane.f32.xlu0 %v5055
      %v5057 = vpop.xlane.xlu0 %5056
      %v5058 = vcvt.f32.s32 %v5057
      %v5059 = vcvt.f32.s32 %v5053
      %v5060 = vshll.u32 %v5059, 16
      %v5061 = vadd.s32 %v5060, %v5058
      %v5062 = vsel %vm822, %v5044, 2147483647
      %v5063 = vand.u32 %v5062, 65535
      %v5064 = vshra.s32 %v5062, 16
      %v5065 = vcvt.s32.f32 %v5063
      %v5066 = vcvt.s32.f32 %v5064
      %5067 = vmin.xlane.f32.xlu0 %v5066
      %v5068 = vpop.xlane.xlu0 %5067
      %vm5069 = vcmp.eq.f32.partialorder %v5066, %v5068
      %v5070 = vsel %vm5069, %v5065, inf
      %5071 = vmin.xlane.f32.xlu0 %v5070
      %v5072 = vpop.xlane.xlu0 %5071
      %v5073 = vcvt.f32.s32 %v5072
      %v5074 = vcvt.f32.s32 %v5068
      %v5075 = vshll.u32 %v5074, 16
      %v5076 = vadd.s32 %v5075, %v5073
      %v5077 = vsel %vm822, %v5045, 2147483647
      %v5078 = vand.u32 %v5077, 65535
      %v5079 = vshra.s32 %v5077, 16
      %v5080 = vcvt.s32.f32 %v5078
      %v5081 = vcvt.s32.f32 %v5079
      %5082 = vmin.xlane.f32.xlu0 %v5081
      %v5083 = vpop.xlane.xlu0 %5082
      %vm5084 = vcmp.eq.f32.partialorder %v5081, %v5083
      %v5085 = vsel %vm5084, %v5080, inf
      %5086 = vmin.xlane.f32.xlu0 %v5085
      %v5087 = vpop.xlane.xlu0 %5086
      %v5088 = vcvt.f32.s32 %v5087
      %v5089 = vcvt.f32.s32 %v5083
      %v5090 = vshll.u32 %v5089, 16
      %v5091 = vadd.s32 %v5090, %v5088
      %v5092 = vsel %vm822, %v5046, 2147483647
      %v5093 = vand.u32 %v5092, 65535
      %v5094 = vshra.s32 %v5092, 16
      %v5095 = vcvt.s32.f32 %v5093
      %v5096 = vcvt.s32.f32 %v5094
      %5097 = vmin.xlane.f32.xlu0 %v5096
      %v5098 = vpop.xlane.xlu0 %5097
      %vm5099 = vcmp.eq.f32.partialorder %v5096, %v5098
      %v5100 = vsel %vm5099, %v5095, inf
      %5101 = vmin.xlane.f32.xlu0 %v5100
      %v5102 = vpop.xlane.xlu0 %5101
      %v5103 = vcvt.f32.s32 %v5102
      %v5104 = vcvt.f32.s32 %v5098
      %v5105 = vshll.u32 %v5104, 16
      %v5106 = vadd.s32 %v5105, %v5103
      %vm5107 = vcmp.eq.s32.totalorder %v524, %v5061
      %vm5108 = vcmp.eq.s32.totalorder %v524, %v5076
      %vm5109 = vcmp.eq.s32.totalorder %v524, %v5091
      %vm5110 = vcmp.eq.s32.totalorder %v524, %v5106
      %v5111 = vsel %vm5107, 1, 0
      %v5112 = vsel %vm5108, 1, 0
      %v5113 = vsel %vm5109, 1, 0
      %v5114 = vsel %vm5110, 1, 0
      %v5115 = vcvt.s32.f32 %v5111
      %v5116 = vcvt.s32.f32 %v5112
      %v5117 = vcvt.s32.f32 %v5113
      %v5118 = vcvt.s32.f32 %v5114
      %v5120 = vsel %vm822, %v5115, 0
      %v5123 = vsel %vm822, %v5116, 0
      %v5126 = vsel %vm822, %v5117, 0
      %v5129 = vsel %vm822, %v5118, 0
      %5131 = vmatprep.subr.mxu0 0.0
      %5132 = vmatpush1.msra.mxu0 0.0
      %5133 = vmatprep.subr.mxu0 0.0
      %5134 = vmatpush1.msra.mxu0 0.0
      %5135 = vmatprep.subr.mxu0 0.0
      %5136 = vmatpush1.msra.mxu0 0.0
      %5137 = vmatprep.subr.mxu0 0.0
      %5138 = vmatpush1.msra.mxu0 0.0
      %5139 = vmatprep.subr.mxu0 0.0
      %5140 = vmatpush1.msra.mxu0 0.0
      %5141 = vmatprep.subr.mxu0 0.0
      %5142 = vmatpush1.msra.mxu0 0.0
      %5143 = vmatprep.subr.mxu0 0.0
      %5144 = vmatpush1.msra.mxu0 0.0
      %5145 = vmatprep.subr.mxu0 0.0
      %5146 = vmatpush1.msra.mxu0 0.0
      %5147 = vmatprep.subr.mxu0 0.0
      %5148 = vmatpush1.msra.mxu0 0.0
      %5149 = vmatprep.subr.mxu0 0.0
      %5150 = vmatpush1.msra.mxu0 0.0
      %5151 = vmatprep.subr.mxu0 0.0
      %5152 = vmatpush1.msra.mxu0 0.0
      %5153 = vmatprep.subr.mxu0 0.0
      %5154 = vmatpush1.msra.mxu0 0.0
      %5155 = vmatprep.subr.mxu0 0.0
      %5156 = vmatpush1.msra.mxu0 %v4129
      %5157 = vmatprep.subr.mxu0 0.0
      %5158 = vmatpush1.msra.mxu0 %v4128
      %5159 = vmatprep.subr.mxu0 0.0
      %5160 = vmatpush1.msra.mxu0 %v4127
      %5161 = vmatprep.subr.mxu0 0.0
      %5162 = vmatpush1.msra.mxu0 %v4126
      %5163 = vmatprep.subr.mxu0 0.0
      %5164 = vmatpush2.msra.mxu0 0.0
      %5165 = vmatprep.subr.mxu0 0.0
      %5166 = vmatpush2.msra.mxu0 0.0
      %5167 = vmatprep.subr.mxu0 0.0
      %5168 = vmatpush2.msra.mxu0 0.0
      %5169 = vmatprep.subr.mxu0 0.0
      %5170 = vmatpush2.msra.mxu0 0.0
      %5171 = vmatprep.subr.mxu0 0.0
      %5172 = vmatpush2.msra.mxu0 0.0
      %5173 = vmatprep.subr.mxu0 0.0
      %5174 = vmatpush2.msra.mxu0 0.0
      %5175 = vmatprep.subr.mxu0 0.0
      %5176 = vmatpush2.msra.mxu0 0.0
      %5177 = vmatprep.subr.mxu0 0.0
      %5178 = vmatpush2.msra.mxu0 0.0
      %5179 = vmatprep.subr.mxu0 0.0
      %5180 = vmatpush2.msra.mxu0 0.0
      %5181 = vmatprep.subr.mxu0 0.0
      %5182 = vmatpush2.msra.mxu0 0.0
      %5183 = vmatprep.subr.mxu0 0.0
      %5184 = vmatpush2.msra.mxu0 0.0
      %5185 = vmatprep.subr.mxu0 0.0
      %5186 = vmatpush2.msra.mxu0 0.0
      %5187 = vmatprep.subr.mxu0 0.0
      %5188 = vmatpush2.msra.mxu0 0.0
      %5189 = vmatprep.subr.mxu0 0.0
      %5190 = vmatpush2.msra.mxu0 0.0
      %5191 = vmatprep.subr.mxu0 0.0
      %5192 = vmatpush2.msra.mxu0 0.0
      %5193 = vmatprep.subr.mxu0 0.0
      %5194 = vmatpush2.msra.mxu0 0.0
      %5195 = vmatprep.mubr.f32.mxu0 0.0
      %5196 = vmatmul.mubr.f32.gmra.mxu0 %v5120
      %v5197 = vpop.f32.mrf.mxu0
      %v5198 = vadd.f32 0.0, %v5197
      %v5199 = vpop.f32.mrf.mxu0
      %5200 = vmatprep.mubr.f32.mxu0 0.0
      %5201 = vmatmul.mubr.f32.gmra.mxu0 %v5123
      %v5202 = vpop.f32.mrf.mxu0
      %v5203 = vadd.f32 0.0, %v5202
      %v5204 = vpop.f32.mrf.mxu0
      %5205 = vmatprep.mubr.f32.mxu0 0.0
      %5206 = vmatmul.mubr.f32.gmra.mxu0 %v5126
      %v5207 = vpop.f32.mrf.mxu0
      %v5208 = vadd.f32 0.0, %v5207
      %v5209 = vpop.f32.mrf.mxu0
      %5210 = vmatprep.mubr.f32.mxu0 0.0
      %5211 = vmatmul.mubr.f32.gmra.mxu0 %v5129
      %v5212 = vpop.f32.mrf.mxu0
      %v5213 = vadd.f32 0.0, %v5212
      %v5214 = vpop.f32.mrf.mxu0
      %5215 = vdwg.mxu0
      %v5216 = vsub.f32 %v5198, %v4126
      %v5217 = vsub.f32 %v5203, %v4127
      %v5218 = vsub.f32 %v5208, %v4128
      %v5219 = vsub.f32 %v5213, %v4129
      %v5221 = vsel %vm1155, %v5216, 0
      %v5224 = vsel %vm1155, %v5217, 0
      %v5227 = vsel %vm1155, %v5218, 0
      %v5230 = vsel %vm1155, %v5219, 0
      %5232 = vmatprep.subr.mxu0 0.0
      %5233 = vmatpush1.msra.mxu0 0.0
      %5234 = vmatprep.subr.mxu0 0.0
      %5235 = vmatpush1.msra.mxu0 0.0
      %5236 = vmatprep.subr.mxu0 0.0
      %5237 = vmatpush1.msra.mxu0 0.0
      %5238 = vmatprep.subr.mxu0 0.0
      %5239 = vmatpush1.msra.mxu0 0.0
      %5240 = vmatprep.subr.mxu0 0.0
      %5241 = vmatpush1.msra.mxu0 0.0
      %5242 = vmatprep.subr.mxu0 0.0
      %5243 = vmatpush1.msra.mxu0 0.0
      %5244 = vmatprep.subr.mxu0 0.0
      %5245 = vmatpush1.msra.mxu0 0.0
      %5246 = vmatprep.subr.mxu0 0.0
      %5247 = vmatpush1.msra.mxu0 0.0
      %5248 = vmatprep.subr.mxu0 0.0
      %5249 = vmatpush1.msra.mxu0 %v4342
      %5250 = vmatprep.subr.mxu0 0.0
      %5251 = vmatpush1.msra.mxu0 %v4341
      %5252 = vmatprep.subr.mxu0 0.0
      %5253 = vmatpush1.msra.mxu0 %v4340
      %5254 = vmatprep.subr.mxu0 0.0
      %5255 = vmatpush1.msra.mxu0 %v4339
      %5256 = vmatprep.subr.mxu0 0.0
      %5257 = vmatpush1.msra.mxu0 %v4338
      %5258 = vmatprep.subr.mxu0 0.0
      %5259 = vmatpush1.msra.mxu0 %v4337
      %5260 = vmatprep.subr.mxu0 0.0
      %5261 = vmatpush1.msra.mxu0 %v4336
      %5262 = vmatprep.subr.mxu0 0.0
      %5263 = vmatpush1.msra.mxu0 %v4335
      %5264 = vmatprep.subr.mxu0 0.0
      %5265 = vmatpush2.msra.mxu0 0.0
      %5266 = vmatprep.subr.mxu0 0.0
      %5267 = vmatpush2.msra.mxu0 0.0
      %5268 = vmatprep.subr.mxu0 0.0
      %5269 = vmatpush2.msra.mxu0 0.0
      %5270 = vmatprep.subr.mxu0 0.0
      %5271 = vmatpush2.msra.mxu0 0.0
      %5272 = vmatprep.subr.mxu0 0.0
      %5273 = vmatpush2.msra.mxu0 0.0
      %5274 = vmatprep.subr.mxu0 0.0
      %5275 = vmatpush2.msra.mxu0 0.0
      %5276 = vmatprep.subr.mxu0 0.0
      %5277 = vmatpush2.msra.mxu0 0.0
      %5278 = vmatprep.subr.mxu0 0.0
      %5279 = vmatpush2.msra.mxu0 0.0
      %5280 = vmatprep.subr.mxu0 0.0
      %5281 = vmatpush2.msra.mxu0 0.0
      %5282 = vmatprep.subr.mxu0 0.0
      %5283 = vmatpush2.msra.mxu0 0.0
      %5284 = vmatprep.subr.mxu0 0.0
      %5285 = vmatpush2.msra.mxu0 0.0
      %5286 = vmatprep.subr.mxu0 0.0
      %5287 = vmatpush2.msra.mxu0 0.0
      %5288 = vmatprep.subr.mxu0 0.0
      %5289 = vmatpush2.msra.mxu0 0.0
      %5290 = vmatprep.subr.mxu0 0.0
      %5291 = vmatpush2.msra.mxu0 0.0
      %5292 = vmatprep.subr.mxu0 0.0
      %5293 = vmatpush2.msra.mxu0 0.0
      %5294 = vmatprep.subr.mxu0 0.0
      %5295 = vmatpush2.msra.mxu0 0.0
      %5296 = vmatprep.mubr.f32.mxu0 0.0
      %5297 = vmatmul.mubr.f32.gmra.mxu0 %v5221
      %v5298 = vpop.f32.mrf.mxu0
      %v5299 = vadd.f32 0.0, %v5298
      %v5300 = vpop.f32.mrf.mxu0
      %5301 = vmatprep.mubr.f32.mxu0 0.0
      %5302 = vmatmul.mubr.f32.gmra.mxu0 %v5224
      %v5303 = vpop.f32.mrf.mxu0
      %v5304 = vadd.f32 0.0, %v5303
      %v5305 = vpop.f32.mrf.mxu0
      %5306 = vmatprep.mubr.f32.mxu0 0.0
      %5307 = vmatmul.mubr.f32.gmra.mxu0 %v5227
      %v5308 = vpop.f32.mrf.mxu0
      %v5309 = vadd.f32 0.0, %v5308
      %v5310 = vpop.f32.mrf.mxu0
      %5311 = vmatprep.mubr.f32.mxu0 0.0
      %5312 = vmatmul.mubr.f32.gmra.mxu0 %v5230
      %v5313 = vpop.f32.mrf.mxu0
      %v5314 = vadd.f32 0.0, %v5313
      %v5315 = vpop.f32.mrf.mxu0
      %5316 = vdwg.mxu0
      %v5317 = vmax.f32 %v5019, %v5299
      %v5318 = vmax.f32 %v5020, %v5304
      %v5319 = vmax.f32 %v5021, %v5309
      %v5320 = vmax.f32 %v5022, %v5314
      %v5321 = vsel %vm5107, inf, %v5023
      %v5322 = vsel %vm5108, inf, %v5024
      %v5323 = vsel %vm5109, inf, %v5025
      %v5324 = vsel %vm5110, inf, %v5026
      %v5325 = vsel %vm822, %v5321, inf
      %5326 = vmin.xlane.f32.xlu0 %v5325
      %v5327 = vpop.xlane.xlu0 %5326
      %v5328 = vsel %vm822, %v5322, inf
      %5329 = vmin.xlane.f32.xlu0 %v5328
      %v5330 = vpop.xlane.xlu0 %5329
      %v5331 = vsel %vm822, %v5323, inf
      %5332 = vmin.xlane.f32.xlu0 %v5331
      %v5333 = vpop.xlane.xlu0 %5332
      %v5334 = vsel %vm822, %v5324, inf
      %5335 = vmin.xlane.f32.xlu0 %v5334
      %v5336 = vpop.xlane.xlu0 %5335
      %vm5337 = vcmp.eq.f32.partialorder %v5321, %v5327
      %vm5338 = vcmp.eq.f32.partialorder %v5322, %v5330
      %vm5339 = vcmp.eq.f32.partialorder %v5323, %v5333
      %vm5340 = vcmp.eq.f32.partialorder %v5324, %v5336
      %v5341 = vsel %vm5337, %v524, 32
      %v5342 = vsel %vm5338, %v524, 32
      %v5343 = vsel %vm5339, %v524, 32
      %v5344 = vsel %vm5340, %v524, 32
      %v5345 = vsel %vm822, %v5341, 2147483647
      %v5346 = vand.u32 %v5345, 65535
      %v5347 = vshra.s32 %v5345, 16
      %v5348 = vcvt.s32.f32 %v5346
      %v5349 = vcvt.s32.f32 %v5347
      %5350 = vmin.xlane.f32.xlu0 %v5349
      %v5351 = vpop.xlane.xlu0 %5350
      %vm5352 = vcmp.eq.f32.partialorder %v5349, %v5351
      %v5353 = vsel %vm5352, %v5348, inf
      %5354 = vmin.xlane.f32.xlu0 %v5353
      %v5355 = vpop.xlane.xlu0 %5354
      %v5356 = vcvt.f32.s32 %v5355
      %v5357 = vcvt.f32.s32 %v5351
      %v5358 = vshll.u32 %v5357, 16
      %v5359 = vadd.s32 %v5358, %v5356
      %v5360 = vsel %vm822, %v5342, 2147483647
      %v5361 = vand.u32 %v5360, 65535
      %v5362 = vshra.s32 %v5360, 16
      %v5363 = vcvt.s32.f32 %v5361
      %v5364 = vcvt.s32.f32 %v5362
      %5365 = vmin.xlane.f32.xlu0 %v5364
      %v5366 = vpop.xlane.xlu0 %5365
      %vm5367 = vcmp.eq.f32.partialorder %v5364, %v5366
      %v5368 = vsel %vm5367, %v5363, inf
      %5369 = vmin.xlane.f32.xlu0 %v5368
      %v5370 = vpop.xlane.xlu0 %5369
      %v5371 = vcvt.f32.s32 %v5370
      %v5372 = vcvt.f32.s32 %v5366
      %v5373 = vshll.u32 %v5372, 16
      %v5374 = vadd.s32 %v5373, %v5371
      %v5375 = vsel %vm822, %v5343, 2147483647
      %v5376 = vand.u32 %v5375, 65535
      %v5377 = vshra.s32 %v5375, 16
      %v5378 = vcvt.s32.f32 %v5376
      %v5379 = vcvt.s32.f32 %v5377
      %5380 = vmin.xlane.f32.xlu0 %v5379
      %v5381 = vpop.xlane.xlu0 %5380
      %vm5382 = vcmp.eq.f32.partialorder %v5379, %v5381
      %v5383 = vsel %vm5382, %v5378, inf
      %5384 = vmin.xlane.f32.xlu0 %v5383
      %v5385 = vpop.xlane.xlu0 %5384
      %v5386 = vcvt.f32.s32 %v5385
      %v5387 = vcvt.f32.s32 %v5381
      %v5388 = vshll.u32 %v5387, 16
      %v5389 = vadd.s32 %v5388, %v5386
      %v5390 = vsel %vm822, %v5344, 2147483647
      %v5391 = vand.u32 %v5390, 65535
      %v5392 = vshra.s32 %v5390, 16
      %v5393 = vcvt.s32.f32 %v5391
      %v5394 = vcvt.s32.f32 %v5392
      %5395 = vmin.xlane.f32.xlu0 %v5394
      %v5396 = vpop.xlane.xlu0 %5395
      %vm5397 = vcmp.eq.f32.partialorder %v5394, %v5396
      %v5398 = vsel %vm5397, %v5393, inf
      %5399 = vmin.xlane.f32.xlu0 %v5398
      %v5400 = vpop.xlane.xlu0 %5399
      %v5401 = vcvt.f32.s32 %v5400
      %v5402 = vcvt.f32.s32 %v5396
      %v5403 = vshll.u32 %v5402, 16
      %v5404 = vadd.s32 %v5403, %v5401
      %vm5405 = vcmp.eq.s32.totalorder %v524, %v5359
      %vm5406 = vcmp.eq.s32.totalorder %v524, %v5374
      %vm5407 = vcmp.eq.s32.totalorder %v524, %v5389
      %vm5408 = vcmp.eq.s32.totalorder %v524, %v5404
      %v5409 = vsel %vm5405, 1, 0
      %v5410 = vsel %vm5406, 1, 0
      %v5411 = vsel %vm5407, 1, 0
      %v5412 = vsel %vm5408, 1, 0
      %v5413 = vcvt.s32.f32 %v5409
      %v5414 = vcvt.s32.f32 %v5410
      %v5415 = vcvt.s32.f32 %v5411
      %v5416 = vcvt.s32.f32 %v5412
      %v5418 = vsel %vm822, %v5413, 0
      %v5421 = vsel %vm822, %v5414, 0
      %v5424 = vsel %vm822, %v5415, 0
      %v5427 = vsel %vm822, %v5416, 0
      %5429 = vmatprep.subr.mxu0 0.0
      %5430 = vmatpush1.msra.mxu0 0.0
      %5431 = vmatprep.subr.mxu0 0.0
      %5432 = vmatpush1.msra.mxu0 0.0
      %5433 = vmatprep.subr.mxu0 0.0
      %5434 = vmatpush1.msra.mxu0 0.0
      %5435 = vmatprep.subr.mxu0 0.0
      %5436 = vmatpush1.msra.mxu0 0.0
      %5437 = vmatprep.subr.mxu0 0.0
      %5438 = vmatpush1.msra.mxu0 0.0
      %5439 = vmatprep.subr.mxu0 0.0
      %5440 = vmatpush1.msra.mxu0 0.0
      %5441 = vmatprep.subr.mxu0 0.0
      %5442 = vmatpush1.msra.mxu0 0.0
      %5443 = vmatprep.subr.mxu0 0.0
      %5444 = vmatpush1.msra.mxu0 0.0
      %5445 = vmatprep.subr.mxu0 0.0
      %5446 = vmatpush1.msra.mxu0 0.0
      %5447 = vmatprep.subr.mxu0 0.0
      %5448 = vmatpush1.msra.mxu0 0.0
      %5449 = vmatprep.subr.mxu0 0.0
      %5450 = vmatpush1.msra.mxu0 0.0
      %5451 = vmatprep.subr.mxu0 0.0
      %5452 = vmatpush1.msra.mxu0 0.0
      %5453 = vmatprep.subr.mxu0 0.0
      %5454 = vmatpush1.msra.mxu0 %v4129
      %5455 = vmatprep.subr.mxu0 0.0
      %5456 = vmatpush1.msra.mxu0 %v4128
      %5457 = vmatprep.subr.mxu0 0.0
      %5458 = vmatpush1.msra.mxu0 %v4127
      %5459 = vmatprep.subr.mxu0 0.0
      %5460 = vmatpush1.msra.mxu0 %v4126
      %5461 = vmatprep.subr.mxu0 0.0
      %5462 = vmatpush2.msra.mxu0 0.0
      %5463 = vmatprep.subr.mxu0 0.0
      %5464 = vmatpush2.msra.mxu0 0.0
      %5465 = vmatprep.subr.mxu0 0.0
      %5466 = vmatpush2.msra.mxu0 0.0
      %5467 = vmatprep.subr.mxu0 0.0
      %5468 = vmatpush2.msra.mxu0 0.0
      %5469 = vmatprep.subr.mxu0 0.0
      %5470 = vmatpush2.msra.mxu0 0.0
      %5471 = vmatprep.subr.mxu0 0.0
      %5472 = vmatpush2.msra.mxu0 0.0
      %5473 = vmatprep.subr.mxu0 0.0
      %5474 = vmatpush2.msra.mxu0 0.0
      %5475 = vmatprep.subr.mxu0 0.0
      %5476 = vmatpush2.msra.mxu0 0.0
      %5477 = vmatprep.subr.mxu0 0.0
      %5478 = vmatpush2.msra.mxu0 0.0
      %5479 = vmatprep.subr.mxu0 0.0
      %5480 = vmatpush2.msra.mxu0 0.0
      %5481 = vmatprep.subr.mxu0 0.0
      %5482 = vmatpush2.msra.mxu0 0.0
      %5483 = vmatprep.subr.mxu0 0.0
      %5484 = vmatpush2.msra.mxu0 0.0
      %5485 = vmatprep.subr.mxu0 0.0
      %5486 = vmatpush2.msra.mxu0 0.0
      %5487 = vmatprep.subr.mxu0 0.0
      %5488 = vmatpush2.msra.mxu0 0.0
      %5489 = vmatprep.subr.mxu0 0.0
      %5490 = vmatpush2.msra.mxu0 0.0
      %5491 = vmatprep.subr.mxu0 0.0
      %5492 = vmatpush2.msra.mxu0 0.0
      %5493 = vmatprep.mubr.f32.mxu0 0.0
      %5494 = vmatmul.mubr.f32.gmra.mxu0 %v5418
      %v5495 = vpop.f32.mrf.mxu0
      %v5496 = vadd.f32 0.0, %v5495
      %v5497 = vpop.f32.mrf.mxu0
      %5498 = vmatprep.mubr.f32.mxu0 0.0
      %5499 = vmatmul.mubr.f32.gmra.mxu0 %v5421
      %v5500 = vpop.f32.mrf.mxu0
      %v5501 = vadd.f32 0.0, %v5500
      %v5502 = vpop.f32.mrf.mxu0
      %5503 = vmatprep.mubr.f32.mxu0 0.0
      %5504 = vmatmul.mubr.f32.gmra.mxu0 %v5424
      %v5505 = vpop.f32.mrf.mxu0
      %v5506 = vadd.f32 0.0, %v5505
      %v5507 = vpop.f32.mrf.mxu0
      %5508 = vmatprep.mubr.f32.mxu0 0.0
      %5509 = vmatmul.mubr.f32.gmra.mxu0 %v5427
      %v5510 = vpop.f32.mrf.mxu0
      %v5511 = vadd.f32 0.0, %v5510
      %v5512 = vpop.f32.mrf.mxu0
      %5513 = vdwg.mxu0
      %v5514 = vsub.f32 %v5496, %v4126
      %v5515 = vsub.f32 %v5501, %v4127
      %v5516 = vsub.f32 %v5506, %v4128
      %v5517 = vsub.f32 %v5511, %v4129
      %v5519 = vsel %vm1155, %v5514, 0
      %v5522 = vsel %vm1155, %v5515, 0
      %v5525 = vsel %vm1155, %v5516, 0
      %v5528 = vsel %vm1155, %v5517, 0
      %5530 = vmatprep.subr.mxu0 0.0
      %5531 = vmatpush1.msra.mxu0 0.0
      %5532 = vmatprep.subr.mxu0 0.0
      %5533 = vmatpush1.msra.mxu0 0.0
      %5534 = vmatprep.subr.mxu0 0.0
      %5535 = vmatpush1.msra.mxu0 0.0
      %5536 = vmatprep.subr.mxu0 0.0
      %5537 = vmatpush1.msra.mxu0 0.0
      %5538 = vmatprep.subr.mxu0 0.0
      %5539 = vmatpush1.msra.mxu0 0.0
      %5540 = vmatprep.subr.mxu0 0.0
      %5541 = vmatpush1.msra.mxu0 0.0
      %5542 = vmatprep.subr.mxu0 0.0
      %5543 = vmatpush1.msra.mxu0 0.0
      %5544 = vmatprep.subr.mxu0 0.0
      %5545 = vmatpush1.msra.mxu0 0.0
      %5546 = vmatprep.subr.mxu0 0.0
      %5547 = vmatpush1.msra.mxu0 %v4342
      %5548 = vmatprep.subr.mxu0 0.0
      %5549 = vmatpush1.msra.mxu0 %v4341
      %5550 = vmatprep.subr.mxu0 0.0
      %5551 = vmatpush1.msra.mxu0 %v4340
      %5552 = vmatprep.subr.mxu0 0.0
      %5553 = vmatpush1.msra.mxu0 %v4339
      %5554 = vmatprep.subr.mxu0 0.0
      %5555 = vmatpush1.msra.mxu0 %v4338
      %5556 = vmatprep.subr.mxu0 0.0
      %5557 = vmatpush1.msra.mxu0 %v4337
      %5558 = vmatprep.subr.mxu0 0.0
      %5559 = vmatpush1.msra.mxu0 %v4336
      %5560 = vmatprep.subr.mxu0 0.0
      %5561 = vmatpush1.msra.mxu0 %v4335
      %5562 = vmatprep.subr.mxu0 0.0
      %5563 = vmatpush2.msra.mxu0 0.0
      %5564 = vmatprep.subr.mxu0 0.0
      %5565 = vmatpush2.msra.mxu0 0.0
      %5566 = vmatprep.subr.mxu0 0.0
      %5567 = vmatpush2.msra.mxu0 0.0
      %5568 = vmatprep.subr.mxu0 0.0
      %5569 = vmatpush2.msra.mxu0 0.0
      %5570 = vmatprep.subr.mxu0 0.0
      %5571 = vmatpush2.msra.mxu0 0.0
      %5572 = vmatprep.subr.mxu0 0.0
      %5573 = vmatpush2.msra.mxu0 0.0
      %5574 = vmatprep.subr.mxu0 0.0
      %5575 = vmatpush2.msra.mxu0 0.0
      %5576 = vmatprep.subr.mxu0 0.0
      %5577 = vmatpush2.msra.mxu0 0.0
      %5578 = vmatprep.subr.mxu0 0.0
      %5579 = vmatpush2.msra.mxu0 0.0
      %5580 = vmatprep.subr.mxu0 0.0
      %5581 = vmatpush2.msra.mxu0 0.0
      %5582 = vmatprep.subr.mxu0 0.0
      %5583 = vmatpush2.msra.mxu0 0.0
      %5584 = vmatprep.subr.mxu0 0.0
      %5585 = vmatpush2.msra.mxu0 0.0
      %5586 = vmatprep.subr.mxu0 0.0
      %5587 = vmatpush2.msra.mxu0 0.0
      %5588 = vmatprep.subr.mxu0 0.0
      %5589 = vmatpush2.msra.mxu0 0.0
      %5590 = vmatprep.subr.mxu0 0.0
      %5591 = vmatpush2.msra.mxu0 0.0
      %5592 = vmatprep.subr.mxu0 0.0
      %5593 = vmatpush2.msra.mxu0 0.0
      %5594 = vmatprep.mubr.f32.mxu0 0.0
      %5595 = vmatmul.mubr.f32.gmra.mxu0 %v5519
      %v5596 = vpop.f32.mrf.mxu0
      %v5597 = vadd.f32 0.0, %v5596
      %v5598 = vpop.f32.mrf.mxu0
      %5599 = vmatprep.mubr.f32.mxu0 0.0
      %5600 = vmatmul.mubr.f32.gmra.mxu0 %v5522
      %v5601 = vpop.f32.mrf.mxu0
      %v5602 = vadd.f32 0.0, %v5601
      %v5603 = vpop.f32.mrf.mxu0
      %5604 = vmatprep.mubr.f32.mxu0 0.0
      %5605 = vmatmul.mubr.f32.gmra.mxu0 %v5525
      %v5606 = vpop.f32.mrf.mxu0
      %v5607 = vadd.f32 0.0, %v5606
      %v5608 = vpop.f32.mrf.mxu0
      %5609 = vmatprep.mubr.f32.mxu0 0.0
      %5610 = vmatmul.mubr.f32.gmra.mxu0 %v5528
      %v5611 = vpop.f32.mrf.mxu0
      %v5612 = vadd.f32 0.0, %v5611
      %v5613 = vpop.f32.mrf.mxu0
      %5614 = vdwg.mxu0
      %v5615 = vmax.f32 %v5317, %v5597
      %v5616 = vmax.f32 %v5318, %v5602
      %v5617 = vmax.f32 %v5319, %v5607
      %v5618 = vmax.f32 %v5320, %v5612
      %v5619 = vsel %vm5405, inf, %v5321
      %v5620 = vsel %vm5406, inf, %v5322
      %v5621 = vsel %vm5407, inf, %v5323
      %v5622 = vsel %vm5408, inf, %v5324
      %v5623 = vsel %vm822, %v5619, inf
      %5624 = vmin.xlane.f32.xlu0 %v5623
      %v5625 = vpop.xlane.xlu0 %5624
      %v5626 = vsel %vm822, %v5620, inf
      %5627 = vmin.xlane.f32.xlu0 %v5626
      %v5628 = vpop.xlane.xlu0 %5627
      %v5629 = vsel %vm822, %v5621, inf
      %5630 = vmin.xlane.f32.xlu0 %v5629
      %v5631 = vpop.xlane.xlu0 %5630
      %v5632 = vsel %vm822, %v5622, inf
      %5633 = vmin.xlane.f32.xlu0 %v5632
      %v5634 = vpop.xlane.xlu0 %5633
      %vm5635 = vcmp.eq.f32.partialorder %v5619, %v5625
      %vm5636 = vcmp.eq.f32.partialorder %v5620, %v5628
      %vm5637 = vcmp.eq.f32.partialorder %v5621, %v5631
      %vm5638 = vcmp.eq.f32.partialorder %v5622, %v5634
      %v5639 = vsel %vm5635, %v524, 32
      %v5640 = vsel %vm5636, %v524, 32
      %v5641 = vsel %vm5637, %v524, 32
      %v5642 = vsel %vm5638, %v524, 32
      %v5643 = vsel %vm822, %v5639, 2147483647
      %v5644 = vand.u32 %v5643, 65535
      %v5645 = vshra.s32 %v5643, 16
      %v5646 = vcvt.s32.f32 %v5644
      %v5647 = vcvt.s32.f32 %v5645
      %5648 = vmin.xlane.f32.xlu0 %v5647
      %v5649 = vpop.xlane.xlu0 %5648
      %vm5650 = vcmp.eq.f32.partialorder %v5647, %v5649
      %v5651 = vsel %vm5650, %v5646, inf
      %5652 = vmin.xlane.f32.xlu0 %v5651
      %v5653 = vpop.xlane.xlu0 %5652
      %v5654 = vcvt.f32.s32 %v5653
      %v5655 = vcvt.f32.s32 %v5649
      %v5656 = vshll.u32 %v5655, 16
      %v5657 = vadd.s32 %v5656, %v5654
      %v5658 = vsel %vm822, %v5640, 2147483647
      %v5659 = vand.u32 %v5658, 65535
      %v5660 = vshra.s32 %v5658, 16
      %v5661 = vcvt.s32.f32 %v5659
      %v5662 = vcvt.s32.f32 %v5660
      %5663 = vmin.xlane.f32.xlu0 %v5662
      %v5664 = vpop.xlane.xlu0 %5663
      %vm5665 = vcmp.eq.f32.partialorder %v5662, %v5664
      %v5666 = vsel %vm5665, %v5661, inf
      %5667 = vmin.xlane.f32.xlu0 %v5666
      %v5668 = vpop.xlane.xlu0 %5667
      %v5669 = vcvt.f32.s32 %v5668
      %v5670 = vcvt.f32.s32 %v5664
      %v5671 = vshll.u32 %v5670, 16
      %v5672 = vadd.s32 %v5671, %v5669
      %v5673 = vsel %vm822, %v5641, 2147483647
      %v5674 = vand.u32 %v5673, 65535
      %v5675 = vshra.s32 %v5673, 16
      %v5676 = vcvt.s32.f32 %v5674
      %v5677 = vcvt.s32.f32 %v5675
      %5678 = vmin.xlane.f32.xlu0 %v5677
      %v5679 = vpop.xlane.xlu0 %5678
      %vm5680 = vcmp.eq.f32.partialorder %v5677, %v5679
      %v5681 = vsel %vm5680, %v5676, inf
      %5682 = vmin.xlane.f32.xlu0 %v5681
      %v5683 = vpop.xlane.xlu0 %5682
      %v5684 = vcvt.f32.s32 %v5683
      %v5685 = vcvt.f32.s32 %v5679
      %v5686 = vshll.u32 %v5685, 16
      %v5687 = vadd.s32 %v5686, %v5684
      %v5688 = vsel %vm822, %v5642, 2147483647
      %v5689 = vand.u32 %v5688, 65535
      %v5690 = vshra.s32 %v5688, 16
      %v5691 = vcvt.s32.f32 %v5689
      %v5692 = vcvt.s32.f32 %v5690
      %5693 = vmin.xlane.f32.xlu0 %v5692
      %v5694 = vpop.xlane.xlu0 %5693
      %vm5695 = vcmp.eq.f32.partialorder %v5692, %v5694
      %v5696 = vsel %vm5695, %v5691, inf
      %5697 = vmin.xlane.f32.xlu0 %v5696
      %v5698 = vpop.xlane.xlu0 %5697
      %v5699 = vcvt.f32.s32 %v5698
      %v5700 = vcvt.f32.s32 %v5694
      %v5701 = vshll.u32 %v5700, 16
      %v5702 = vadd.s32 %v5701, %v5699
      %vm5703 = vcmp.eq.s32.totalorder %v524, %v5657
      %vm5704 = vcmp.eq.s32.totalorder %v524, %v5672
      %vm5705 = vcmp.eq.s32.totalorder %v524, %v5687
      %vm5706 = vcmp.eq.s32.totalorder %v524, %v5702
      %v5707 = vsel %vm5703, 1, 0
      %v5708 = vsel %vm5704, 1, 0
      %v5709 = vsel %vm5705, 1, 0
      %v5710 = vsel %vm5706, 1, 0
      %v5711 = vcvt.s32.f32 %v5707
      %v5712 = vcvt.s32.f32 %v5708
      %v5713 = vcvt.s32.f32 %v5709
      %v5714 = vcvt.s32.f32 %v5710
      %v5716 = vsel %vm822, %v5711, 0
      %v5719 = vsel %vm822, %v5712, 0
      %v5722 = vsel %vm822, %v5713, 0
      %v5725 = vsel %vm822, %v5714, 0
      %5727 = vmatprep.subr.mxu0 0.0
      %5728 = vmatpush1.msra.mxu0 0.0
      %5729 = vmatprep.subr.mxu0 0.0
      %5730 = vmatpush1.msra.mxu0 0.0
      %5731 = vmatprep.subr.mxu0 0.0
      %5732 = vmatpush1.msra.mxu0 0.0
      %5733 = vmatprep.subr.mxu0 0.0
      %5734 = vmatpush1.msra.mxu0 0.0
      %5735 = vmatprep.subr.mxu0 0.0
      %5736 = vmatpush1.msra.mxu0 0.0
      %5737 = vmatprep.subr.mxu0 0.0
      %5738 = vmatpush1.msra.mxu0 0.0
      %5739 = vmatprep.subr.mxu0 0.0
      %5740 = vmatpush1.msra.mxu0 0.0
      %5741 = vmatprep.subr.mxu0 0.0
      %5742 = vmatpush1.msra.mxu0 0.0
      %5743 = vmatprep.subr.mxu0 0.0
      %5744 = vmatpush1.msra.mxu0 0.0
      %5745 = vmatprep.subr.mxu0 0.0
      %5746 = vmatpush1.msra.mxu0 0.0
      %5747 = vmatprep.subr.mxu0 0.0
      %5748 = vmatpush1.msra.mxu0 0.0
      %5749 = vmatprep.subr.mxu0 0.0
      %5750 = vmatpush1.msra.mxu0 0.0
      %5751 = vmatprep.subr.mxu0 0.0
      %5752 = vmatpush1.msra.mxu0 %v4129
      %5753 = vmatprep.subr.mxu0 0.0
      %5754 = vmatpush1.msra.mxu0 %v4128
      %5755 = vmatprep.subr.mxu0 0.0
      %5756 = vmatpush1.msra.mxu0 %v4127
      %5757 = vmatprep.subr.mxu0 0.0
      %5758 = vmatpush1.msra.mxu0 %v4126
      %5759 = vmatprep.subr.mxu0 0.0
      %5760 = vmatpush2.msra.mxu0 0.0
      %5761 = vmatprep.subr.mxu0 0.0
      %5762 = vmatpush2.msra.mxu0 0.0
      %5763 = vmatprep.subr.mxu0 0.0
      %5764 = vmatpush2.msra.mxu0 0.0
      %5765 = vmatprep.subr.mxu0 0.0
      %5766 = vmatpush2.msra.mxu0 0.0
      %5767 = vmatprep.subr.mxu0 0.0
      %5768 = vmatpush2.msra.mxu0 0.0
      %5769 = vmatprep.subr.mxu0 0.0
      %5770 = vmatpush2.msra.mxu0 0.0
      %5771 = vmatprep.subr.mxu0 0.0
      %5772 = vmatpush2.msra.mxu0 0.0
      %5773 = vmatprep.subr.mxu0 0.0
      %5774 = vmatpush2.msra.mxu0 0.0
      %5775 = vmatprep.subr.mxu0 0.0
      %5776 = vmatpush2.msra.mxu0 0.0
      %5777 = vmatprep.subr.mxu0 0.0
      %5778 = vmatpush2.msra.mxu0 0.0
      %5779 = vmatprep.subr.mxu0 0.0
      %5780 = vmatpush2.msra.mxu0 0.0
      %5781 = vmatprep.subr.mxu0 0.0
      %5782 = vmatpush2.msra.mxu0 0.0
      %5783 = vmatprep.subr.mxu0 0.0
      %5784 = vmatpush2.msra.mxu0 0.0
      %5785 = vmatprep.subr.mxu0 0.0
      %5786 = vmatpush2.msra.mxu0 0.0
      %5787 = vmatprep.subr.mxu0 0.0
      %5788 = vmatpush2.msra.mxu0 0.0
      %5789 = vmatprep.subr.mxu0 0.0
      %5790 = vmatpush2.msra.mxu0 0.0
      %5791 = vmatprep.mubr.f32.mxu0 0.0
      %5792 = vmatmul.mubr.f32.gmra.mxu0 %v5716
      %v5793 = vpop.f32.mrf.mxu0
      %v5794 = vadd.f32 0.0, %v5793
      %v5795 = vpop.f32.mrf.mxu0
      %5796 = vmatprep.mubr.f32.mxu0 0.0
      %5797 = vmatmul.mubr.f32.gmra.mxu0 %v5719
      %v5798 = vpop.f32.mrf.mxu0
      %v5799 = vadd.f32 0.0, %v5798
      %v5800 = vpop.f32.mrf.mxu0
      %5801 = vmatprep.mubr.f32.mxu0 0.0
      %5802 = vmatmul.mubr.f32.gmra.mxu0 %v5722
      %v5803 = vpop.f32.mrf.mxu0
      %v5804 = vadd.f32 0.0, %v5803
      %v5805 = vpop.f32.mrf.mxu0
      %5806 = vmatprep.mubr.f32.mxu0 0.0
      %5807 = vmatmul.mubr.f32.gmra.mxu0 %v5725
      %v5808 = vpop.f32.mrf.mxu0
      %v5809 = vadd.f32 0.0, %v5808
      %v5810 = vpop.f32.mrf.mxu0
      %5811 = vdwg.mxu0
      %v5812 = vsub.f32 %v5794, %v4126
      %v5813 = vsub.f32 %v5799, %v4127
      %v5814 = vsub.f32 %v5804, %v4128
      %v5815 = vsub.f32 %v5809, %v4129
      %v5817 = vsel %vm1155, %v5812, 0
      %v5820 = vsel %vm1155, %v5813, 0
      %v5823 = vsel %vm1155, %v5814, 0
      %v5826 = vsel %vm1155, %v5815, 0
      %5828 = vmatprep.subr.mxu0 0.0
      %5829 = vmatpush1.msra.mxu0 0.0
      %5830 = vmatprep.subr.mxu0 0.0
      %5831 = vmatpush1.msra.mxu0 0.0
      %5832 = vmatprep.subr.mxu0 0.0
      %5833 = vmatpush1.msra.mxu0 0.0
      %5834 = vmatprep.subr.mxu0 0.0
      %5835 = vmatpush1.msra.mxu0 0.0
      %5836 = vmatprep.subr.mxu0 0.0
      %5837 = vmatpush1.msra.mxu0 0.0
      %5838 = vmatprep.subr.mxu0 0.0
      %5839 = vmatpush1.msra.mxu0 0.0
      %5840 = vmatprep.subr.mxu0 0.0
      %5841 = vmatpush1.msra.mxu0 0.0
      %5842 = vmatprep.subr.mxu0 0.0
      %5843 = vmatpush1.msra.mxu0 0.0
      %5844 = vmatprep.subr.mxu0 0.0
      %5845 = vmatpush1.msra.mxu0 %v4342
      %5846 = vmatprep.subr.mxu0 0.0
      %5847 = vmatpush1.msra.mxu0 %v4341
      %5848 = vmatprep.subr.mxu0 0.0
      %5849 = vmatpush1.msra.mxu0 %v4340
      %5850 = vmatprep.subr.mxu0 0.0
      %5851 = vmatpush1.msra.mxu0 %v4339
      %5852 = vmatprep.subr.mxu0 0.0
      %5853 = vmatpush1.msra.mxu0 %v4338
      %5854 = vmatprep.subr.mxu0 0.0
      %5855 = vmatpush1.msra.mxu0 %v4337
      %5856 = vmatprep.subr.mxu0 0.0
      %5857 = vmatpush1.msra.mxu0 %v4336
      %5858 = vmatprep.subr.mxu0 0.0
      %5859 = vmatpush1.msra.mxu0 %v4335
      %5860 = vmatprep.subr.mxu0 0.0
      %5861 = vmatpush2.msra.mxu0 0.0
      %5862 = vmatprep.subr.mxu0 0.0
      %5863 = vmatpush2.msra.mxu0 0.0
      %5864 = vmatprep.subr.mxu0 0.0
      %5865 = vmatpush2.msra.mxu0 0.0
      %5866 = vmatprep.subr.mxu0 0.0
      %5867 = vmatpush2.msra.mxu0 0.0
      %5868 = vmatprep.subr.mxu0 0.0
      %5869 = vmatpush2.msra.mxu0 0.0
      %5870 = vmatprep.subr.mxu0 0.0
      %5871 = vmatpush2.msra.mxu0 0.0
      %5872 = vmatprep.subr.mxu0 0.0
      %5873 = vmatpush2.msra.mxu0 0.0
      %5874 = vmatprep.subr.mxu0 0.0
      %5875 = vmatpush2.msra.mxu0 0.0
      %5876 = vmatprep.subr.mxu0 0.0
      %5877 = vmatpush2.msra.mxu0 0.0
      %5878 = vmatprep.subr.mxu0 0.0
      %5879 = vmatpush2.msra.mxu0 0.0
      %5880 = vmatprep.subr.mxu0 0.0
      %5881 = vmatpush2.msra.mxu0 0.0
      %5882 = vmatprep.subr.mxu0 0.0
      %5883 = vmatpush2.msra.mxu0 0.0
      %5884 = vmatprep.subr.mxu0 0.0
      %5885 = vmatpush2.msra.mxu0 0.0
      %5886 = vmatprep.subr.mxu0 0.0
      %5887 = vmatpush2.msra.mxu0 0.0
      %5888 = vmatprep.subr.mxu0 0.0
      %5889 = vmatpush2.msra.mxu0 0.0
      %5890 = vmatprep.subr.mxu0 0.0
      %5891 = vmatpush2.msra.mxu0 0.0
      %5892 = vmatprep.mubr.f32.mxu0 0.0
      %5893 = vmatmul.mubr.f32.gmra.mxu0 %v5817
      %v5894 = vpop.f32.mrf.mxu0
      %v5895 = vadd.f32 0.0, %v5894
      %v5896 = vpop.f32.mrf.mxu0
      %5897 = vmatprep.mubr.f32.mxu0 0.0
      %5898 = vmatmul.mubr.f32.gmra.mxu0 %v5820
      %v5899 = vpop.f32.mrf.mxu0
      %v5900 = vadd.f32 0.0, %v5899
      %v5901 = vpop.f32.mrf.mxu0
      %5902 = vmatprep.mubr.f32.mxu0 0.0
      %5903 = vmatmul.mubr.f32.gmra.mxu0 %v5823
      %v5904 = vpop.f32.mrf.mxu0
      %v5905 = vadd.f32 0.0, %v5904
      %v5906 = vpop.f32.mrf.mxu0
      %5907 = vmatprep.mubr.f32.mxu0 0.0
      %5908 = vmatmul.mubr.f32.gmra.mxu0 %v5826
      %v5909 = vpop.f32.mrf.mxu0
      %v5910 = vadd.f32 0.0, %v5909
      %v5911 = vpop.f32.mrf.mxu0
      %5912 = vdwg.mxu0
      %v5913 = vmax.f32 %v5615, %v5895
      %v5914 = vmax.f32 %v5616, %v5900
      %v5915 = vmax.f32 %v5617, %v5905
      %v5916 = vmax.f32 %v5618, %v5910
      %v5917 = vsel %vm5703, inf, %v5619
      %v5918 = vsel %vm5704, inf, %v5620
      %v5919 = vsel %vm5705, inf, %v5621
      %v5920 = vsel %vm5706, inf, %v5622
      %v5921 = vsel %vm822, %v5917, inf
      %5922 = vmin.xlane.f32.xlu0 %v5921
      %v5923 = vpop.xlane.xlu0 %5922
      %v5924 = vsel %vm822, %v5918, inf
      %5925 = vmin.xlane.f32.xlu0 %v5924
      %v5926 = vpop.xlane.xlu0 %5925
      %v5927 = vsel %vm822, %v5919, inf
      %5928 = vmin.xlane.f32.xlu0 %v5927
      %v5929 = vpop.xlane.xlu0 %5928
      %v5930 = vsel %vm822, %v5920, inf
      %5931 = vmin.xlane.f32.xlu0 %v5930
      %v5932 = vpop.xlane.xlu0 %5931
      %vm5933 = vcmp.eq.f32.partialorder %v5917, %v5923
      %vm5934 = vcmp.eq.f32.partialorder %v5918, %v5926
      %vm5935 = vcmp.eq.f32.partialorder %v5919, %v5929
      %vm5936 = vcmp.eq.f32.partialorder %v5920, %v5932
      %v5937 = vsel %vm5933, %v524, 32
      %v5938 = vsel %vm5934, %v524, 32
      %v5939 = vsel %vm5935, %v524, 32
      %v5940 = vsel %vm5936, %v524, 32
      %v5941 = vsel %vm822, %v5937, 2147483647
      %v5942 = vand.u32 %v5941, 65535
      %v5943 = vshra.s32 %v5941, 16
      %v5944 = vcvt.s32.f32 %v5942
      %v5945 = vcvt.s32.f32 %v5943
      %5946 = vmin.xlane.f32.xlu0 %v5945
      %v5947 = vpop.xlane.xlu0 %5946
      %vm5948 = vcmp.eq.f32.partialorder %v5945, %v5947
      %v5949 = vsel %vm5948, %v5944, inf
      %5950 = vmin.xlane.f32.xlu0 %v5949
      %v5951 = vpop.xlane.xlu0 %5950
      %v5952 = vcvt.f32.s32 %v5951
      %v5953 = vcvt.f32.s32 %v5947
      %v5954 = vshll.u32 %v5953, 16
      %v5955 = vadd.s32 %v5954, %v5952
      %v5956 = vsel %vm822, %v5938, 2147483647
      %v5957 = vand.u32 %v5956, 65535
      %v5958 = vshra.s32 %v5956, 16
      %v5959 = vcvt.s32.f32 %v5957
      %v5960 = vcvt.s32.f32 %v5958
      %5961 = vmin.xlane.f32.xlu0 %v5960
      %v5962 = vpop.xlane.xlu0 %5961
      %vm5963 = vcmp.eq.f32.partialorder %v5960, %v5962
      %v5964 = vsel %vm5963, %v5959, inf
      %5965 = vmin.xlane.f32.xlu0 %v5964
      %v5966 = vpop.xlane.xlu0 %5965
      %v5967 = vcvt.f32.s32 %v5966
      %v5968 = vcvt.f32.s32 %v5962
      %v5969 = vshll.u32 %v5968, 16
      %v5970 = vadd.s32 %v5969, %v5967
      %v5971 = vsel %vm822, %v5939, 2147483647
      %v5972 = vand.u32 %v5971, 65535
      %v5973 = vshra.s32 %v5971, 16
      %v5974 = vcvt.s32.f32 %v5972
      %v5975 = vcvt.s32.f32 %v5973
      %5976 = vmin.xlane.f32.xlu0 %v5975
      %v5977 = vpop.xlane.xlu0 %5976
      %vm5978 = vcmp.eq.f32.partialorder %v5975, %v5977
      %v5979 = vsel %vm5978, %v5974, inf
      %5980 = vmin.xlane.f32.xlu0 %v5979
      %v5981 = vpop.xlane.xlu0 %5980
      %v5982 = vcvt.f32.s32 %v5981
      %v5983 = vcvt.f32.s32 %v5977
      %v5984 = vshll.u32 %v5983, 16
      %v5985 = vadd.s32 %v5984, %v5982
      %v5986 = vsel %vm822, %v5940, 2147483647
      %v5987 = vand.u32 %v5986, 65535
      %v5988 = vshra.s32 %v5986, 16
      %v5989 = vcvt.s32.f32 %v5987
      %v5990 = vcvt.s32.f32 %v5988
      %5991 = vmin.xlane.f32.xlu0 %v5990
      %v5992 = vpop.xlane.xlu0 %5991
      %vm5993 = vcmp.eq.f32.partialorder %v5990, %v5992
      %v5994 = vsel %vm5993, %v5989, inf
      %5995 = vmin.xlane.f32.xlu0 %v5994
      %v5996 = vpop.xlane.xlu0 %5995
      %v5997 = vcvt.f32.s32 %v5996
      %v5998 = vcvt.f32.s32 %v5992
      %v5999 = vshll.u32 %v5998, 16
      %v6000 = vadd.s32 %v5999, %v5997
      %vm6001 = vcmp.eq.s32.totalorder %v524, %v5955
      %vm6002 = vcmp.eq.s32.totalorder %v524, %v5970
      %vm6003 = vcmp.eq.s32.totalorder %v524, %v5985
      %vm6004 = vcmp.eq.s32.totalorder %v524, %v6000
      %v6005 = vsel %vm6001, 1, 0
      %v6006 = vsel %vm6002, 1, 0
      %v6007 = vsel %vm6003, 1, 0
      %v6008 = vsel %vm6004, 1, 0
      %v6009 = vcvt.s32.f32 %v6005
      %v6010 = vcvt.s32.f32 %v6006
      %v6011 = vcvt.s32.f32 %v6007
      %v6012 = vcvt.s32.f32 %v6008
      %v6014 = vsel %vm822, %v6009, 0
      %v6017 = vsel %vm822, %v6010, 0
      %v6020 = vsel %vm822, %v6011, 0
      %v6023 = vsel %vm822, %v6012, 0
      %6025 = vmatprep.subr.mxu0 0.0
      %6026 = vmatpush1.msra.mxu0 0.0
      %6027 = vmatprep.subr.mxu0 0.0
      %6028 = vmatpush1.msra.mxu0 0.0
      %6029 = vmatprep.subr.mxu0 0.0
      %6030 = vmatpush1.msra.mxu0 0.0
      %6031 = vmatprep.subr.mxu0 0.0
      %6032 = vmatpush1.msra.mxu0 0.0
      %6033 = vmatprep.subr.mxu0 0.0
      %6034 = vmatpush1.msra.mxu0 0.0
      %6035 = vmatprep.subr.mxu0 0.0
      %6036 = vmatpush1.msra.mxu0 0.0
      %6037 = vmatprep.subr.mxu0 0.0
      %6038 = vmatpush1.msra.mxu0 0.0
      %6039 = vmatprep.subr.mxu0 0.0
      %6040 = vmatpush1.msra.mxu0 0.0
      %6041 = vmatprep.subr.mxu0 0.0
      %6042 = vmatpush1.msra.mxu0 0.0
      %6043 = vmatprep.subr.mxu0 0.0
      %6044 = vmatpush1.msra.mxu0 0.0
      %6045 = vmatprep.subr.mxu0 0.0
      %6046 = vmatpush1.msra.mxu0 0.0
      %6047 = vmatprep.subr.mxu0 0.0
      %6048 = vmatpush1.msra.mxu0 0.0
      %6049 = vmatprep.subr.mxu0 0.0
      %6050 = vmatpush1.msra.mxu0 %v4129
      %6051 = vmatprep.subr.mxu0 0.0
      %6052 = vmatpush1.msra.mxu0 %v4128
      %6053 = vmatprep.subr.mxu0 0.0
      %6054 = vmatpush1.msra.mxu0 %v4127
      %6055 = vmatprep.subr.mxu0 0.0
      %6056 = vmatpush1.msra.mxu0 %v4126
      %6057 = vmatprep.subr.mxu0 0.0
      %6058 = vmatpush2.msra.mxu0 0.0
      %6059 = vmatprep.subr.mxu0 0.0
      %6060 = vmatpush2.msra.mxu0 0.0
      %6061 = vmatprep.subr.mxu0 0.0
      %6062 = vmatpush2.msra.mxu0 0.0
      %6063 = vmatprep.subr.mxu0 0.0
      %6064 = vmatpush2.msra.mxu0 0.0
      %6065 = vmatprep.subr.mxu0 0.0
      %6066 = vmatpush2.msra.mxu0 0.0
      %6067 = vmatprep.subr.mxu0 0.0
      %6068 = vmatpush2.msra.mxu0 0.0
      %6069 = vmatprep.subr.mxu0 0.0
      %6070 = vmatpush2.msra.mxu0 0.0
      %6071 = vmatprep.subr.mxu0 0.0
      %6072 = vmatpush2.msra.mxu0 0.0
      %6073 = vmatprep.subr.mxu0 0.0
      %6074 = vmatpush2.msra.mxu0 0.0
      %6075 = vmatprep.subr.mxu0 0.0
      %6076 = vmatpush2.msra.mxu0 0.0
      %6077 = vmatprep.subr.mxu0 0.0
      %6078 = vmatpush2.msra.mxu0 0.0
      %6079 = vmatprep.subr.mxu0 0.0
      %6080 = vmatpush2.msra.mxu0 0.0
      %6081 = vmatprep.subr.mxu0 0.0
      %6082 = vmatpush2.msra.mxu0 0.0
      %6083 = vmatprep.subr.mxu0 0.0
      %6084 = vmatpush2.msra.mxu0 0.0
      %6085 = vmatprep.subr.mxu0 0.0
      %6086 = vmatpush2.msra.mxu0 0.0
      %6087 = vmatprep.subr.mxu0 0.0
      %6088 = vmatpush2.msra.mxu0 0.0
      %6089 = vmatprep.mubr.f32.mxu0 0.0
      %6090 = vmatmul.mubr.f32.gmra.mxu0 %v6014
      %v6091 = vpop.f32.mrf.mxu0
      %v6092 = vadd.f32 0.0, %v6091
      %v6093 = vpop.f32.mrf.mxu0
      %6094 = vmatprep.mubr.f32.mxu0 0.0
      %6095 = vmatmul.mubr.f32.gmra.mxu0 %v6017
      %v6096 = vpop.f32.mrf.mxu0
      %v6097 = vadd.f32 0.0, %v6096
      %v6098 = vpop.f32.mrf.mxu0
      %6099 = vmatprep.mubr.f32.mxu0 0.0
      %6100 = vmatmul.mubr.f32.gmra.mxu0 %v6020
      %v6101 = vpop.f32.mrf.mxu0
      %v6102 = vadd.f32 0.0, %v6101
      %v6103 = vpop.f32.mrf.mxu0
      %6104 = vmatprep.mubr.f32.mxu0 0.0
      %6105 = vmatmul.mubr.f32.gmra.mxu0 %v6023
      %v6106 = vpop.f32.mrf.mxu0
      %v6107 = vadd.f32 0.0, %v6106
      %v6108 = vpop.f32.mrf.mxu0
      %6109 = vdwg.mxu0
      %v6110 = vsub.f32 %v6092, %v4126
      %v6111 = vsub.f32 %v6097, %v4127
      %v6112 = vsub.f32 %v6102, %v4128
      %v6113 = vsub.f32 %v6107, %v4129
      %v6115 = vsel %vm1155, %v6110, 0
      %v6118 = vsel %vm1155, %v6111, 0
      %v6121 = vsel %vm1155, %v6112, 0
      %v6124 = vsel %vm1155, %v6113, 0
      %6126 = vmatprep.subr.mxu0 0.0
      %6127 = vmatpush1.msra.mxu0 0.0
      %6128 = vmatprep.subr.mxu0 0.0
      %6129 = vmatpush1.msra.mxu0 0.0
      %6130 = vmatprep.subr.mxu0 0.0
      %6131 = vmatpush1.msra.mxu0 0.0
      %6132 = vmatprep.subr.mxu0 0.0
      %6133 = vmatpush1.msra.mxu0 0.0
      %6134 = vmatprep.subr.mxu0 0.0
      %6135 = vmatpush1.msra.mxu0 0.0
      %6136 = vmatprep.subr.mxu0 0.0
      %6137 = vmatpush1.msra.mxu0 0.0
      %6138 = vmatprep.subr.mxu0 0.0
      %6139 = vmatpush1.msra.mxu0 0.0
      %6140 = vmatprep.subr.mxu0 0.0
      %6141 = vmatpush1.msra.mxu0 0.0
      %6142 = vmatprep.subr.mxu0 0.0
      %6143 = vmatpush1.msra.mxu0 %v4342
      %6144 = vmatprep.subr.mxu0 0.0
      %6145 = vmatpush1.msra.mxu0 %v4341
      %6146 = vmatprep.subr.mxu0 0.0
      %6147 = vmatpush1.msra.mxu0 %v4340
      %6148 = vmatprep.subr.mxu0 0.0
      %6149 = vmatpush1.msra.mxu0 %v4339
      %6150 = vmatprep.subr.mxu0 0.0
      %6151 = vmatpush1.msra.mxu0 %v4338
      %6152 = vmatprep.subr.mxu0 0.0
      %6153 = vmatpush1.msra.mxu0 %v4337
      %6154 = vmatprep.subr.mxu0 0.0
      %6155 = vmatpush1.msra.mxu0 %v4336
      %6156 = vmatprep.subr.mxu0 0.0
      %6157 = vmatpush1.msra.mxu0 %v4335
      %6158 = vmatprep.subr.mxu0 0.0
      %6159 = vmatpush2.msra.mxu0 0.0
      %6160 = vmatprep.subr.mxu0 0.0
      %6161 = vmatpush2.msra.mxu0 0.0
      %6162 = vmatprep.subr.mxu0 0.0
      %6163 = vmatpush2.msra.mxu0 0.0
      %6164 = vmatprep.subr.mxu0 0.0
      %6165 = vmatpush2.msra.mxu0 0.0
      %6166 = vmatprep.subr.mxu0 0.0
      %6167 = vmatpush2.msra.mxu0 0.0
      %6168 = vmatprep.subr.mxu0 0.0
      %6169 = vmatpush2.msra.mxu0 0.0
      %6170 = vmatprep.subr.mxu0 0.0
      %6171 = vmatpush2.msra.mxu0 0.0
      %6172 = vmatprep.subr.mxu0 0.0
      %6173 = vmatpush2.msra.mxu0 0.0
      %6174 = vmatprep.subr.mxu0 0.0
      %6175 = vmatpush2.msra.mxu0 0.0
      %6176 = vmatprep.subr.mxu0 0.0
      %6177 = vmatpush2.msra.mxu0 0.0
      %6178 = vmatprep.subr.mxu0 0.0
      %6179 = vmatpush2.msra.mxu0 0.0
      %6180 = vmatprep.subr.mxu0 0.0
      %6181 = vmatpush2.msra.mxu0 0.0
      %6182 = vmatprep.subr.mxu0 0.0
      %6183 = vmatpush2.msra.mxu0 0.0
      %6184 = vmatprep.subr.mxu0 0.0
      %6185 = vmatpush2.msra.mxu0 0.0
      %6186 = vmatprep.subr.mxu0 0.0
      %6187 = vmatpush2.msra.mxu0 0.0
      %6188 = vmatprep.subr.mxu0 0.0
      %6189 = vmatpush2.msra.mxu0 0.0
      %6190 = vmatprep.mubr.f32.mxu0 0.0
      %6191 = vmatmul.mubr.f32.gmra.mxu0 %v6115
      %v6192 = vpop.f32.mrf.mxu0
      %v6193 = vadd.f32 0.0, %v6192
      %v6194 = vpop.f32.mrf.mxu0
      %6195 = vmatprep.mubr.f32.mxu0 0.0
      %6196 = vmatmul.mubr.f32.gmra.mxu0 %v6118
      %v6197 = vpop.f32.mrf.mxu0
      %v6198 = vadd.f32 0.0, %v6197
      %v6199 = vpop.f32.mrf.mxu0
      %6200 = vmatprep.mubr.f32.mxu0 0.0
      %6201 = vmatmul.mubr.f32.gmra.mxu0 %v6121
      %v6202 = vpop.f32.mrf.mxu0
      %v6203 = vadd.f32 0.0, %v6202
      %v6204 = vpop.f32.mrf.mxu0
      %6205 = vmatprep.mubr.f32.mxu0 0.0
      %6206 = vmatmul.mubr.f32.gmra.mxu0 %v6124
      %v6207 = vpop.f32.mrf.mxu0
      %v6208 = vadd.f32 0.0, %v6207
      %v6209 = vpop.f32.mrf.mxu0
      %6210 = vdwg.mxu0
      %v6211 = vmax.f32 %v5913, %v6193
      %v6212 = vmax.f32 %v5914, %v6198
      %v6213 = vmax.f32 %v5915, %v6203
      %v6214 = vmax.f32 %v5916, %v6208
      %v6215 = vsel %vm6001, inf, %v5917
      %v6216 = vsel %vm6002, inf, %v5918
      %v6217 = vsel %vm6003, inf, %v5919
      %v6218 = vsel %vm6004, inf, %v5920
      %v6219 = vsel %vm822, %v6215, inf
      %6220 = vmin.xlane.f32.xlu0 %v6219
      %v6221 = vpop.xlane.xlu0 %6220
      %v6222 = vsel %vm822, %v6216, inf
      %6223 = vmin.xlane.f32.xlu0 %v6222
      %v6224 = vpop.xlane.xlu0 %6223
      %v6225 = vsel %vm822, %v6217, inf
      %6226 = vmin.xlane.f32.xlu0 %v6225
      %v6227 = vpop.xlane.xlu0 %6226
      %v6228 = vsel %vm822, %v6218, inf
      %6229 = vmin.xlane.f32.xlu0 %v6228
      %v6230 = vpop.xlane.xlu0 %6229
      %vm6231 = vcmp.eq.f32.partialorder %v6215, %v6221
      %vm6232 = vcmp.eq.f32.partialorder %v6216, %v6224
      %vm6233 = vcmp.eq.f32.partialorder %v6217, %v6227
      %vm6234 = vcmp.eq.f32.partialorder %v6218, %v6230
      %v6235 = vsel %vm6231, %v524, 32
      %v6236 = vsel %vm6232, %v524, 32
      %v6237 = vsel %vm6233, %v524, 32
      %v6238 = vsel %vm6234, %v524, 32
      %v6239 = vsel %vm822, %v6235, 2147483647
      %v6240 = vand.u32 %v6239, 65535
      %v6241 = vshra.s32 %v6239, 16
      %v6242 = vcvt.s32.f32 %v6240
      %v6243 = vcvt.s32.f32 %v6241
      %6244 = vmin.xlane.f32.xlu0 %v6243
      %v6245 = vpop.xlane.xlu0 %6244
      %vm6246 = vcmp.eq.f32.partialorder %v6243, %v6245
      %v6247 = vsel %vm6246, %v6242, inf
      %6248 = vmin.xlane.f32.xlu0 %v6247
      %v6249 = vpop.xlane.xlu0 %6248
      %v6250 = vcvt.f32.s32 %v6249
      %v6251 = vcvt.f32.s32 %v6245
      %v6252 = vshll.u32 %v6251, 16
      %v6253 = vadd.s32 %v6252, %v6250
      %v6254 = vsel %vm822, %v6236, 2147483647
      %v6255 = vand.u32 %v6254, 65535
      %v6256 = vshra.s32 %v6254, 16
      %v6257 = vcvt.s32.f32 %v6255
      %v6258 = vcvt.s32.f32 %v6256
      %6259 = vmin.xlane.f32.xlu0 %v6258
      %v6260 = vpop.xlane.xlu0 %6259
      %vm6261 = vcmp.eq.f32.partialorder %v6258, %v6260
      %v6262 = vsel %vm6261, %v6257, inf
      %6263 = vmin.xlane.f32.xlu0 %v6262
      %v6264 = vpop.xlane.xlu0 %6263
      %v6265 = vcvt.f32.s32 %v6264
      %v6266 = vcvt.f32.s32 %v6260
      %v6267 = vshll.u32 %v6266, 16
      %v6268 = vadd.s32 %v6267, %v6265
      %v6269 = vsel %vm822, %v6237, 2147483647
      %v6270 = vand.u32 %v6269, 65535
      %v6271 = vshra.s32 %v6269, 16
      %v6272 = vcvt.s32.f32 %v6270
      %v6273 = vcvt.s32.f32 %v6271
      %6274 = vmin.xlane.f32.xlu0 %v6273
      %v6275 = vpop.xlane.xlu0 %6274
      %vm6276 = vcmp.eq.f32.partialorder %v6273, %v6275
      %v6277 = vsel %vm6276, %v6272, inf
      %6278 = vmin.xlane.f32.xlu0 %v6277
      %v6279 = vpop.xlane.xlu0 %6278
      %v6280 = vcvt.f32.s32 %v6279
      %v6281 = vcvt.f32.s32 %v6275
      %v6282 = vshll.u32 %v6281, 16
      %v6283 = vadd.s32 %v6282, %v6280
      %v6284 = vsel %vm822, %v6238, 2147483647
      %v6285 = vand.u32 %v6284, 65535
      %v6286 = vshra.s32 %v6284, 16
      %v6287 = vcvt.s32.f32 %v6285
      %v6288 = vcvt.s32.f32 %v6286
      %6289 = vmin.xlane.f32.xlu0 %v6288
      %v6290 = vpop.xlane.xlu0 %6289
      %vm6291 = vcmp.eq.f32.partialorder %v6288, %v6290
      %v6292 = vsel %vm6291, %v6287, inf
      %6293 = vmin.xlane.f32.xlu0 %v6292
      %v6294 = vpop.xlane.xlu0 %6293
      %v6295 = vcvt.f32.s32 %v6294
      %v6296 = vcvt.f32.s32 %v6290
      %v6297 = vshll.u32 %v6296, 16
      %v6298 = vadd.s32 %v6297, %v6295
      %vm6299 = vcmp.eq.s32.totalorder %v524, %v6253
      %vm6300 = vcmp.eq.s32.totalorder %v524, %v6268
      %vm6301 = vcmp.eq.s32.totalorder %v524, %v6283
      %vm6302 = vcmp.eq.s32.totalorder %v524, %v6298
      %v6303 = vsel %vm6299, 1, 0
      %v6304 = vsel %vm6300, 1, 0
      %v6305 = vsel %vm6301, 1, 0
      %v6306 = vsel %vm6302, 1, 0
      %v6307 = vcvt.s32.f32 %v6303
      %v6308 = vcvt.s32.f32 %v6304
      %v6309 = vcvt.s32.f32 %v6305
      %v6310 = vcvt.s32.f32 %v6306
      %v6312 = vsel %vm822, %v6307, 0
      %v6315 = vsel %vm822, %v6308, 0
      %v6318 = vsel %vm822, %v6309, 0
      %v6321 = vsel %vm822, %v6310, 0
      %6323 = vmatprep.subr.mxu0 0.0
      %6324 = vmatpush1.msra.mxu0 0.0
      %6325 = vmatprep.subr.mxu0 0.0
      %6326 = vmatpush1.msra.mxu0 0.0
      %6327 = vmatprep.subr.mxu0 0.0
      %6328 = vmatpush1.msra.mxu0 0.0
      %6329 = vmatprep.subr.mxu0 0.0
      %6330 = vmatpush1.msra.mxu0 0.0
      %6331 = vmatprep.subr.mxu0 0.0
      %6332 = vmatpush1.msra.mxu0 0.0
      %6333 = vmatprep.subr.mxu0 0.0
      %6334 = vmatpush1.msra.mxu0 0.0
      %6335 = vmatprep.subr.mxu0 0.0
      %6336 = vmatpush1.msra.mxu0 0.0
      %6337 = vmatprep.subr.mxu0 0.0
      %6338 = vmatpush1.msra.mxu0 0.0
      %6339 = vmatprep.subr.mxu0 0.0
      %6340 = vmatpush1.msra.mxu0 0.0
      %6341 = vmatprep.subr.mxu0 0.0
      %6342 = vmatpush1.msra.mxu0 0.0
      %6343 = vmatprep.subr.mxu0 0.0
      %6344 = vmatpush1.msra.mxu0 0.0
      %6345 = vmatprep.subr.mxu0 0.0
      %6346 = vmatpush1.msra.mxu0 0.0
      %6347 = vmatprep.subr.mxu0 0.0
      %6348 = vmatpush1.msra.mxu0 %v4129
      %6349 = vmatprep.subr.mxu0 0.0
      %6350 = vmatpush1.msra.mxu0 %v4128
      %6351 = vmatprep.subr.mxu0 0.0
      %6352 = vmatpush1.msra.mxu0 %v4127
      %6353 = vmatprep.subr.mxu0 0.0
      %6354 = vmatpush1.msra.mxu0 %v4126
      %6355 = vmatprep.subr.mxu0 0.0
      %6356 = vmatpush2.msra.mxu0 0.0
      %6357 = vmatprep.subr.mxu0 0.0
      %6358 = vmatpush2.msra.mxu0 0.0
      %6359 = vmatprep.subr.mxu0 0.0
      %6360 = vmatpush2.msra.mxu0 0.0
      %6361 = vmatprep.subr.mxu0 0.0
      %6362 = vmatpush2.msra.mxu0 0.0
      %6363 = vmatprep.subr.mxu0 0.0
      %6364 = vmatpush2.msra.mxu0 0.0
      %6365 = vmatprep.subr.mxu0 0.0
      %6366 = vmatpush2.msra.mxu0 0.0
      %6367 = vmatprep.subr.mxu0 0.0
      %6368 = vmatpush2.msra.mxu0 0.0
      %6369 = vmatprep.subr.mxu0 0.0
      %6370 = vmatpush2.msra.mxu0 0.0
      %6371 = vmatprep.subr.mxu0 0.0
      %6372 = vmatpush2.msra.mxu0 0.0
      %6373 = vmatprep.subr.mxu0 0.0
      %6374 = vmatpush2.msra.mxu0 0.0
      %6375 = vmatprep.subr.mxu0 0.0
      %6376 = vmatpush2.msra.mxu0 0.0
      %6377 = vmatprep.subr.mxu0 0.0
      %6378 = vmatpush2.msra.mxu0 0.0
      %6379 = vmatprep.subr.mxu0 0.0
      %6380 = vmatpush2.msra.mxu0 0.0
      %6381 = vmatprep.subr.mxu0 0.0
      %6382 = vmatpush2.msra.mxu0 0.0
      %6383 = vmatprep.subr.mxu0 0.0
      %6384 = vmatpush2.msra.mxu0 0.0
      %6385 = vmatprep.subr.mxu0 0.0
      %6386 = vmatpush2.msra.mxu0 0.0
      %6387 = vmatprep.mubr.f32.mxu0 0.0
      %6388 = vmatmul.mubr.f32.gmra.mxu0 %v6312
      %v6389 = vpop.f32.mrf.mxu0
      %v6390 = vadd.f32 0.0, %v6389
      %v6391 = vpop.f32.mrf.mxu0
      %6392 = vmatprep.mubr.f32.mxu0 0.0
      %6393 = vmatmul.mubr.f32.gmra.mxu0 %v6315
      %v6394 = vpop.f32.mrf.mxu0
      %v6395 = vadd.f32 0.0, %v6394
      %v6396 = vpop.f32.mrf.mxu0
      %6397 = vmatprep.mubr.f32.mxu0 0.0
      %6398 = vmatmul.mubr.f32.gmra.mxu0 %v6318
      %v6399 = vpop.f32.mrf.mxu0
      %v6400 = vadd.f32 0.0, %v6399
      %v6401 = vpop.f32.mrf.mxu0
      %6402 = vmatprep.mubr.f32.mxu0 0.0
      %6403 = vmatmul.mubr.f32.gmra.mxu0 %v6321
      %v6404 = vpop.f32.mrf.mxu0
      %v6405 = vadd.f32 0.0, %v6404
      %v6406 = vpop.f32.mrf.mxu0
      %6407 = vdwg.mxu0
      %v6408 = vsub.f32 %v6390, %v4126
      %v6409 = vsub.f32 %v6395, %v4127
      %v6410 = vsub.f32 %v6400, %v4128
      %v6411 = vsub.f32 %v6405, %v4129
      %v6413 = vsel %vm1155, %v6408, 0
      %v6416 = vsel %vm1155, %v6409, 0
      %v6419 = vsel %vm1155, %v6410, 0
      %v6422 = vsel %vm1155, %v6411, 0
      %6424 = vmatprep.subr.mxu0 0.0
      %6425 = vmatpush1.msra.mxu0 0.0
      %6426 = vmatprep.subr.mxu0 0.0
      %6427 = vmatpush1.msra.mxu0 0.0
      %6428 = vmatprep.subr.mxu0 0.0
      %6429 = vmatpush1.msra.mxu0 0.0
      %6430 = vmatprep.subr.mxu0 0.0
      %6431 = vmatpush1.msra.mxu0 0.0
      %6432 = vmatprep.subr.mxu0 0.0
      %6433 = vmatpush1.msra.mxu0 0.0
      %6434 = vmatprep.subr.mxu0 0.0
      %6435 = vmatpush1.msra.mxu0 0.0
      %6436 = vmatprep.subr.mxu0 0.0
      %6437 = vmatpush1.msra.mxu0 0.0
      %6438 = vmatprep.subr.mxu0 0.0
      %6439 = vmatpush1.msra.mxu0 0.0
      %6440 = vmatprep.subr.mxu0 0.0
      %6441 = vmatpush1.msra.mxu0 %v4342
      %6442 = vmatprep.subr.mxu0 0.0
      %6443 = vmatpush1.msra.mxu0 %v4341
      %6444 = vmatprep.subr.mxu0 0.0
      %6445 = vmatpush1.msra.mxu0 %v4340
      %6446 = vmatprep.subr.mxu0 0.0
      %6447 = vmatpush1.msra.mxu0 %v4339
      %6448 = vmatprep.subr.mxu0 0.0
      %6449 = vmatpush1.msra.mxu0 %v4338
      %6450 = vmatprep.subr.mxu0 0.0
      %6451 = vmatpush1.msra.mxu0 %v4337
      %6452 = vmatprep.subr.mxu0 0.0
      %6453 = vmatpush1.msra.mxu0 %v4336
      %6454 = vmatprep.subr.mxu0 0.0
      %6455 = vmatpush1.msra.mxu0 %v4335
      %6456 = vmatprep.subr.mxu0 0.0
      %6457 = vmatpush2.msra.mxu0 0.0
      %6458 = vmatprep.subr.mxu0 0.0
      %6459 = vmatpush2.msra.mxu0 0.0
      %6460 = vmatprep.subr.mxu0 0.0
      %6461 = vmatpush2.msra.mxu0 0.0
      %6462 = vmatprep.subr.mxu0 0.0
      %6463 = vmatpush2.msra.mxu0 0.0
      %6464 = vmatprep.subr.mxu0 0.0
      %6465 = vmatpush2.msra.mxu0 0.0
      %6466 = vmatprep.subr.mxu0 0.0
      %6467 = vmatpush2.msra.mxu0 0.0
      %6468 = vmatprep.subr.mxu0 0.0
      %6469 = vmatpush2.msra.mxu0 0.0
      %6470 = vmatprep.subr.mxu0 0.0
      %6471 = vmatpush2.msra.mxu0 0.0
      %6472 = vmatprep.subr.mxu0 0.0
      %6473 = vmatpush2.msra.mxu0 0.0
      %6474 = vmatprep.subr.mxu0 0.0
      %6475 = vmatpush2.msra.mxu0 0.0
      %6476 = vmatprep.subr.mxu0 0.0
      %6477 = vmatpush2.msra.mxu0 0.0
      %6478 = vmatprep.subr.mxu0 0.0
      %6479 = vmatpush2.msra.mxu0 0.0
      %6480 = vmatprep.subr.mxu0 0.0
      %6481 = vmatpush2.msra.mxu0 0.0
      %6482 = vmatprep.subr.mxu0 0.0
      %6483 = vmatpush2.msra.mxu0 0.0
      %6484 = vmatprep.subr.mxu0 0.0
      %6485 = vmatpush2.msra.mxu0 0.0
      %6486 = vmatprep.subr.mxu0 0.0
      %6487 = vmatpush2.msra.mxu0 0.0
      %6488 = vmatprep.mubr.f32.mxu0 0.0
      %6489 = vmatmul.mubr.f32.gmra.mxu0 %v6413
      %v6490 = vpop.f32.mrf.mxu0
      %v6491 = vadd.f32 0.0, %v6490
      %v6492 = vpop.f32.mrf.mxu0
      %6493 = vmatprep.mubr.f32.mxu0 0.0
      %6494 = vmatmul.mubr.f32.gmra.mxu0 %v6416
      %v6495 = vpop.f32.mrf.mxu0
      %v6496 = vadd.f32 0.0, %v6495
      %v6497 = vpop.f32.mrf.mxu0
      %6498 = vmatprep.mubr.f32.mxu0 0.0
      %6499 = vmatmul.mubr.f32.gmra.mxu0 %v6419
      %v6500 = vpop.f32.mrf.mxu0
      %v6501 = vadd.f32 0.0, %v6500
      %v6502 = vpop.f32.mrf.mxu0
      %6503 = vmatprep.mubr.f32.mxu0 0.0
      %6504 = vmatmul.mubr.f32.gmra.mxu0 %v6422
      %v6505 = vpop.f32.mrf.mxu0
      %v6506 = vadd.f32 0.0, %v6505
      %v6507 = vpop.f32.mrf.mxu0
      %6508 = vdwg.mxu0
      %v6509 = vmax.f32 %v6211, %v6491
      %v6510 = vmax.f32 %v6212, %v6496
      %v6511 = vmax.f32 %v6213, %v6501
      %v6512 = vmax.f32 %v6214, %v6506
      %v6513 = vsel %vm6299, inf, %v6215
      %v6514 = vsel %vm6300, inf, %v6216
      %v6515 = vsel %vm6301, inf, %v6217
      %v6516 = vsel %vm6302, inf, %v6218
      %v6517 = vsel %vm822, %v6513, inf
      %6518 = vmin.xlane.f32.xlu0 %v6517
      %v6519 = vpop.xlane.xlu0 %6518
      %v6520 = vsel %vm822, %v6514, inf
      %6521 = vmin.xlane.f32.xlu0 %v6520
      %v6522 = vpop.xlane.xlu0 %6521
      %v6523 = vsel %vm822, %v6515, inf
      %6524 = vmin.xlane.f32.xlu0 %v6523
      %v6525 = vpop.xlane.xlu0 %6524
      %v6526 = vsel %vm822, %v6516, inf
      %6527 = vmin.xlane.f32.xlu0 %v6526
      %v6528 = vpop.xlane.xlu0 %6527
      %vm6529 = vcmp.eq.f32.partialorder %v6513, %v6519
      %vm6530 = vcmp.eq.f32.partialorder %v6514, %v6522
      %vm6531 = vcmp.eq.f32.partialorder %v6515, %v6525
      %vm6532 = vcmp.eq.f32.partialorder %v6516, %v6528
      %v6533 = vsel %vm6529, %v524, 32
      %v6534 = vsel %vm6530, %v524, 32
      %v6535 = vsel %vm6531, %v524, 32
      %v6536 = vsel %vm6532, %v524, 32
      %v6537 = vsel %vm822, %v6533, 2147483647
      %v6538 = vand.u32 %v6537, 65535
      %v6539 = vshra.s32 %v6537, 16
      %v6540 = vcvt.s32.f32 %v6538
      %v6541 = vcvt.s32.f32 %v6539
      %6542 = vmin.xlane.f32.xlu0 %v6541
      %v6543 = vpop.xlane.xlu0 %6542
      %vm6544 = vcmp.eq.f32.partialorder %v6541, %v6543
      %v6545 = vsel %vm6544, %v6540, inf
      %6546 = vmin.xlane.f32.xlu0 %v6545
      %v6547 = vpop.xlane.xlu0 %6546
      %v6548 = vcvt.f32.s32 %v6547
      %v6549 = vcvt.f32.s32 %v6543
      %v6550 = vshll.u32 %v6549, 16
      %v6551 = vadd.s32 %v6550, %v6548
      %v6552 = vsel %vm822, %v6534, 2147483647
      %v6553 = vand.u32 %v6552, 65535
      %v6554 = vshra.s32 %v6552, 16
      %v6555 = vcvt.s32.f32 %v6553
      %v6556 = vcvt.s32.f32 %v6554
      %6557 = vmin.xlane.f32.xlu0 %v6556
      %v6558 = vpop.xlane.xlu0 %6557
      %vm6559 = vcmp.eq.f32.partialorder %v6556, %v6558
      %v6560 = vsel %vm6559, %v6555, inf
      %6561 = vmin.xlane.f32.xlu0 %v6560
      %v6562 = vpop.xlane.xlu0 %6561
      %v6563 = vcvt.f32.s32 %v6562
      %v6564 = vcvt.f32.s32 %v6558
      %v6565 = vshll.u32 %v6564, 16
      %v6566 = vadd.s32 %v6565, %v6563
      %v6567 = vsel %vm822, %v6535, 2147483647
      %v6568 = vand.u32 %v6567, 65535
      %v6569 = vshra.s32 %v6567, 16
      %v6570 = vcvt.s32.f32 %v6568
      %v6571 = vcvt.s32.f32 %v6569
      %6572 = vmin.xlane.f32.xlu0 %v6571
      %v6573 = vpop.xlane.xlu0 %6572
      %vm6574 = vcmp.eq.f32.partialorder %v6571, %v6573
      %v6575 = vsel %vm6574, %v6570, inf
      %6576 = vmin.xlane.f32.xlu0 %v6575
      %v6577 = vpop.xlane.xlu0 %6576
      %v6578 = vcvt.f32.s32 %v6577
      %v6579 = vcvt.f32.s32 %v6573
      %v6580 = vshll.u32 %v6579, 16
      %v6581 = vadd.s32 %v6580, %v6578
      %v6582 = vsel %vm822, %v6536, 2147483647
      %v6583 = vand.u32 %v6582, 65535
      %v6584 = vshra.s32 %v6582, 16
      %v6585 = vcvt.s32.f32 %v6583
      %v6586 = vcvt.s32.f32 %v6584
      %6587 = vmin.xlane.f32.xlu0 %v6586
      %v6588 = vpop.xlane.xlu0 %6587
      %vm6589 = vcmp.eq.f32.partialorder %v6586, %v6588
      %v6590 = vsel %vm6589, %v6585, inf
      %6591 = vmin.xlane.f32.xlu0 %v6590
      %v6592 = vpop.xlane.xlu0 %6591
      %v6593 = vcvt.f32.s32 %v6592
      %v6594 = vcvt.f32.s32 %v6588
      %v6595 = vshll.u32 %v6594, 16
      %v6596 = vadd.s32 %v6595, %v6593
      %vm6597 = vcmp.eq.s32.totalorder %v524, %v6551
      %vm6598 = vcmp.eq.s32.totalorder %v524, %v6566
      %vm6599 = vcmp.eq.s32.totalorder %v524, %v6581
      %vm6600 = vcmp.eq.s32.totalorder %v524, %v6596
      %v6601 = vsel %vm6597, 1, 0
      %v6602 = vsel %vm6598, 1, 0
      %v6603 = vsel %vm6599, 1, 0
      %v6604 = vsel %vm6600, 1, 0
      %v6605 = vcvt.s32.f32 %v6601
      %v6606 = vcvt.s32.f32 %v6602
      %v6607 = vcvt.s32.f32 %v6603
      %v6608 = vcvt.s32.f32 %v6604
      %v6610 = vsel %vm822, %v6605, 0
      %v6613 = vsel %vm822, %v6606, 0
      %v6616 = vsel %vm822, %v6607, 0
      %v6619 = vsel %vm822, %v6608, 0
      %6621 = vmatprep.subr.mxu0 0.0
      %6622 = vmatpush1.msra.mxu0 0.0
      %6623 = vmatprep.subr.mxu0 0.0
      %6624 = vmatpush1.msra.mxu0 0.0
      %6625 = vmatprep.subr.mxu0 0.0
      %6626 = vmatpush1.msra.mxu0 0.0
      %6627 = vmatprep.subr.mxu0 0.0
      %6628 = vmatpush1.msra.mxu0 0.0
      %6629 = vmatprep.subr.mxu0 0.0
      %6630 = vmatpush1.msra.mxu0 0.0
      %6631 = vmatprep.subr.mxu0 0.0
      %6632 = vmatpush1.msra.mxu0 0.0
      %6633 = vmatprep.subr.mxu0 0.0
      %6634 = vmatpush1.msra.mxu0 0.0
      %6635 = vmatprep.subr.mxu0 0.0
      %6636 = vmatpush1.msra.mxu0 0.0
      %6637 = vmatprep.subr.mxu0 0.0
      %6638 = vmatpush1.msra.mxu0 0.0
      %6639 = vmatprep.subr.mxu0 0.0
      %6640 = vmatpush1.msra.mxu0 0.0
      %6641 = vmatprep.subr.mxu0 0.0
      %6642 = vmatpush1.msra.mxu0 0.0
      %6643 = vmatprep.subr.mxu0 0.0
      %6644 = vmatpush1.msra.mxu0 0.0
      %6645 = vmatprep.subr.mxu0 0.0
      %6646 = vmatpush1.msra.mxu0 %v4129
      %6647 = vmatprep.subr.mxu0 0.0
      %6648 = vmatpush1.msra.mxu0 %v4128
      %6649 = vmatprep.subr.mxu0 0.0
      %6650 = vmatpush1.msra.mxu0 %v4127
      %6651 = vmatprep.subr.mxu0 0.0
      %6652 = vmatpush1.msra.mxu0 %v4126
      %6653 = vmatprep.subr.mxu0 0.0
      %6654 = vmatpush2.msra.mxu0 0.0
      %6655 = vmatprep.subr.mxu0 0.0
      %6656 = vmatpush2.msra.mxu0 0.0
      %6657 = vmatprep.subr.mxu0 0.0
      %6658 = vmatpush2.msra.mxu0 0.0
      %6659 = vmatprep.subr.mxu0 0.0
      %6660 = vmatpush2.msra.mxu0 0.0
      %6661 = vmatprep.subr.mxu0 0.0
      %6662 = vmatpush2.msra.mxu0 0.0
      %6663 = vmatprep.subr.mxu0 0.0
      %6664 = vmatpush2.msra.mxu0 0.0
      %6665 = vmatprep.subr.mxu0 0.0
      %6666 = vmatpush2.msra.mxu0 0.0
      %6667 = vmatprep.subr.mxu0 0.0
      %6668 = vmatpush2.msra.mxu0 0.0
      %6669 = vmatprep.subr.mxu0 0.0
      %6670 = vmatpush2.msra.mxu0 0.0
      %6671 = vmatprep.subr.mxu0 0.0
      %6672 = vmatpush2.msra.mxu0 0.0
      %6673 = vmatprep.subr.mxu0 0.0
      %6674 = vmatpush2.msra.mxu0 0.0
      %6675 = vmatprep.subr.mxu0 0.0
      %6676 = vmatpush2.msra.mxu0 0.0
      %6677 = vmatprep.subr.mxu0 0.0
      %6678 = vmatpush2.msra.mxu0 0.0
      %6679 = vmatprep.subr.mxu0 0.0
      %6680 = vmatpush2.msra.mxu0 0.0
      %6681 = vmatprep.subr.mxu0 0.0
      %6682 = vmatpush2.msra.mxu0 0.0
      %6683 = vmatprep.subr.mxu0 0.0
      %6684 = vmatpush2.msra.mxu0 0.0
      %6685 = vmatprep.mubr.f32.mxu0 0.0
      %6686 = vmatmul.mubr.f32.gmra.mxu0 %v6610
      %v6687 = vpop.f32.mrf.mxu0
      %v6688 = vadd.f32 0.0, %v6687
      %v6689 = vpop.f32.mrf.mxu0
      %6690 = vmatprep.mubr.f32.mxu0 0.0
      %6691 = vmatmul.mubr.f32.gmra.mxu0 %v6613
      %v6692 = vpop.f32.mrf.mxu0
      %v6693 = vadd.f32 0.0, %v6692
      %v6694 = vpop.f32.mrf.mxu0
      %6695 = vmatprep.mubr.f32.mxu0 0.0
      %6696 = vmatmul.mubr.f32.gmra.mxu0 %v6616
      %v6697 = vpop.f32.mrf.mxu0
      %v6698 = vadd.f32 0.0, %v6697
      %v6699 = vpop.f32.mrf.mxu0
      %6700 = vmatprep.mubr.f32.mxu0 0.0
      %6701 = vmatmul.mubr.f32.gmra.mxu0 %v6619
      %v6702 = vpop.f32.mrf.mxu0
      %v6703 = vadd.f32 0.0, %v6702
      %v6704 = vpop.f32.mrf.mxu0
      %6705 = vdwg.mxu0
      %v6706 = vsub.f32 %v6688, %v4126
      %v6707 = vsub.f32 %v6693, %v4127
      %v6708 = vsub.f32 %v6698, %v4128
      %v6709 = vsub.f32 %v6703, %v4129
      %v6711 = vsel %vm1155, %v6706, 0
      %v6714 = vsel %vm1155, %v6707, 0
      %v6717 = vsel %vm1155, %v6708, 0
      %v6720 = vsel %vm1155, %v6709, 0
      %6722 = vmatprep.subr.mxu0 0.0
      %6723 = vmatpush1.msra.mxu0 0.0
      %6724 = vmatprep.subr.mxu0 0.0
      %6725 = vmatpush1.msra.mxu0 0.0
      %6726 = vmatprep.subr.mxu0 0.0
      %6727 = vmatpush1.msra.mxu0 0.0
      %6728 = vmatprep.subr.mxu0 0.0
      %6729 = vmatpush1.msra.mxu0 0.0
      %6730 = vmatprep.subr.mxu0 0.0
      %6731 = vmatpush1.msra.mxu0 0.0
      %6732 = vmatprep.subr.mxu0 0.0
      %6733 = vmatpush1.msra.mxu0 0.0
      %6734 = vmatprep.subr.mxu0 0.0
      %6735 = vmatpush1.msra.mxu0 0.0
      %6736 = vmatprep.subr.mxu0 0.0
      %6737 = vmatpush1.msra.mxu0 0.0
      %6738 = vmatprep.subr.mxu0 0.0
      %6739 = vmatpush1.msra.mxu0 %v4342
      %6740 = vmatprep.subr.mxu0 0.0
      %6741 = vmatpush1.msra.mxu0 %v4341
      %6742 = vmatprep.subr.mxu0 0.0
      %6743 = vmatpush1.msra.mxu0 %v4340
      %6744 = vmatprep.subr.mxu0 0.0
      %6745 = vmatpush1.msra.mxu0 %v4339
      %6746 = vmatprep.subr.mxu0 0.0
      %6747 = vmatpush1.msra.mxu0 %v4338
      %6748 = vmatprep.subr.mxu0 0.0
      %6749 = vmatpush1.msra.mxu0 %v4337
      %6750 = vmatprep.subr.mxu0 0.0
      %6751 = vmatpush1.msra.mxu0 %v4336
      %6752 = vmatprep.subr.mxu0 0.0
      %6753 = vmatpush1.msra.mxu0 %v4335
      %6754 = vmatprep.subr.mxu0 0.0
      %6755 = vmatpush2.msra.mxu0 0.0
      %6756 = vmatprep.subr.mxu0 0.0
      %6757 = vmatpush2.msra.mxu0 0.0
      %6758 = vmatprep.subr.mxu0 0.0
      %6759 = vmatpush2.msra.mxu0 0.0
      %6760 = vmatprep.subr.mxu0 0.0
      %6761 = vmatpush2.msra.mxu0 0.0
      %6762 = vmatprep.subr.mxu0 0.0
      %6763 = vmatpush2.msra.mxu0 0.0
      %6764 = vmatprep.subr.mxu0 0.0
      %6765 = vmatpush2.msra.mxu0 0.0
      %6766 = vmatprep.subr.mxu0 0.0
      %6767 = vmatpush2.msra.mxu0 0.0
      %6768 = vmatprep.subr.mxu0 0.0
      %6769 = vmatpush2.msra.mxu0 0.0
      %6770 = vmatprep.subr.mxu0 0.0
      %6771 = vmatpush2.msra.mxu0 0.0
      %6772 = vmatprep.subr.mxu0 0.0
      %6773 = vmatpush2.msra.mxu0 0.0
      %6774 = vmatprep.subr.mxu0 0.0
      %6775 = vmatpush2.msra.mxu0 0.0
      %6776 = vmatprep.subr.mxu0 0.0
      %6777 = vmatpush2.msra.mxu0 0.0
      %6778 = vmatprep.subr.mxu0 0.0
      %6779 = vmatpush2.msra.mxu0 0.0
      %6780 = vmatprep.subr.mxu0 0.0
      %6781 = vmatpush2.msra.mxu0 0.0
      %6782 = vmatprep.subr.mxu0 0.0
      %6783 = vmatpush2.msra.mxu0 0.0
      %6784 = vmatprep.subr.mxu0 0.0
      %6785 = vmatpush2.msra.mxu0 0.0
      %6786 = vmatprep.mubr.f32.mxu0 0.0
      %6787 = vmatmul.mubr.f32.gmra.mxu0 %v6711
      %v6788 = vpop.f32.mrf.mxu0
      %v6789 = vadd.f32 0.0, %v6788
      %v6790 = vpop.f32.mrf.mxu0
      %6791 = vmatprep.mubr.f32.mxu0 0.0
      %6792 = vmatmul.mubr.f32.gmra.mxu0 %v6714
      %v6793 = vpop.f32.mrf.mxu0
      %v6794 = vadd.f32 0.0, %v6793
      %v6795 = vpop.f32.mrf.mxu0
      %6796 = vmatprep.mubr.f32.mxu0 0.0
      %6797 = vmatmul.mubr.f32.gmra.mxu0 %v6717
      %v6798 = vpop.f32.mrf.mxu0
      %v6799 = vadd.f32 0.0, %v6798
      %v6800 = vpop.f32.mrf.mxu0
      %6801 = vmatprep.mubr.f32.mxu0 0.0
      %6802 = vmatmul.mubr.f32.gmra.mxu0 %v6720
      %v6803 = vpop.f32.mrf.mxu0
      %v6804 = vadd.f32 0.0, %v6803
      %v6805 = vpop.f32.mrf.mxu0
      %6806 = vdwg.mxu0
      %v6807 = vmax.f32 %v6509, %v6789
      %v6808 = vmax.f32 %v6510, %v6794
      %v6809 = vmax.f32 %v6511, %v6799
      %v6810 = vmax.f32 %v6512, %v6804
      %v6811 = vadd.f32 %v4417, %v6807
      %v6812 = vadd.f32 %v4422, %v6808
      %v6813 = vadd.f32 %v4427, %v6809
      %v6814 = vadd.f32 %v4432, %v6810
      %v6815 = vld [vmem:[%s8] sm:$0xff]
      %v6816 = vld [vmem:[%s8 + $0x8] sm:$0xff]
      %v6817 = vld [vmem:[%s8 + $0x10] sm:$0xff]
      %v6818 = vld [vmem:[%s8 + $0x18] sm:$0xff]
      %v6819 = vld [vmem:[%s8 + $0x20] sm:$0xff]
      %v6820 = vld [vmem:[%s8 + $0x28] sm:$0xff]
      %v6821 = vld [vmem:[%s8 + $0x30] sm:$0xff]
      %v6822 = vld [vmem:[%s8 + $0x38] sm:$0xff]
      %v6823 = vld [vmem:[%s8 + $0x40] sm:$0xff]
      %v6824 = vld [vmem:[%s8 + $0x48] sm:$0xff]
      %v6825 = vld [vmem:[%s8 + $0x50] sm:$0xff]
      %v6826 = vld [vmem:[%s8 + $0x58] sm:$0xff]
      %v6827 = vld [vmem:[%s8 + $0x60] sm:$0xff]
      %v6828 = vld [vmem:[%s8 + $0x68] sm:$0xff]
      %v6829 = vld [vmem:[%s8 + $0x70] sm:$0xff]
      %v6830 = vld [vmem:[%s8 + $0x78] sm:$0xff]
      %v6831 = vld [vmem:[%s8 + $0x80] sm:$0xff]
      %v6832 = vld [vmem:[%s8 + $0x88] sm:$0xff]
      %v6833 = vld [vmem:[%s8 + $0x90] sm:$0xff]
      %v6834 = vld [vmem:[%s8 + $0x98] sm:$0xff]
      %v6835 = vld [vmem:[%s8 + $0xa0] sm:$0xff]
      %v6836 = vld [vmem:[%s8 + $0xa8] sm:$0xff]
      %v6837 = vld [vmem:[%s8 + $0xb0] sm:$0xff]
      %v6838 = vld [vmem:[%s8 + $0xb8] sm:$0xff]
      %6839 = vmatprep.subr.mxu0 0.0
      %6840 = vmatpush1.msra.mxu0 %v6838
      %6841 = vmatprep.subr.mxu0 0.0
      %6842 = vmatpush1.msra.mxu0 %v6837
      %6843 = vmatprep.subr.mxu0 0.0
      %6844 = vmatpush1.msra.mxu0 %v6836
      %6845 = vmatprep.subr.mxu0 0.0
      %6846 = vmatpush1.msra.mxu0 %v6835
      %6847 = vmatprep.subr.mxu0 0.0
      %6848 = vmatpush1.msra.mxu0 %v6834
      %6849 = vmatprep.subr.mxu0 0.0
      %6850 = vmatpush1.msra.mxu0 %v6833
      %6851 = vmatprep.subr.mxu0 0.0
      %6852 = vmatpush1.msra.mxu0 %v6832
      %6853 = vmatprep.subr.mxu0 0.0
      %6854 = vmatpush1.msra.mxu0 %v6831
      %6855 = vmatprep.subr.mxu0 0.0
      %6856 = vmatpush1.msra.mxu0 %v6830
      %6857 = vmatprep.subr.mxu0 0.0
      %6858 = vmatpush1.msra.mxu0 %v6829
      %6859 = vmatprep.subr.mxu0 0.0
      %6860 = vmatpush1.msra.mxu0 %v6828
      %6861 = vmatprep.subr.mxu0 0.0
      %6862 = vmatpush1.msra.mxu0 %v6827
      %6863 = vmatprep.subr.mxu0 0.0
      %6864 = vmatpush1.msra.mxu0 %v6826
      %6865 = vmatprep.subr.mxu0 0.0
      %6866 = vmatpush1.msra.mxu0 %v6825
      %6867 = vmatprep.subr.mxu0 0.0
      %6868 = vmatpush1.msra.mxu0 %v6824
      %6869 = vmatprep.subr.mxu0 0.0
      %6870 = vmatpush1.msra.mxu0 %v6823
      %6871 = vmatprep.subr.mxu0 0.0
      %6872 = vmatpush2.msra.mxu0 0.0
      %6873 = vmatprep.subr.mxu0 0.0
      %6874 = vmatpush2.msra.mxu0 0.0
      %6875 = vmatprep.subr.mxu0 0.0
      %6876 = vmatpush2.msra.mxu0 0.0
      %6877 = vmatprep.subr.mxu0 0.0
      %6878 = vmatpush2.msra.mxu0 0.0
      %6879 = vmatprep.subr.mxu0 0.0
      %6880 = vmatpush2.msra.mxu0 0.0
      %6881 = vmatprep.subr.mxu0 0.0
      %6882 = vmatpush2.msra.mxu0 0.0
      %6883 = vmatprep.subr.mxu0 0.0
      %6884 = vmatpush2.msra.mxu0 0.0
      %6885 = vmatprep.subr.mxu0 0.0
      %6886 = vmatpush2.msra.mxu0 0.0
      %6887 = vmatprep.subr.mxu0 0.0
      %6888 = vmatpush2.msra.mxu0 0.0
      %6889 = vmatprep.subr.mxu0 0.0
      %6890 = vmatpush2.msra.mxu0 0.0
      %6891 = vmatprep.subr.mxu0 0.0
      %6892 = vmatpush2.msra.mxu0 0.0
      %6893 = vmatprep.subr.mxu0 0.0
      %6894 = vmatpush2.msra.mxu0 0.0
      %6895 = vmatprep.subr.mxu0 0.0
      %6896 = vmatpush2.msra.mxu0 0.0
      %6897 = vmatprep.subr.mxu0 0.0
      %6898 = vmatpush2.msra.mxu0 0.0
      %6899 = vmatprep.subr.mxu0 0.0
      %6900 = vmatpush2.msra.mxu0 0.0
      %6901 = vmatprep.subr.mxu0 0.0
      %6902 = vmatpush2.msra.mxu0 0.0
      %6903 = vmatprep.mubr.f32.mxu0 0.0
      %6904 = vmatmul.mubr.f32.gmra.mxu0 %v6811
      %v6905 = vpop.f32.mrf.mxu0
      %v6906 = vadd.f32 0.0, %v6905
      %v6907 = vpop.f32.mrf.mxu0
      %6908 = vmatprep.mubr.f32.mxu0 0.0
      %6909 = vmatmul.mubr.f32.gmra.mxu0 %v6812
      %v6910 = vpop.f32.mrf.mxu0
      %v6911 = vadd.f32 0.0, %v6910
      %v6912 = vpop.f32.mrf.mxu0
      %6913 = vmatprep.mubr.f32.mxu0 0.0
      %6914 = vmatmul.mubr.f32.gmra.mxu0 %v6813
      %v6915 = vpop.f32.mrf.mxu0
      %v6916 = vadd.f32 0.0, %v6915
      %v6917 = vpop.f32.mrf.mxu0
      %6918 = vmatprep.mubr.f32.mxu0 0.0
      %6919 = vmatmul.mubr.f32.gmra.mxu0 %v6814
      %v6920 = vpop.f32.mrf.mxu0
      %v6921 = vadd.f32 0.0, %v6920
      %v6922 = vpop.f32.mrf.mxu0
      %6923 = vdwg.mxu0
      %6924 = vmatprep.subr.mxu0 0.0
      %6925 = vmatpush1.msra.mxu0 0.0
      %6926 = vmatprep.subr.mxu0 0.0
      %6927 = vmatpush1.msra.mxu0 0.0
      %6928 = vmatprep.subr.mxu0 0.0
      %6929 = vmatpush1.msra.mxu0 0.0
      %6930 = vmatprep.subr.mxu0 0.0
      %6931 = vmatpush1.msra.mxu0 0.0
      %6932 = vmatprep.subr.mxu0 0.0
      %6933 = vmatpush1.msra.mxu0 0.0
      %6934 = vmatprep.subr.mxu0 0.0
      %6935 = vmatpush1.msra.mxu0 0.0
      %6936 = vmatprep.subr.mxu0 0.0
      %6937 = vmatpush1.msra.mxu0 0.0
      %6938 = vmatprep.subr.mxu0 0.0
      %6939 = vmatpush1.msra.mxu0 0.0
      %6940 = vmatprep.subr.mxu0 0.0
      %6941 = vmatpush1.msra.mxu0 %v6822
      %6942 = vmatprep.subr.mxu0 0.0
      %6943 = vmatpush1.msra.mxu0 %v6821
      %6944 = vmatprep.subr.mxu0 0.0
      %6945 = vmatpush1.msra.mxu0 %v6820
      %6946 = vmatprep.subr.mxu0 0.0
      %6947 = vmatpush1.msra.mxu0 %v6819
      %6948 = vmatprep.subr.mxu0 0.0
      %6949 = vmatpush1.msra.mxu0 %v6818
      %6950 = vmatprep.subr.mxu0 0.0
      %6951 = vmatpush1.msra.mxu0 %v6817
      %6952 = vmatprep.subr.mxu0 0.0
      %6953 = vmatpush1.msra.mxu0 %v6816
      %6954 = vmatprep.subr.mxu0 0.0
      %6955 = vmatpush1.msra.mxu0 %v6815
      %6956 = vmatprep.subr.mxu0 0.0
      %6957 = vmatpush2.msra.mxu0 0.0
      %6958 = vmatprep.subr.mxu0 0.0
      %6959 = vmatpush2.msra.mxu0 0.0
      %6960 = vmatprep.subr.mxu0 0.0
      %6961 = vmatpush2.msra.mxu0 0.0
      %6962 = vmatprep.subr.mxu0 0.0
      %6963 = vmatpush2.msra.mxu0 0.0
      %6964 = vmatprep.subr.mxu0 0.0
      %6965 = vmatpush2.msra.mxu0 0.0
      %6966 = vmatprep.subr.mxu0 0.0
      %6967 = vmatpush2.msra.mxu0 0.0
      %6968 = vmatprep.subr.mxu0 0.0
      %6969 = vmatpush2.msra.mxu0 0.0
      %6970 = vmatprep.subr.mxu0 0.0
      %6971 = vmatpush2.msra.mxu0 0.0
      %6972 = vmatprep.subr.mxu0 0.0
      %6973 = vmatpush2.msra.mxu0 0.0
      %6974 = vmatprep.subr.mxu0 0.0
      %6975 = vmatpush2.msra.mxu0 0.0
      %6976 = vmatprep.subr.mxu0 0.0
      %6977 = vmatpush2.msra.mxu0 0.0
      %6978 = vmatprep.subr.mxu0 0.0
      %6979 = vmatpush2.msra.mxu0 0.0
      %6980 = vmatprep.subr.mxu0 0.0
      %6981 = vmatpush2.msra.mxu0 0.0
      %6982 = vmatprep.subr.mxu0 0.0
      %6983 = vmatpush2.msra.mxu0 0.0
      %6984 = vmatprep.subr.mxu0 0.0
      %6985 = vmatpush2.msra.mxu0 0.0
      %6986 = vmatprep.subr.mxu0 0.0
      %6987 = vmatpush2.msra.mxu0 0.0
      %6988 = vmatprep.mubr.f32.mxu0 0.0
      %6989 = vmatmul.mubr.f32.gmra.mxu0 %v4131
      %v6990 = vpop.f32.mrf.mxu0
      %v6991 = vadd.f32 %v6906, %v6990
      %v6992 = vpop.f32.mrf.mxu0
      %6993 = vmatprep.mubr.f32.mxu0 0.0
      %6994 = vmatmul.mubr.f32.gmra.mxu0 %v4134
      %v6995 = vpop.f32.mrf.mxu0
      %v6996 = vadd.f32 %v6911, %v6995
      %v6997 = vpop.f32.mrf.mxu0
      %6998 = vmatprep.mubr.f32.mxu0 0.0
      %6999 = vmatmul.mubr.f32.gmra.mxu0 %v4137
      %v7000 = vpop.f32.mrf.mxu0
      %v7001 = vadd.f32 %v6916, %v7000
      %v7002 = vpop.f32.mrf.mxu0
      %7003 = vmatprep.mubr.f32.mxu0 0.0
      %7004 = vmatmul.mubr.f32.gmra.mxu0 %v4140
      %v7005 = vpop.f32.mrf.mxu0
      %v7006 = vadd.f32 %v6921, %v7005
      %v7007 = vpop.f32.mrf.mxu0
      %7008 = vdwg.mxu0
      %v7009 = vld [vmem:[%s9] sm:$0x1]
      %v7011 = vlaneseq
      %v7012 = vshrl.u32 %v7011, 7
      %v7013 = vsub.s32 0, %v7012
      %v7014 = vrot.slane %v7009, %v7013
      %v7016 = vadd.f32 %v6991, %v7014
      %v7017 = vadd.f32 %v6996, %v7014
      %v7018 = vadd.f32 %v7001, %v7014
      %v7019 = vadd.f32 %v7006, %v7014
      %v7020 = vmax.f32 %v7016, %v7017
      %v7021 = vmax.f32 %v7018, %v7019
      %v7022 = vmax.f32 %v7020, %v7021
      %v7023 = vrot.slane %v7022, 4
      %v7024 = vmax.f32 %v7022, %v7023
      %v7025 = vrot.slane %v7024, 2
      %v7026 = vmax.f32 %v7024, %v7025
      %v7027 = vrot.slane %v7026, 1
      %v7028 = vmax.f32 %v7026, %v7027
      %7029 = vst [vmem:[%s513] sm:$0x1] %v7028
      %v7030 = vld [vmem:[%s10] sm:$0xff]
      %v7031 = vld [vmem:[%s10 + $0x8] sm:$0xff]
      %v7032 = vld [vmem:[%s10 + $0x10] sm:$0xff]
      %v7033 = vld [vmem:[%s10 + $0x18] sm:$0xff]
      %v7034 = vld [vmem:[%s10 + $0x20] sm:$0xff]
      %v7035 = vld [vmem:[%s10 + $0x28] sm:$0xff]
      %v7036 = vld [vmem:[%s10 + $0x30] sm:$0xff]
      %v7037 = vld [vmem:[%s10 + $0x38] sm:$0xff]
      %v7038 = vld [vmem:[%s10 + $0x40] sm:$0xff]
      %v7039 = vld [vmem:[%s10 + $0x48] sm:$0xff]
      %v7040 = vld [vmem:[%s10 + $0x50] sm:$0xff]
      %v7041 = vld [vmem:[%s10 + $0x58] sm:$0xff]
      %v7042 = vld [vmem:[%s10 + $0x60] sm:$0xff]
      %v7043 = vld [vmem:[%s10 + $0x68] sm:$0xff]
      %v7044 = vld [vmem:[%s10 + $0x70] sm:$0xff]
      %v7045 = vld [vmem:[%s10 + $0x78] sm:$0xff]
      %v7046 = vld [vmem:[%s10 + $0x80] sm:$0xff]
      %v7047 = vld [vmem:[%s10 + $0x88] sm:$0xff]
      %v7048 = vld [vmem:[%s10 + $0x90] sm:$0xff]
      %v7049 = vld [vmem:[%s10 + $0x98] sm:$0xff]
      %v7050 = vld [vmem:[%s10 + $0xa0] sm:$0xff]
      %v7051 = vld [vmem:[%s10 + $0xa8] sm:$0xff]
      %v7052 = vld [vmem:[%s10 + $0xb0] sm:$0xff]
      %v7053 = vld [vmem:[%s10 + $0xb8] sm:$0xff]
      %v7054 = vld [vmem:[%s10 + $0xc0] sm:$0xff]
      %v7055 = vld [vmem:[%s10 + $0xc8] sm:$0xff]
      %v7056 = vld [vmem:[%s10 + $0xd0] sm:$0xff]
      %v7057 = vld [vmem:[%s10 + $0xd8] sm:$0xff]
      %v7058 = vld [vmem:[%s10 + $0xe0] sm:$0xff]
      %v7059 = vld [vmem:[%s10 + $0xe8] sm:$0xff]
      %v7060 = vld [vmem:[%s10 + $0xf0] sm:$0xff]
      %v7061 = vld [vmem:[%s10 + $0xf8] sm:$0xff]
      %v7062 = vld [vmem:[%s11] sm:$0x3]
      %v7064 = vlaneseq
      %v7065 = vshrl.u32 %v7064, 7
      %v7066 = vsub.s32 0, %v7065
      %v7067 = vrot.slane %v7062, %v7066
      %v7068 = vlaneseq
      %v7069 = vshrl.u32 %v7068, 7
      %v7070 = vsub.s32 1, %v7069
      %v7071 = vrot.slane %v7062, %v7070
      %7074 = vmatprep.subr.mxu0 %v7061
      %7075 = vmatpush1.msra.mxu0 %v7060
      %7076 = vmatprep.subr.mxu0 %v7059
      %7077 = vmatpush1.msra.mxu0 %v7058
      %7078 = vmatprep.subr.mxu0 %v7057
      %7079 = vmatpush1.msra.mxu0 %v7056
      %7080 = vmatprep.subr.mxu0 %v7055
      %7081 = vmatpush1.msra.mxu0 %v7054
      %7082 = vmatprep.subr.mxu0 %v7053
      %7083 = vmatpush1.msra.mxu0 %v7052
      %7084 = vmatprep.subr.mxu0 %v7051
      %7085 = vmatpush1.msra.mxu0 %v7050
      %7086 = vmatprep.subr.mxu0 %v7049
      %7087 = vmatpush1.msra.mxu0 %v7048
      %7088 = vmatprep.subr.mxu0 %v7047
      %7089 = vmatpush1.msra.mxu0 %v7046
      %7090 = vmatprep.subr.mxu0 %v7045
      %7091 = vmatpush1.msra.mxu0 %v7044
      %7092 = vmatprep.subr.mxu0 %v7043
      %7093 = vmatpush1.msra.mxu0 %v7042
      %7094 = vmatprep.subr.mxu0 %v7041
      %7095 = vmatpush1.msra.mxu0 %v7040
      %7096 = vmatprep.subr.mxu0 %v7039
      %7097 = vmatpush1.msra.mxu0 %v7038
      %7098 = vmatprep.subr.mxu0 %v7037
      %7099 = vmatpush1.msra.mxu0 %v7036
      %7100 = vmatprep.subr.mxu0 %v7035
      %7101 = vmatpush1.msra.mxu0 %v7034
      %7102 = vmatprep.subr.mxu0 %v7033
      %7103 = vmatpush1.msra.mxu0 %v7032
      %7104 = vmatprep.subr.mxu0 %v7031
      %7105 = vmatpush1.msra.mxu0 %v7030
      %7106 = vmatprep.subr.mxu0 0.0
      %7107 = vmatpush2.msra.mxu0 0.0
      %7108 = vmatprep.subr.mxu0 0.0
      %7109 = vmatpush2.msra.mxu0 0.0
      %7110 = vmatprep.subr.mxu0 0.0
      %7111 = vmatpush2.msra.mxu0 0.0
      %7112 = vmatprep.subr.mxu0 0.0
      %7113 = vmatpush2.msra.mxu0 0.0
      %7114 = vmatprep.subr.mxu0 0.0
      %7115 = vmatpush2.msra.mxu0 0.0
      %7116 = vmatprep.subr.mxu0 0.0
      %7117 = vmatpush2.msra.mxu0 0.0
      %7118 = vmatprep.subr.mxu0 0.0
      %7119 = vmatpush2.msra.mxu0 0.0
      %7120 = vmatprep.subr.mxu0 0.0
      %7121 = vmatpush2.msra.mxu0 0.0
      %7122 = vmatprep.subr.mxu0 0.0
      %7123 = vmatpush2.msra.mxu0 0.0
      %7124 = vmatprep.subr.mxu0 0.0
      %7125 = vmatpush2.msra.mxu0 0.0
      %7126 = vmatprep.subr.mxu0 0.0
      %7127 = vmatpush2.msra.mxu0 0.0
      %7128 = vmatprep.subr.mxu0 0.0
      %7129 = vmatpush2.msra.mxu0 0.0
      %7130 = vmatprep.subr.mxu0 0.0
      %7131 = vmatpush2.msra.mxu0 0.0
      %7132 = vmatprep.subr.mxu0 0.0
      %7133 = vmatpush2.msra.mxu0 0.0
      %7134 = vmatprep.subr.mxu0 0.0
      %7135 = vmatpush2.msra.mxu0 0.0
      %7136 = vmatprep.subr.mxu0 0.0
      %7137 = vmatpush2.msra.mxu0 0.0
      %7138 = vmatprep.mubr.f32.mxu0 0.0
      %7139 = vmatmul.mubr.f32.gmra.mxu0 %v7028
      %v7140 = vpop.f32.mrf.mxu0
      %v7141 = vadd.f32 %v7067, %v7140
      %v7142 = vpop.f32.mrf.mxu0
      %v7143 = vadd.f32 %v7071, %v7142
      %7144 = vdwg.mxu0
      %v7145 = vmax.f32 %v7141, 0.0
      %v7146 = vmax.f32 %v7143, 0.0
      %v7147 = vld [vmem:[%s12] sm:$0xff]
      %v7148 = vld [vmem:[%s12 + $0x8] sm:$0xff]
      %v7149 = vld [vmem:[%s12 + $0x10] sm:$0xff]
      %v7150 = vld [vmem:[%s12 + $0x18] sm:$0xff]
      %v7151 = vld [vmem:[%s12 + $0x20] sm:$0xff]
      %v7152 = vld [vmem:[%s12 + $0x28] sm:$0xff]
      %v7153 = vld [vmem:[%s12 + $0x30] sm:$0xff]
      %v7154 = vld [vmem:[%s12 + $0x38] sm:$0xff]
      %v7155 = vld [vmem:[%s12 + $0x40] sm:$0xff]
      %v7156 = vld [vmem:[%s12 + $0x48] sm:$0xff]
      %v7157 = vld [vmem:[%s12 + $0x50] sm:$0xff]
      %v7158 = vld [vmem:[%s12 + $0x58] sm:$0xff]
      %v7159 = vld [vmem:[%s12 + $0x60] sm:$0xff]
      %v7160 = vld [vmem:[%s12 + $0x68] sm:$0xff]
      %v7161 = vld [vmem:[%s12 + $0x70] sm:$0xff]
      %v7162 = vld [vmem:[%s12 + $0x78] sm:$0xff]
      %v7163 = vld [vmem:[%s12 + $0x80] sm:$0xff]
      %v7164 = vld [vmem:[%s12 + $0x88] sm:$0xff]
      %v7165 = vld [vmem:[%s12 + $0x90] sm:$0xff]
      %v7166 = vld [vmem:[%s12 + $0x98] sm:$0xff]
      %v7167 = vld [vmem:[%s12 + $0xa0] sm:$0xff]
      %v7168 = vld [vmem:[%s12 + $0xa8] sm:$0xff]
      %v7169 = vld [vmem:[%s12 + $0xb0] sm:$0xff]
      %v7170 = vld [vmem:[%s12 + $0xb8] sm:$0xff]
      %v7171 = vld [vmem:[%s12 + $0xc0] sm:$0xff]
      %v7172 = vld [vmem:[%s12 + $0xc8] sm:$0xff]
      %v7173 = vld [vmem:[%s12 + $0xd0] sm:$0xff]
      %v7174 = vld [vmem:[%s12 + $0xd8] sm:$0xff]
      %v7175 = vld [vmem:[%s12 + $0xe0] sm:$0xff]
      %v7176 = vld [vmem:[%s12 + $0xe8] sm:$0xff]
      %v7177 = vld [vmem:[%s12 + $0xf0] sm:$0xff]
      %v7178 = vld [vmem:[%s12 + $0xf8] sm:$0xff]
      %v7179 = vld [vmem:[%s13] sm:$0x1]
      %7180 = vmatprep.subr.mxu0 0.0
      %7181 = vmatpush1.msra.mxu0 %v7162
      %7182 = vmatprep.subr.mxu0 0.0
      %7183 = vmatpush1.msra.mxu0 %v7161
      %7184 = vmatprep.subr.mxu0 0.0
      %7185 = vmatpush1.msra.mxu0 %v7160
      %7186 = vmatprep.subr.mxu0 0.0
      %7187 = vmatpush1.msra.mxu0 %v7159
      %7188 = vmatprep.subr.mxu0 0.0
      %7189 = vmatpush1.msra.mxu0 %v7158
      %7190 = vmatprep.subr.mxu0 0.0
      %7191 = vmatpush1.msra.mxu0 %v7157
      %7192 = vmatprep.subr.mxu0 0.0
      %7193 = vmatpush1.msra.mxu0 %v7156
      %7194 = vmatprep.subr.mxu0 0.0
      %7195 = vmatpush1.msra.mxu0 %v7155
      %7196 = vmatprep.subr.mxu0 0.0
      %7197 = vmatpush1.msra.mxu0 %v7154
      %7198 = vmatprep.subr.mxu0 0.0
      %7199 = vmatpush1.msra.mxu0 %v7153
      %7200 = vmatprep.subr.mxu0 0.0
      %7201 = vmatpush1.msra.mxu0 %v7152
      %7202 = vmatprep.subr.mxu0 0.0
      %7203 = vmatpush1.msra.mxu0 %v7151
      %7204 = vmatprep.subr.mxu0 0.0
      %7205 = vmatpush1.msra.mxu0 %v7150
      %7206 = vmatprep.subr.mxu0 0.0
      %7207 = vmatpush1.msra.mxu0 %v7149
      %7208 = vmatprep.subr.mxu0 0.0
      %7209 = vmatpush1.msra.mxu0 %v7148
      %7210 = vmatprep.subr.mxu0 0.0
      %7211 = vmatpush1.msra.mxu0 %v7147
      %7212 = vmatprep.subr.mxu0 0.0
      %7213 = vmatpush2.msra.mxu0 %v7178
      %7214 = vmatprep.subr.mxu0 0.0
      %7215 = vmatpush2.msra.mxu0 %v7177
      %7216 = vmatprep.subr.mxu0 0.0
      %7217 = vmatpush2.msra.mxu0 %v7176
      %7218 = vmatprep.subr.mxu0 0.0
      %7219 = vmatpush2.msra.mxu0 %v7175
      %7220 = vmatprep.subr.mxu0 0.0
      %7221 = vmatpush2.msra.mxu0 %v7174
      %7222 = vmatprep.subr.mxu0 0.0
      %7223 = vmatpush2.msra.mxu0 %v7173
      %7224 = vmatprep.subr.mxu0 0.0
      %7225 = vmatpush2.msra.mxu0 %v7172
      %7226 = vmatprep.subr.mxu0 0.0
      %7227 = vmatpush2.msra.mxu0 %v7171
      %7228 = vmatprep.subr.mxu0 0.0
      %7229 = vmatpush2.msra.mxu0 %v7170
      %7230 = vmatprep.subr.mxu0 0.0
      %7231 = vmatpush2.msra.mxu0 %v7169
      %7232 = vmatprep.subr.mxu0 0.0
      %7233 = vmatpush2.msra.mxu0 %v7168
      %7234 = vmatprep.subr.mxu0 0.0
      %7235 = vmatpush2.msra.mxu0 %v7167
      %7236 = vmatprep.subr.mxu0 0.0
      %7237 = vmatpush2.msra.mxu0 %v7166
      %7238 = vmatprep.subr.mxu0 0.0
      %7239 = vmatpush2.msra.mxu0 %v7165
      %7240 = vmatprep.subr.mxu0 0.0
      %7241 = vmatpush2.msra.mxu0 %v7164
      %7242 = vmatprep.subr.mxu0 0.0
      %7243 = vmatpush2.msra.mxu0 %v7163
      %7244 = vmatprep.mubr.f32.mxu0 %v7146
      %7245 = vmatmul.mubr.f32.gmra.mxu0 %v7145
      %v7246 = vpop.f32.mrf.mxu0
      %v7247 = vadd.f32 %v7179, %v7246
      %v7248 = vpop.f32.mrf.mxu0
      %7249 = vdwg.mxu0
      %vm7250 = vcmask 253952
      %7251 = vst.msk [vmem:[%s516] sm:$0x1] %vm7250, %v7247
      %p7252 = scmp.lt.s32.totalorder %s27, 3
      %s7253 = scalar_select %p7252, %s27, 3
      %s7254 = scalar_lea.vmem %s14, %s7253
      %p7255 = scmp.lt.s32.totalorder %s27, 3
      %s7256 = scalar_select %p7255, %s27, 3
      %s7257 = scalar_lea.vmem %s15, %s7256
      // Predicated region
      $region77: #{model_forward.5} parent=75 // pred_check
        %p7258 = pneg %p349
      $region78: #{model_forward.5} parent=75 // pred_check_branch
        %7260 = sbr.rel (%p7258) target = $region80
      $region79: #{model_forward.5} parent=75 // pred_region
        _
      $region80: #{model_forward.5} parent=75 // pred_fallthru
        _
      // Predicated region
      $region81: #{model_forward.5} parent=75 // pred_check
        %p7261 = pneg %p375
      $region82: #{model_forward.5} parent=75 // pred_check_branch
        %7263 = sbr.rel (%p7261) target = $region84
      $region83: #{model_forward.5} parent=75 // pred_region
        _
      $region84: #{model_forward.5} parent=75 // pred_fallthru
        _
    $region76: #{model_forward.5} parent=5 // pred_fallthru
      _
    %p7264 = scmp.le.s32.totalorder 2, %s22
    // Predicated region
    $region85: #{model_forward.5} parent=5 // pred_check
      %p7265 = pneg %p7264
    $region86: #{model_forward.5} parent=5 // pred_check_branch
      %7267 = sbr.rel (%p7265) target = $region88
    $region87: #{model_forward.5} parent=5 // pred_region
      %s7268 = ssub.s32 %s22, 2
      // Predicated region
      $region89: #{model_forward.5} parent=87 // pred_check
        %p7269 = pneg %p355
      $region90: #{model_forward.5} parent=87 // pred_check_branch
        %7271 = sbr.rel (%p7269) target = $region92
      $region91: #{model_forward.5} parent=87 // pred_region
        %p7272 = scmp.lt.s32.totalorder %s28, 3
        %s7273 = scalar_select %p7272, %s28, 3
        %s7274 = scalar_lea.vmem %s14, %s7273
      $region92: #{model_forward.5} parent=87 // pred_fallthru
        _
      // Predicated region
      $region93: #{model_forward.5} parent=87 // pred_check
        %p7275 = pneg %p381
      $region94: #{model_forward.5} parent=87 // pred_check_branch
        %7277 = sbr.rel (%p7275) target = $region96
      $region95: #{model_forward.5} parent=87 // pred_region
        %p7278 = scmp.lt.s32.totalorder %s28, 3
        %s7279 = scalar_select %p7278, %s28, 3
        %s7280 = scalar_lea.vmem %s15, %s7279
      $region96: #{model_forward.5} parent=87 // pred_fallthru
        _
    $region88: #{model_forward.5} parent=5 // pred_fallthru
      _
  $region6: #{model_forward.5} parent=0 // loop_footer
    %s26 = sadd.s32 1, %s22
  $region7: #{model_forward.5} parent=0 // loop_footer_branch
    %21 = sbr.rel target = $region3
  $region8: #{model_forward.5} parent=0 // loop_exit
    _

</llo_original>
